<compile_context>
chip_gen: v7x
topology: tpu7x:2x2x1
jax: 0.10.0
libtpu: 0.0.40
codegen_flags: <defaults>
</compile_context>

<pallas_src>
import functools

import jax
import jax.numpy as jnp
from jax import lax
from jax.experimental import pallas as pl
from jax.experimental.pallas import tpu as pltpu

BN_EPS = 1e-5
# float32 keeps the reference comparison tight; set to jnp.bfloat16 on v6e/v7x
# for full-rate MXU and half the HBM traffic (loosen the tolerance accordingly).
MATMUL_DTYPE = jnp.float32


# ---------------------------------------------------------------------------
# Tiling helper: largest row tile that divides M, preferring >= 2 grid steps
# (keeps both v7x TensorCores busy); avoids the pad+slice HBM pass of v1.
# ---------------------------------------------------------------------------
def _choose_m_tile(M):
    cands = (1024, 512, 256, 128, 64, 32, 16, 8)
    for tm in cands:
        if M % tm == 0 and M // tm >= 2:
            return tm, M
    for tm in cands:
        if M % tm == 0:
            return tm, M
    mp = ((M + 127) // 128) * 128          # fallback (not hit in this config)
    return 128, mp


# ---------------------------------------------------------------------------
# Kernel 1: fused BatchNorm(affine) -> ReLU -> 1x1 conv (matmul)   [scale0]
# ---------------------------------------------------------------------------
def _bn_relu_mm_kernel(x_ref, s_ref, b_ref, w_ref, o_ref):
    y = jnp.maximum(x_ref[...] * s_ref[...] + b_ref[...], 0.0)
    o_ref[...] = jnp.dot(y.astype(MATMUL_DTYPE), w_ref[...],
                         preferred_element_type=jnp.float32)


def bn_relu_conv1x1(x2d, bn_scale, bn_bias, w):
    """out = relu(x * scale + bias) @ w.   x2d: (M, Cin), w: (Cin, Cout)."""
    M, cin = x2d.shape
    cout = w.shape[1]
    tm, mp = _choose_m_tile(M)
    xp = x2d if mp == M else jnp.pad(x2d, ((0, mp - M), (0, 0)))
    out = pl.pallas_call(
        _bn_relu_mm_kernel,
        out_shape=jax.ShapeDtypeStruct((mp, cout), jnp.float32),
        grid=(mp // tm,),
        in_specs=[
            pl.BlockSpec((tm, cin), lambda i: (i, 0)),
            pl.BlockSpec((1, cin), lambda i: (0, 0)),
            pl.BlockSpec((1, cin), lambda i: (0, 0)),
            pl.BlockSpec((cin, cout), lambda i: (0, 0)),
        ],
        out_specs=pl.BlockSpec((tm, cout), lambda i: (i, 0)),
        compiler_params=pltpu.CompilerParams(dimension_semantics=("parallel",)),
    )(xp, bn_scale.reshape(1, cin), bn_bias.reshape(1, cin),
      w.astype(MATMUL_DTYPE))
    return out if mp == M else out[:M]


# ---------------------------------------------------------------------------
# Kernel 2: scale_process = BN -> ReLU -> grouped 3x3 conv (groups=4), fused.
# Channels-interleaved (N, H*W, 4*bp) in and out; the grouped conv is nine
# block-diagonal (4bp x 4bp) tap matmuls.  The output layout is exactly what
# the compression kernel consumes, so no transpose pass is needed afterwards.
# ---------------------------------------------------------------------------
def _scale_process_kernel(z_ref, s_ref, b_ref, w_ref, o_ref, zp_ref):
    # z_ref : (1, H*W, C)   pre-BN activations (already include the +x_ residual)
    # s/b   : (1, C)        folded BN affine
    # w_ref : (9, C, C)     block-diagonal per-tap weights (tap = 3*dy + dx)
    # o_ref : (1, H*W, C)
    # zp_ref: (H+2, W+2, C) zero-padded post-activation scratch
    HW = z_ref.shape[1]
    C = z_ref.shape[2]
    H = zp_ref.shape[0] - 2
    W = zp_ref.shape[1] - 2

    z = jnp.maximum(z_ref[0] * s_ref[...] + b_ref[...], 0.0)      # (HW, C)

    # Zero only the one-pixel border (done every step so no assumption about
    # scratch/core assignment is needed), then one interior store.
    zrow = jnp.zeros((1, W + 2, C), jnp.float32)
    zcol = jnp.zeros((H + 2, 1, C), jnp.float32)
    zp_ref[pl.ds(0, 1), :, :] = zrow
    zp_ref[pl.ds(H + 1, 1), :, :] = zrow
    zp_ref[:, pl.ds(0, 1), :] = zcol
    zp_ref[:, pl.ds(W + 1, 1), :] = zcol
    zp_ref[pl.ds(1, H), pl.ds(1, W), :] = z.reshape(H, W, C)

    acc = jnp.zeros((HW, C), jnp.float32)
    for dy in range(3):
        for dx in range(3):
            win = zp_ref[pl.ds(dy, H), pl.ds(dx, W), :]            # (H, W, C)
            acc = acc + jnp.dot(win.reshape(HW, C).astype(MATMUL_DTYPE),
                                w_ref[3 * dy + dx],
                                preferred_element_type=jnp.float32)
    o_ref[0] = acc


def scale_process_fused(cat4, bn_scale, bn_bias, w_taps):
    # cat4: (N, H, W, C=4*bp);  w_taps: (9, C, C) block-diagonal tap weights.
    N, H, W, C = cat4.shape
    out = pl.pallas_call(
        _scale_process_kernel,
        out_shape=jax.ShapeDtypeStruct((N, H * W, C), jnp.float32),
        grid=(N,),
        in_specs=[
            pl.BlockSpec((1, H * W, C), lambda n: (n, 0, 0)),
            pl.BlockSpec((1, C), lambda n: (0, 0)),
            pl.BlockSpec((1, C), lambda n: (0, 0)),
            pl.BlockSpec((9, C, C), lambda n: (0, 0, 0)),
        ],
        out_specs=pl.BlockSpec((1, H * W, C), lambda n: (n, 0, 0)),
        scratch_shapes=[pltpu.VMEM((H + 2, W + 2, C), jnp.float32)],
        # TODO(synk): for large H*W, tile this grid over H with a 1-row halo to
        # bound VMEM (v7x has 64 MiB) and add pipeline depth; at these shapes
        # grid=(N,) already gives the 2 parallel steps v7x's two TCs need.
        compiler_params=pltpu.CompilerParams(dimension_semantics=("parallel",)),
    )(cat4.reshape(N, H * W, C),
      bn_scale.reshape(1, C), bn_bias.reshape(1, C),
      w_taps.astype(MATMUL_DTYPE))
    return out.reshape(N * H * W, C)


# ---------------------------------------------------------------------------
# Kernel 3: fused compression + shortcut:
#   out = relu(x_ *s0+b0) @ Wc[:bp] + relu(scale_out *s1+b1) @ Wc[bp:]
#         + relu(x *ss+sb) @ Ws
# == compression(cat([x_, scale_out])) + shortcut(x), with no concat and no
# separate shortcut pass over the M full-resolution rows.
# ---------------------------------------------------------------------------
def _compress_shortcut_kernel(x0_ref, so_ref, x_ref,
                              s0_ref, b0_ref, s1_ref, b1_ref, ss_ref, sb_ref,
                              w0_ref, w1_ref, ws_ref, o_ref):
    y0 = jnp.maximum(x0_ref[...] * s0_ref[...] + b0_ref[...], 0.0)
    y1 = jnp.maximum(so_ref[...] * s1_ref[...] + b1_ref[...], 0.0)
    ys = jnp.maximum(x_ref[...] * ss_ref[...] + sb_ref[...], 0.0)
    o_ref[...] = (
        jnp.dot(y0.astype(MATMUL_DTYPE), w0_ref[...],
                preferred_element_type=jnp.float32)
        + jnp.dot(y1.astype(MATMUL_DTYPE), w1_ref[...],
                  preferred_element_type=jnp.float32)
        + jnp.dot(ys.astype(MATMUL_DTYPE), ws_ref[...],
                  preferred_element_type=jnp.float32))


def compress_shortcut_fused(x0_2d, so_2d, x_2d, c_scale, c_bias, wc,
                            s_scale, s_bias, ws, bp):
    M, cin = x_2d.shape
    c4 = 4 * bp
    outp = wc.shape[1]
    tm, mp = _choose_m_tile(M)

    def _p(a):
        return a if mp == M else jnp.pad(a, ((0, mp - M), (0, 0)))

    out = pl.pallas_call(
        _compress_shortcut_kernel,
        out_shape=jax.ShapeDtypeStruct((mp, outp), jnp.float32),
        grid=(mp // tm,),
        in_specs=[
            pl.BlockSpec((tm, bp), lambda i: (i, 0)),
            pl.BlockSpec((tm, c4), lambda i: (i, 0)),
            pl.BlockSpec((tm, cin), lambda i: (i, 0)),
            pl.BlockSpec((1, bp), lambda i: (0, 0)),
            pl.BlockSpec((1, bp), lambda i: (0, 0)),
            pl.BlockSpec((1, c4), lambda i: (0, 0)),
            pl.BlockSpec((1, c4), lambda i: (0, 0)),
            pl.BlockSpec((1, cin), lambda i: (0, 0)),
            pl.BlockSpec((1, cin), lambda i: (0, 0)),
            pl.BlockSpec((bp, outp), lambda i: (0, 0)),
            pl.BlockSpec((c4, outp), lambda i: (0, 0)),
            pl.BlockSpec((cin, outp), lambda i: (0, 0)),
        ],
        out_specs=pl.BlockSpec((tm, outp), lambda i: (i, 0)),
        compiler_params=pltpu.CompilerParams(dimension_semantics=("parallel",)),
    )(_p(x0_2d), _p(so_2d), _p(x_2d),
      c_scale[:bp].reshape(1, bp), c_bias[:bp].reshape(1, bp),
      c_scale[bp:].reshape(1, c4), c_bias[bp:].reshape(1, c4),
      s_scale.reshape(1, cin), s_bias.reshape(1, cin),
      wc[:bp].astype(MATMUL_DTYPE), wc[bp:].astype(MATMUL_DTYPE),
      ws.astype(MATMUL_DTYPE))
    return out if mp == M else out[:M]


# ---------------------------------------------------------------------------
# Glue (plain JAX): pooling, bilinear upsample matrices, parameter setup
# ---------------------------------------------------------------------------
def avg_pool(x_nhwc, k, s, p):
    # PyTorch AvgPool2d default count_include_pad=True -> divisor is always k*k.
    summed = lax.reduce_window(
        x_nhwc, 0.0, lax.add,
        window_dimensions=(1, k, k, 1),
        window_strides=(1, s, s, 1),
        padding=((0, 0), (p, p), (p, p), (0, 0)))
    return summed / float(k * k)


def interp_matrix(in_len, out_len):
    # 1-D bilinear matrix matching F.interpolate(mode='bilinear', align_corners=False)
    scale = in_len / out_len
    i = jnp.arange(out_len)
    x = jnp.maximum((i + 0.5) * scale - 0.5, 0.0)
    x0 = jnp.clip(jnp.floor(x).astype(jnp.int32), 0, in_len - 1)
    x1 = jnp.minimum(x0 + 1, in_len - 1)
    w1 = x - x0.astype(jnp.float32)
    w0 = 1.0 - w1
    a = jnp.zeros((out_len, in_len), jnp.float32)
    return a.at[i, x0].add(w0).at[i, x1].add(w1)


def bilinear_upsample(x, H, W):
    # x: (N, h, w, C) -> (N, H, W, C); bilinear kernel is separable.
    _, h, w, _ = x.shape
    ah = interp_matrix(h, H)
    aw = interp_matrix(w, W)
    return jnp.einsum('Ha,Wb,nabc->nHWc', ah, aw, x,
                      precision=lax.Precision.HIGHEST)


def fold_bn(gamma, beta, mean, var):
    s = gamma * lax.rsqrt(var + BN_EPS)
    return s, beta - mean * s


def build_blockdiag_taps(w, bp):
    # w: (G, 3, 3, bp_in, bp_out) -> (9, G*bp, G*bp) block-diagonal per tap,
    # matching torch.cat channel order (group g occupies channels [g*bp,(g+1)*bp)).
    G = w.shape[0]
    Cc = G * bp
    taps = jnp.zeros((9, Cc, Cc), jnp.float32)
    for dy in range(3):
        for dx in range(3):
            for g in range(G):
                taps = taps.at[3 * dy + dx,
                               g * bp:(g + 1) * bp,
                               g * bp:(g + 1) * bp].set(w[g, dy, dx])
    return taps


def make_params(key, inplanes, bp, outp):
    def bn(k, c):
        k1, k2, k3, k4 = jax.random.split(k, 4)
        gamma = 1.0 + 0.1 * jax.random.normal(k1, (c,), jnp.float32)
        beta = 0.1 * jax.random.normal(k2, (c,), jnp.float32)
        mean = 0.1 * jax.random.normal(k3, (c,), jnp.float32)
        var = jax.random.uniform(k4, (c,), jnp.float32, 0.5, 1.5)
        return fold_bn(gamma, beta, mean, var)

    def conv(k, shape, fan_in):
        return ((2.0 / fan_in) ** 0.5) * jax.random.normal(k, shape, jnp.float32)

    keys = jax.random.split(key, 16)
    p = {}
    for i, name in enumerate(['scale0', 'scale1', 'scale2', 'scale3', 'scale4',
                              'shortcut']):
        p[name + '_bn'] = bn(keys[i], inplanes)
    p['process_bn'] = bn(keys[6], 4 * bp)
    p['compress_bn'] = bn(keys[7], 5 * bp)
    for i, name in enumerate(['scale0', 'scale1', 'scale2', 'scale3', 'scale4']):
        p[name + '_w'] = conv(keys[8 + i], (inplanes, bp), inplanes)
    p['process_w'] = conv(keys[13], (4, 3, 3, bp, bp), bp * 9)
    p['compress_w'] = conv(keys[14], (5 * bp, outp), 5 * bp)
    p['shortcut_w'] = conv(keys[15], (inplanes, outp), inplanes)
    return p


# ---------------------------------------------------------------------------
# PAPPM forward (Pallas kernels on the hot path)
# ---------------------------------------------------------------------------
def pappm_forward(x_nchw, params, bp):
    N, C, H, W = x_nchw.shape
    x = jnp.transpose(x_nchw, (0, 2, 3, 1))             # (N, H, W, C)
    x_flat = x.reshape(N * H * W, C)

    # scale0: full-resolution BN -> ReLU -> 1x1 conv (Pallas)
    s0, b0 = params['scale0_bn']
    x_2d = bn_relu_conv1x1(x_flat, s0, b0, params['scale0_w'])    # (M, bp)
    x_ = x_2d.reshape(N, H, W, bp)

    # pooled branches: tiny (<= 8x8) spatial extents -> plain XLA, one fused
    # elementwise+matmul each instead of 4 near-empty pallas_call launches.
    pooled = [
        avg_pool(x, 5, 2, 2),
        avg_pool(x, 9, 4, 4),
        avg_pool(x, 17, 8, 8),
        jnp.mean(x, axis=(1, 2), keepdims=True),        # AdaptiveAvgPool2d((1,1))
    ]
    ups = []
    for i, px in enumerate(pooled):
        name = 'scale%d' % (i + 1)
        s, b = params[name + '_bn']
        y = jnp.einsum('nhwc,cd->nhwd', jnp.maximum(px * s + b, 0.0),
                       params[name + '_w'], precision=lax.Precision.HIGHEST)
        if px.shape[1] == 1 and px.shape[2] == 1:
            up = jnp.broadcast_to(y, (N, H, W, bp))     # bilinear from 1x1 == broadcast
        else:
            up = bilinear_upsample(y, H, W)
        ups.append(up + x_)                             # XLA fuses add into concat
    cat4 = jnp.concatenate(ups, axis=-1)                # (N, H, W, 4*bp) interleaved

    # scale_process (Pallas): BN -> ReLU -> grouped 3x3 conv, interleaved layout.
    ps, pb = params['process_bn']
    w_taps = build_blockdiag_taps(params['process_w'], bp)
    so_2d = scale_process_fused(cat4, ps, pb, w_taps)   # (M, 4*bp)

    # fused compression + shortcut (Pallas): no concat, no extra pass.
    cs, cb = params['compress_bn']
    ss, sb = params['shortcut_bn']
    out2d = compress_shortcut_fused(x_2d, so_2d, x_flat, cs, cb,
                                    params['compress_w'], ss, sb,
                                    params['shortcut_w'], bp)
    out = out2d.reshape(N, H, W, -1)
    return jnp.transpose(out, (0, 3, 1, 2))             # back to NCHW


# ---------------------------------------------------------------------------
# Pure-JAX reference (same math, no Pallas) for a sanity check
# ---------------------------------------------------------------------------
def pappm_reference(x_nchw, params, bp):
    N, C, H, W = x_nchw.shape
    x = jnp.transpose(x_nchw, (0, 2, 3, 1))

    def bn_relu(v, name):
        s, b = params[name + '_bn']
        return jnp.maximum(v * s + b, 0.0)

    def conv1x1(v, w):
        return jnp.einsum('nhwc,cd->nhwd', v, w, precision=lax.Precision.HIGHEST)

    x_ = conv1x1(bn_relu(x, 'scale0'), params['scale0_w'])
    pooled = [avg_pool(x, 5, 2, 2), avg_pool(x, 9, 4, 4), avg_pool(x, 17, 8, 8),
              jnp.mean(x, axis=(1, 2), keepdims=True)]
    ups = []
    for i, px in enumerate(pooled):
        name = 'scale%d' % (i + 1)
        y = conv1x1(bn_relu(px, name), params[name + '_w'])
        if y.shape[1] == 1:
            up = jnp.broadcast_to(y, (N, H, W, bp))
        else:
            up = bilinear_upsample(y, H, W)
        ups.append(up + x_)
    cat4 = jnp.concatenate(ups, axis=-1)
    z = bn_relu(cat4, 'process')
    w = params['process_w']                              # (g, ky, kx, in, out)
    w_hwio = jnp.transpose(w, (1, 2, 3, 0, 4)).reshape(3, 3, bp, 4 * bp)
    so = lax.conv_general_dilated(
        z, w_hwio, window_strides=(1, 1), padding=((1, 1), (1, 1)),
        dimension_numbers=('NHWC', 'HWIO', 'NHWC'), feature_group_count=4,
        precision=lax.Precision.HIGHEST)
    cat5 = jnp.concatenate([x_, so], axis=-1)
    comp = conv1x1(bn_relu(cat5, 'compress'), params['compress_w'])
    short = conv1x1(bn_relu(x, 'shortcut'), params['shortcut_w'])
    return jnp.transpose(comp + short, (0, 3, 1, 2))


if __name__ == "__main__":
    key = jax.random.PRNGKey(0)
    kx, kp = jax.random.split(key)
    N, C, H, W = 2, 16, 16, 16        # inplanes=16
    bp, outp = 8, 16                  # branch_planes=8, outplanes=16
    x = jax.random.normal(kx, (N, C, H, W), jnp.float32)
    params = make_params(kp, C, bp, outp)

    fwd = jax.jit(functools.partial(pappm_forward, bp=bp))
    out = jax.block_until_ready(fwd(x, params))
    ref = jax.block_until_ready(pappm_reference(x, params, bp))
    assert out.shape == (N, outp, H, W), out.shape
    err = float(jnp.max(jnp.abs(out - ref)))
    if err > 5e-2:
        raise AssertionError("mismatch vs pure-JAX reference: %g" % err)
    print("KERNEL_OK")
</pallas_src>

<mosaic_0001>
module attributes {stable_mosaic.version = 11 : i64} {
  func.func private @main(%arg0: i32) attributes {dimension_semantics = [#tpu.dimension_semantics<core_parallel>], iteration_bounds = array<i64: 2>, tpu.core_type = #tpu.core_type<sc_scalar_subcore>, window_params = []} {
    return
  }
}

module attributes {stable_mosaic.version = 11 : i64} {
  func.func private @main(%arg0: i32) attributes {dimension_semantics = [#tpu.dimension_semantics<core_parallel>], iteration_bounds = array<i64: 2>, tpu.core_type = #tpu.core_type<sc_scalar_subcore>, window_params = []} {
    return
  }
}

module attributes {stable_mosaic.version = 11 : i64} {
  func.func @_bn_relu_mm_kernel(%arg0: i32, %arg1: memref<256x16xf32, #tpu.memory_space<vmem>>, %arg2: memref<1x16xf32, #tpu.memory_space<vmem>>, %arg3: memref<1x16xf32, #tpu.memory_space<vmem>>, %arg4: memref<16x8xf32, #tpu.memory_space<vmem>>, %arg5: memref<256x8xf32, #tpu.memory_space<vmem>>) attributes {dimension_semantics = [#tpu.dimension_semantics<parallel>], iteration_bounds = array<i64: 2>, scalar_prefetch = 0 : i64, scratch_operands = 0 : i64, tpu.core_type = #tpu.core_type<tc>, window_params = [{transform_indices = @transform_0, window_bounds = array<i64: 256, 16>}, {pipeline_mode = #tpu.pipeline_mode<synchronous>, transform_indices = @transform_1, window_bounds = array<i64: 1, 16>}, {pipeline_mode = #tpu.pipeline_mode<synchronous>, transform_indices = @transform_2, window_bounds = array<i64: 1, 16>}, {pipeline_mode = #tpu.pipeline_mode<synchronous>, transform_indices = @transform_3, window_bounds = array<i64: 16, 8>}, {transform_indices = @transform_4, window_bounds = array<i64: 256, 8>}]} {
    %c0 = arith.constant 0 : index
    %c0_0 = arith.constant 0 : index
    %0 = vector.load %arg1[%c0, %c0_0] : memref<256x16xf32, #tpu.memory_space<vmem>>, vector<256x16xf32>
    %c0_1 = arith.constant 0 : index
    %c0_2 = arith.constant 0 : index
    %1 = vector.load %arg2[%c0_1, %c0_2] : memref<1x16xf32, #tpu.memory_space<vmem>>, vector<1x16xf32>
    %2 = vector.broadcast %1 : vector<1x16xf32> to vector<256x16xf32>
    %3 = arith.mulf %0, %2 : vector<256x16xf32>
    %c0_3 = arith.constant 0 : index
    %c0_4 = arith.constant 0 : index
    %4 = vector.load %arg3[%c0_3, %c0_4] : memref<1x16xf32, #tpu.memory_space<vmem>>, vector<1x16xf32>
    %5 = vector.broadcast %4 : vector<1x16xf32> to vector<256x16xf32>
    %6 = arith.addf %3, %5 : vector<256x16xf32>
    %cst = arith.constant 0.000000e+00 : f32
    %7 = vector.broadcast %cst : f32 to vector<256x16xf32>
    %8 = arith.maximumf %6, %7 : vector<256x16xf32>
    %c0_5 = arith.constant 0 : index
    %c0_6 = arith.constant 0 : index
    %9 = vector.load %arg4[%c0_5, %c0_6] : memref<16x8xf32, #tpu.memory_space<vmem>>, vector<16x8xf32>
    %cst_7 = arith.constant dense<0.000000e+00> : vector<256x8xf32>
    %10 = tpu.matmul %8, %9, %cst_7 {dimension_numbers = #tpu.dot_dimension_numbers<[1], [0], [0], [1], [0, 0, 1, 1], [], []>} : vector<256x16xf32>, vector<16x8xf32>, vector<256x8xf32> -> vector<256x8xf32>
    %c0_8 = arith.constant 0 : index
    %c0_9 = arith.constant 0 : index
    %11 = vector.load %arg5[%c0_8, %c0_9] : memref<256x8xf32, #tpu.memory_space<vmem>>, vector<256x8xf32>
    tpu.vector_store %arg5[%c0_8, %c0_9], %10 {strides = array<i32>} : memref<256x8xf32, #tpu.memory_space<vmem>>, vector<256x8xf32>,
    return
  }
  func.func @transform_0(%arg0: i32) -> (i32, i32) {
    %c0_i32 = arith.constant 0 : i32
    %c0_i32_0 = arith.constant 0 : i32
    return %arg0, %c0_i32 : i32, i32
  }
  func.func @transform_1(%arg0: i32) -> (i32, i32) {
    %c0_i32 = arith.constant 0 : i32
    %c0_i32_0 = arith.constant 0 : i32
    %c0_i32_1 = arith.constant 0 : i32
    return %c0_i32, %c0_i32_0 : i32, i32
  }
  func.func @transform_2(%arg0: i32) -> (i32, i32) {
    %c0_i32 = arith.constant 0 : i32
    %c0_i32_0 = arith.constant 0 : i32
    %c0_i32_1 = arith.constant 0 : i32
    return %c0_i32, %c0_i32_0 : i32, i32
  }
  func.func @transform_3(%arg0: i32) -> (i32, i32) {
    %c0_i32 = arith.constant 0 : i32
    %c0_i32_0 = arith.constant 0 : i32
    %c0_i32_1 = arith.constant 0 : i32
    return %c0_i32, %c0_i32_0 : i32, i32
  }
  func.func @transform_4(%arg0: i32) -> (i32, i32) {
    %c0_i32 = arith.constant 0 : i32
    %c0_i32_0 = arith.constant 0 : i32
    return %arg0, %c0_i32 : i32, i32
  }
}

module attributes {stable_mosaic.version = 11 : i64} {
  func.func @_scale_process_kernel(%arg0: i32, %arg1: memref<1x256x32xf32, #tpu.memory_space<vmem>>, %arg2: memref<1x32xf32, #tpu.memory_space<vmem>>, %arg3: memref<1x32xf32, #tpu.memory_space<vmem>>, %arg4: memref<9x32x32xf32, #tpu.memory_space<vmem>>, %arg5: memref<1x256x32xf32, #tpu.memory_space<vmem>>, %arg6: memref<18x18x32xf32, #tpu.memory_space<vmem>>) attributes {dimension_semantics = [#tpu.dimension_semantics<parallel>], iteration_bounds = array<i64: 2>, scalar_prefetch = 0 : i64, scratch_operands = 1 : i64, tpu.core_type = #tpu.core_type<tc>, window_params = [{transform_indices = @transform_0, window_bounds = array<i64: 1, 256, 32>}, {pipeline_mode = #tpu.pipeline_mode<synchronous>, transform_indices = @transform_1, window_bounds = array<i64: 1, 32>}, {pipeline_mode = #tpu.pipeline_mode<synchronous>, transform_indices = @transform_2, window_bounds = array<i64: 1, 32>}, {pipeline_mode = #tpu.pipeline_mode<synchronous>, transform_indices = @transform_3, window_bounds = array<i64: 9, 32, 32>}, {transform_indices = @transform_4, window_bounds = array<i64: 1, 256, 32>}]} {
    %c0 = arith.constant 0 : index
    %c0_0 = arith.constant 0 : index
    %c0_1 = arith.constant 0 : index
    %0 = vector.load %arg1[%c0, %c0_0, %c0_1] : memref<1x256x32xf32, #tpu.memory_space<vmem>>, vector<1x256x32xf32>
    %1 = vector.shape_cast %0 : vector<1x256x32xf32> to vector<256x32xf32>
    %c0_2 = arith.constant 0 : index
    %c0_3 = arith.constant 0 : index
    %2 = vector.load %arg2[%c0_2, %c0_3] : memref<1x32xf32, #tpu.memory_space<vmem>>, vector<1x32xf32>
    %3 = vector.broadcast %2 : vector<1x32xf32> to vector<256x32xf32>
    %4 = arith.mulf %1, %3 : vector<256x32xf32>
    %c0_4 = arith.constant 0 : index
    %c0_5 = arith.constant 0 : index
    %5 = vector.load %arg3[%c0_4, %c0_5] : memref<1x32xf32, #tpu.memory_space<vmem>>, vector<1x32xf32>
    %6 = vector.broadcast %5 : vector<1x32xf32> to vector<256x32xf32>
    %7 = arith.addf %4, %6 : vector<256x32xf32>
    %cst = arith.constant 0.000000e+00 : f32
    %8 = vector.broadcast %cst : f32 to vector<256x32xf32>
    %9 = arith.maximumf %7, %8 : vector<256x32xf32>
    %cst_6 = arith.constant 0.000000e+00 : f32
    %10 = vector.broadcast %cst_6 : f32 to vector<1x18x32xf32>
    %cst_7 = arith.constant 0.000000e+00 : f32
    %11 = vector.broadcast %cst_7 : f32 to vector<18x1x32xf32>
    %c0_8 = arith.constant 0 : index
    %c0_9 = arith.constant 0 : index
    %c0_10 = arith.constant 0 : index
    %12 = vector.load %arg6[%c0_8, %c0_9, %c0_10] : memref<18x18x32xf32, #tpu.memory_space<vmem>>, vector<1x18x32xf32>
    tpu.vector_store %arg6[%c0_8, %c0_9, %c0_10], %10 {strides = array<i32>} : memref<18x18x32xf32, #tpu.memory_space<vmem>>, vector<1x18x32xf32>,
    %c17 = arith.constant 17 : index
    %c0_11 = arith.constant 0 : index
    %c0_12 = arith.constant 0 : index
    %13 = vector.load %arg6[%c17, %c0_11, %c0_12] : memref<18x18x32xf32, #tpu.memory_space<vmem>>, vector<1x18x32xf32>
    tpu.vector_store %arg6[%c17, %c0_11, %c0_12], %10 {strides = array<i32>} : memref<18x18x32xf32, #tpu.memory_space<vmem>>, vector<1x18x32xf32>,
    %c0_13 = arith.constant 0 : index
    %c0_14 = arith.constant 0 : index
    %c0_15 = arith.constant 0 : index
    %14 = vector.load %arg6[%c0_13, %c0_14, %c0_15] : memref<18x18x32xf32, #tpu.memory_space<vmem>>, vector<18x1x32xf32>
    tpu.vector_store %arg6[%c0_13, %c0_14, %c0_15], %11 {strides = array<i32>} : memref<18x18x32xf32, #tpu.memory_space<vmem>>, vector<18x1x32xf32>,
    %c0_16 = arith.constant 0 : index
    %c17_17 = arith.constant 17 : index
    %c0_18 = arith.constant 0 : index
    %15 = vector.load %arg6[%c0_16, %c17_17, %c0_18] : memref<18x18x32xf32, #tpu.memory_space<vmem>>, vector<18x1x32xf32>
    tpu.vector_store %arg6[%c0_16, %c17_17, %c0_18], %11 {strides = array<i32>} : memref<18x18x32xf32, #tpu.memory_space<vmem>>, vector<18x1x32xf32>,
    %16 = vector.shape_cast %9 : vector<256x32xf32> to vector<16x16x32xf32>
    %c1 = arith.constant 1 : index
    %c1_19 = arith.constant 1 : index
    %c0_20 = arith.constant 0 : index
    %17 = vector.load %arg6[%c1, %c1_19, %c0_20] : memref<18x18x32xf32, #tpu.memory_space<vmem>>, vector<16x16x32xf32>
    tpu.vector_store %arg6[%c1, %c1_19, %c0_20], %16 {strides = array<i32>} : memref<18x18x32xf32, #tpu.memory_space<vmem>>, vector<16x16x32xf32>,
    %cst_21 = arith.constant 0.000000e+00 : f32
    %18 = vector.broadcast %cst_21 : f32 to vector<256x32xf32>
    %c0_22 = arith.constant 0 : index
    %c0_23 = arith.constant 0 : index
    %c0_24 = arith.constant 0 : index
    %19 = vector.load %arg6[%c0_22, %c0_23, %c0_24] : memref<18x18x32xf32, #tpu.memory_space<vmem>>, vector<16x16x32xf32>
    %20 = vector.shape_cast %19 : vector<16x16x32xf32> to vector<256x32xf32>
    %c0_25 = arith.constant 0 : index
    %c0_26 = arith.constant 0 : index
    %c0_27 = arith.constant 0 : index
    %21 = vector.load %arg4[%c0_25, %c0_26, %c0_27] : memref<9x32x32xf32, #tpu.memory_space<vmem>>, vector<1x32x32xf32>
    %22 = vector.shape_cast %21 : vector<1x32x32xf32> to vector<32x32xf32>
    %cst_28 = arith.constant dense<0.000000e+00> : vector<256x32xf32>
    %23 = tpu.matmul %20, %22, %cst_28 {dimension_numbers = #tpu.dot_dimension_numbers<[1], [0], [0], [1], [0, 0, 1, 1], [], []>} : vector<256x32xf32>, vector<32x32xf32>, vector<256x32xf32> -> vector<256x32xf32>
    %24 = arith.addf %18, %23 : vector<256x32xf32>
    %c0_29 = arith.constant 0 : index
    %c1_30 = arith.constant 1 : index
    %c0_31 = arith.constant 0 : index
    %25 = vector.load %arg6[%c0_29, %c1_30, %c0_31] : memref<18x18x32xf32, #tpu.memory_space<vmem>>, vector<16x16x32xf32>
    %26 = vector.shape_cast %25 : vector<16x16x32xf32> to vector<256x32xf32>
    %c1_32 = arith.constant 1 : index
    %c0_33 = arith.constant 0 : index
    %c0_34 = arith.constant 0 : index
    %27 = vector.load %arg4[%c1_32, %c0_33, %c0_34] : memref<9x32x32xf32, #tpu.memory_space<vmem>>, vector<1x32x32xf32>
    %28 = vector.shape_cast %27 : vector<1x32x32xf32> to vector<32x32xf32>
    %cst_35 = arith.constant dense<0.000000e+00> : vector<256x32xf32>
    %29 = tpu.matmul %26, %28, %cst_35 {dimension_numbers = #tpu.dot_dimension_numbers<[1], [0], [0], [1], [0, 0, 1, 1], [], []>} : vector<256x32xf32>, vector<32x32xf32>, vector<256x32xf32> -> vector<256x32xf32>
    %30 = arith.addf %24, %29 : vector<256x32xf32>
    %c0_36 = arith.constant 0 : index
    %c2 = arith.constant 2 : index
    %c0_37 = arith.constant 0 : index
    %31 = vector.load %arg6[%c0_36, %c2, %c0_37] : memref<18x18x32xf32, #tpu.memory_space<vmem>>, vector<16x16x32xf32>
    %32 = vector.shape_cast %31 : vector<16x16x32xf32> to vector<256x32xf32>
    %c2_38 = arith.constant 2 : index
    %c0_39 = arith.constant 0 : index
    %c0_40 = arith.constant 0 : index
    %33 = vector.load %arg4[%c2_38, %c0_39, %c0_40] : memref<9x32x32xf32, #tpu.memory_space<vmem>>, vector<1x32x32xf32>
    %34 = vector.shape_cast %33 : vector<1x32x32xf32> to vector<32x32xf32>
    %cst_41 = arith.constant dense<0.000000e+00> : vector<256x32xf32>
    %35 = tpu.matmul %32, %34, %cst_41 {dimension_numbers = #tpu.dot_dimension_numbers<[1], [0], [0], [1], [0, 0, 1, 1], [], []>} : vector<256x32xf32>, vector<32x32xf32>, vector<256x32xf32> -> vector<256x32xf32>
    %36 = arith.addf %30, %35 : vector<256x32xf32>
    %c1_42 = arith.constant 1 : index
    %c0_43 = arith.constant 0 : index
    %c0_44 = arith.constant 0 : index
    %37 = vector.load %arg6[%c1_42, %c0_43, %c0_44] : memref<18x18x32xf32, #tpu.memory_space<vmem>>, vector<16x16x32xf32>
    %38 = vector.shape_cast %37 : vector<16x16x32xf32> to vector<256x32xf32>
    %c3 = arith.constant 3 : index
    %c0_45 = arith.constant 0 : index
    %c0_46 = arith.constant 0 : index
    %39 = vector.load %arg4[%c3, %c0_45, %c0_46] : memref<9x32x32xf32, #tpu.memory_space<vmem>>, vector<1x32x32xf32>
    %40 = vector.shape_cast %39 : vector<1x32x32xf32> to vector<32x32xf32>
    %cst_47 = arith.constant dense<0.000000e+00> : vector<256x32xf32>
    %41 = tpu.matmul %38, %40, %cst_47 {dimension_numbers = #tpu.dot_dimension_numbers<[1], [0], [0], [1], [0, 0, 1, 1], [], []>} : vector<256x32xf32>, vector<32x32xf32>, vector<256x32xf32> -> vector<256x32xf32>
    %42 = arith.addf %36, %41 : vector<256x32xf32>
    %c1_48 = arith.constant 1 : index
    %c1_49 = arith.constant 1 : index
    %c0_50 = arith.constant 0 : index
    %43 = vector.load %arg6[%c1_48, %c1_49, %c0_50] : memref<18x18x32xf32, #tpu.memory_space<vmem>>, vector<16x16x32xf32>
    %44 = vector.shape_cast %43 : vector<16x16x32xf32> to vector<256x32xf32>
    %c4 = arith.constant 4 : index
    %c0_51 = arith.constant 0 : index
    %c0_52 = arith.constant 0 : index
    %45 = vector.load %arg4[%c4, %c0_51, %c0_52] : memref<9x32x32xf32, #tpu.memory_space<vmem>>, vector<1x32x32xf32>
    %46 = vector.shape_cast %45 : vector<1x32x32xf32> to vector<32x32xf32>
    %cst_53 = arith.constant dense<0.000000e+00> : vector<256x32xf32>
    %47 = tpu.matmul %44, %46, %cst_53 {dimension_numbers = #tpu.dot_dimension_numbers<[1], [0], [0], [1], [0, 0, 1, 1], [], []>} : vector<256x32xf32>, vector<32x32xf32>, vector<256x32xf32> -> vector<256x32xf32>
    %48 = arith.addf %42, %47 : vector<256x32xf32>
    %c1_54 = arith.constant 1 : index
    %c2_55 = arith.constant 2 : index
    %c0_56 = arith.constant 0 : index
    %49 = vector.load %arg6[%c1_54, %c2_55, %c0_56] : memref<18x18x32xf32, #tpu.memory_space<vmem>>, vector<16x16x32xf32>
    %50 = vector.shape_cast %49 : vector<16x16x32xf32> to vector<256x32xf32>
    %c5 = arith.constant 5 : index
    %c0_57 = arith.constant 0 : index
    %c0_58 = arith.constant 0 : index
    %51 = vector.load %arg4[%c5, %c0_57, %c0_58] : memref<9x32x32xf32, #tpu.memory_space<vmem>>, vector<1x32x32xf32>
    %52 = vector.shape_cast %51 : vector<1x32x32xf32> to vector<32x32xf32>
    %cst_59 = arith.constant dense<0.000000e+00> : vector<256x32xf32>
    %53 = tpu.matmul %50, %52, %cst_59 {dimension_numbers = #tpu.dot_dimension_numbers<[1], [0], [0], [1], [0, 0, 1, 1], [], []>} : vector<256x32xf32>, vector<32x32xf32>, vector<256x32xf32> -> vector<256x32xf32>
    %54 = arith.addf %48, %53 : vector<256x32xf32>
    %c2_60 = arith.constant 2 : index
    %c0_61 = arith.constant 0 : index
    %c0_62 = arith.constant 0 : index
    %55 = vector.load %arg6[%c2_60, %c0_61, %c0_62] : memref<18x18x32xf32, #tpu.memory_space<vmem>>, vector<16x16x32xf32>
    %56 = vector.shape_cast %55 : vector<16x16x32xf32> to vector<256x32xf32>
    %c6 = arith.constant 6 : index
    %c0_63 = arith.constant 0 : index
    %c0_64 = arith.constant 0 : index
    %57 = vector.load %arg4[%c6, %c0_63, %c0_64] : memref<9x32x32xf32, #tpu.memory_space<vmem>>, vector<1x32x32xf32>
    %58 = vector.shape_cast %57 : vector<1x32x32xf32> to vector<32x32xf32>
    %cst_65 = arith.constant dense<0.000000e+00> : vector<256x32xf32>
    %59 = tpu.matmul %56, %58, %cst_65 {dimension_numbers = #tpu.dot_dimension_numbers<[1], [0], [0], [1], [0, 0, 1, 1], [], []>} : vector<256x32xf32>, vector<32x32xf32>, vector<256x32xf32> -> vector<256x32xf32>
    %60 = arith.addf %54, %59 : vector<256x32xf32>
    %c2_66 = arith.constant 2 : index
    %c1_67 = arith.constant 1 : index
    %c0_68 = arith.constant 0 : index
    %61 = vector.load %arg6[%c2_66, %c1_67, %c0_68] : memref<18x18x32xf32, #tpu.memory_space<vmem>>, vector<16x16x32xf32>
    %62 = vector.shape_cast %61 : vector<16x16x32xf32> to vector<256x32xf32>
    %c7 = arith.constant 7 : index
    %c0_69 = arith.constant 0 : index
    %c0_70 = arith.constant 0 : index
    %63 = vector.load %arg4[%c7, %c0_69, %c0_70] : memref<9x32x32xf32, #tpu.memory_space<vmem>>, vector<1x32x32xf32>
    %64 = vector.shape_cast %63 : vector<1x32x32xf32> to vector<32x32xf32>
    %cst_71 = arith.constant dense<0.000000e+00> : vector<256x32xf32>
    %65 = tpu.matmul %62, %64, %cst_71 {dimension_numbers = #tpu.dot_dimension_numbers<[1], [0], [0], [1], [0, 0, 1, 1], [], []>} : vector<256x32xf32>, vector<32x32xf32>, vector<256x32xf32> -> vector<256x32xf32>
    %66 = arith.addf %60, %65 : vector<256x32xf32>
    %c2_72 = arith.constant 2 : index
    %c2_73 = arith.constant 2 : index
    %c0_74 = arith.constant 0 : index
    %67 = vector.load %arg6[%c2_72, %c2_73, %c0_74] : memref<18x18x32xf32, #tpu.memory_space<vmem>>, vector<16x16x32xf32>
    %68 = vector.shape_cast %67 : vector<16x16x32xf32> to vector<256x32xf32>
    %c8 = arith.constant 8 : index
    %c0_75 = arith.constant 0 : index
    %c0_76 = arith.constant 0 : index
    %69 = vector.load %arg4[%c8, %c0_75, %c0_76] : memref<9x32x32xf32, #tpu.memory_space<vmem>>, vector<1x32x32xf32>
    %70 = vector.shape_cast %69 : vector<1x32x32xf32> to vector<32x32xf32>
    %cst_77 = arith.constant dense<0.000000e+00> : vector<256x32xf32>
    %71 = tpu.matmul %68, %70, %cst_77 {dimension_numbers = #tpu.dot_dimension_numbers<[1], [0], [0], [1], [0, 0, 1, 1], [], []>} : vector<256x32xf32>, vector<32x32xf32>, vector<256x32xf32> -> vector<256x32xf32>
    %72 = arith.addf %66, %71 : vector<256x32xf32>
    %c0_78 = arith.constant 0 : index
    %c0_79 = arith.constant 0 : index
    %c0_80 = arith.constant 0 : index
    %73 = vector.load %arg5[%c0_78, %c0_79, %c0_80] : memref<1x256x32xf32, #tpu.memory_space<vmem>>, vector<1x256x32xf32>
    %74 = vector.shape_cast %73 : vector<1x256x32xf32> to vector<256x32xf32>
    %75 = vector.shape_cast %72 : vector<256x32xf32> to vector<1x256x32xf32>
    tpu.vector_store %arg5[%c0_78, %c0_79, %c0_80], %75 {strides = array<i32>} : memref<1x256x32xf32, #tpu.memory_space<vmem>>, vector<1x256x32xf32>,
    return
  }
  func.func @transform_0(%arg0: i32) -> (i32, i32, i32) {
    %c0_i32 = arith.constant 0 : i32
    %c0_i32_0 = arith.constant 0 : i32
    %c0_i32_1 = arith.constant 0 : i32
    return %arg0, %c0_i32, %c0_i32_0 : i32, i32, i32
  }
  func.func @transform_1(%arg0: i32) -> (i32, i32) {
    %c0_i32 = arith.constant 0 : i32
    %c0_i32_0 = arith.constant 0 : i32
    %c0_i32_1 = arith.constant 0 : i32
    return %c0_i32, %c0_i32_0 : i32, i32
  }
  func.func @transform_2(%arg0: i32) -> (i32, i32) {
    %c0_i32 = arith.constant 0 : i32
    %c0_i32_0 = arith.constant 0 : i32
    %c0_i32_1 = arith.constant 0 : i32
    return %c0_i32, %c0_i32_0 : i32, i32
  }
  func.func @transform_3(%arg0: i32) -> (i32, i32, i32) {
    %c0_i32 = arith.constant 0 : i32
    %c0_i32_0 = arith.constant 0 : i32
    %c0_i32_1 = arith.constant 0 : i32
    %c0_i32_2 = arith.constant 0 : i32
    return %c0_i32, %c0_i32_0, %c0_i32_1 : i32, i32, i32
  }
  func.func @transform_4(%arg0: i32) -> (i32, i32, i32) {
    %c0_i32 = arith.constant 0 : i32
    %c0_i32_0 = arith.constant 0 : i32
    %c0_i32_1 = arith.constant 0 : i32
    return %arg0, %c0_i32, %c0_i32_0 : i32, i32, i32
  }
}

module attributes {stable_mosaic.version = 11 : i64} {
  func.func @_compress_shortcut_kernel(%arg0: i32, %arg1: memref<256x8xf32, #tpu.memory_space<vmem>>, %arg2: memref<256x32xf32, #tpu.memory_space<vmem>>, %arg3: memref<256x16xf32, #tpu.memory_space<vmem>>, %arg4: memref<1x8xf32, #tpu.memory_space<vmem>>, %arg5: memref<1x8xf32, #tpu.memory_space<vmem>>, %arg6: memref<1x32xf32, #tpu.memory_space<vmem>>, %arg7: memref<1x32xf32, #tpu.memory_space<vmem>>, %arg8: memref<1x16xf32, #tpu.memory_space<vmem>>, %arg9: memref<1x16xf32, #tpu.memory_space<vmem>>, %arg10: memref<8x16xf32, #tpu.memory_space<vmem>>, %arg11: memref<32x16xf32, #tpu.memory_space<vmem>>, %arg12: memref<16x16xf32, #tpu.memory_space<vmem>>, %arg13: memref<256x16xf32, #tpu.memory_space<vmem>>) attributes {dimension_semantics = [#tpu.dimension_semantics<parallel>], iteration_bounds = array<i64: 2>, scalar_prefetch = 0 : i64, scratch_operands = 0 : i64, tpu.core_type = #tpu.core_type<tc>, window_params = [{transform_indices = @transform_0, window_bounds = array<i64: 256, 8>}, {transform_indices = @transform_1, window_bounds = array<i64: 256, 32>}, {transform_indices = @transform_2, window_bounds = array<i64: 256, 16>}, {pipeline_mode = #tpu.pipeline_mode<synchronous>, transform_indices = @transform_3, window_bounds = array<i64: 1, 8>}, {pipeline_mode = #tpu.pipeline_mode<synchronous>, transform_indices = @transform_4, window_bounds = array<i64: 1, 8>}, {pipeline_mode = #tpu.pipeline_mode<synchronous>, transform_indices = @transform_5, window_bounds = array<i64: 1, 32>}, {pipeline_mode = #tpu.pipeline_mode<synchronous>, transform_indices = @transform_6, window_bounds = array<i64: 1, 32>}, {pipeline_mode = #tpu.pipeline_mode<synchronous>, transform_indices = @transform_7, window_bounds = array<i64: 1, 16>}, {pipeline_mode = #tpu.pipeline_mode<synchronous>, transform_indices = @transform_8, window_bounds = array<i64: 1, 16>}, {pipeline_mode = #tpu.pipeline_mode<synchronous>, transform_indices = @transform_9, window_bounds = array<i64: 8, 16>}, {pipeline_mode = #tpu.pipeline_mode<synchronous>, transform_indices = @transform_10, window_bounds = array<i64: 32, 16>}, {pipeline_mode = #tpu.pipeline_mode<synchronous>, transform_indices = @transform_11, window_bounds = array<i64: 16, 16>}, {transform_indices = @transform_12, window_bounds = array<i64: 256, 16>}]} {
    %c0 = arith.constant 0 : index
    %c0_0 = arith.constant 0 : index
    %0 = vector.load %arg1[%c0, %c0_0] : memref<256x8xf32, #tpu.memory_space<vmem>>, vector<256x8xf32>
    %c0_1 = arith.constant 0 : index
    %c0_2 = arith.constant 0 : index
    %1 = vector.load %arg4[%c0_1, %c0_2] : memref<1x8xf32, #tpu.memory_space<vmem>>, vector<1x8xf32>
    %2 = vector.broadcast %1 : vector<1x8xf32> to vector<256x8xf32>
    %3 = arith.mulf %0, %2 : vector<256x8xf32>
    %c0_3 = arith.constant 0 : index
    %c0_4 = arith.constant 0 : index
    %4 = vector.load %arg5[%c0_3, %c0_4] : memref<1x8xf32, #tpu.memory_space<vmem>>, vector<1x8xf32>
    %5 = vector.broadcast %4 : vector<1x8xf32> to vector<256x8xf32>
    %6 = arith.addf %3, %5 : vector<256x8xf32>
    %cst = arith.constant 0.000000e+00 : f32
    %7 = vector.broadcast %cst : f32 to vector<256x8xf32>
    %8 = arith.maximumf %6, %7 : vector<256x8xf32>
    %c0_5 = arith.constant 0 : index
    %c0_6 = arith.constant 0 : index
    %9 = vector.load %arg2[%c0_5, %c0_6] : memref<256x32xf32, #tpu.memory_space<vmem>>, vector<256x32xf32>
    %c0_7 = arith.constant 0 : index
    %c0_8 = arith.constant 0 : index
    %10 = vector.load %arg6[%c0_7, %c0_8] : memref<1x32xf32, #tpu.memory_space<vmem>>, vector<1x32xf32>
    %11 = vector.broadcast %10 : vector<1x32xf32> to vector<256x32xf32>
    %12 = arith.mulf %9, %11 : vector<256x32xf32>
    %c0_9 = arith.constant 0 : index
    %c0_10 = arith.constant 0 : index
    %13 = vector.load %arg7[%c0_9, %c0_10] : memref<1x32xf32, #tpu.memory_space<vmem>>, vector<1x32xf32>
    %14 = vector.broadcast %13 : vector<1x32xf32> to vector<256x32xf32>
    %15 = arith.addf %12, %14 : vector<256x32xf32>
    %cst_11 = arith.constant 0.000000e+00 : f32
    %16 = vector.broadcast %cst_11 : f32 to vector<256x32xf32>
    %17 = arith.maximumf %15, %16 : vector<256x32xf32>
    %c0_12 = arith.constant 0 : index
    %c0_13 = arith.constant 0 : index
    %18 = vector.load %arg3[%c0_12, %c0_13] : memref<256x16xf32, #tpu.memory_space<vmem>>, vector<256x16xf32>
    %c0_14 = arith.constant 0 : index
    %c0_15 = arith.constant 0 : index
    %19 = vector.load %arg8[%c0_14, %c0_15] : memref<1x16xf32, #tpu.memory_space<vmem>>, vector<1x16xf32>
    %20 = vector.broadcast %19 : vector<1x16xf32> to vector<256x16xf32>
    %21 = arith.mulf %18, %20 : vector<256x16xf32>
    %c0_16 = arith.constant 0 : index
    %c0_17 = arith.constant 0 : index
    %22 = vector.load %arg9[%c0_16, %c0_17] : memref<1x16xf32, #tpu.memory_space<vmem>>, vector<1x16xf32>
    %23 = vector.broadcast %22 : vector<1x16xf32> to vector<256x16xf32>
    %24 = arith.addf %21, %23 : vector<256x16xf32>
    %cst_18 = arith.constant 0.000000e+00 : f32
    %25 = vector.broadcast %cst_18 : f32 to vector<256x16xf32>
    %26 = arith.maximumf %24, %25 : vector<256x16xf32>
    %c0_19 = arith.constant 0 : index
    %c0_20 = arith.constant 0 : index
    %27 = vector.load %arg10[%c0_19, %c0_20] : memref<8x16xf32, #tpu.memory_space<vmem>>, vector<8x16xf32>
    %cst_21 = arith.constant dense<0.000000e+00> : vector<256x16xf32>
    %28 = tpu.matmul %8, %27, %cst_21 {dimension_numbers = #tpu.dot_dimension_numbers<[1], [0], [0], [1], [0, 0, 1, 1], [], []>} : vector<256x8xf32>, vector<8x16xf32>, vector<256x16xf32> -> vector<256x16xf32>
    %c0_22 = arith.constant 0 : index
    %c0_23 = arith.constant 0 : index
    %29 = vector.load %arg11[%c0_22, %c0_23] : memref<32x16xf32, #tpu.memory_space<vmem>>, vector<32x16xf32>
    %cst_24 = arith.constant dense<0.000000e+00> : vector<256x16xf32>
    %30 = tpu.matmul %17, %29, %cst_24 {dimension_numbers = #tpu.dot_dimension_numbers<[1], [0], [0], [1], [0, 0, 1, 1], [], []>} : vector<256x32xf32>, vector<32x16xf32>, vector<256x16xf32> -> vector<256x16xf32>
    %31 = arith.addf %28, %30 : vector<256x16xf32>
    %c0_25 = arith.constant 0 : index
    %c0_26 = arith.constant 0 : index
    %32 = vector.load %arg12[%c0_25, %c0_26] : memref<16x16xf32, #tpu.memory_space<vmem>>, vector<16x16xf32>
    %cst_27 = arith.constant dense<0.000000e+00> : vector<256x16xf32>
    %33 = tpu.matmul %26, %32, %cst_27 {dimension_numbers = #tpu.dot_dimension_numbers<[1], [0], [0], [1], [0, 0, 1, 1], [], []>} : vector<256x16xf32>, vector<16x16xf32>, vector<256x16xf32> -> vector<256x16xf32>
    %34 = arith.addf %31, %33 : vector<256x16xf32>
    %c0_28 = arith.constant 0 : index
    %c0_29 = arith.constant 0 : index
    %35 = vector.load %arg13[%c0_28, %c0_29] : memref<256x16xf32, #tpu.memory_space<vmem>>, vector<256x16xf32>
    tpu.vector_store %arg13[%c0_28, %c0_29], %34 {strides = array<i32>} : memref<256x16xf32, #tpu.memory_space<vmem>>, vector<256x16xf32>,
    return
  }
  func.func @transform_0(%arg0: i32) -> (i32, i32) {
    %c0_i32 = arith.constant 0 : i32
    %c0_i32_0 = arith.constant 0 : i32
    return %arg0, %c0_i32 : i32, i32
  }
  func.func @transform_1(%arg0: i32) -> (i32, i32) {
    %c0_i32 = arith.constant 0 : i32
    %c0_i32_0 = arith.constant 0 : i32
    return %arg0, %c0_i32 : i32, i32
  }
  func.func @transform_2(%arg0: i32) -> (i32, i32) {
    %c0_i32 = arith.constant 0 : i32
    %c0_i32_0 = arith.constant 0 : i32
    return %arg0, %c0_i32 : i32, i32
  }
  func.func @transform_3(%arg0: i32) -> (i32, i32) {
    %c0_i32 = arith.constant 0 : i32
    %c0_i32_0 = arith.constant 0 : i32
    %c0_i32_1 = arith.constant 0 : i32
    return %c0_i32, %c0_i32_0 : i32, i32
  }
  func.func @transform_4(%arg0: i32) -> (i32, i32) {
    %c0_i32 = arith.constant 0 : i32
    %c0_i32_0 = arith.constant 0 : i32
    %c0_i32_1 = arith.constant 0 : i32
    return %c0_i32, %c0_i32_0 : i32, i32
  }
  func.func @transform_5(%arg0: i32) -> (i32, i32) {
    %c0_i32 = arith.constant 0 : i32
    %c0_i32_0 = arith.constant 0 : i32
    %c0_i32_1 = arith.constant 0 : i32
    return %c0_i32, %c0_i32_0 : i32, i32
  }
  func.func @transform_6(%arg0: i32) -> (i32, i32) {
    %c0_i32 = arith.constant 0 : i32
    %c0_i32_0 = arith.constant 0 : i32
    %c0_i32_1 = arith.constant 0 : i32
    return %c0_i32, %c0_i32_0 : i32, i32
  }
  func.func @transform_7(%arg0: i32) -> (i32, i32) {
    %c0_i32 = arith.constant 0 : i32
    %c0_i32_0 = arith.constant 0 : i32
    %c0_i32_1 = arith.constant 0 : i32
    return %c0_i32, %c0_i32_0 : i32, i32
  }
  func.func @transform_8(%arg0: i32) -> (i32, i32) {
    %c0_i32 = arith.constant 0 : i32
    %c0_i32_0 = arith.constant 0 : i32
    %c0_i32_1 = arith.constant 0 : i32
    return %c0_i32, %c0_i32_0 : i32, i32
  }
  func.func @transform_9(%arg0: i32) -> (i32, i32) {
    %c0_i32 = arith.constant 0 : i32
    %c0_i32_0 = arith.constant 0 : i32
    %c0_i32_1 = arith.constant 0 : i32
    return %c0_i32, %c0_i32_0 : i32, i32
  }
  func.func @transform_10(%arg0: i32) -> (i32, i32) {
    %c0_i32 = arith.constant 0 : i32
    %c0_i32_0 = arith.constant 0 : i32
    %c0_i32_1 = arith.constant 0 : i32
    return %c0_i32, %c0_i32_0 : i32, i32
  }
  func.func @transform_11(%arg0: i32) -> (i32, i32) {
    %c0_i32 = arith.constant 0 : i32
    %c0_i32_0 = arith.constant 0 : i32
    %c0_i32_1 = arith.constant 0 : i32
    return %c0_i32, %c0_i32_0 : i32, i32
  }
  func.func @transform_12(%arg0: i32) -> (i32, i32) {
    %c0_i32 = arith.constant 0 : i32
    %c0_i32_0 = arith.constant 0 : i32
    return %arg0, %c0_i32 : i32, i32
  }
}

</mosaic_0001>

<llo_original>
// kernel: pappm_forward.3
$region0: #{pappm_forward.3}
  #allocation0 [shape = 'u32[]', space=smem, size = 0x4, offset = 0x4, fixed_abs, tag = 'smem constant byte address 0x4 - core index']
  #allocation1 [shape = 'u32[144,128]{1,0:T(1,128)}', space=vmem, size = 0x12000, scoped, tag = 'internal scratch']
  %s0 = inlined_call_operand.vmem [shape: f32[512,16], index: 0, kind: input, shape index: {}]
  %s1 = inlined_call_operand.vmem [shape: f32[1,16], index: 1, kind: input, shape index: {}]
  %s2 = inlined_call_operand.vmem [shape: f32[1,16], index: 2, kind: input, shape index: {}]
  %s3 = inlined_call_operand.vmem [shape: f32[16,8], index: 3, kind: input, shape index: {}]
  %s4 = inlined_call_operand.vmem [shape: f32[512,8], index: 4, kind: output, shape index: {}]
  %s5 = sld [smem:[#allocation0]]
  $region49: #{pappm_forward.3} parent=0
    _
  %s7 = ssub.s32 1, %s5
  %s8 = scalar_select 0, %s7, %s5
  loop: start=0, step=1, limit=4
  $region2: #{pappm_forward.3} parent=0 // loop_pre_header
    _
  $region3: #{pappm_forward.3} parent=0 // loop_header
    %s10 = sphi 0, %s14
    %p11 = scmp.ge.s32.totalorder %s10, 4
    %s20 = sphi 0, %s22
    %s23 = sphi 0, %s20
    %s24 = sphi 0, %s23
    %s40 = sphi 0, %s24
    %s44 = sphi 0, %s44
    %s46 = sphi 0, %s44
    %s47 = sphi 0, %s46
    %s61 = sphi 0, %s47
    %s65 = sphi 0, %s65
    %s67 = sphi 0, %s65
    %s68 = sphi 0, %s67
    %s82 = sphi 0, %s68
    %s86 = sphi 0, %s86
    %s88 = sphi 0, %s86
    %s89 = sphi 0, %s88
    %s103 = sphi 0, %s89
    %s109 = sphi 0, %s111
    %s112 = sphi 0, %s109
    %s113 = sphi 0, %s112
    %s129 = sphi 0, %s113
  $region4: #{pappm_forward.3} parent=0 // loop_header_branch
    %13 = sbr.rel (%p11) target = $region8
  $region5: #{pappm_forward.3} parent=0 // loop_body
    %s15 = ssub.s32 %s10, 1
    %s16 = ssub.s32 %s10, 2
    %s17 = sadd.s32 %s10, 1
    %s18 = ssub.s32 %s10, %s17
    %p19 = scmp.eq.s32.totalorder %s18, 0
    %s21 = sadd.s32 %s20, 1
    %s22 = scalar_select %p19, %s20, %s21
    %p25 = pneg %p19
    %p26 = scmp.eq.s32.totalorder %s10, 1
    %p27 = por %p25, %p26
    %p28 = scmp.ne.s32.totalorder %s20, %s23
    %p29 = scmp.eq.s32.totalorder %s10, 0
    %p30 = por %p28, %p29
    %p31 = scmp.ne.s32.totalorder %s20, %s23
    %p32 = scmp.eq.s32.totalorder %s15, 1
    %p33 = por %p31, %p32
    %p34 = scmp.ne.s32.totalorder %s23, %s24
    %p35 = scmp.eq.s32.totalorder %s15, 0
    %p36 = por %p34, %p35
    %p37 = scmp.ne.s32.totalorder %s23, %s24
    %p38 = scmp.eq.s32.totalorder %s16, 1
    %p39 = por %p37, %p38
    %p41 = scmp.ne.s32.totalorder %s24, %s40
    %p42 = scmp.eq.s32.totalorder %s16, 0
    %p43 = por %p41, %p42
    %s45 = sadd.s32 %s44, 1
    %p48 = scmp.eq.s32.totalorder %s10, 1
    %p49 = scmp.ne.s32.totalorder %s44, %s46
    %p50 = scmp.eq.s32.totalorder %s10, 0
    %p51 = por %p49, %p50
    %p52 = scmp.ne.s32.totalorder %s44, %s46
    %p53 = scmp.eq.s32.totalorder %s15, 1
    %p54 = por %p52, %p53
    %p55 = scmp.ne.s32.totalorder %s46, %s47
    %p56 = scmp.eq.s32.totalorder %s15, 0
    %p57 = por %p55, %p56
    %p58 = scmp.ne.s32.totalorder %s46, %s47
    %p59 = scmp.eq.s32.totalorder %s16, 1
    %p60 = por %p58, %p59
    %p62 = scmp.ne.s32.totalorder %s47, %s61
    %p63 = scmp.eq.s32.totalorder %s16, 0
    %p64 = por %p62, %p63
    %s66 = sadd.s32 %s65, 1
    %p69 = scmp.eq.s32.totalorder %s10, 1
    %p70 = scmp.ne.s32.totalorder %s65, %s67
    %p71 = scmp.eq.s32.totalorder %s10, 0
    %p72 = por %p70, %p71
    %p73 = scmp.ne.s32.totalorder %s65, %s67
    %p74 = scmp.eq.s32.totalorder %s15, 1
    %p75 = por %p73, %p74
    %p76 = scmp.ne.s32.totalorder %s67, %s68
    %p77 = scmp.eq.s32.totalorder %s15, 0
    %p78 = por %p76, %p77
    %p79 = scmp.ne.s32.totalorder %s67, %s68
    %p80 = scmp.eq.s32.totalorder %s16, 1
    %p81 = por %p79, %p80
    %p83 = scmp.ne.s32.totalorder %s68, %s82
    %p84 = scmp.eq.s32.totalorder %s16, 0
    %p85 = por %p83, %p84
    %s87 = sadd.s32 %s86, 1
    %p90 = scmp.eq.s32.totalorder %s10, 1
    %p91 = scmp.ne.s32.totalorder %s86, %s88
    %p92 = scmp.eq.s32.totalorder %s10, 0
    %p93 = por %p91, %p92
    %p94 = scmp.ne.s32.totalorder %s86, %s88
    %p95 = scmp.eq.s32.totalorder %s15, 1
    %p96 = por %p94, %p95
    %p97 = scmp.ne.s32.totalorder %s88, %s89
    %p98 = scmp.eq.s32.totalorder %s15, 0
    %p99 = por %p97, %p98
    %p100 = scmp.ne.s32.totalorder %s88, %s89
    %p101 = scmp.eq.s32.totalorder %s16, 1
    %p102 = por %p100, %p101
    %p104 = scmp.ne.s32.totalorder %s89, %s103
    %p105 = scmp.eq.s32.totalorder %s16, 0
    %p106 = por %p104, %p105
    %s107 = ssub.s32 %s10, %s17
    %p108 = scmp.eq.s32.totalorder %s107, 0
    %s110 = sadd.s32 %s109, 1
    %s111 = scalar_select %p108, %s109, %s110
    %p114 = pneg %p108
    %p115 = scmp.eq.s32.totalorder %s10, 1
    %p116 = por %p114, %p115
    %p117 = scmp.ne.s32.totalorder %s109, %s112
    %p118 = scmp.eq.s32.totalorder %s10, 0
    %p119 = por %p117, %p118
    %p120 = scmp.ne.s32.totalorder %s109, %s112
    %p121 = scmp.eq.s32.totalorder %s15, 1
    %p122 = por %p120, %p121
    %p123 = scmp.ne.s32.totalorder %s112, %s113
    %p124 = scmp.eq.s32.totalorder %s15, 0
    %p125 = por %p123, %p124
    %p126 = scmp.ne.s32.totalorder %s112, %s113
    %p127 = scmp.eq.s32.totalorder %s16, 1
    %p128 = por %p126, %p127
    %p130 = scmp.ne.s32.totalorder %s113, %s129
    %p131 = scmp.eq.s32.totalorder %s16, 0
    %p132 = por %p130, %p131
    %p133 = scmp.le.s32.totalorder 1, %s10
    %p134 = scmp.lt.s32.totalorder %s10, 3
    %p135 = pnand %p133, %p134
    %p136 = pneg %p135
    // Predicated region
    $region9: #{pappm_forward.3} parent=5 // pred_check
      _
    $region10: #{pappm_forward.3} parent=5 // pred_check_branch
      %138 = sbr.rel (%p135) target = $region12
    $region11: #{pappm_forward.3} parent=5 // pred_region
      %s139 = ssub.s32 %s10, 1
      // Predicated region
      $region13: #{pappm_forward.3} parent=11 // pred_check
        %p140 = pneg %p57
      $region14: #{pappm_forward.3} parent=11 // pred_check_branch
        %142 = sbr.rel (%p140) target = $region16
      $region15: #{pappm_forward.3} parent=11 // pred_region
        _
      $region16: #{pappm_forward.3} parent=11 // pred_fallthru
        _
      // Predicated region
      $region17: #{pappm_forward.3} parent=11 // pred_check
        %p143 = pneg %p78
      $region18: #{pappm_forward.3} parent=11 // pred_check_branch
        %145 = sbr.rel (%p143) target = $region20
      $region19: #{pappm_forward.3} parent=11 // pred_region
        _
      $region20: #{pappm_forward.3} parent=11 // pred_fallthru
        _
      // Predicated region
      $region21: #{pappm_forward.3} parent=11 // pred_check
        %p146 = pneg %p99
      $region22: #{pappm_forward.3} parent=11 // pred_check_branch
        %148 = sbr.rel (%p146) target = $region24
      $region23: #{pappm_forward.3} parent=11 // pred_region
        _
      $region24: #{pappm_forward.3} parent=11 // pred_fallthru
        _
    $region12: #{pappm_forward.3} parent=5 // pred_fallthru
      _
    %p149 = scmp.lt.s32.totalorder %s10, 2
    // Predicated region
    $region25: #{pappm_forward.3} parent=5 // pred_check
      %p150 = pneg %p149
    $region26: #{pappm_forward.3} parent=5 // pred_check_branch
      %152 = sbr.rel (%p150) target = $region28
    $region27: #{pappm_forward.3} parent=5 // pred_region
      // Predicated region
      $region29: #{pappm_forward.3} parent=27 // pred_check
        %p153 = pneg %p30
      $region30: #{pappm_forward.3} parent=27 // pred_check_branch
        %155 = sbr.rel (%p153) target = $region32
      $region31: #{pappm_forward.3} parent=27 // pred_region
        %s156 = smul.u32 32, %s10
        %p157 = scmp.lt.s32.totalorder %s156, 63
        %s158 = scalar_select %p157, %s156, 63
        %s159 = smul.addr %s158, 8
        %s160 = scalar_lea.vmem %s0, %s159
        %s161 = smul.u32 32, %s10
      $region32: #{pappm_forward.3} parent=27 // pred_fallthru
        _
    $region28: #{pappm_forward.3} parent=5 // pred_fallthru
      _
    %p162 = scmp.le.s32.totalorder 1, %s10
    %p163 = scmp.lt.s32.totalorder %s10, 3
    %p164 = pnand %p162, %p163
    %p165 = pneg %p164
    // Predicated region
    $region33: #{pappm_forward.3} parent=5 // pred_check
      _
    $region34: #{pappm_forward.3} parent=5 // pred_check_branch
      %167 = sbr.rel (%p164) target = $region36
    $region35: #{pappm_forward.3} parent=5 // pred_region
      %s168 = ssub.s32 %s10, 1
      %s169 = smul.u32 32, %s15
      %p170 = scmp.lt.s32.totalorder %s169, 63
      %s171 = scalar_select %p170, %s169, 63
      %s172 = smul.addr %s171, 8
      %s173 = scalar_lea.vmem %s0, %s172
      %p174 = pneg %p36
      %p175 = pneg %p33
      %p176 = pneg %p57
      %p177 = pneg %p54
      %p178 = pneg %p78
      %p179 = pneg %p75
      %p180 = pneg %p99
      %p181 = pneg %p96
      %p182 = pneg %p125
      %p183 = pneg %p122
      %s184 = smul.u32 32, %s15
      %p185 = scmp.lt.s32.totalorder %s184, 63
      %s186 = scalar_select %p185, %s184, 63
      %s187 = smul.addr %s186, 8
      %s188 = scalar_lea.vmem %s4, %s187
      %s189 = smul.u32 32, %s15
      %p190 = scmp.lt.s32.totalorder %s189, 63
      %s191 = scalar_select %p190, %s189, 63
      %s192 = smul.addr %s191, 8
      %s193 = scalar_lea.vmem %s0, %s192
      %s194 = smul.u32 32, %s15
      %s195 = smul.u32 32, %s15
      %p196 = scmp.lt.s32.totalorder %s195, 63
      %s197 = scalar_select %p196, %s195, 63
      %s198 = smul.addr %s197, 8
      %s199 = scalar_lea.vmem %s4, %s198
      %s200 = smul.u32 32, %s15
      %v201 = vld [vmem:[%s193] sm:$0xff]
      %v202 = vld [vmem:[%s193 + $0x8] sm:$0xff]
      %v203 = vld [vmem:[%s193 + $0x10] sm:$0xff]
      %v204 = vld [vmem:[%s193 + $0x18] sm:$0xff]
      %v205 = vld [vmem:[%s193 + $0x20] sm:$0xff]
      %v206 = vld [vmem:[%s193 + $0x28] sm:$0xff]
      %v207 = vld [vmem:[%s193 + $0x30] sm:$0xff]
      %v208 = vld [vmem:[%s193 + $0x38] sm:$0xff]
      %v209 = vld [vmem:[%s193 + $0x40] sm:$0xff]
      %v210 = vld [vmem:[%s193 + $0x48] sm:$0xff]
      %v211 = vld [vmem:[%s193 + $0x50] sm:$0xff]
      %v212 = vld [vmem:[%s193 + $0x58] sm:$0xff]
      %v213 = vld [vmem:[%s193 + $0x60] sm:$0xff]
      %v214 = vld [vmem:[%s193 + $0x68] sm:$0xff]
      %v215 = vld [vmem:[%s193 + $0x70] sm:$0xff]
      %v216 = vld [vmem:[%s193 + $0x78] sm:$0xff]
      %v217 = vld [vmem:[%s193 + $0x80] sm:$0xff]
      %v218 = vld [vmem:[%s193 + $0x88] sm:$0xff]
      %v219 = vld [vmem:[%s193 + $0x90] sm:$0xff]
      %v220 = vld [vmem:[%s193 + $0x98] sm:$0xff]
      %v221 = vld [vmem:[%s193 + $0xa0] sm:$0xff]
      %v222 = vld [vmem:[%s193 + $0xa8] sm:$0xff]
      %v223 = vld [vmem:[%s193 + $0xb0] sm:$0xff]
      %v224 = vld [vmem:[%s193 + $0xb8] sm:$0xff]
      %v225 = vld [vmem:[%s193 + $0xc0] sm:$0xff]
      %v226 = vld [vmem:[%s193 + $0xc8] sm:$0xff]
      %v227 = vld [vmem:[%s193 + $0xd0] sm:$0xff]
      %v228 = vld [vmem:[%s193 + $0xd8] sm:$0xff]
      %v229 = vld [vmem:[%s193 + $0xe0] sm:$0xff]
      %v230 = vld [vmem:[%s193 + $0xe8] sm:$0xff]
      %v231 = vld [vmem:[%s193 + $0xf0] sm:$0xff]
      %v232 = vld [vmem:[%s193 + $0xf8] sm:$0xff]
      %v233 = vld [vmem:[%s1] sm:$0x1]
      %v235 = vlaneseq
      %v236 = vshrl.u32 %v235, 7
      %v237 = vsub.s32 0, %v236
      %v238 = vrot.slane %v233, %v237
      %v240 = vmul.f32 %v201, %v238
      %v241 = vmul.f32 %v202, %v238
      %v242 = vmul.f32 %v203, %v238
      %v243 = vmul.f32 %v204, %v238
      %v244 = vmul.f32 %v205, %v238
      %v245 = vmul.f32 %v206, %v238
      %v246 = vmul.f32 %v207, %v238
      %v247 = vmul.f32 %v208, %v238
      %v248 = vmul.f32 %v209, %v238
      %v249 = vmul.f32 %v210, %v238
      %v250 = vmul.f32 %v211, %v238
      %v251 = vmul.f32 %v212, %v238
      %v252 = vmul.f32 %v213, %v238
      %v253 = vmul.f32 %v214, %v238
      %v254 = vmul.f32 %v215, %v238
      %v255 = vmul.f32 %v216, %v238
      %v256 = vmul.f32 %v217, %v238
      %v257 = vmul.f32 %v218, %v238
      %v258 = vmul.f32 %v219, %v238
      %v259 = vmul.f32 %v220, %v238
      %v260 = vmul.f32 %v221, %v238
      %v261 = vmul.f32 %v222, %v238
      %v262 = vmul.f32 %v223, %v238
      %v263 = vmul.f32 %v224, %v238
      %v264 = vmul.f32 %v225, %v238
      %v265 = vmul.f32 %v226, %v238
      %v266 = vmul.f32 %v227, %v238
      %v267 = vmul.f32 %v228, %v238
      %v268 = vmul.f32 %v229, %v238
      %v269 = vmul.f32 %v230, %v238
      %v270 = vmul.f32 %v231, %v238
      %v271 = vmul.f32 %v232, %v238
      %v272 = vld [vmem:[%s2] sm:$0x1]
      %v274 = vlaneseq
      %v275 = vshrl.u32 %v274, 7
      %v276 = vsub.s32 0, %v275
      %v277 = vrot.slane %v272, %v276
      %v279 = vadd.f32 %v240, %v277
      %v280 = vadd.f32 %v241, %v277
      %v281 = vadd.f32 %v242, %v277
      %v282 = vadd.f32 %v243, %v277
      %v283 = vadd.f32 %v244, %v277
      %v284 = vadd.f32 %v245, %v277
      %v285 = vadd.f32 %v246, %v277
      %v286 = vadd.f32 %v247, %v277
      %v287 = vadd.f32 %v248, %v277
      %v288 = vadd.f32 %v249, %v277
      %v289 = vadd.f32 %v250, %v277
      %v290 = vadd.f32 %v251, %v277
      %v291 = vadd.f32 %v252, %v277
      %v292 = vadd.f32 %v253, %v277
      %v293 = vadd.f32 %v254, %v277
      %v294 = vadd.f32 %v255, %v277
      %v295 = vadd.f32 %v256, %v277
      %v296 = vadd.f32 %v257, %v277
      %v297 = vadd.f32 %v258, %v277
      %v298 = vadd.f32 %v259, %v277
      %v299 = vadd.f32 %v260, %v277
      %v300 = vadd.f32 %v261, %v277
      %v301 = vadd.f32 %v262, %v277
      %v302 = vadd.f32 %v263, %v277
      %v303 = vadd.f32 %v264, %v277
      %v304 = vadd.f32 %v265, %v277
      %v305 = vadd.f32 %v266, %v277
      %v306 = vadd.f32 %v267, %v277
      %v307 = vadd.f32 %v268, %v277
      %v308 = vadd.f32 %v269, %v277
      %v309 = vadd.f32 %v270, %v277
      %v310 = vadd.f32 %v271, %v277
      %v311 = vmax.f32 %v279, 0.0
      %v312 = vmax.f32 %v280, 0.0
      %v313 = vmax.f32 %v281, 0.0
      %v314 = vmax.f32 %v282, 0.0
      %v315 = vmax.f32 %v283, 0.0
      %v316 = vmax.f32 %v284, 0.0
      %v317 = vmax.f32 %v285, 0.0
      %v318 = vmax.f32 %v286, 0.0
      %v319 = vmax.f32 %v287, 0.0
      %v320 = vmax.f32 %v288, 0.0
      %v321 = vmax.f32 %v289, 0.0
      %v322 = vmax.f32 %v290, 0.0
      %v323 = vmax.f32 %v291, 0.0
      %v324 = vmax.f32 %v292, 0.0
      %v325 = vmax.f32 %v293, 0.0
      %v326 = vmax.f32 %v294, 0.0
      %v327 = vmax.f32 %v295, 0.0
      %v328 = vmax.f32 %v296, 0.0
      %v329 = vmax.f32 %v297, 0.0
      %v330 = vmax.f32 %v298, 0.0
      %v331 = vmax.f32 %v299, 0.0
      %v332 = vmax.f32 %v300, 0.0
      %v333 = vmax.f32 %v301, 0.0
      %v334 = vmax.f32 %v302, 0.0
      %v335 = vmax.f32 %v303, 0.0
      %v336 = vmax.f32 %v304, 0.0
      %v337 = vmax.f32 %v305, 0.0
      %v338 = vmax.f32 %v306, 0.0
      %v339 = vmax.f32 %v307, 0.0
      %v340 = vmax.f32 %v308, 0.0
      %v341 = vmax.f32 %v309, 0.0
      %v342 = vmax.f32 %v310, 0.0
      %v343 = vld [vmem:[%s3] sm:$0xff]
      %v344 = vld [vmem:[%s3 + $0x8] sm:$0xff]
      %vm345 = vcmask 130048
      %v347 = vsel %vm345, %v311, 0
      %v350 = vsel %vm345, %v312, 0
      %v353 = vsel %vm345, %v313, 0
      %v356 = vsel %vm345, %v314, 0
      %v359 = vsel %vm345, %v315, 0
      %v362 = vsel %vm345, %v316, 0
      %v365 = vsel %vm345, %v317, 0
      %v368 = vsel %vm345, %v318, 0
      %v371 = vsel %vm345, %v319, 0
      %v374 = vsel %vm345, %v320, 0
      %v377 = vsel %vm345, %v321, 0
      %v380 = vsel %vm345, %v322, 0
      %v383 = vsel %vm345, %v323, 0
      %v386 = vsel %vm345, %v324, 0
      %v389 = vsel %vm345, %v325, 0
      %v392 = vsel %vm345, %v326, 0
      %v395 = vsel %vm345, %v327, 0
      %v398 = vsel %vm345, %v328, 0
      %v401 = vsel %vm345, %v329, 0
      %v404 = vsel %vm345, %v330, 0
      %v407 = vsel %vm345, %v331, 0
      %v410 = vsel %vm345, %v332, 0
      %v413 = vsel %vm345, %v333, 0
      %v416 = vsel %vm345, %v334, 0
      %v419 = vsel %vm345, %v335, 0
      %v422 = vsel %vm345, %v336, 0
      %v425 = vsel %vm345, %v337, 0
      %v428 = vsel %vm345, %v338, 0
      %v431 = vsel %vm345, %v339, 0
      %v434 = vsel %vm345, %v340, 0
      %v437 = vsel %vm345, %v341, 0
      %v440 = vsel %vm345, %v342, 0
      %442 = vmatprep.subr.mxu0 0.0
      %443 = vmatpush1.msra.mxu0 %v343
      %444 = vmatprep.subr.mxu0 0.0
      %445 = vmatpush1.msra.mxu0 %v344
      %446 = vmatprep.subr.mxu0 0.0
      %447 = vmatpush1.msra.mxu0 0.0
      %448 = vmatprep.subr.mxu0 0.0
      %449 = vmatpush1.msra.mxu0 0.0
      %450 = vmatprep.subr.mxu0 0.0
      %451 = vmatpush1.msra.mxu0 0.0
      %452 = vmatprep.subr.mxu0 0.0
      %453 = vmatpush1.msra.mxu0 0.0
      %454 = vmatprep.subr.mxu0 0.0
      %455 = vmatpush1.msra.mxu0 0.0
      %456 = vmatprep.subr.mxu0 0.0
      %457 = vmatpush1.msra.mxu0 0.0
      %458 = vmatprep.subr.mxu0 0.0
      %459 = vmatpush1.msra.mxu0 0.0
      %460 = vmatprep.subr.mxu0 0.0
      %461 = vmatpush1.msra.mxu0 0.0
      %462 = vmatprep.subr.mxu0 0.0
      %463 = vmatpush1.msra.mxu0 0.0
      %464 = vmatprep.subr.mxu0 0.0
      %465 = vmatpush1.msra.mxu0 0.0
      %466 = vmatprep.subr.mxu0 0.0
      %467 = vmatpush1.msra.mxu0 0.0
      %468 = vmatprep.subr.mxu0 0.0
      %469 = vmatpush1.msra.mxu0 0.0
      %470 = vmatprep.subr.mxu0 0.0
      %471 = vmatpush1.msra.mxu0 0.0
      %472 = vmatprep.subr.mxu0 0.0
      %473 = vmatpush1.msra.mxu0 0.0
      %474 = vmatprep.subr.mxu0 0.0
      %475 = vmatpush1.msra.mxu0 0.0
      %476 = vmatprep.subr.mxu0 0.0
      %477 = vmatpush1.msra.mxu0 0.0
      %478 = vmatprep.subr.mxu0 0.0
      %479 = vmatpush1.msra.mxu0 0.0
      %480 = vmatprep.subr.mxu0 0.0
      %481 = vmatpush1.msra.mxu0 0.0
      %482 = vmatprep.subr.mxu0 0.0
      %483 = vmatpush1.msra.mxu0 0.0
      %484 = vmatprep.subr.mxu0 0.0
      %485 = vmatpush1.msra.mxu0 0.0
      %486 = vmatprep.subr.mxu0 0.0
      %487 = vmatpush1.msra.mxu0 0.0
      %488 = vmatprep.subr.mxu0 0.0
      %489 = vmatpush1.msra.mxu0 0.0
      %490 = vmatprep.subr.mxu0 0.0
      %491 = vmatpush1.msra.mxu0 0.0
      %492 = vmatprep.subr.mxu0 0.0
      %493 = vmatpush1.msra.mxu0 0.0
      %494 = vmatprep.subr.mxu0 0.0
      %495 = vmatpush1.msra.mxu0 0.0
      %496 = vmatprep.subr.mxu0 0.0
      %497 = vmatpush1.msra.mxu0 0.0
      %498 = vmatprep.subr.mxu0 0.0
      %499 = vmatpush1.msra.mxu0 0.0
      %500 = vmatprep.subr.mxu0 0.0
      %501 = vmatpush1.msra.mxu0 0.0
      %502 = vmatprep.subr.mxu0 0.0
      %503 = vmatpush1.msra.mxu0 0.0
      %504 = vmatprep.subr.mxu0 0.0
      %505 = vmatpush1.msra.mxu0 0.0
      %506 = vmatprep.mubr.f32.mxu0 0.0
      %507 = vmatmul.mubr.f32.gmra.mrb[0].mxu0 %v347
      %v508 = vpop.f32.mrb[0].mxu0
      %v509 = vadd.f32 0.0, %v508
      %v510 = vpop.f32.mrb[0].mxu0
      %511 = vmatprep.mubr.f32.mxu0 0.0
      %512 = vmatmul.mubr.f32.gmra.mrb[0].mxu0 %v350
      %v513 = vpop.f32.mrb[0].mxu0
      %v514 = vadd.f32 0.0, %v513
      %v515 = vpop.f32.mrb[0].mxu0
      %516 = vmatprep.mubr.f32.mxu0 0.0
      %517 = vmatmul.mubr.f32.gmra.mrb[0].mxu0 %v353
      %v518 = vpop.f32.mrb[0].mxu0
      %v519 = vadd.f32 0.0, %v518
      %v520 = vpop.f32.mrb[0].mxu0
      %521 = vmatprep.mubr.f32.mxu0 0.0
      %522 = vmatmul.mubr.f32.gmra.mrb[0].mxu0 %v356
      %v523 = vpop.f32.mrb[0].mxu0
      %v524 = vadd.f32 0.0, %v523
      %v525 = vpop.f32.mrb[0].mxu0
      %526 = vmatprep.mubr.f32.mxu0 0.0
      %527 = vmatmul.mubr.f32.gmra.mrb[0].mxu0 %v359
      %v528 = vpop.f32.mrb[0].mxu0
      %v529 = vadd.f32 0.0, %v528
      %v530 = vpop.f32.mrb[0].mxu0
      %531 = vmatprep.mubr.f32.mxu0 0.0
      %532 = vmatmul.mubr.f32.gmra.mrb[0].mxu0 %v362
      %v533 = vpop.f32.mrb[0].mxu0
      %v534 = vadd.f32 0.0, %v533
      %v535 = vpop.f32.mrb[0].mxu0
      %536 = vmatprep.mubr.f32.mxu0 0.0
      %537 = vmatmul.mubr.f32.gmra.mrb[0].mxu0 %v365
      %v538 = vpop.f32.mrb[0].mxu0
      %v539 = vadd.f32 0.0, %v538
      %v540 = vpop.f32.mrb[0].mxu0
      %541 = vmatprep.mubr.f32.mxu0 0.0
      %542 = vmatmul.mubr.f32.gmra.mrb[0].mxu0 %v368
      %v543 = vpop.f32.mrb[0].mxu0
      %v544 = vadd.f32 0.0, %v543
      %v545 = vpop.f32.mrb[0].mxu0
      %546 = vmatprep.mubr.f32.mxu0 0.0
      %547 = vmatmul.mubr.f32.gmra.mrb[0].mxu0 %v371
      %v548 = vpop.f32.mrb[0].mxu0
      %v549 = vadd.f32 0.0, %v548
      %v550 = vpop.f32.mrb[0].mxu0
      %551 = vmatprep.mubr.f32.mxu0 0.0
      %552 = vmatmul.mubr.f32.gmra.mrb[0].mxu0 %v374
      %v553 = vpop.f32.mrb[0].mxu0
      %v554 = vadd.f32 0.0, %v553
      %v555 = vpop.f32.mrb[0].mxu0
      %556 = vmatprep.mubr.f32.mxu0 0.0
      %557 = vmatmul.mubr.f32.gmra.mrb[0].mxu0 %v377
      %v558 = vpop.f32.mrb[0].mxu0
      %v559 = vadd.f32 0.0, %v558
      %v560 = vpop.f32.mrb[0].mxu0
      %561 = vmatprep.mubr.f32.mxu0 0.0
      %562 = vmatmul.mubr.f32.gmra.mrb[0].mxu0 %v380
      %v563 = vpop.f32.mrb[0].mxu0
      %v564 = vadd.f32 0.0, %v563
      %v565 = vpop.f32.mrb[0].mxu0
      %566 = vmatprep.mubr.f32.mxu0 0.0
      %567 = vmatmul.mubr.f32.gmra.mrb[0].mxu0 %v383
      %v568 = vpop.f32.mrb[0].mxu0
      %v569 = vadd.f32 0.0, %v568
      %v570 = vpop.f32.mrb[0].mxu0
      %571 = vmatprep.mubr.f32.mxu0 0.0
      %572 = vmatmul.mubr.f32.gmra.mrb[0].mxu0 %v386
      %v573 = vpop.f32.mrb[0].mxu0
      %v574 = vadd.f32 0.0, %v573
      %v575 = vpop.f32.mrb[0].mxu0
      %576 = vmatprep.mubr.f32.mxu0 0.0
      %577 = vmatmul.mubr.f32.gmra.mrb[0].mxu0 %v389
      %v578 = vpop.f32.mrb[0].mxu0
      %v579 = vadd.f32 0.0, %v578
      %v580 = vpop.f32.mrb[0].mxu0
      %581 = vmatprep.mubr.f32.mxu0 0.0
      %582 = vmatmul.mubr.f32.gmra.mrb[0].mxu0 %v392
      %v583 = vpop.f32.mrb[0].mxu0
      %v584 = vadd.f32 0.0, %v583
      %v585 = vpop.f32.mrb[0].mxu0
      %586 = vmatprep.mubr.f32.mxu0 0.0
      %587 = vmatmul.mubr.f32.gmra.mrb[0].mxu0 %v395
      %v588 = vpop.f32.mrb[0].mxu0
      %v589 = vadd.f32 0.0, %v588
      %v590 = vpop.f32.mrb[0].mxu0
      %591 = vmatprep.mubr.f32.mxu0 0.0
      %592 = vmatmul.mubr.f32.gmra.mrb[0].mxu0 %v398
      %v593 = vpop.f32.mrb[0].mxu0
      %v594 = vadd.f32 0.0, %v593
      %v595 = vpop.f32.mrb[0].mxu0
      %596 = vmatprep.mubr.f32.mxu0 0.0
      %597 = vmatmul.mubr.f32.gmra.mrb[0].mxu0 %v401
      %v598 = vpop.f32.mrb[0].mxu0
      %v599 = vadd.f32 0.0, %v598
      %v600 = vpop.f32.mrb[0].mxu0
      %601 = vmatprep.mubr.f32.mxu0 0.0
      %602 = vmatmul.mubr.f32.gmra.mrb[0].mxu0 %v404
      %v603 = vpop.f32.mrb[0].mxu0
      %v604 = vadd.f32 0.0, %v603
      %v605 = vpop.f32.mrb[0].mxu0
      %606 = vmatprep.mubr.f32.mxu0 0.0
      %607 = vmatmul.mubr.f32.gmra.mrb[0].mxu0 %v407
      %v608 = vpop.f32.mrb[0].mxu0
      %v609 = vadd.f32 0.0, %v608
      %v610 = vpop.f32.mrb[0].mxu0
      %611 = vmatprep.mubr.f32.mxu0 0.0
      %612 = vmatmul.mubr.f32.gmra.mrb[0].mxu0 %v410
      %v613 = vpop.f32.mrb[0].mxu0
      %v614 = vadd.f32 0.0, %v613
      %v615 = vpop.f32.mrb[0].mxu0
      %616 = vmatprep.mubr.f32.mxu0 0.0
      %617 = vmatmul.mubr.f32.gmra.mrb[0].mxu0 %v413
      %v618 = vpop.f32.mrb[0].mxu0
      %v619 = vadd.f32 0.0, %v618
      %v620 = vpop.f32.mrb[0].mxu0
      %621 = vmatprep.mubr.f32.mxu0 0.0
      %622 = vmatmul.mubr.f32.gmra.mrb[0].mxu0 %v416
      %v623 = vpop.f32.mrb[0].mxu0
      %v624 = vadd.f32 0.0, %v623
      %v625 = vpop.f32.mrb[0].mxu0
      %626 = vmatprep.mubr.f32.mxu0 0.0
      %627 = vmatmul.mubr.f32.gmra.mrb[0].mxu0 %v419
      %v628 = vpop.f32.mrb[0].mxu0
      %v629 = vadd.f32 0.0, %v628
      %v630 = vpop.f32.mrb[0].mxu0
      %631 = vmatprep.mubr.f32.mxu0 0.0
      %632 = vmatmul.mubr.f32.gmra.mrb[0].mxu0 %v422
      %v633 = vpop.f32.mrb[0].mxu0
      %v634 = vadd.f32 0.0, %v633
      %v635 = vpop.f32.mrb[0].mxu0
      %636 = vmatprep.mubr.f32.mxu0 0.0
      %637 = vmatmul.mubr.f32.gmra.mrb[0].mxu0 %v425
      %v638 = vpop.f32.mrb[0].mxu0
      %v639 = vadd.f32 0.0, %v638
      %v640 = vpop.f32.mrb[0].mxu0
      %641 = vmatprep.mubr.f32.mxu0 0.0
      %642 = vmatmul.mubr.f32.gmra.mrb[0].mxu0 %v428
      %v643 = vpop.f32.mrb[0].mxu0
      %v644 = vadd.f32 0.0, %v643
      %v645 = vpop.f32.mrb[0].mxu0
      %646 = vmatprep.mubr.f32.mxu0 0.0
      %647 = vmatmul.mubr.f32.gmra.mrb[0].mxu0 %v431
      %v648 = vpop.f32.mrb[0].mxu0
      %v649 = vadd.f32 0.0, %v648
      %v650 = vpop.f32.mrb[0].mxu0
      %651 = vmatprep.mubr.f32.mxu0 0.0
      %652 = vmatmul.mubr.f32.gmra.mrb[0].mxu0 %v434
      %v653 = vpop.f32.mrb[0].mxu0
      %v654 = vadd.f32 0.0, %v653
      %v655 = vpop.f32.mrb[0].mxu0
      %656 = vmatprep.mubr.f32.mxu0 0.0
      %657 = vmatmul.mubr.f32.gmra.mrb[0].mxu0 %v437
      %v658 = vpop.f32.mrb[0].mxu0
      %v659 = vadd.f32 0.0, %v658
      %v660 = vpop.f32.mrb[0].mxu0
      %661 = vmatprep.mubr.f32.mxu0 0.0
      %662 = vmatmul.mubr.f32.gmra.mrb[0].mxu0 %v440
      %v663 = vpop.f32.mrb[0].mxu0
      %v664 = vadd.f32 0.0, %v663
      %v665 = vpop.f32.mrb[0].mxu0
      %666 = vdwg.mxu0
      %vm667 = vcmask 64512
      %668 = vst.msk [vmem:[%s199] sm:$0xff] %vm667, %v509
      %669 = vst.msk [vmem:[%s199 + $0x8] sm:$0xff] %vm667, %v514
      %670 = vst.msk [vmem:[%s199 + $0x10] sm:$0xff] %vm667, %v519
      %671 = vst.msk [vmem:[%s199 + $0x18] sm:$0xff] %vm667, %v524
      %672 = vst.msk [vmem:[%s199 + $0x20] sm:$0xff] %vm667, %v529
      %673 = vst.msk [vmem:[%s199 + $0x28] sm:$0xff] %vm667, %v534
      %674 = vst.msk [vmem:[%s199 + $0x30] sm:$0xff] %vm667, %v539
      %675 = vst.msk [vmem:[%s199 + $0x38] sm:$0xff] %vm667, %v544
      %676 = vst.msk [vmem:[%s199 + $0x40] sm:$0xff] %vm667, %v549
      %677 = vst.msk [vmem:[%s199 + $0x48] sm:$0xff] %vm667, %v554
      %678 = vst.msk [vmem:[%s199 + $0x50] sm:$0xff] %vm667, %v559
      %679 = vst.msk [vmem:[%s199 + $0x58] sm:$0xff] %vm667, %v564
      %680 = vst.msk [vmem:[%s199 + $0x60] sm:$0xff] %vm667, %v569
      %681 = vst.msk [vmem:[%s199 + $0x68] sm:$0xff] %vm667, %v574
      %682 = vst.msk [vmem:[%s199 + $0x70] sm:$0xff] %vm667, %v579
      %683 = vst.msk [vmem:[%s199 + $0x78] sm:$0xff] %vm667, %v584
      %684 = vst.msk [vmem:[%s199 + $0x80] sm:$0xff] %vm667, %v589
      %685 = vst.msk [vmem:[%s199 + $0x88] sm:$0xff] %vm667, %v594
      %686 = vst.msk [vmem:[%s199 + $0x90] sm:$0xff] %vm667, %v599
      %687 = vst.msk [vmem:[%s199 + $0x98] sm:$0xff] %vm667, %v604
      %688 = vst.msk [vmem:[%s199 + $0xa0] sm:$0xff] %vm667, %v609
      %689 = vst.msk [vmem:[%s199 + $0xa8] sm:$0xff] %vm667, %v614
      %690 = vst.msk [vmem:[%s199 + $0xb0] sm:$0xff] %vm667, %v619
      %691 = vst.msk [vmem:[%s199 + $0xb8] sm:$0xff] %vm667, %v624
      %692 = vst.msk [vmem:[%s199 + $0xc0] sm:$0xff] %vm667, %v629
      %693 = vst.msk [vmem:[%s199 + $0xc8] sm:$0xff] %vm667, %v634
      %694 = vst.msk [vmem:[%s199 + $0xd0] sm:$0xff] %vm667, %v639
      %695 = vst.msk [vmem:[%s199 + $0xd8] sm:$0xff] %vm667, %v644
      %696 = vst.msk [vmem:[%s199 + $0xe0] sm:$0xff] %vm667, %v649
      %697 = vst.msk [vmem:[%s199 + $0xe8] sm:$0xff] %vm667, %v654
      %698 = vst.msk [vmem:[%s199 + $0xf0] sm:$0xff] %vm667, %v659
      %699 = vst.msk [vmem:[%s199 + $0xf8] sm:$0xff] %vm667, %v664
      %s700 = smul.u32 32, %s15
      %p701 = scmp.lt.s32.totalorder %s700, 63
      %s702 = scalar_select %p701, %s700, 63
      %s703 = smul.addr %s702, 8
      %s704 = scalar_lea.vmem %s4, %s703
      // Predicated region
      $region37: #{pappm_forward.3} parent=35 // pred_check
        %p705 = pneg %p122
      $region38: #{pappm_forward.3} parent=35 // pred_check_branch
        %707 = sbr.rel (%p705) target = $region40
      $region39: #{pappm_forward.3} parent=35 // pred_region
        %s708 = smul.u32 32, %s15
      $region40: #{pappm_forward.3} parent=35 // pred_fallthru
        _
    $region36: #{pappm_forward.3} parent=5 // pred_fallthru
      _
    %p709 = scmp.le.s32.totalorder 2, %s10
    // Predicated region
    $region41: #{pappm_forward.3} parent=5 // pred_check
      %p710 = pneg %p709
    $region42: #{pappm_forward.3} parent=5 // pred_check_branch
      %712 = sbr.rel (%p710) target = $region44
    $region43: #{pappm_forward.3} parent=5 // pred_region
      %s713 = ssub.s32 %s10, 2
      // Predicated region
      $region45: #{pappm_forward.3} parent=43 // pred_check
        %p714 = pneg %p128
      $region46: #{pappm_forward.3} parent=43 // pred_check_branch
        %716 = sbr.rel (%p714) target = $region48
      $region47: #{pappm_forward.3} parent=43 // pred_region
        %s717 = smul.u32 32, %s16
        %p718 = scmp.lt.s32.totalorder %s717, 63
        %s719 = scalar_select %p718, %s717, 63
        %s720 = smul.addr %s719, 8
        %s721 = scalar_lea.vmem %s4, %s720
      $region48: #{pappm_forward.3} parent=43 // pred_fallthru
        _
    $region44: #{pappm_forward.3} parent=5 // pred_fallthru
      _
  $region6: #{pappm_forward.3} parent=0 // loop_footer
    %s14 = sadd.s32 1, %s10
  $region7: #{pappm_forward.3} parent=0 // loop_footer_branch
    %9 = sbr.rel target = $region3
  $region8: #{pappm_forward.3} parent=0 // loop_exit
    _

// kernel: pappm_forward.5
$region0: #{pappm_forward.5}
  #allocation0 [shape = 'u32[]', space=smem, size = 0x4, offset = 0x4, fixed_abs, tag = 'smem constant byte address 0x4 - core index']
  #allocation1 [shape = 'u32[144,128]{1,0:T(1,128)}', space=vmem, size = 0x12000, scoped, tag = 'internal scratch']
  %s0 = inlined_call_operand.vmem [shape: f32[512,8], index: 0, kind: input, shape index: {}]
  %s1 = inlined_call_operand.vmem [shape: f32[512,32], index: 1, kind: input, shape index: {}]
  %s2 = inlined_call_operand.vmem [shape: f32[512,16], index: 2, kind: input, shape index: {}]
  %s3 = inlined_call_operand.vmem [shape: f32[1,8], index: 3, kind: input, shape index: {}]
  %s4 = inlined_call_operand.vmem [shape: f32[1,8], index: 4, kind: input, shape index: {}]
  %s5 = inlined_call_operand.vmem [shape: f32[1,32], index: 5, kind: input, shape index: {}]
  %s6 = inlined_call_operand.vmem [shape: f32[1,32], index: 6, kind: input, shape index: {}]
  %s7 = inlined_call_operand.vmem [shape: f32[1,16], index: 7, kind: input, shape index: {}]
  %s8 = inlined_call_operand.vmem [shape: f32[1,16], index: 8, kind: input, shape index: {}]
  %s9 = inlined_call_operand.vmem [shape: f32[8,16], index: 9, kind: input, shape index: {}]
  %s10 = inlined_call_operand.vmem [shape: f32[32,16], index: 10, kind: input, shape index: {}]
  %s11 = inlined_call_operand.vmem [shape: f32[16,16], index: 11, kind: input, shape index: {}]
  %s12 = inlined_call_operand.vmem [shape: f32[512,16], index: 12, kind: output, shape index: {}]
  %s13 = sld [smem:[#allocation0]]
  $region81: #{pappm_forward.5} parent=0
    _
  %s15 = ssub.s32 1, %s13
  %s16 = scalar_select 0, %s15, %s13
  loop: start=0, step=1, limit=4
  $region2: #{pappm_forward.5} parent=0 // loop_pre_header
    _
  $region3: #{pappm_forward.5} parent=0 // loop_header
    %s18 = sphi 0, %s22
    %p19 = scmp.ge.s32.totalorder %s18, 4
    %s28 = sphi 0, %s30
    %s31 = sphi 0, %s28
    %s32 = sphi 0, %s31
    %s48 = sphi 0, %s32
    %s54 = sphi 0, %s56
    %s57 = sphi 0, %s54
    %s58 = sphi 0, %s57
    %s74 = sphi 0, %s58
    %s80 = sphi 0, %s82
    %s83 = sphi 0, %s80
    %s84 = sphi 0, %s83
    %s100 = sphi 0, %s84
    %s104 = sphi 0, %s104
    %s106 = sphi 0, %s104
    %s107 = sphi 0, %s106
    %s121 = sphi 0, %s107
    %s125 = sphi 0, %s125
    %s127 = sphi 0, %s125
    %s128 = sphi 0, %s127
    %s142 = sphi 0, %s128
    %s146 = sphi 0, %s146
    %s148 = sphi 0, %s146
    %s149 = sphi 0, %s148
    %s163 = sphi 0, %s149
    %s167 = sphi 0, %s167
    %s169 = sphi 0, %s167
    %s170 = sphi 0, %s169
    %s184 = sphi 0, %s170
    %s188 = sphi 0, %s188
    %s190 = sphi 0, %s188
    %s191 = sphi 0, %s190
    %s205 = sphi 0, %s191
    %s209 = sphi 0, %s209
    %s211 = sphi 0, %s209
    %s212 = sphi 0, %s211
    %s226 = sphi 0, %s212
    %s230 = sphi 0, %s230
    %s232 = sphi 0, %s230
    %s233 = sphi 0, %s232
    %s247 = sphi 0, %s233
    %s251 = sphi 0, %s251
    %s253 = sphi 0, %s251
    %s254 = sphi 0, %s253
    %s268 = sphi 0, %s254
    %s272 = sphi 0, %s272
    %s274 = sphi 0, %s272
    %s275 = sphi 0, %s274
    %s289 = sphi 0, %s275
    %s295 = sphi 0, %s297
    %s298 = sphi 0, %s295
    %s299 = sphi 0, %s298
    %s315 = sphi 0, %s299
  $region4: #{pappm_forward.5} parent=0 // loop_header_branch
    %21 = sbr.rel (%p19) target = $region8
  $region5: #{pappm_forward.5} parent=0 // loop_body
    %s23 = ssub.s32 %s18, 1
    %s24 = ssub.s32 %s18, 2
    %s25 = sadd.s32 %s18, 1
    %s26 = ssub.s32 %s18, %s25
    %p27 = scmp.eq.s32.totalorder %s26, 0
    %s29 = sadd.s32 %s28, 1
    %s30 = scalar_select %p27, %s28, %s29
    %p33 = pneg %p27
    %p34 = scmp.eq.s32.totalorder %s18, 1
    %p35 = por %p33, %p34
    %p36 = scmp.ne.s32.totalorder %s28, %s31
    %p37 = scmp.eq.s32.totalorder %s18, 0
    %p38 = por %p36, %p37
    %p39 = scmp.ne.s32.totalorder %s28, %s31
    %p40 = scmp.eq.s32.totalorder %s23, 1
    %p41 = por %p39, %p40
    %p42 = scmp.ne.s32.totalorder %s31, %s32
    %p43 = scmp.eq.s32.totalorder %s23, 0
    %p44 = por %p42, %p43
    %p45 = scmp.ne.s32.totalorder %s31, %s32
    %p46 = scmp.eq.s32.totalorder %s24, 1
    %p47 = por %p45, %p46
    %p49 = scmp.ne.s32.totalorder %s32, %s48
    %p50 = scmp.eq.s32.totalorder %s24, 0
    %p51 = por %p49, %p50
    %s52 = ssub.s32 %s18, %s25
    %p53 = scmp.eq.s32.totalorder %s52, 0
    %s55 = sadd.s32 %s54, 1
    %s56 = scalar_select %p53, %s54, %s55
    %p59 = pneg %p53
    %p60 = scmp.eq.s32.totalorder %s18, 1
    %p61 = por %p59, %p60
    %p62 = scmp.ne.s32.totalorder %s54, %s57
    %p63 = scmp.eq.s32.totalorder %s18, 0
    %p64 = por %p62, %p63
    %p65 = scmp.ne.s32.totalorder %s54, %s57
    %p66 = scmp.eq.s32.totalorder %s23, 1
    %p67 = por %p65, %p66
    %p68 = scmp.ne.s32.totalorder %s57, %s58
    %p69 = scmp.eq.s32.totalorder %s23, 0
    %p70 = por %p68, %p69
    %p71 = scmp.ne.s32.totalorder %s57, %s58
    %p72 = scmp.eq.s32.totalorder %s24, 1
    %p73 = por %p71, %p72
    %p75 = scmp.ne.s32.totalorder %s58, %s74
    %p76 = scmp.eq.s32.totalorder %s24, 0
    %p77 = por %p75, %p76
    %s78 = ssub.s32 %s18, %s25
    %p79 = scmp.eq.s32.totalorder %s78, 0
    %s81 = sadd.s32 %s80, 1
    %s82 = scalar_select %p79, %s80, %s81
    %p85 = pneg %p79
    %p86 = scmp.eq.s32.totalorder %s18, 1
    %p87 = por %p85, %p86
    %p88 = scmp.ne.s32.totalorder %s80, %s83
    %p89 = scmp.eq.s32.totalorder %s18, 0
    %p90 = por %p88, %p89
    %p91 = scmp.ne.s32.totalorder %s80, %s83
    %p92 = scmp.eq.s32.totalorder %s23, 1
    %p93 = por %p91, %p92
    %p94 = scmp.ne.s32.totalorder %s83, %s84
    %p95 = scmp.eq.s32.totalorder %s23, 0
    %p96 = por %p94, %p95
    %p97 = scmp.ne.s32.totalorder %s83, %s84
    %p98 = scmp.eq.s32.totalorder %s24, 1
    %p99 = por %p97, %p98
    %p101 = scmp.ne.s32.totalorder %s84, %s100
    %p102 = scmp.eq.s32.totalorder %s24, 0
    %p103 = por %p101, %p102
    %s105 = sadd.s32 %s104, 1
    %p108 = scmp.eq.s32.totalorder %s18, 1
    %p109 = scmp.ne.s32.totalorder %s104, %s106
    %p110 = scmp.eq.s32.totalorder %s18, 0
    %p111 = por %p109, %p110
    %p112 = scmp.ne.s32.totalorder %s104, %s106
    %p113 = scmp.eq.s32.totalorder %s23, 1
    %p114 = por %p112, %p113
    %p115 = scmp.ne.s32.totalorder %s106, %s107
    %p116 = scmp.eq.s32.totalorder %s23, 0
    %p117 = por %p115, %p116
    %p118 = scmp.ne.s32.totalorder %s106, %s107
    %p119 = scmp.eq.s32.totalorder %s24, 1
    %p120 = por %p118, %p119
    %p122 = scmp.ne.s32.totalorder %s107, %s121
    %p123 = scmp.eq.s32.totalorder %s24, 0
    %p124 = por %p122, %p123
    %s126 = sadd.s32 %s125, 1
    %p129 = scmp.eq.s32.totalorder %s18, 1
    %p130 = scmp.ne.s32.totalorder %s125, %s127
    %p131 = scmp.eq.s32.totalorder %s18, 0
    %p132 = por %p130, %p131
    %p133 = scmp.ne.s32.totalorder %s125, %s127
    %p134 = scmp.eq.s32.totalorder %s23, 1
    %p135 = por %p133, %p134
    %p136 = scmp.ne.s32.totalorder %s127, %s128
    %p137 = scmp.eq.s32.totalorder %s23, 0
    %p138 = por %p136, %p137
    %p139 = scmp.ne.s32.totalorder %s127, %s128
    %p140 = scmp.eq.s32.totalorder %s24, 1
    %p141 = por %p139, %p140
    %p143 = scmp.ne.s32.totalorder %s128, %s142
    %p144 = scmp.eq.s32.totalorder %s24, 0
    %p145 = por %p143, %p144
    %s147 = sadd.s32 %s146, 1
    %p150 = scmp.eq.s32.totalorder %s18, 1
    %p151 = scmp.ne.s32.totalorder %s146, %s148
    %p152 = scmp.eq.s32.totalorder %s18, 0
    %p153 = por %p151, %p152
    %p154 = scmp.ne.s32.totalorder %s146, %s148
    %p155 = scmp.eq.s32.totalorder %s23, 1
    %p156 = por %p154, %p155
    %p157 = scmp.ne.s32.totalorder %s148, %s149
    %p158 = scmp.eq.s32.totalorder %s23, 0
    %p159 = por %p157, %p158
    %p160 = scmp.ne.s32.totalorder %s148, %s149
    %p161 = scmp.eq.s32.totalorder %s24, 1
    %p162 = por %p160, %p161
    %p164 = scmp.ne.s32.totalorder %s149, %s163
    %p165 = scmp.eq.s32.totalorder %s24, 0
    %p166 = por %p164, %p165
    %s168 = sadd.s32 %s167, 1
    %p171 = scmp.eq.s32.totalorder %s18, 1
    %p172 = scmp.ne.s32.totalorder %s167, %s169
    %p173 = scmp.eq.s32.totalorder %s18, 0
    %p174 = por %p172, %p173
    %p175 = scmp.ne.s32.totalorder %s167, %s169
    %p176 = scmp.eq.s32.totalorder %s23, 1
    %p177 = por %p175, %p176
    %p178 = scmp.ne.s32.totalorder %s169, %s170
    %p179 = scmp.eq.s32.totalorder %s23, 0
    %p180 = por %p178, %p179
    %p181 = scmp.ne.s32.totalorder %s169, %s170
    %p182 = scmp.eq.s32.totalorder %s24, 1
    %p183 = por %p181, %p182
    %p185 = scmp.ne.s32.totalorder %s170, %s184
    %p186 = scmp.eq.s32.totalorder %s24, 0
    %p187 = por %p185, %p186
    %s189 = sadd.s32 %s188, 1
    %p192 = scmp.eq.s32.totalorder %s18, 1
    %p193 = scmp.ne.s32.totalorder %s188, %s190
    %p194 = scmp.eq.s32.totalorder %s18, 0
    %p195 = por %p193, %p194
    %p196 = scmp.ne.s32.totalorder %s188, %s190
    %p197 = scmp.eq.s32.totalorder %s23, 1
    %p198 = por %p196, %p197
    %p199 = scmp.ne.s32.totalorder %s190, %s191
    %p200 = scmp.eq.s32.totalorder %s23, 0
    %p201 = por %p199, %p200
    %p202 = scmp.ne.s32.totalorder %s190, %s191
    %p203 = scmp.eq.s32.totalorder %s24, 1
    %p204 = por %p202, %p203
    %p206 = scmp.ne.s32.totalorder %s191, %s205
    %p207 = scmp.eq.s32.totalorder %s24, 0
    %p208 = por %p206, %p207
    %s210 = sadd.s32 %s209, 1
    %p213 = scmp.eq.s32.totalorder %s18, 1
    %p214 = scmp.ne.s32.totalorder %s209, %s211
    %p215 = scmp.eq.s32.totalorder %s18, 0
    %p216 = por %p214, %p215
    %p217 = scmp.ne.s32.totalorder %s209, %s211
    %p218 = scmp.eq.s32.totalorder %s23, 1
    %p219 = por %p217, %p218
    %p220 = scmp.ne.s32.totalorder %s211, %s212
    %p221 = scmp.eq.s32.totalorder %s23, 0
    %p222 = por %p220, %p221
    %p223 = scmp.ne.s32.totalorder %s211, %s212
    %p224 = scmp.eq.s32.totalorder %s24, 1
    %p225 = por %p223, %p224
    %p227 = scmp.ne.s32.totalorder %s212, %s226
    %p228 = scmp.eq.s32.totalorder %s24, 0
    %p229 = por %p227, %p228
    %s231 = sadd.s32 %s230, 1
    %p234 = scmp.eq.s32.totalorder %s18, 1
    %p235 = scmp.ne.s32.totalorder %s230, %s232
    %p236 = scmp.eq.s32.totalorder %s18, 0
    %p237 = por %p235, %p236
    %p238 = scmp.ne.s32.totalorder %s230, %s232
    %p239 = scmp.eq.s32.totalorder %s23, 1
    %p240 = por %p238, %p239
    %p241 = scmp.ne.s32.totalorder %s232, %s233
    %p242 = scmp.eq.s32.totalorder %s23, 0
    %p243 = por %p241, %p242
    %p244 = scmp.ne.s32.totalorder %s232, %s233
    %p245 = scmp.eq.s32.totalorder %s24, 1
    %p246 = por %p244, %p245
    %p248 = scmp.ne.s32.totalorder %s233, %s247
    %p249 = scmp.eq.s32.totalorder %s24, 0
    %p250 = por %p248, %p249
    %s252 = sadd.s32 %s251, 1
    %p255 = scmp.eq.s32.totalorder %s18, 1
    %p256 = scmp.ne.s32.totalorder %s251, %s253
    %p257 = scmp.eq.s32.totalorder %s18, 0
    %p258 = por %p256, %p257
    %p259 = scmp.ne.s32.totalorder %s251, %s253
    %p260 = scmp.eq.s32.totalorder %s23, 1
    %p261 = por %p259, %p260
    %p262 = scmp.ne.s32.totalorder %s253, %s254
    %p263 = scmp.eq.s32.totalorder %s23, 0
    %p264 = por %p262, %p263
    %p265 = scmp.ne.s32.totalorder %s253, %s254
    %p266 = scmp.eq.s32.totalorder %s24, 1
    %p267 = por %p265, %p266
    %p269 = scmp.ne.s32.totalorder %s254, %s268
    %p270 = scmp.eq.s32.totalorder %s24, 0
    %p271 = por %p269, %p270
    %s273 = sadd.s32 %s272, 1
    %p276 = scmp.eq.s32.totalorder %s18, 1
    %p277 = scmp.ne.s32.totalorder %s272, %s274
    %p278 = scmp.eq.s32.totalorder %s18, 0
    %p279 = por %p277, %p278
    %p280 = scmp.ne.s32.totalorder %s272, %s274
    %p281 = scmp.eq.s32.totalorder %s23, 1
    %p282 = por %p280, %p281
    %p283 = scmp.ne.s32.totalorder %s274, %s275
    %p284 = scmp.eq.s32.totalorder %s23, 0
    %p285 = por %p283, %p284
    %p286 = scmp.ne.s32.totalorder %s274, %s275
    %p287 = scmp.eq.s32.totalorder %s24, 1
    %p288 = por %p286, %p287
    %p290 = scmp.ne.s32.totalorder %s275, %s289
    %p291 = scmp.eq.s32.totalorder %s24, 0
    %p292 = por %p290, %p291
    %s293 = ssub.s32 %s18, %s25
    %p294 = scmp.eq.s32.totalorder %s293, 0
    %s296 = sadd.s32 %s295, 1
    %s297 = scalar_select %p294, %s295, %s296
    %p300 = pneg %p294
    %p301 = scmp.eq.s32.totalorder %s18, 1
    %p302 = por %p300, %p301
    %p303 = scmp.ne.s32.totalorder %s295, %s298
    %p304 = scmp.eq.s32.totalorder %s18, 0
    %p305 = por %p303, %p304
    %p306 = scmp.ne.s32.totalorder %s295, %s298
    %p307 = scmp.eq.s32.totalorder %s23, 1
    %p308 = por %p306, %p307
    %p309 = scmp.ne.s32.totalorder %s298, %s299
    %p310 = scmp.eq.s32.totalorder %s23, 0
    %p311 = por %p309, %p310
    %p312 = scmp.ne.s32.totalorder %s298, %s299
    %p313 = scmp.eq.s32.totalorder %s24, 1
    %p314 = por %p312, %p313
    %p316 = scmp.ne.s32.totalorder %s299, %s315
    %p317 = scmp.eq.s32.totalorder %s24, 0
    %p318 = por %p316, %p317
    %p319 = scmp.le.s32.totalorder 1, %s18
    %p320 = scmp.lt.s32.totalorder %s18, 3
    %p321 = pnand %p319, %p320
    %p322 = pneg %p321
    // Predicated region
    $region9: #{pappm_forward.5} parent=5 // pred_check
      _
    $region10: #{pappm_forward.5} parent=5 // pred_check_branch
      %324 = sbr.rel (%p321) target = $region12
    $region11: #{pappm_forward.5} parent=5 // pred_region
      %s325 = ssub.s32 %s18, 1
      // Predicated region
      $region13: #{pappm_forward.5} parent=11 // pred_check
        %p326 = pneg %p117
      $region14: #{pappm_forward.5} parent=11 // pred_check_branch
        %328 = sbr.rel (%p326) target = $region16
      $region15: #{pappm_forward.5} parent=11 // pred_region
        _
      $region16: #{pappm_forward.5} parent=11 // pred_fallthru
        _
      // Predicated region
      $region17: #{pappm_forward.5} parent=11 // pred_check
        %p329 = pneg %p138
      $region18: #{pappm_forward.5} parent=11 // pred_check_branch
        %331 = sbr.rel (%p329) target = $region20
      $region19: #{pappm_forward.5} parent=11 // pred_region
        _
      $region20: #{pappm_forward.5} parent=11 // pred_fallthru
        _
      // Predicated region
      $region21: #{pappm_forward.5} parent=11 // pred_check
        %p332 = pneg %p159
      $region22: #{pappm_forward.5} parent=11 // pred_check_branch
        %334 = sbr.rel (%p332) target = $region24
      $region23: #{pappm_forward.5} parent=11 // pred_region
        _
      $region24: #{pappm_forward.5} parent=11 // pred_fallthru
        _
      // Predicated region
      $region25: #{pappm_forward.5} parent=11 // pred_check
        %p335 = pneg %p180
      $region26: #{pappm_forward.5} parent=11 // pred_check_branch
        %337 = sbr.rel (%p335) target = $region28
      $region27: #{pappm_forward.5} parent=11 // pred_region
        _
      $region28: #{pappm_forward.5} parent=11 // pred_fallthru
        _
      // Predicated region
      $region29: #{pappm_forward.5} parent=11 // pred_check
        %p338 = pneg %p201
      $region30: #{pappm_forward.5} parent=11 // pred_check_branch
        %340 = sbr.rel (%p338) target = $region32
      $region31: #{pappm_forward.5} parent=11 // pred_region
        _
      $region32: #{pappm_forward.5} parent=11 // pred_fallthru
        _
      // Predicated region
      $region33: #{pappm_forward.5} parent=11 // pred_check
        %p341 = pneg %p222
      $region34: #{pappm_forward.5} parent=11 // pred_check_branch
        %343 = sbr.rel (%p341) target = $region36
      $region35: #{pappm_forward.5} parent=11 // pred_region
        _
      $region36: #{pappm_forward.5} parent=11 // pred_fallthru
        _
      // Predicated region
      $region37: #{pappm_forward.5} parent=11 // pred_check
        %p344 = pneg %p243
      $region38: #{pappm_forward.5} parent=11 // pred_check_branch
        %346 = sbr.rel (%p344) target = $region40
      $region39: #{pappm_forward.5} parent=11 // pred_region
        _
      $region40: #{pappm_forward.5} parent=11 // pred_fallthru
        _
      // Predicated region
      $region41: #{pappm_forward.5} parent=11 // pred_check
        %p347 = pneg %p264
      $region42: #{pappm_forward.5} parent=11 // pred_check_branch
        %349 = sbr.rel (%p347) target = $region44
      $region43: #{pappm_forward.5} parent=11 // pred_region
        _
      $region44: #{pappm_forward.5} parent=11 // pred_fallthru
        _
      // Predicated region
      $region45: #{pappm_forward.5} parent=11 // pred_check
        %p350 = pneg %p285
      $region46: #{pappm_forward.5} parent=11 // pred_check_branch
        %352 = sbr.rel (%p350) target = $region48
      $region47: #{pappm_forward.5} parent=11 // pred_region
        _
      $region48: #{pappm_forward.5} parent=11 // pred_fallthru
        _
    $region12: #{pappm_forward.5} parent=5 // pred_fallthru
      _
    %p353 = scmp.lt.s32.totalorder %s18, 2
    // Predicated region
    $region49: #{pappm_forward.5} parent=5 // pred_check
      %p354 = pneg %p353
    $region50: #{pappm_forward.5} parent=5 // pred_check_branch
      %356 = sbr.rel (%p354) target = $region52
    $region51: #{pappm_forward.5} parent=5 // pred_region
      // Predicated region
      $region53: #{pappm_forward.5} parent=51 // pred_check
        %p357 = pneg %p38
      $region54: #{pappm_forward.5} parent=51 // pred_check_branch
        %359 = sbr.rel (%p357) target = $region56
      $region55: #{pappm_forward.5} parent=51 // pred_region
        %s360 = smul.u32 32, %s18
        %p361 = scmp.lt.s32.totalorder %s360, 63
        %s362 = scalar_select %p361, %s360, 63
        %s363 = smul.addr %s362, 8
        %s364 = scalar_lea.vmem %s0, %s363
        %s365 = smul.u32 32, %s18
      $region56: #{pappm_forward.5} parent=51 // pred_fallthru
        _
      // Predicated region
      $region57: #{pappm_forward.5} parent=51 // pred_check
        %p366 = pneg %p64
      $region58: #{pappm_forward.5} parent=51 // pred_check_branch
        %368 = sbr.rel (%p366) target = $region60
      $region59: #{pappm_forward.5} parent=51 // pred_region
        %s369 = smul.u32 32, %s18
        %p370 = scmp.lt.s32.totalorder %s369, 63
        %s371 = scalar_select %p370, %s369, 63
        %s372 = smul.addr %s371, 8
        %s373 = scalar_lea.vmem %s1, %s372
        %s374 = smul.u32 32, %s18
      $region60: #{pappm_forward.5} parent=51 // pred_fallthru
        _
      // Predicated region
      $region61: #{pappm_forward.5} parent=51 // pred_check
        %p375 = pneg %p90
      $region62: #{pappm_forward.5} parent=51 // pred_check_branch
        %377 = sbr.rel (%p375) target = $region64
      $region63: #{pappm_forward.5} parent=51 // pred_region
        %s378 = smul.u32 32, %s18
        %p379 = scmp.lt.s32.totalorder %s378, 63
        %s380 = scalar_select %p379, %s378, 63
        %s381 = smul.addr %s380, 8
        %s382 = scalar_lea.vmem %s2, %s381
        %s383 = smul.u32 32, %s18
      $region64: #{pappm_forward.5} parent=51 // pred_fallthru
        _
    $region52: #{pappm_forward.5} parent=5 // pred_fallthru
      _
    %p384 = scmp.le.s32.totalorder 1, %s18
    %p385 = scmp.lt.s32.totalorder %s18, 3
    %p386 = pnand %p384, %p385
    %p387 = pneg %p386
    // Predicated region
    $region65: #{pappm_forward.5} parent=5 // pred_check
      _
    $region66: #{pappm_forward.5} parent=5 // pred_check_branch
      %389 = sbr.rel (%p386) target = $region68
    $region67: #{pappm_forward.5} parent=5 // pred_region
      %s390 = ssub.s32 %s18, 1
      %s391 = smul.u32 32, %s23
      %p392 = scmp.lt.s32.totalorder %s391, 63
      %s393 = scalar_select %p392, %s391, 63
      %s394 = smul.addr %s393, 8
      %s395 = scalar_lea.vmem %s0, %s394
      %p396 = pneg %p44
      %p397 = pneg %p41
      %s398 = smul.u32 32, %s23
      %p399 = scmp.lt.s32.totalorder %s398, 63
      %s400 = scalar_select %p399, %s398, 63
      %s401 = smul.addr %s400, 8
      %s402 = scalar_lea.vmem %s1, %s401
      %p403 = pneg %p70
      %p404 = pneg %p67
      %s405 = smul.u32 32, %s23
      %p406 = scmp.lt.s32.totalorder %s405, 63
      %s407 = scalar_select %p406, %s405, 63
      %s408 = smul.addr %s407, 8
      %s409 = scalar_lea.vmem %s2, %s408
      %p410 = pneg %p96
      %p411 = pneg %p93
      %p412 = pneg %p117
      %p413 = pneg %p114
      %p414 = pneg %p138
      %p415 = pneg %p135
      %p416 = pneg %p159
      %p417 = pneg %p156
      %p418 = pneg %p180
      %p419 = pneg %p177
      %p420 = pneg %p201
      %p421 = pneg %p198
      %p422 = pneg %p222
      %p423 = pneg %p219
      %p424 = pneg %p243
      %p425 = pneg %p240
      %p426 = pneg %p264
      %p427 = pneg %p261
      %p428 = pneg %p285
      %p429 = pneg %p282
      %p430 = pneg %p311
      %p431 = pneg %p308
      %s432 = smul.u32 32, %s23
      %p433 = scmp.lt.s32.totalorder %s432, 63
      %s434 = scalar_select %p433, %s432, 63
      %s435 = smul.addr %s434, 8
      %s436 = scalar_lea.vmem %s12, %s435
      %s437 = smul.u32 32, %s23
      %p438 = scmp.lt.s32.totalorder %s437, 63
      %s439 = scalar_select %p438, %s437, 63
      %s440 = smul.addr %s439, 8
      %s441 = scalar_lea.vmem %s0, %s440
      %s442 = smul.u32 32, %s23
      %s443 = smul.u32 32, %s23
      %p444 = scmp.lt.s32.totalorder %s443, 63
      %s445 = scalar_select %p444, %s443, 63
      %s446 = smul.addr %s445, 8
      %s447 = scalar_lea.vmem %s1, %s446
      %s448 = smul.u32 32, %s23
      %s449 = smul.u32 32, %s23
      %p450 = scmp.lt.s32.totalorder %s449, 63
      %s451 = scalar_select %p450, %s449, 63
      %s452 = smul.addr %s451, 8
      %s453 = scalar_lea.vmem %s2, %s452
      %s454 = smul.u32 32, %s23
      %s455 = smul.u32 32, %s23
      %p456 = scmp.lt.s32.totalorder %s455, 63
      %s457 = scalar_select %p456, %s455, 63
      %s458 = smul.addr %s457, 8
      %s459 = scalar_lea.vmem %s12, %s458
      %s460 = smul.u32 32, %s23
      %v461 = vld [vmem:[%s441] sm:$0xff]
      %v462 = vld [vmem:[%s441 + $0x8] sm:$0xff]
      %v463 = vld [vmem:[%s441 + $0x10] sm:$0xff]
      %v464 = vld [vmem:[%s441 + $0x18] sm:$0xff]
      %v465 = vld [vmem:[%s441 + $0x20] sm:$0xff]
      %v466 = vld [vmem:[%s441 + $0x28] sm:$0xff]
      %v467 = vld [vmem:[%s441 + $0x30] sm:$0xff]
      %v468 = vld [vmem:[%s441 + $0x38] sm:$0xff]
      %v469 = vld [vmem:[%s441 + $0x40] sm:$0xff]
      %v470 = vld [vmem:[%s441 + $0x48] sm:$0xff]
      %v471 = vld [vmem:[%s441 + $0x50] sm:$0xff]
      %v472 = vld [vmem:[%s441 + $0x58] sm:$0xff]
      %v473 = vld [vmem:[%s441 + $0x60] sm:$0xff]
      %v474 = vld [vmem:[%s441 + $0x68] sm:$0xff]
      %v475 = vld [vmem:[%s441 + $0x70] sm:$0xff]
      %v476 = vld [vmem:[%s441 + $0x78] sm:$0xff]
      %v477 = vld [vmem:[%s441 + $0x80] sm:$0xff]
      %v478 = vld [vmem:[%s441 + $0x88] sm:$0xff]
      %v479 = vld [vmem:[%s441 + $0x90] sm:$0xff]
      %v480 = vld [vmem:[%s441 + $0x98] sm:$0xff]
      %v481 = vld [vmem:[%s441 + $0xa0] sm:$0xff]
      %v482 = vld [vmem:[%s441 + $0xa8] sm:$0xff]
      %v483 = vld [vmem:[%s441 + $0xb0] sm:$0xff]
      %v484 = vld [vmem:[%s441 + $0xb8] sm:$0xff]
      %v485 = vld [vmem:[%s441 + $0xc0] sm:$0xff]
      %v486 = vld [vmem:[%s441 + $0xc8] sm:$0xff]
      %v487 = vld [vmem:[%s441 + $0xd0] sm:$0xff]
      %v488 = vld [vmem:[%s441 + $0xd8] sm:$0xff]
      %v489 = vld [vmem:[%s441 + $0xe0] sm:$0xff]
      %v490 = vld [vmem:[%s441 + $0xe8] sm:$0xff]
      %v491 = vld [vmem:[%s441 + $0xf0] sm:$0xff]
      %v492 = vld [vmem:[%s441 + $0xf8] sm:$0xff]
      %v493 = vld [vmem:[%s3] sm:$0x1]
      %v495 = vlaneseq
      %v496 = vshrl.u32 %v495, 7
      %v497 = vsub.s32 0, %v496
      %v498 = vrot.slane %v493, %v497
      %v500 = vmul.f32 %v461, %v498
      %v501 = vmul.f32 %v462, %v498
      %v502 = vmul.f32 %v463, %v498
      %v503 = vmul.f32 %v464, %v498
      %v504 = vmul.f32 %v465, %v498
      %v505 = vmul.f32 %v466, %v498
      %v506 = vmul.f32 %v467, %v498
      %v507 = vmul.f32 %v468, %v498
      %v508 = vmul.f32 %v469, %v498
      %v509 = vmul.f32 %v470, %v498
      %v510 = vmul.f32 %v471, %v498
      %v511 = vmul.f32 %v472, %v498
      %v512 = vmul.f32 %v473, %v498
      %v513 = vmul.f32 %v474, %v498
      %v514 = vmul.f32 %v475, %v498
      %v515 = vmul.f32 %v476, %v498
      %v516 = vmul.f32 %v477, %v498
      %v517 = vmul.f32 %v478, %v498
      %v518 = vmul.f32 %v479, %v498
      %v519 = vmul.f32 %v480, %v498
      %v520 = vmul.f32 %v481, %v498
      %v521 = vmul.f32 %v482, %v498
      %v522 = vmul.f32 %v483, %v498
      %v523 = vmul.f32 %v484, %v498
      %v524 = vmul.f32 %v485, %v498
      %v525 = vmul.f32 %v486, %v498
      %v526 = vmul.f32 %v487, %v498
      %v527 = vmul.f32 %v488, %v498
      %v528 = vmul.f32 %v489, %v498
      %v529 = vmul.f32 %v490, %v498
      %v530 = vmul.f32 %v491, %v498
      %v531 = vmul.f32 %v492, %v498
      %v532 = vld [vmem:[%s4] sm:$0x1]
      %v534 = vlaneseq
      %v535 = vshrl.u32 %v534, 7
      %v536 = vsub.s32 0, %v535
      %v537 = vrot.slane %v532, %v536
      %v539 = vadd.f32 %v500, %v537
      %v540 = vadd.f32 %v501, %v537
      %v541 = vadd.f32 %v502, %v537
      %v542 = vadd.f32 %v503, %v537
      %v543 = vadd.f32 %v504, %v537
      %v544 = vadd.f32 %v505, %v537
      %v545 = vadd.f32 %v506, %v537
      %v546 = vadd.f32 %v507, %v537
      %v547 = vadd.f32 %v508, %v537
      %v548 = vadd.f32 %v509, %v537
      %v549 = vadd.f32 %v510, %v537
      %v550 = vadd.f32 %v511, %v537
      %v551 = vadd.f32 %v512, %v537
      %v552 = vadd.f32 %v513, %v537
      %v553 = vadd.f32 %v514, %v537
      %v554 = vadd.f32 %v515, %v537
      %v555 = vadd.f32 %v516, %v537
      %v556 = vadd.f32 %v517, %v537
      %v557 = vadd.f32 %v518, %v537
      %v558 = vadd.f32 %v519, %v537
      %v559 = vadd.f32 %v520, %v537
      %v560 = vadd.f32 %v521, %v537
      %v561 = vadd.f32 %v522, %v537
      %v562 = vadd.f32 %v523, %v537
      %v563 = vadd.f32 %v524, %v537
      %v564 = vadd.f32 %v525, %v537
      %v565 = vadd.f32 %v526, %v537
      %v566 = vadd.f32 %v527, %v537
      %v567 = vadd.f32 %v528, %v537
      %v568 = vadd.f32 %v529, %v537
      %v569 = vadd.f32 %v530, %v537
      %v570 = vadd.f32 %v531, %v537
      %v571 = vmax.f32 %v539, 0.0
      %v572 = vmax.f32 %v540, 0.0
      %v573 = vmax.f32 %v541, 0.0
      %v574 = vmax.f32 %v542, 0.0
      %v575 = vmax.f32 %v543, 0.0
      %v576 = vmax.f32 %v544, 0.0
      %v577 = vmax.f32 %v545, 0.0
      %v578 = vmax.f32 %v546, 0.0
      %v579 = vmax.f32 %v547, 0.0
      %v580 = vmax.f32 %v548, 0.0
      %v581 = vmax.f32 %v549, 0.0
      %v582 = vmax.f32 %v550, 0.0
      %v583 = vmax.f32 %v551, 0.0
      %v584 = vmax.f32 %v552, 0.0
      %v585 = vmax.f32 %v553, 0.0
      %v586 = vmax.f32 %v554, 0.0
      %v587 = vmax.f32 %v555, 0.0
      %v588 = vmax.f32 %v556, 0.0
      %v589 = vmax.f32 %v557, 0.0
      %v590 = vmax.f32 %v558, 0.0
      %v591 = vmax.f32 %v559, 0.0
      %v592 = vmax.f32 %v560, 0.0
      %v593 = vmax.f32 %v561, 0.0
      %v594 = vmax.f32 %v562, 0.0
      %v595 = vmax.f32 %v563, 0.0
      %v596 = vmax.f32 %v564, 0.0
      %v597 = vmax.f32 %v565, 0.0
      %v598 = vmax.f32 %v566, 0.0
      %v599 = vmax.f32 %v567, 0.0
      %v600 = vmax.f32 %v568, 0.0
      %v601 = vmax.f32 %v569, 0.0
      %v602 = vmax.f32 %v570, 0.0
      %v603 = vld [vmem:[%s447] sm:$0xff]
      %v604 = vld [vmem:[%s447 + $0x8] sm:$0xff]
      %v605 = vld [vmem:[%s447 + $0x10] sm:$0xff]
      %v606 = vld [vmem:[%s447 + $0x18] sm:$0xff]
      %v607 = vld [vmem:[%s447 + $0x20] sm:$0xff]
      %v608 = vld [vmem:[%s447 + $0x28] sm:$0xff]
      %v609 = vld [vmem:[%s447 + $0x30] sm:$0xff]
      %v610 = vld [vmem:[%s447 + $0x38] sm:$0xff]
      %v611 = vld [vmem:[%s447 + $0x40] sm:$0xff]
      %v612 = vld [vmem:[%s447 + $0x48] sm:$0xff]
      %v613 = vld [vmem:[%s447 + $0x50] sm:$0xff]
      %v614 = vld [vmem:[%s447 + $0x58] sm:$0xff]
      %v615 = vld [vmem:[%s447 + $0x60] sm:$0xff]
      %v616 = vld [vmem:[%s447 + $0x68] sm:$0xff]
      %v617 = vld [vmem:[%s447 + $0x70] sm:$0xff]
      %v618 = vld [vmem:[%s447 + $0x78] sm:$0xff]
      %v619 = vld [vmem:[%s447 + $0x80] sm:$0xff]
      %v620 = vld [vmem:[%s447 + $0x88] sm:$0xff]
      %v621 = vld [vmem:[%s447 + $0x90] sm:$0xff]
      %v622 = vld [vmem:[%s447 + $0x98] sm:$0xff]
      %v623 = vld [vmem:[%s447 + $0xa0] sm:$0xff]
      %v624 = vld [vmem:[%s447 + $0xa8] sm:$0xff]
      %v625 = vld [vmem:[%s447 + $0xb0] sm:$0xff]
      %v626 = vld [vmem:[%s447 + $0xb8] sm:$0xff]
      %v627 = vld [vmem:[%s447 + $0xc0] sm:$0xff]
      %v628 = vld [vmem:[%s447 + $0xc8] sm:$0xff]
      %v629 = vld [vmem:[%s447 + $0xd0] sm:$0xff]
      %v630 = vld [vmem:[%s447 + $0xd8] sm:$0xff]
      %v631 = vld [vmem:[%s447 + $0xe0] sm:$0xff]
      %v632 = vld [vmem:[%s447 + $0xe8] sm:$0xff]
      %v633 = vld [vmem:[%s447 + $0xf0] sm:$0xff]
      %v634 = vld [vmem:[%s447 + $0xf8] sm:$0xff]
      %v635 = vld [vmem:[%s5] sm:$0x1]
      %v637 = vlaneseq
      %v638 = vshrl.u32 %v637, 7
      %v639 = vsub.s32 0, %v638
      %v640 = vrot.slane %v635, %v639
      %v642 = vmul.f32 %v603, %v640
      %v643 = vmul.f32 %v604, %v640
      %v644 = vmul.f32 %v605, %v640
      %v645 = vmul.f32 %v606, %v640
      %v646 = vmul.f32 %v607, %v640
      %v647 = vmul.f32 %v608, %v640
      %v648 = vmul.f32 %v609, %v640
      %v649 = vmul.f32 %v610, %v640
      %v650 = vmul.f32 %v611, %v640
      %v651 = vmul.f32 %v612, %v640
      %v652 = vmul.f32 %v613, %v640
      %v653 = vmul.f32 %v614, %v640
      %v654 = vmul.f32 %v615, %v640
      %v655 = vmul.f32 %v616, %v640
      %v656 = vmul.f32 %v617, %v640
      %v657 = vmul.f32 %v618, %v640
      %v658 = vmul.f32 %v619, %v640
      %v659 = vmul.f32 %v620, %v640
      %v660 = vmul.f32 %v621, %v640
      %v661 = vmul.f32 %v622, %v640
      %v662 = vmul.f32 %v623, %v640
      %v663 = vmul.f32 %v624, %v640
      %v664 = vmul.f32 %v625, %v640
      %v665 = vmul.f32 %v626, %v640
      %v666 = vmul.f32 %v627, %v640
      %v667 = vmul.f32 %v628, %v640
      %v668 = vmul.f32 %v629, %v640
      %v669 = vmul.f32 %v630, %v640
      %v670 = vmul.f32 %v631, %v640
      %v671 = vmul.f32 %v632, %v640
      %v672 = vmul.f32 %v633, %v640
      %v673 = vmul.f32 %v634, %v640
      %v674 = vld [vmem:[%s6] sm:$0x1]
      %v676 = vlaneseq
      %v677 = vshrl.u32 %v676, 7
      %v678 = vsub.s32 0, %v677
      %v679 = vrot.slane %v674, %v678
      %v681 = vadd.f32 %v642, %v679
      %v682 = vadd.f32 %v643, %v679
      %v683 = vadd.f32 %v644, %v679
      %v684 = vadd.f32 %v645, %v679
      %v685 = vadd.f32 %v646, %v679
      %v686 = vadd.f32 %v647, %v679
      %v687 = vadd.f32 %v648, %v679
      %v688 = vadd.f32 %v649, %v679
      %v689 = vadd.f32 %v650, %v679
      %v690 = vadd.f32 %v651, %v679
      %v691 = vadd.f32 %v652, %v679
      %v692 = vadd.f32 %v653, %v679
      %v693 = vadd.f32 %v654, %v679
      %v694 = vadd.f32 %v655, %v679
      %v695 = vadd.f32 %v656, %v679
      %v696 = vadd.f32 %v657, %v679
      %v697 = vadd.f32 %v658, %v679
      %v698 = vadd.f32 %v659, %v679
      %v699 = vadd.f32 %v660, %v679
      %v700 = vadd.f32 %v661, %v679
      %v701 = vadd.f32 %v662, %v679
      %v702 = vadd.f32 %v663, %v679
      %v703 = vadd.f32 %v664, %v679
      %v704 = vadd.f32 %v665, %v679
      %v705 = vadd.f32 %v666, %v679
      %v706 = vadd.f32 %v667, %v679
      %v707 = vadd.f32 %v668, %v679
      %v708 = vadd.f32 %v669, %v679
      %v709 = vadd.f32 %v670, %v679
      %v710 = vadd.f32 %v671, %v679
      %v711 = vadd.f32 %v672, %v679
      %v712 = vadd.f32 %v673, %v679
      %v713 = vmax.f32 %v681, 0.0
      %v714 = vmax.f32 %v682, 0.0
      %v715 = vmax.f32 %v683, 0.0
      %v716 = vmax.f32 %v684, 0.0
      %v717 = vmax.f32 %v685, 0.0
      %v718 = vmax.f32 %v686, 0.0
      %v719 = vmax.f32 %v687, 0.0
      %v720 = vmax.f32 %v688, 0.0
      %v721 = vmax.f32 %v689, 0.0
      %v722 = vmax.f32 %v690, 0.0
      %v723 = vmax.f32 %v691, 0.0
      %v724 = vmax.f32 %v692, 0.0
      %v725 = vmax.f32 %v693, 0.0
      %v726 = vmax.f32 %v694, 0.0
      %v727 = vmax.f32 %v695, 0.0
      %v728 = vmax.f32 %v696, 0.0
      %v729 = vmax.f32 %v697, 0.0
      %v730 = vmax.f32 %v698, 0.0
      %v731 = vmax.f32 %v699, 0.0
      %v732 = vmax.f32 %v700, 0.0
      %v733 = vmax.f32 %v701, 0.0
      %v734 = vmax.f32 %v702, 0.0
      %v735 = vmax.f32 %v703, 0.0
      %v736 = vmax.f32 %v704, 0.0
      %v737 = vmax.f32 %v705, 0.0
      %v738 = vmax.f32 %v706, 0.0
      %v739 = vmax.f32 %v707, 0.0
      %v740 = vmax.f32 %v708, 0.0
      %v741 = vmax.f32 %v709, 0.0
      %v742 = vmax.f32 %v710, 0.0
      %v743 = vmax.f32 %v711, 0.0
      %v744 = vmax.f32 %v712, 0.0
      %v745 = vld [vmem:[%s453] sm:$0xff]
      %v746 = vld [vmem:[%s453 + $0x8] sm:$0xff]
      %v747 = vld [vmem:[%s453 + $0x10] sm:$0xff]
      %v748 = vld [vmem:[%s453 + $0x18] sm:$0xff]
      %v749 = vld [vmem:[%s453 + $0x20] sm:$0xff]
      %v750 = vld [vmem:[%s453 + $0x28] sm:$0xff]
      %v751 = vld [vmem:[%s453 + $0x30] sm:$0xff]
      %v752 = vld [vmem:[%s453 + $0x38] sm:$0xff]
      %v753 = vld [vmem:[%s453 + $0x40] sm:$0xff]
      %v754 = vld [vmem:[%s453 + $0x48] sm:$0xff]
      %v755 = vld [vmem:[%s453 + $0x50] sm:$0xff]
      %v756 = vld [vmem:[%s453 + $0x58] sm:$0xff]
      %v757 = vld [vmem:[%s453 + $0x60] sm:$0xff]
      %v758 = vld [vmem:[%s453 + $0x68] sm:$0xff]
      %v759 = vld [vmem:[%s453 + $0x70] sm:$0xff]
      %v760 = vld [vmem:[%s453 + $0x78] sm:$0xff]
      %v761 = vld [vmem:[%s453 + $0x80] sm:$0xff]
      %v762 = vld [vmem:[%s453 + $0x88] sm:$0xff]
      %v763 = vld [vmem:[%s453 + $0x90] sm:$0xff]
      %v764 = vld [vmem:[%s453 + $0x98] sm:$0xff]
      %v765 = vld [vmem:[%s453 + $0xa0] sm:$0xff]
      %v766 = vld [vmem:[%s453 + $0xa8] sm:$0xff]
      %v767 = vld [vmem:[%s453 + $0xb0] sm:$0xff]
      %v768 = vld [vmem:[%s453 + $0xb8] sm:$0xff]
      %v769 = vld [vmem:[%s453 + $0xc0] sm:$0xff]
      %v770 = vld [vmem:[%s453 + $0xc8] sm:$0xff]
      %v771 = vld [vmem:[%s453 + $0xd0] sm:$0xff]
      %v772 = vld [vmem:[%s453 + $0xd8] sm:$0xff]
      %v773 = vld [vmem:[%s453 + $0xe0] sm:$0xff]
      %v774 = vld [vmem:[%s453 + $0xe8] sm:$0xff]
      %v775 = vld [vmem:[%s453 + $0xf0] sm:$0xff]
      %v776 = vld [vmem:[%s453 + $0xf8] sm:$0xff]
      %v777 = vld [vmem:[%s7] sm:$0x1]
      %v779 = vlaneseq
      %v780 = vshrl.u32 %v779, 7
      %v781 = vsub.s32 0, %v780
      %v782 = vrot.slane %v777, %v781
      %v784 = vmul.f32 %v745, %v782
      %v785 = vmul.f32 %v746, %v782
      %v786 = vmul.f32 %v747, %v782
      %v787 = vmul.f32 %v748, %v782
      %v788 = vmul.f32 %v749, %v782
      %v789 = vmul.f32 %v750, %v782
      %v790 = vmul.f32 %v751, %v782
      %v791 = vmul.f32 %v752, %v782
      %v792 = vmul.f32 %v753, %v782
      %v793 = vmul.f32 %v754, %v782
      %v794 = vmul.f32 %v755, %v782
      %v795 = vmul.f32 %v756, %v782
      %v796 = vmul.f32 %v757, %v782
      %v797 = vmul.f32 %v758, %v782
      %v798 = vmul.f32 %v759, %v782
      %v799 = vmul.f32 %v760, %v782
      %v800 = vmul.f32 %v761, %v782
      %v801 = vmul.f32 %v762, %v782
      %v802 = vmul.f32 %v763, %v782
      %v803 = vmul.f32 %v764, %v782
      %v804 = vmul.f32 %v765, %v782
      %v805 = vmul.f32 %v766, %v782
      %v806 = vmul.f32 %v767, %v782
      %v807 = vmul.f32 %v768, %v782
      %v808 = vmul.f32 %v769, %v782
      %v809 = vmul.f32 %v770, %v782
      %v810 = vmul.f32 %v771, %v782
      %v811 = vmul.f32 %v772, %v782
      %v812 = vmul.f32 %v773, %v782
      %v813 = vmul.f32 %v774, %v782
      %v814 = vmul.f32 %v775, %v782
      %v815 = vmul.f32 %v776, %v782
      %v816 = vld [vmem:[%s8] sm:$0x1]
      %v818 = vlaneseq
      %v819 = vshrl.u32 %v818, 7
      %v820 = vsub.s32 0, %v819
      %v821 = vrot.slane %v816, %v820
      %v823 = vadd.f32 %v784, %v821
      %v824 = vadd.f32 %v785, %v821
      %v825 = vadd.f32 %v786, %v821
      %v826 = vadd.f32 %v787, %v821
      %v827 = vadd.f32 %v788, %v821
      %v828 = vadd.f32 %v789, %v821
      %v829 = vadd.f32 %v790, %v821
      %v830 = vadd.f32 %v791, %v821
      %v831 = vadd.f32 %v792, %v821
      %v832 = vadd.f32 %v793, %v821
      %v833 = vadd.f32 %v794, %v821
      %v834 = vadd.f32 %v795, %v821
      %v835 = vadd.f32 %v796, %v821
      %v836 = vadd.f32 %v797, %v821
      %v837 = vadd.f32 %v798, %v821
      %v838 = vadd.f32 %v799, %v821
      %v839 = vadd.f32 %v800, %v821
      %v840 = vadd.f32 %v801, %v821
      %v841 = vadd.f32 %v802, %v821
      %v842 = vadd.f32 %v803, %v821
      %v843 = vadd.f32 %v804, %v821
      %v844 = vadd.f32 %v805, %v821
      %v845 = vadd.f32 %v806, %v821
      %v846 = vadd.f32 %v807, %v821
      %v847 = vadd.f32 %v808, %v821
      %v848 = vadd.f32 %v809, %v821
      %v849 = vadd.f32 %v810, %v821
      %v850 = vadd.f32 %v811, %v821
      %v851 = vadd.f32 %v812, %v821
      %v852 = vadd.f32 %v813, %v821
      %v853 = vadd.f32 %v814, %v821
      %v854 = vadd.f32 %v815, %v821
      %v855 = vmax.f32 %v823, 0.0
      %v856 = vmax.f32 %v824, 0.0
      %v857 = vmax.f32 %v825, 0.0
      %v858 = vmax.f32 %v826, 0.0
      %v859 = vmax.f32 %v827, 0.0
      %v860 = vmax.f32 %v828, 0.0
      %v861 = vmax.f32 %v829, 0.0
      %v862 = vmax.f32 %v830, 0.0
      %v863 = vmax.f32 %v831, 0.0
      %v864 = vmax.f32 %v832, 0.0
      %v865 = vmax.f32 %v833, 0.0
      %v866 = vmax.f32 %v834, 0.0
      %v867 = vmax.f32 %v835, 0.0
      %v868 = vmax.f32 %v836, 0.0
      %v869 = vmax.f32 %v837, 0.0
      %v870 = vmax.f32 %v838, 0.0
      %v871 = vmax.f32 %v839, 0.0
      %v872 = vmax.f32 %v840, 0.0
      %v873 = vmax.f32 %v841, 0.0
      %v874 = vmax.f32 %v842, 0.0
      %v875 = vmax.f32 %v843, 0.0
      %v876 = vmax.f32 %v844, 0.0
      %v877 = vmax.f32 %v845, 0.0
      %v878 = vmax.f32 %v846, 0.0
      %v879 = vmax.f32 %v847, 0.0
      %v880 = vmax.f32 %v848, 0.0
      %v881 = vmax.f32 %v849, 0.0
      %v882 = vmax.f32 %v850, 0.0
      %v883 = vmax.f32 %v851, 0.0
      %v884 = vmax.f32 %v852, 0.0
      %v885 = vmax.f32 %v853, 0.0
      %v886 = vmax.f32 %v854, 0.0
      %v887 = vld [vmem:[%s9] sm:$0xff]
      %v888 = vld [vmem:[%s10] sm:$0xff]
      %v889 = vld [vmem:[%s10 + $0x8] sm:$0xff]
      %v890 = vld [vmem:[%s10 + $0x10] sm:$0xff]
      %v891 = vld [vmem:[%s10 + $0x18] sm:$0xff]
      %vm892 = vcmask 261120
      %v894 = vsel %vm892, %v713, 0
      %v897 = vsel %vm892, %v714, 0
      %v900 = vsel %vm892, %v715, 0
      %v903 = vsel %vm892, %v716, 0
      %v906 = vsel %vm892, %v717, 0
      %v909 = vsel %vm892, %v718, 0
      %v912 = vsel %vm892, %v719, 0
      %v915 = vsel %vm892, %v720, 0
      %v918 = vsel %vm892, %v721, 0
      %v921 = vsel %vm892, %v722, 0
      %v924 = vsel %vm892, %v723, 0
      %v927 = vsel %vm892, %v724, 0
      %v930 = vsel %vm892, %v725, 0
      %v933 = vsel %vm892, %v726, 0
      %v936 = vsel %vm892, %v727, 0
      %v939 = vsel %vm892, %v728, 0
      %v942 = vsel %vm892, %v729, 0
      %v945 = vsel %vm892, %v730, 0
      %v948 = vsel %vm892, %v731, 0
      %v951 = vsel %vm892, %v732, 0
      %v954 = vsel %vm892, %v733, 0
      %v957 = vsel %vm892, %v734, 0
      %v960 = vsel %vm892, %v735, 0
      %v963 = vsel %vm892, %v736, 0
      %v966 = vsel %vm892, %v737, 0
      %v969 = vsel %vm892, %v738, 0
      %v972 = vsel %vm892, %v739, 0
      %v975 = vsel %vm892, %v740, 0
      %v978 = vsel %vm892, %v741, 0
      %v981 = vsel %vm892, %v742, 0
      %v984 = vsel %vm892, %v743, 0
      %v987 = vsel %vm892, %v744, 0
      %989 = vmatprep.subr.mxu0 0.0
      %990 = vmatpush1.msra.mxu0 %v888
      %991 = vmatprep.subr.mxu0 0.0
      %992 = vmatpush1.msra.mxu0 %v889
      %993 = vmatprep.subr.mxu0 0.0
      %994 = vmatpush1.msra.mxu0 %v890
      %995 = vmatprep.subr.mxu0 0.0
      %996 = vmatpush1.msra.mxu0 %v891
      %997 = vmatprep.subr.mxu0 0.0
      %998 = vmatpush1.msra.mxu0 0.0
      %999 = vmatprep.subr.mxu0 0.0
      %1000 = vmatpush1.msra.mxu0 0.0
      %1001 = vmatprep.subr.mxu0 0.0
      %1002 = vmatpush1.msra.mxu0 0.0
      %1003 = vmatprep.subr.mxu0 0.0
      %1004 = vmatpush1.msra.mxu0 0.0
      %1005 = vmatprep.subr.mxu0 0.0
      %1006 = vmatpush1.msra.mxu0 0.0
      %1007 = vmatprep.subr.mxu0 0.0
      %1008 = vmatpush1.msra.mxu0 0.0
      %1009 = vmatprep.subr.mxu0 0.0
      %1010 = vmatpush1.msra.mxu0 0.0
      %1011 = vmatprep.subr.mxu0 0.0
      %1012 = vmatpush1.msra.mxu0 0.0
      %1013 = vmatprep.subr.mxu0 0.0
      %1014 = vmatpush1.msra.mxu0 0.0
      %1015 = vmatprep.subr.mxu0 0.0
      %1016 = vmatpush1.msra.mxu0 0.0
      %1017 = vmatprep.subr.mxu0 0.0
      %1018 = vmatpush1.msra.mxu0 0.0
      %1019 = vmatprep.subr.mxu0 0.0
      %1020 = vmatpush1.msra.mxu0 0.0
      %1021 = vmatprep.subr.mxu0 0.0
      %1022 = vmatpush1.msra.mxu0 0.0
      %1023 = vmatprep.subr.mxu0 0.0
      %1024 = vmatpush1.msra.mxu0 0.0
      %1025 = vmatprep.subr.mxu0 0.0
      %1026 = vmatpush1.msra.mxu0 0.0
      %1027 = vmatprep.subr.mxu0 0.0
      %1028 = vmatpush1.msra.mxu0 0.0
      %1029 = vmatprep.subr.mxu0 0.0
      %1030 = vmatpush1.msra.mxu0 0.0
      %1031 = vmatprep.subr.mxu0 0.0
      %1032 = vmatpush1.msra.mxu0 0.0
      %1033 = vmatprep.subr.mxu0 0.0
      %1034 = vmatpush1.msra.mxu0 0.0
      %1035 = vmatprep.subr.mxu0 0.0
      %1036 = vmatpush1.msra.mxu0 0.0
      %1037 = vmatprep.subr.mxu0 0.0
      %1038 = vmatpush1.msra.mxu0 0.0
      %1039 = vmatprep.subr.mxu0 0.0
      %1040 = vmatpush1.msra.mxu0 0.0
      %1041 = vmatprep.subr.mxu0 0.0
      %1042 = vmatpush1.msra.mxu0 0.0
      %1043 = vmatprep.subr.mxu0 0.0
      %1044 = vmatpush1.msra.mxu0 0.0
      %1045 = vmatprep.subr.mxu0 0.0
      %1046 = vmatpush1.msra.mxu0 0.0
      %1047 = vmatprep.subr.mxu0 0.0
      %1048 = vmatpush1.msra.mxu0 0.0
      %1049 = vmatprep.subr.mxu0 0.0
      %1050 = vmatpush1.msra.mxu0 0.0
      %1051 = vmatprep.subr.mxu0 0.0
      %1052 = vmatpush1.msra.mxu0 0.0
      %1053 = vmatprep.mubr.f32.mxu0 0.0
      %1054 = vmatmul.mubr.f32.gmra.mrb[0].mxu0 %v894
      %v1055 = vpop.f32.mrb[0].mxu0
      %v1056 = vadd.f32 0.0, %v1055
      %v1057 = vpop.f32.mrb[0].mxu0
      %1058 = vmatprep.mubr.f32.mxu0 0.0
      %1059 = vmatmul.mubr.f32.gmra.mrb[0].mxu0 %v897
      %v1060 = vpop.f32.mrb[0].mxu0
      %v1061 = vadd.f32 0.0, %v1060
      %v1062 = vpop.f32.mrb[0].mxu0
      %1063 = vmatprep.mubr.f32.mxu0 0.0
      %1064 = vmatmul.mubr.f32.gmra.mrb[0].mxu0 %v900
      %v1065 = vpop.f32.mrb[0].mxu0
      %v1066 = vadd.f32 0.0, %v1065
      %v1067 = vpop.f32.mrb[0].mxu0
      %1068 = vmatprep.mubr.f32.mxu0 0.0
      %1069 = vmatmul.mubr.f32.gmra.mrb[0].mxu0 %v903
      %v1070 = vpop.f32.mrb[0].mxu0
      %v1071 = vadd.f32 0.0, %v1070
      %v1072 = vpop.f32.mrb[0].mxu0
      %1073 = vmatprep.mubr.f32.mxu0 0.0
      %1074 = vmatmul.mubr.f32.gmra.mrb[0].mxu0 %v906
      %v1075 = vpop.f32.mrb[0].mxu0
      %v1076 = vadd.f32 0.0, %v1075
      %v1077 = vpop.f32.mrb[0].mxu0
      %1078 = vmatprep.mubr.f32.mxu0 0.0
      %1079 = vmatmul.mubr.f32.gmra.mrb[0].mxu0 %v909
      %v1080 = vpop.f32.mrb[0].mxu0
      %v1081 = vadd.f32 0.0, %v1080
      %v1082 = vpop.f32.mrb[0].mxu0
      %1083 = vmatprep.mubr.f32.mxu0 0.0
      %1084 = vmatmul.mubr.f32.gmra.mrb[0].mxu0 %v912
      %v1085 = vpop.f32.mrb[0].mxu0
      %v1086 = vadd.f32 0.0, %v1085
      %v1087 = vpop.f32.mrb[0].mxu0
      %1088 = vmatprep.mubr.f32.mxu0 0.0
      %1089 = vmatmul.mubr.f32.gmra.mrb[0].mxu0 %v915
      %v1090 = vpop.f32.mrb[0].mxu0
      %v1091 = vadd.f32 0.0, %v1090
      %v1092 = vpop.f32.mrb[0].mxu0
      %1093 = vmatprep.mubr.f32.mxu0 0.0
      %1094 = vmatmul.mubr.f32.gmra.mrb[0].mxu0 %v918
      %v1095 = vpop.f32.mrb[0].mxu0
      %v1096 = vadd.f32 0.0, %v1095
      %v1097 = vpop.f32.mrb[0].mxu0
      %1098 = vmatprep.mubr.f32.mxu0 0.0
      %1099 = vmatmul.mubr.f32.gmra.mrb[0].mxu0 %v921
      %v1100 = vpop.f32.mrb[0].mxu0
      %v1101 = vadd.f32 0.0, %v1100
      %v1102 = vpop.f32.mrb[0].mxu0
      %1103 = vmatprep.mubr.f32.mxu0 0.0
      %1104 = vmatmul.mubr.f32.gmra.mrb[0].mxu0 %v924
      %v1105 = vpop.f32.mrb[0].mxu0
      %v1106 = vadd.f32 0.0, %v1105
      %v1107 = vpop.f32.mrb[0].mxu0
      %1108 = vmatprep.mubr.f32.mxu0 0.0
      %1109 = vmatmul.mubr.f32.gmra.mrb[0].mxu0 %v927
      %v1110 = vpop.f32.mrb[0].mxu0
      %v1111 = vadd.f32 0.0, %v1110
      %v1112 = vpop.f32.mrb[0].mxu0
      %1113 = vmatprep.mubr.f32.mxu0 0.0
      %1114 = vmatmul.mubr.f32.gmra.mrb[0].mxu0 %v930
      %v1115 = vpop.f32.mrb[0].mxu0
      %v1116 = vadd.f32 0.0, %v1115
      %v1117 = vpop.f32.mrb[0].mxu0
      %1118 = vmatprep.mubr.f32.mxu0 0.0
      %1119 = vmatmul.mubr.f32.gmra.mrb[0].mxu0 %v933
      %v1120 = vpop.f32.mrb[0].mxu0
      %v1121 = vadd.f32 0.0, %v1120
      %v1122 = vpop.f32.mrb[0].mxu0
      %1123 = vmatprep.mubr.f32.mxu0 0.0
      %1124 = vmatmul.mubr.f32.gmra.mrb[0].mxu0 %v936
      %v1125 = vpop.f32.mrb[0].mxu0
      %v1126 = vadd.f32 0.0, %v1125
      %v1127 = vpop.f32.mrb[0].mxu0
      %1128 = vmatprep.mubr.f32.mxu0 0.0
      %1129 = vmatmul.mubr.f32.gmra.mrb[0].mxu0 %v939
      %v1130 = vpop.f32.mrb[0].mxu0
      %v1131 = vadd.f32 0.0, %v1130
      %v1132 = vpop.f32.mrb[0].mxu0
      %1133 = vmatprep.mubr.f32.mxu0 0.0
      %1134 = vmatmul.mubr.f32.gmra.mrb[0].mxu0 %v942
      %v1135 = vpop.f32.mrb[0].mxu0
      %v1136 = vadd.f32 0.0, %v1135
      %v1137 = vpop.f32.mrb[0].mxu0
      %1138 = vmatprep.mubr.f32.mxu0 0.0
      %1139 = vmatmul.mubr.f32.gmra.mrb[0].mxu0 %v945
      %v1140 = vpop.f32.mrb[0].mxu0
      %v1141 = vadd.f32 0.0, %v1140
      %v1142 = vpop.f32.mrb[0].mxu0
      %1143 = vmatprep.mubr.f32.mxu0 0.0
      %1144 = vmatmul.mubr.f32.gmra.mrb[0].mxu0 %v948
      %v1145 = vpop.f32.mrb[0].mxu0
      %v1146 = vadd.f32 0.0, %v1145
      %v1147 = vpop.f32.mrb[0].mxu0
      %1148 = vmatprep.mubr.f32.mxu0 0.0
      %1149 = vmatmul.mubr.f32.gmra.mrb[0].mxu0 %v951
      %v1150 = vpop.f32.mrb[0].mxu0
      %v1151 = vadd.f32 0.0, %v1150
      %v1152 = vpop.f32.mrb[0].mxu0
      %1153 = vmatprep.mubr.f32.mxu0 0.0
      %1154 = vmatmul.mubr.f32.gmra.mrb[0].mxu0 %v954
      %v1155 = vpop.f32.mrb[0].mxu0
      %v1156 = vadd.f32 0.0, %v1155
      %v1157 = vpop.f32.mrb[0].mxu0
      %1158 = vmatprep.mubr.f32.mxu0 0.0
      %1159 = vmatmul.mubr.f32.gmra.mrb[0].mxu0 %v957
      %v1160 = vpop.f32.mrb[0].mxu0
      %v1161 = vadd.f32 0.0, %v1160
      %v1162 = vpop.f32.mrb[0].mxu0
      %1163 = vmatprep.mubr.f32.mxu0 0.0
      %1164 = vmatmul.mubr.f32.gmra.mrb[0].mxu0 %v960
      %v1165 = vpop.f32.mrb[0].mxu0
      %v1166 = vadd.f32 0.0, %v1165
      %v1167 = vpop.f32.mrb[0].mxu0
      %1168 = vmatprep.mubr.f32.mxu0 0.0
      %1169 = vmatmul.mubr.f32.gmra.mrb[0].mxu0 %v963
      %v1170 = vpop.f32.mrb[0].mxu0
      %v1171 = vadd.f32 0.0, %v1170
      %v1172 = vpop.f32.mrb[0].mxu0
      %1173 = vmatprep.mubr.f32.mxu0 0.0
      %1174 = vmatmul.mubr.f32.gmra.mrb[0].mxu0 %v966
      %v1175 = vpop.f32.mrb[0].mxu0
      %v1176 = vadd.f32 0.0, %v1175
      %v1177 = vpop.f32.mrb[0].mxu0
      %1178 = vmatprep.mubr.f32.mxu0 0.0
      %1179 = vmatmul.mubr.f32.gmra.mrb[0].mxu0 %v969
      %v1180 = vpop.f32.mrb[0].mxu0
      %v1181 = vadd.f32 0.0, %v1180
      %v1182 = vpop.f32.mrb[0].mxu0
      %1183 = vmatprep.mubr.f32.mxu0 0.0
      %1184 = vmatmul.mubr.f32.gmra.mrb[0].mxu0 %v972
      %v1185 = vpop.f32.mrb[0].mxu0
      %v1186 = vadd.f32 0.0, %v1185
      %v1187 = vpop.f32.mrb[0].mxu0
      %1188 = vmatprep.mubr.f32.mxu0 0.0
      %1189 = vmatmul.mubr.f32.gmra.mrb[0].mxu0 %v975
      %v1190 = vpop.f32.mrb[0].mxu0
      %v1191 = vadd.f32 0.0, %v1190
      %v1192 = vpop.f32.mrb[0].mxu0
      %1193 = vmatprep.mubr.f32.mxu0 0.0
      %1194 = vmatmul.mubr.f32.gmra.mrb[0].mxu0 %v978
      %v1195 = vpop.f32.mrb[0].mxu0
      %v1196 = vadd.f32 0.0, %v1195
      %v1197 = vpop.f32.mrb[0].mxu0
      %1198 = vmatprep.mubr.f32.mxu0 0.0
      %1199 = vmatmul.mubr.f32.gmra.mrb[0].mxu0 %v981
      %v1200 = vpop.f32.mrb[0].mxu0
      %v1201 = vadd.f32 0.0, %v1200
      %v1202 = vpop.f32.mrb[0].mxu0
      %1203 = vmatprep.mubr.f32.mxu0 0.0
      %1204 = vmatmul.mubr.f32.gmra.mrb[0].mxu0 %v984
      %v1205 = vpop.f32.mrb[0].mxu0
      %v1206 = vadd.f32 0.0, %v1205
      %v1207 = vpop.f32.mrb[0].mxu0
      %1208 = vmatprep.mubr.f32.mxu0 0.0
      %1209 = vmatmul.mubr.f32.gmra.mrb[0].mxu0 %v987
      %v1210 = vpop.f32.mrb[0].mxu0
      %v1211 = vadd.f32 0.0, %v1210
      %v1212 = vpop.f32.mrb[0].mxu0
      %1213 = vdwg.mxu0
      %vm1214 = vcmask 64512
      %v1216 = vsel %vm1214, %v571, 0
      %v1219 = vsel %vm1214, %v572, 0
      %v1222 = vsel %vm1214, %v573, 0
      %v1225 = vsel %vm1214, %v574, 0
      %v1228 = vsel %vm1214, %v575, 0
      %v1231 = vsel %vm1214, %v576, 0
      %v1234 = vsel %vm1214, %v577, 0
      %v1237 = vsel %vm1214, %v578, 0
      %v1240 = vsel %vm1214, %v579, 0
      %v1243 = vsel %vm1214, %v580, 0
      %v1246 = vsel %vm1214, %v581, 0
      %v1249 = vsel %vm1214, %v582, 0
      %v1252 = vsel %vm1214, %v583, 0
      %v1255 = vsel %vm1214, %v584, 0
      %v1258 = vsel %vm1214, %v585, 0
      %v1261 = vsel %vm1214, %v586, 0
      %v1264 = vsel %vm1214, %v587, 0
      %v1267 = vsel %vm1214, %v588, 0
      %v1270 = vsel %vm1214, %v589, 0
      %v1273 = vsel %vm1214, %v590, 0
      %v1276 = vsel %vm1214, %v591, 0
      %v1279 = vsel %vm1214, %v592, 0
      %v1282 = vsel %vm1214, %v593, 0
      %v1285 = vsel %vm1214, %v594, 0
      %v1288 = vsel %vm1214, %v595, 0
      %v1291 = vsel %vm1214, %v596, 0
      %v1294 = vsel %vm1214, %v597, 0
      %v1297 = vsel %vm1214, %v598, 0
      %v1300 = vsel %vm1214, %v599, 0
      %v1303 = vsel %vm1214, %v600, 0
      %v1306 = vsel %vm1214, %v601, 0
      %v1309 = vsel %vm1214, %v602, 0
      %1311 = vmatprep.subr.mxu0 0.0
      %1312 = vmatpush1.msra.mxu0 %v887
      %1313 = vmatprep.subr.mxu0 0.0
      %1314 = vmatpush1.msra.mxu0 0.0
      %1315 = vmatprep.subr.mxu0 0.0
      %1316 = vmatpush1.msra.mxu0 0.0
      %1317 = vmatprep.subr.mxu0 0.0
      %1318 = vmatpush1.msra.mxu0 0.0
      %1319 = vmatprep.subr.mxu0 0.0
      %1320 = vmatpush1.msra.mxu0 0.0
      %1321 = vmatprep.subr.mxu0 0.0
      %1322 = vmatpush1.msra.mxu0 0.0
      %1323 = vmatprep.subr.mxu0 0.0
      %1324 = vmatpush1.msra.mxu0 0.0
      %1325 = vmatprep.subr.mxu0 0.0
      %1326 = vmatpush1.msra.mxu0 0.0
      %1327 = vmatprep.subr.mxu0 0.0
      %1328 = vmatpush1.msra.mxu0 0.0
      %1329 = vmatprep.subr.mxu0 0.0
      %1330 = vmatpush1.msra.mxu0 0.0
      %1331 = vmatprep.subr.mxu0 0.0
      %1332 = vmatpush1.msra.mxu0 0.0
      %1333 = vmatprep.subr.mxu0 0.0
      %1334 = vmatpush1.msra.mxu0 0.0
      %1335 = vmatprep.subr.mxu0 0.0
      %1336 = vmatpush1.msra.mxu0 0.0
      %1337 = vmatprep.subr.mxu0 0.0
      %1338 = vmatpush1.msra.mxu0 0.0
      %1339 = vmatprep.subr.mxu0 0.0
      %1340 = vmatpush1.msra.mxu0 0.0
      %1341 = vmatprep.subr.mxu0 0.0
      %1342 = vmatpush1.msra.mxu0 0.0
      %1343 = vmatprep.subr.mxu0 0.0
      %1344 = vmatpush1.msra.mxu0 0.0
      %1345 = vmatprep.subr.mxu0 0.0
      %1346 = vmatpush1.msra.mxu0 0.0
      %1347 = vmatprep.subr.mxu0 0.0
      %1348 = vmatpush1.msra.mxu0 0.0
      %1349 = vmatprep.subr.mxu0 0.0
      %1350 = vmatpush1.msra.mxu0 0.0
      %1351 = vmatprep.subr.mxu0 0.0
      %1352 = vmatpush1.msra.mxu0 0.0
      %1353 = vmatprep.subr.mxu0 0.0
      %1354 = vmatpush1.msra.mxu0 0.0
      %1355 = vmatprep.subr.mxu0 0.0
      %1356 = vmatpush1.msra.mxu0 0.0
      %1357 = vmatprep.subr.mxu0 0.0
      %1358 = vmatpush1.msra.mxu0 0.0
      %1359 = vmatprep.subr.mxu0 0.0
      %1360 = vmatpush1.msra.mxu0 0.0
      %1361 = vmatprep.subr.mxu0 0.0
      %1362 = vmatpush1.msra.mxu0 0.0
      %1363 = vmatprep.subr.mxu0 0.0
      %1364 = vmatpush1.msra.mxu0 0.0
      %1365 = vmatprep.subr.mxu0 0.0
      %1366 = vmatpush1.msra.mxu0 0.0
      %1367 = vmatprep.subr.mxu0 0.0
      %1368 = vmatpush1.msra.mxu0 0.0
      %1369 = vmatprep.subr.mxu0 0.0
      %1370 = vmatpush1.msra.mxu0 0.0
      %1371 = vmatprep.subr.mxu0 0.0
      %1372 = vmatpush1.msra.mxu0 0.0
      %1373 = vmatprep.subr.mxu0 0.0
      %1374 = vmatpush1.msra.mxu0 0.0
      %1375 = vmatprep.mubr.f32.mxu0 0.0
      %1376 = vmatmul.mubr.f32.gmra.mrb[0].mxu0 %v1216
      %v1377 = vpop.f32.mrb[0].mxu0
      %v1378 = vadd.f32 %v1056, %v1377
      %v1379 = vpop.f32.mrb[0].mxu0
      %1380 = vmatprep.mubr.f32.mxu0 0.0
      %1381 = vmatmul.mubr.f32.gmra.mrb[0].mxu0 %v1219
      %v1382 = vpop.f32.mrb[0].mxu0
      %v1383 = vadd.f32 %v1061, %v1382
      %v1384 = vpop.f32.mrb[0].mxu0
      %1385 = vmatprep.mubr.f32.mxu0 0.0
      %1386 = vmatmul.mubr.f32.gmra.mrb[0].mxu0 %v1222
      %v1387 = vpop.f32.mrb[0].mxu0
      %v1388 = vadd.f32 %v1066, %v1387
      %v1389 = vpop.f32.mrb[0].mxu0
      %1390 = vmatprep.mubr.f32.mxu0 0.0
      %1391 = vmatmul.mubr.f32.gmra.mrb[0].mxu0 %v1225
      %v1392 = vpop.f32.mrb[0].mxu0
      %v1393 = vadd.f32 %v1071, %v1392
      %v1394 = vpop.f32.mrb[0].mxu0
      %1395 = vmatprep.mubr.f32.mxu0 0.0
      %1396 = vmatmul.mubr.f32.gmra.mrb[0].mxu0 %v1228
      %v1397 = vpop.f32.mrb[0].mxu0
      %v1398 = vadd.f32 %v1076, %v1397
      %v1399 = vpop.f32.mrb[0].mxu0
      %1400 = vmatprep.mubr.f32.mxu0 0.0
      %1401 = vmatmul.mubr.f32.gmra.mrb[0].mxu0 %v1231
      %v1402 = vpop.f32.mrb[0].mxu0
      %v1403 = vadd.f32 %v1081, %v1402
      %v1404 = vpop.f32.mrb[0].mxu0
      %1405 = vmatprep.mubr.f32.mxu0 0.0
      %1406 = vmatmul.mubr.f32.gmra.mrb[0].mxu0 %v1234
      %v1407 = vpop.f32.mrb[0].mxu0
      %v1408 = vadd.f32 %v1086, %v1407
      %v1409 = vpop.f32.mrb[0].mxu0
      %1410 = vmatprep.mubr.f32.mxu0 0.0
      %1411 = vmatmul.mubr.f32.gmra.mrb[0].mxu0 %v1237
      %v1412 = vpop.f32.mrb[0].mxu0
      %v1413 = vadd.f32 %v1091, %v1412
      %v1414 = vpop.f32.mrb[0].mxu0
      %1415 = vmatprep.mubr.f32.mxu0 0.0
      %1416 = vmatmul.mubr.f32.gmra.mrb[0].mxu0 %v1240
      %v1417 = vpop.f32.mrb[0].mxu0
      %v1418 = vadd.f32 %v1096, %v1417
      %v1419 = vpop.f32.mrb[0].mxu0
      %1420 = vmatprep.mubr.f32.mxu0 0.0
      %1421 = vmatmul.mubr.f32.gmra.mrb[0].mxu0 %v1243
      %v1422 = vpop.f32.mrb[0].mxu0
      %v1423 = vadd.f32 %v1101, %v1422
      %v1424 = vpop.f32.mrb[0].mxu0
      %1425 = vmatprep.mubr.f32.mxu0 0.0
      %1426 = vmatmul.mubr.f32.gmra.mrb[0].mxu0 %v1246
      %v1427 = vpop.f32.mrb[0].mxu0
      %v1428 = vadd.f32 %v1106, %v1427
      %v1429 = vpop.f32.mrb[0].mxu0
      %1430 = vmatprep.mubr.f32.mxu0 0.0
      %1431 = vmatmul.mubr.f32.gmra.mrb[0].mxu0 %v1249
      %v1432 = vpop.f32.mrb[0].mxu0
      %v1433 = vadd.f32 %v1111, %v1432
      %v1434 = vpop.f32.mrb[0].mxu0
      %1435 = vmatprep.mubr.f32.mxu0 0.0
      %1436 = vmatmul.mubr.f32.gmra.mrb[0].mxu0 %v1252
      %v1437 = vpop.f32.mrb[0].mxu0
      %v1438 = vadd.f32 %v1116, %v1437
      %v1439 = vpop.f32.mrb[0].mxu0
      %1440 = vmatprep.mubr.f32.mxu0 0.0
      %1441 = vmatmul.mubr.f32.gmra.mrb[0].mxu0 %v1255
      %v1442 = vpop.f32.mrb[0].mxu0
      %v1443 = vadd.f32 %v1121, %v1442
      %v1444 = vpop.f32.mrb[0].mxu0
      %1445 = vmatprep.mubr.f32.mxu0 0.0
      %1446 = vmatmul.mubr.f32.gmra.mrb[0].mxu0 %v1258
      %v1447 = vpop.f32.mrb[0].mxu0
      %v1448 = vadd.f32 %v1126, %v1447
      %v1449 = vpop.f32.mrb[0].mxu0
      %1450 = vmatprep.mubr.f32.mxu0 0.0
      %1451 = vmatmul.mubr.f32.gmra.mrb[0].mxu0 %v1261
      %v1452 = vpop.f32.mrb[0].mxu0
      %v1453 = vadd.f32 %v1131, %v1452
      %v1454 = vpop.f32.mrb[0].mxu0
      %1455 = vmatprep.mubr.f32.mxu0 0.0
      %1456 = vmatmul.mubr.f32.gmra.mrb[0].mxu0 %v1264
      %v1457 = vpop.f32.mrb[0].mxu0
      %v1458 = vadd.f32 %v1136, %v1457
      %v1459 = vpop.f32.mrb[0].mxu0
      %1460 = vmatprep.mubr.f32.mxu0 0.0
      %1461 = vmatmul.mubr.f32.gmra.mrb[0].mxu0 %v1267
      %v1462 = vpop.f32.mrb[0].mxu0
      %v1463 = vadd.f32 %v1141, %v1462
      %v1464 = vpop.f32.mrb[0].mxu0
      %1465 = vmatprep.mubr.f32.mxu0 0.0
      %1466 = vmatmul.mubr.f32.gmra.mrb[0].mxu0 %v1270
      %v1467 = vpop.f32.mrb[0].mxu0
      %v1468 = vadd.f32 %v1146, %v1467
      %v1469 = vpop.f32.mrb[0].mxu0
      %1470 = vmatprep.mubr.f32.mxu0 0.0
      %1471 = vmatmul.mubr.f32.gmra.mrb[0].mxu0 %v1273
      %v1472 = vpop.f32.mrb[0].mxu0
      %v1473 = vadd.f32 %v1151, %v1472
      %v1474 = vpop.f32.mrb[0].mxu0
      %1475 = vmatprep.mubr.f32.mxu0 0.0
      %1476 = vmatmul.mubr.f32.gmra.mrb[0].mxu0 %v1276
      %v1477 = vpop.f32.mrb[0].mxu0
      %v1478 = vadd.f32 %v1156, %v1477
      %v1479 = vpop.f32.mrb[0].mxu0
      %1480 = vmatprep.mubr.f32.mxu0 0.0
      %1481 = vmatmul.mubr.f32.gmra.mrb[0].mxu0 %v1279
      %v1482 = vpop.f32.mrb[0].mxu0
      %v1483 = vadd.f32 %v1161, %v1482
      %v1484 = vpop.f32.mrb[0].mxu0
      %1485 = vmatprep.mubr.f32.mxu0 0.0
      %1486 = vmatmul.mubr.f32.gmra.mrb[0].mxu0 %v1282
      %v1487 = vpop.f32.mrb[0].mxu0
      %v1488 = vadd.f32 %v1166, %v1487
      %v1489 = vpop.f32.mrb[0].mxu0
      %1490 = vmatprep.mubr.f32.mxu0 0.0
      %1491 = vmatmul.mubr.f32.gmra.mrb[0].mxu0 %v1285
      %v1492 = vpop.f32.mrb[0].mxu0
      %v1493 = vadd.f32 %v1171, %v1492
      %v1494 = vpop.f32.mrb[0].mxu0
      %1495 = vmatprep.mubr.f32.mxu0 0.0
      %1496 = vmatmul.mubr.f32.gmra.mrb[0].mxu0 %v1288
      %v1497 = vpop.f32.mrb[0].mxu0
      %v1498 = vadd.f32 %v1176, %v1497
      %v1499 = vpop.f32.mrb[0].mxu0
      %1500 = vmatprep.mubr.f32.mxu0 0.0
      %1501 = vmatmul.mubr.f32.gmra.mrb[0].mxu0 %v1291
      %v1502 = vpop.f32.mrb[0].mxu0
      %v1503 = vadd.f32 %v1181, %v1502
      %v1504 = vpop.f32.mrb[0].mxu0
      %1505 = vmatprep.mubr.f32.mxu0 0.0
      %1506 = vmatmul.mubr.f32.gmra.mrb[0].mxu0 %v1294
      %v1507 = vpop.f32.mrb[0].mxu0
      %v1508 = vadd.f32 %v1186, %v1507
      %v1509 = vpop.f32.mrb[0].mxu0
      %1510 = vmatprep.mubr.f32.mxu0 0.0
      %1511 = vmatmul.mubr.f32.gmra.mrb[0].mxu0 %v1297
      %v1512 = vpop.f32.mrb[0].mxu0
      %v1513 = vadd.f32 %v1191, %v1512
      %v1514 = vpop.f32.mrb[0].mxu0
      %1515 = vmatprep.mubr.f32.mxu0 0.0
      %1516 = vmatmul.mubr.f32.gmra.mrb[0].mxu0 %v1300
      %v1517 = vpop.f32.mrb[0].mxu0
      %v1518 = vadd.f32 %v1196, %v1517
      %v1519 = vpop.f32.mrb[0].mxu0
      %1520 = vmatprep.mubr.f32.mxu0 0.0
      %1521 = vmatmul.mubr.f32.gmra.mrb[0].mxu0 %v1303
      %v1522 = vpop.f32.mrb[0].mxu0
      %v1523 = vadd.f32 %v1201, %v1522
      %v1524 = vpop.f32.mrb[0].mxu0
      %1525 = vmatprep.mubr.f32.mxu0 0.0
      %1526 = vmatmul.mubr.f32.gmra.mrb[0].mxu0 %v1306
      %v1527 = vpop.f32.mrb[0].mxu0
      %v1528 = vadd.f32 %v1206, %v1527
      %v1529 = vpop.f32.mrb[0].mxu0
      %1530 = vmatprep.mubr.f32.mxu0 0.0
      %1531 = vmatmul.mubr.f32.gmra.mrb[0].mxu0 %v1309
      %v1532 = vpop.f32.mrb[0].mxu0
      %v1533 = vadd.f32 %v1211, %v1532
      %v1534 = vpop.f32.mrb[0].mxu0
      %1535 = vdwg.mxu0
      %v1536 = vld [vmem:[%s11] sm:$0xff]
      %v1537 = vld [vmem:[%s11 + $0x8] sm:$0xff]
      %vm1538 = vcmask 130048
      %v1540 = vsel %vm1538, %v855, 0
      %v1543 = vsel %vm1538, %v856, 0
      %v1546 = vsel %vm1538, %v857, 0
      %v1549 = vsel %vm1538, %v858, 0
      %v1552 = vsel %vm1538, %v859, 0
      %v1555 = vsel %vm1538, %v860, 0
      %v1558 = vsel %vm1538, %v861, 0
      %v1561 = vsel %vm1538, %v862, 0
      %v1564 = vsel %vm1538, %v863, 0
      %v1567 = vsel %vm1538, %v864, 0
      %v1570 = vsel %vm1538, %v865, 0
      %v1573 = vsel %vm1538, %v866, 0
      %v1576 = vsel %vm1538, %v867, 0
      %v1579 = vsel %vm1538, %v868, 0
      %v1582 = vsel %vm1538, %v869, 0
      %v1585 = vsel %vm1538, %v870, 0
      %v1588 = vsel %vm1538, %v871, 0
      %v1591 = vsel %vm1538, %v872, 0
      %v1594 = vsel %vm1538, %v873, 0
      %v1597 = vsel %vm1538, %v874, 0
      %v1600 = vsel %vm1538, %v875, 0
      %v1603 = vsel %vm1538, %v876, 0
      %v1606 = vsel %vm1538, %v877, 0
      %v1609 = vsel %vm1538, %v878, 0
      %v1612 = vsel %vm1538, %v879, 0
      %v1615 = vsel %vm1538, %v880, 0
      %v1618 = vsel %vm1538, %v881, 0
      %v1621 = vsel %vm1538, %v882, 0
      %v1624 = vsel %vm1538, %v883, 0
      %v1627 = vsel %vm1538, %v884, 0
      %v1630 = vsel %vm1538, %v885, 0
      %v1633 = vsel %vm1538, %v886, 0
      %1635 = vmatprep.subr.mxu0 0.0
      %1636 = vmatpush1.msra.mxu0 %v1536
      %1637 = vmatprep.subr.mxu0 0.0
      %1638 = vmatpush1.msra.mxu0 %v1537
      %1639 = vmatprep.subr.mxu0 0.0
      %1640 = vmatpush1.msra.mxu0 0.0
      %1641 = vmatprep.subr.mxu0 0.0
      %1642 = vmatpush1.msra.mxu0 0.0
      %1643 = vmatprep.subr.mxu0 0.0
      %1644 = vmatpush1.msra.mxu0 0.0
      %1645 = vmatprep.subr.mxu0 0.0
      %1646 = vmatpush1.msra.mxu0 0.0
      %1647 = vmatprep.subr.mxu0 0.0
      %1648 = vmatpush1.msra.mxu0 0.0
      %1649 = vmatprep.subr.mxu0 0.0
      %1650 = vmatpush1.msra.mxu0 0.0
      %1651 = vmatprep.subr.mxu0 0.0
      %1652 = vmatpush1.msra.mxu0 0.0
      %1653 = vmatprep.subr.mxu0 0.0
      %1654 = vmatpush1.msra.mxu0 0.0
      %1655 = vmatprep.subr.mxu0 0.0
      %1656 = vmatpush1.msra.mxu0 0.0
      %1657 = vmatprep.subr.mxu0 0.0
      %1658 = vmatpush1.msra.mxu0 0.0
      %1659 = vmatprep.subr.mxu0 0.0
      %1660 = vmatpush1.msra.mxu0 0.0
      %1661 = vmatprep.subr.mxu0 0.0
      %1662 = vmatpush1.msra.mxu0 0.0
      %1663 = vmatprep.subr.mxu0 0.0
      %1664 = vmatpush1.msra.mxu0 0.0
      %1665 = vmatprep.subr.mxu0 0.0
      %1666 = vmatpush1.msra.mxu0 0.0
      %1667 = vmatprep.subr.mxu0 0.0
      %1668 = vmatpush1.msra.mxu0 0.0
      %1669 = vmatprep.subr.mxu0 0.0
      %1670 = vmatpush1.msra.mxu0 0.0
      %1671 = vmatprep.subr.mxu0 0.0
      %1672 = vmatpush1.msra.mxu0 0.0
      %1673 = vmatprep.subr.mxu0 0.0
      %1674 = vmatpush1.msra.mxu0 0.0
      %1675 = vmatprep.subr.mxu0 0.0
      %1676 = vmatpush1.msra.mxu0 0.0
      %1677 = vmatprep.subr.mxu0 0.0
      %1678 = vmatpush1.msra.mxu0 0.0
      %1679 = vmatprep.subr.mxu0 0.0
      %1680 = vmatpush1.msra.mxu0 0.0
      %1681 = vmatprep.subr.mxu0 0.0
      %1682 = vmatpush1.msra.mxu0 0.0
      %1683 = vmatprep.subr.mxu0 0.0
      %1684 = vmatpush1.msra.mxu0 0.0
      %1685 = vmatprep.subr.mxu0 0.0
      %1686 = vmatpush1.msra.mxu0 0.0
      %1687 = vmatprep.subr.mxu0 0.0
      %1688 = vmatpush1.msra.mxu0 0.0
      %1689 = vmatprep.subr.mxu0 0.0
      %1690 = vmatpush1.msra.mxu0 0.0
      %1691 = vmatprep.subr.mxu0 0.0
      %1692 = vmatpush1.msra.mxu0 0.0
      %1693 = vmatprep.subr.mxu0 0.0
      %1694 = vmatpush1.msra.mxu0 0.0
      %1695 = vmatprep.subr.mxu0 0.0
      %1696 = vmatpush1.msra.mxu0 0.0
      %1697 = vmatprep.subr.mxu0 0.0
      %1698 = vmatpush1.msra.mxu0 0.0
      %1699 = vmatprep.mubr.f32.mxu0 0.0
      %1700 = vmatmul.mubr.f32.gmra.mrb[0].mxu0 %v1540
      %v1701 = vpop.f32.mrb[0].mxu0
      %v1702 = vadd.f32 0.0, %v1701
      %v1703 = vpop.f32.mrb[0].mxu0
      %1704 = vmatprep.mubr.f32.mxu0 0.0
      %1705 = vmatmul.mubr.f32.gmra.mrb[0].mxu0 %v1543
      %v1706 = vpop.f32.mrb[0].mxu0
      %v1707 = vadd.f32 0.0, %v1706
      %v1708 = vpop.f32.mrb[0].mxu0
      %1709 = vmatprep.mubr.f32.mxu0 0.0
      %1710 = vmatmul.mubr.f32.gmra.mrb[0].mxu0 %v1546
      %v1711 = vpop.f32.mrb[0].mxu0
      %v1712 = vadd.f32 0.0, %v1711
      %v1713 = vpop.f32.mrb[0].mxu0
      %1714 = vmatprep.mubr.f32.mxu0 0.0
      %1715 = vmatmul.mubr.f32.gmra.mrb[0].mxu0 %v1549
      %v1716 = vpop.f32.mrb[0].mxu0
      %v1717 = vadd.f32 0.0, %v1716
      %v1718 = vpop.f32.mrb[0].mxu0
      %1719 = vmatprep.mubr.f32.mxu0 0.0
      %1720 = vmatmul.mubr.f32.gmra.mrb[0].mxu0 %v1552
      %v1721 = vpop.f32.mrb[0].mxu0
      %v1722 = vadd.f32 0.0, %v1721
      %v1723 = vpop.f32.mrb[0].mxu0
      %1724 = vmatprep.mubr.f32.mxu0 0.0
      %1725 = vmatmul.mubr.f32.gmra.mrb[0].mxu0 %v1555
      %v1726 = vpop.f32.mrb[0].mxu0
      %v1727 = vadd.f32 0.0, %v1726
      %v1728 = vpop.f32.mrb[0].mxu0
      %1729 = vmatprep.mubr.f32.mxu0 0.0
      %1730 = vmatmul.mubr.f32.gmra.mrb[0].mxu0 %v1558
      %v1731 = vpop.f32.mrb[0].mxu0
      %v1732 = vadd.f32 0.0, %v1731
      %v1733 = vpop.f32.mrb[0].mxu0
      %1734 = vmatprep.mubr.f32.mxu0 0.0
      %1735 = vmatmul.mubr.f32.gmra.mrb[0].mxu0 %v1561
      %v1736 = vpop.f32.mrb[0].mxu0
      %v1737 = vadd.f32 0.0, %v1736
      %v1738 = vpop.f32.mrb[0].mxu0
      %1739 = vmatprep.mubr.f32.mxu0 0.0
      %1740 = vmatmul.mubr.f32.gmra.mrb[0].mxu0 %v1564
      %v1741 = vpop.f32.mrb[0].mxu0
      %v1742 = vadd.f32 0.0, %v1741
      %v1743 = vpop.f32.mrb[0].mxu0
      %1744 = vmatprep.mubr.f32.mxu0 0.0
      %1745 = vmatmul.mubr.f32.gmra.mrb[0].mxu0 %v1567
      %v1746 = vpop.f32.mrb[0].mxu0
      %v1747 = vadd.f32 0.0, %v1746
      %v1748 = vpop.f32.mrb[0].mxu0
      %1749 = vmatprep.mubr.f32.mxu0 0.0
      %1750 = vmatmul.mubr.f32.gmra.mrb[0].mxu0 %v1570
      %v1751 = vpop.f32.mrb[0].mxu0
      %v1752 = vadd.f32 0.0, %v1751
      %v1753 = vpop.f32.mrb[0].mxu0
      %1754 = vmatprep.mubr.f32.mxu0 0.0
      %1755 = vmatmul.mubr.f32.gmra.mrb[0].mxu0 %v1573
      %v1756 = vpop.f32.mrb[0].mxu0
      %v1757 = vadd.f32 0.0, %v1756
      %v1758 = vpop.f32.mrb[0].mxu0
      %1759 = vmatprep.mubr.f32.mxu0 0.0
      %1760 = vmatmul.mubr.f32.gmra.mrb[0].mxu0 %v1576
      %v1761 = vpop.f32.mrb[0].mxu0
      %v1762 = vadd.f32 0.0, %v1761
      %v1763 = vpop.f32.mrb[0].mxu0
      %1764 = vmatprep.mubr.f32.mxu0 0.0
      %1765 = vmatmul.mubr.f32.gmra.mrb[0].mxu0 %v1579
      %v1766 = vpop.f32.mrb[0].mxu0
      %v1767 = vadd.f32 0.0, %v1766
      %v1768 = vpop.f32.mrb[0].mxu0
      %1769 = vmatprep.mubr.f32.mxu0 0.0
      %1770 = vmatmul.mubr.f32.gmra.mrb[0].mxu0 %v1582
      %v1771 = vpop.f32.mrb[0].mxu0
      %v1772 = vadd.f32 0.0, %v1771
      %v1773 = vpop.f32.mrb[0].mxu0
      %1774 = vmatprep.mubr.f32.mxu0 0.0
      %1775 = vmatmul.mubr.f32.gmra.mrb[0].mxu0 %v1585
      %v1776 = vpop.f32.mrb[0].mxu0
      %v1777 = vadd.f32 0.0, %v1776
      %v1778 = vpop.f32.mrb[0].mxu0
      %1779 = vmatprep.mubr.f32.mxu0 0.0
      %1780 = vmatmul.mubr.f32.gmra.mrb[0].mxu0 %v1588
      %v1781 = vpop.f32.mrb[0].mxu0
      %v1782 = vadd.f32 0.0, %v1781
      %v1783 = vpop.f32.mrb[0].mxu0
      %1784 = vmatprep.mubr.f32.mxu0 0.0
      %1785 = vmatmul.mubr.f32.gmra.mrb[0].mxu0 %v1591
      %v1786 = vpop.f32.mrb[0].mxu0
      %v1787 = vadd.f32 0.0, %v1786
      %v1788 = vpop.f32.mrb[0].mxu0
      %1789 = vmatprep.mubr.f32.mxu0 0.0
      %1790 = vmatmul.mubr.f32.gmra.mrb[0].mxu0 %v1594
      %v1791 = vpop.f32.mrb[0].mxu0
      %v1792 = vadd.f32 0.0, %v1791
      %v1793 = vpop.f32.mrb[0].mxu0
      %1794 = vmatprep.mubr.f32.mxu0 0.0
      %1795 = vmatmul.mubr.f32.gmra.mrb[0].mxu0 %v1597
      %v1796 = vpop.f32.mrb[0].mxu0
      %v1797 = vadd.f32 0.0, %v1796
      %v1798 = vpop.f32.mrb[0].mxu0
      %1799 = vmatprep.mubr.f32.mxu0 0.0
      %1800 = vmatmul.mubr.f32.gmra.mrb[0].mxu0 %v1600
      %v1801 = vpop.f32.mrb[0].mxu0
      %v1802 = vadd.f32 0.0, %v1801
      %v1803 = vpop.f32.mrb[0].mxu0
      %1804 = vmatprep.mubr.f32.mxu0 0.0
      %1805 = vmatmul.mubr.f32.gmra.mrb[0].mxu0 %v1603
      %v1806 = vpop.f32.mrb[0].mxu0
      %v1807 = vadd.f32 0.0, %v1806
      %v1808 = vpop.f32.mrb[0].mxu0
      %1809 = vmatprep.mubr.f32.mxu0 0.0
      %1810 = vmatmul.mubr.f32.gmra.mrb[0].mxu0 %v1606
      %v1811 = vpop.f32.mrb[0].mxu0
      %v1812 = vadd.f32 0.0, %v1811
      %v1813 = vpop.f32.mrb[0].mxu0
      %1814 = vmatprep.mubr.f32.mxu0 0.0
      %1815 = vmatmul.mubr.f32.gmra.mrb[0].mxu0 %v1609
      %v1816 = vpop.f32.mrb[0].mxu0
      %v1817 = vadd.f32 0.0, %v1816
      %v1818 = vpop.f32.mrb[0].mxu0
      %1819 = vmatprep.mubr.f32.mxu0 0.0
      %1820 = vmatmul.mubr.f32.gmra.mrb[0].mxu0 %v1612
      %v1821 = vpop.f32.mrb[0].mxu0
      %v1822 = vadd.f32 0.0, %v1821
      %v1823 = vpop.f32.mrb[0].mxu0
      %1824 = vmatprep.mubr.f32.mxu0 0.0
      %1825 = vmatmul.mubr.f32.gmra.mrb[0].mxu0 %v1615
      %v1826 = vpop.f32.mrb[0].mxu0
      %v1827 = vadd.f32 0.0, %v1826
      %v1828 = vpop.f32.mrb[0].mxu0
      %1829 = vmatprep.mubr.f32.mxu0 0.0
      %1830 = vmatmul.mubr.f32.gmra.mrb[0].mxu0 %v1618
      %v1831 = vpop.f32.mrb[0].mxu0
      %v1832 = vadd.f32 0.0, %v1831
      %v1833 = vpop.f32.mrb[0].mxu0
      %1834 = vmatprep.mubr.f32.mxu0 0.0
      %1835 = vmatmul.mubr.f32.gmra.mrb[0].mxu0 %v1621
      %v1836 = vpop.f32.mrb[0].mxu0
      %v1837 = vadd.f32 0.0, %v1836
      %v1838 = vpop.f32.mrb[0].mxu0
      %1839 = vmatprep.mubr.f32.mxu0 0.0
      %1840 = vmatmul.mubr.f32.gmra.mrb[0].mxu0 %v1624
      %v1841 = vpop.f32.mrb[0].mxu0
      %v1842 = vadd.f32 0.0, %v1841
      %v1843 = vpop.f32.mrb[0].mxu0
      %1844 = vmatprep.mubr.f32.mxu0 0.0
      %1845 = vmatmul.mubr.f32.gmra.mrb[0].mxu0 %v1627
      %v1846 = vpop.f32.mrb[0].mxu0
      %v1847 = vadd.f32 0.0, %v1846
      %v1848 = vpop.f32.mrb[0].mxu0
      %1849 = vmatprep.mubr.f32.mxu0 0.0
      %1850 = vmatmul.mubr.f32.gmra.mrb[0].mxu0 %v1630
      %v1851 = vpop.f32.mrb[0].mxu0
      %v1852 = vadd.f32 0.0, %v1851
      %v1853 = vpop.f32.mrb[0].mxu0
      %1854 = vmatprep.mubr.f32.mxu0 0.0
      %1855 = vmatmul.mubr.f32.gmra.mrb[0].mxu0 %v1633
      %v1856 = vpop.f32.mrb[0].mxu0
      %v1857 = vadd.f32 0.0, %v1856
      %v1858 = vpop.f32.mrb[0].mxu0
      %1859 = vdwg.mxu0
      %v1860 = vadd.f32 %v1378, %v1702
      %v1861 = vadd.f32 %v1383, %v1707
      %v1862 = vadd.f32 %v1388, %v1712
      %v1863 = vadd.f32 %v1393, %v1717
      %v1864 = vadd.f32 %v1398, %v1722
      %v1865 = vadd.f32 %v1403, %v1727
      %v1866 = vadd.f32 %v1408, %v1732
      %v1867 = vadd.f32 %v1413, %v1737
      %v1868 = vadd.f32 %v1418, %v1742
      %v1869 = vadd.f32 %v1423, %v1747
      %v1870 = vadd.f32 %v1428, %v1752
      %v1871 = vadd.f32 %v1433, %v1757
      %v1872 = vadd.f32 %v1438, %v1762
      %v1873 = vadd.f32 %v1443, %v1767
      %v1874 = vadd.f32 %v1448, %v1772
      %v1875 = vadd.f32 %v1453, %v1777
      %v1876 = vadd.f32 %v1458, %v1782
      %v1877 = vadd.f32 %v1463, %v1787
      %v1878 = vadd.f32 %v1468, %v1792
      %v1879 = vadd.f32 %v1473, %v1797
      %v1880 = vadd.f32 %v1478, %v1802
      %v1881 = vadd.f32 %v1483, %v1807
      %v1882 = vadd.f32 %v1488, %v1812
      %v1883 = vadd.f32 %v1493, %v1817
      %v1884 = vadd.f32 %v1498, %v1822
      %v1885 = vadd.f32 %v1503, %v1827
      %v1886 = vadd.f32 %v1508, %v1832
      %v1887 = vadd.f32 %v1513, %v1837
      %v1888 = vadd.f32 %v1518, %v1842
      %v1889 = vadd.f32 %v1523, %v1847
      %v1890 = vadd.f32 %v1528, %v1852
      %v1891 = vadd.f32 %v1533, %v1857
      %1892 = vst.msk [vmem:[%s459] sm:$0xff] %vm1538, %v1860
      %1893 = vst.msk [vmem:[%s459 + $0x8] sm:$0xff] %vm1538, %v1861
      %1894 = vst.msk [vmem:[%s459 + $0x10] sm:$0xff] %vm1538, %v1862
      %1895 = vst.msk [vmem:[%s459 + $0x18] sm:$0xff] %vm1538, %v1863
      %1896 = vst.msk [vmem:[%s459 + $0x20] sm:$0xff] %vm1538, %v1864
      %1897 = vst.msk [vmem:[%s459 + $0x28] sm:$0xff] %vm1538, %v1865
      %1898 = vst.msk [vmem:[%s459 + $0x30] sm:$0xff] %vm1538, %v1866
      %1899 = vst.msk [vmem:[%s459 + $0x38] sm:$0xff] %vm1538, %v1867
      %1900 = vst.msk [vmem:[%s459 + $0x40] sm:$0xff] %vm1538, %v1868
      %1901 = vst.msk [vmem:[%s459 + $0x48] sm:$0xff] %vm1538, %v1869
      %1902 = vst.msk [vmem:[%s459 + $0x50] sm:$0xff] %vm1538, %v1870
      %1903 = vst.msk [vmem:[%s459 + $0x58] sm:$0xff] %vm1538, %v1871
      %1904 = vst.msk [vmem:[%s459 + $0x60] sm:$0xff] %vm1538, %v1872
      %1905 = vst.msk [vmem:[%s459 + $0x68] sm:$0xff] %vm1538, %v1873
      %1906 = vst.msk [vmem:[%s459 + $0x70] sm:$0xff] %vm1538, %v1874
      %1907 = vst.msk [vmem:[%s459 + $0x78] sm:$0xff] %vm1538, %v1875
      %1908 = vst.msk [vmem:[%s459 + $0x80] sm:$0xff] %vm1538, %v1876
      %1909 = vst.msk [vmem:[%s459 + $0x88] sm:$0xff] %vm1538, %v1877
      %1910 = vst.msk [vmem:[%s459 + $0x90] sm:$0xff] %vm1538, %v1878
      %1911 = vst.msk [vmem:[%s459 + $0x98] sm:$0xff] %vm1538, %v1879
      %1912 = vst.msk [vmem:[%s459 + $0xa0] sm:$0xff] %vm1538, %v1880
      %1913 = vst.msk [vmem:[%s459 + $0xa8] sm:$0xff] %vm1538, %v1881
      %1914 = vst.msk [vmem:[%s459 + $0xb0] sm:$0xff] %vm1538, %v1882
      %1915 = vst.msk [vmem:[%s459 + $0xb8] sm:$0xff] %vm1538, %v1883
      %1916 = vst.msk [vmem:[%s459 + $0xc0] sm:$0xff] %vm1538, %v1884
      %1917 = vst.msk [vmem:[%s459 + $0xc8] sm:$0xff] %vm1538, %v1885
      %1918 = vst.msk [vmem:[%s459 + $0xd0] sm:$0xff] %vm1538, %v1886
      %1919 = vst.msk [vmem:[%s459 + $0xd8] sm:$0xff] %vm1538, %v1887
      %1920 = vst.msk [vmem:[%s459 + $0xe0] sm:$0xff] %vm1538, %v1888
      %1921 = vst.msk [vmem:[%s459 + $0xe8] sm:$0xff] %vm1538, %v1889
      %1922 = vst.msk [vmem:[%s459 + $0xf0] sm:$0xff] %vm1538, %v1890
      %1923 = vst.msk [vmem:[%s459 + $0xf8] sm:$0xff] %vm1538, %v1891
      %s1924 = smul.u32 32, %s23
      %p1925 = scmp.lt.s32.totalorder %s1924, 63
      %s1926 = scalar_select %p1925, %s1924, 63
      %s1927 = smul.addr %s1926, 8
      %s1928 = scalar_lea.vmem %s12, %s1927
      // Predicated region
      $region69: #{pappm_forward.5} parent=67 // pred_check
        %p1929 = pneg %p308
      $region70: #{pappm_forward.5} parent=67 // pred_check_branch
        %1931 = sbr.rel (%p1929) target = $region72
      $region71: #{pappm_forward.5} parent=67 // pred_region
        %s1932 = smul.u32 32, %s23
      $region72: #{pappm_forward.5} parent=67 // pred_fallthru
        _
    $region68: #{pappm_forward.5} parent=5 // pred_fallthru
      _
    %p1933 = scmp.le.s32.totalorder 2, %s18
    // Predicated region
    $region73: #{pappm_forward.5} parent=5 // pred_check
      %p1934 = pneg %p1933
    $region74: #{pappm_forward.5} parent=5 // pred_check_branch
      %1936 = sbr.rel (%p1934) target = $region76
    $region75: #{pappm_forward.5} parent=5 // pred_region
      %s1937 = ssub.s32 %s18, 2
      // Predicated region
      $region77: #{pappm_forward.5} parent=75 // pred_check
        %p1938 = pneg %p314
      $region78: #{pappm_forward.5} parent=75 // pred_check_branch
        %1940 = sbr.rel (%p1938) target = $region80
      $region79: #{pappm_forward.5} parent=75 // pred_region
        %s1941 = smul.u32 32, %s24
        %p1942 = scmp.lt.s32.totalorder %s1941, 63
        %s1943 = scalar_select %p1942, %s1941, 63
        %s1944 = smul.addr %s1943, 8
        %s1945 = scalar_lea.vmem %s12, %s1944
      $region80: #{pappm_forward.5} parent=75 // pred_fallthru
        _
    $region76: #{pappm_forward.5} parent=5 // pred_fallthru
      _
  $region6: #{pappm_forward.5} parent=0 // loop_footer
    %s22 = sadd.s32 1, %s18
  $region7: #{pappm_forward.5} parent=0 // loop_footer_branch
    %17 = sbr.rel target = $region3
  $region8: #{pappm_forward.5} parent=0 // loop_exit
    _

// kernel: pappm_forward.4
$region0: #{pappm_forward.4}
  #allocation0 [shape = 'u32[]', space=smem, size = 0x4, offset = 0x4, fixed_abs, tag = 'smem constant byte address 0x4 - core index']
  #allocation1 [shape = 'u32[144,128]{1,0:T(1,128)}', space=vmem, size = 0x12000, scoped, tag = 'internal scratch']
  #allocation2 [shape = 'f32[18,18,32]{2,1,0:T(8,128)}', space=vmem, size = 0x36000, scoped, tag = 'scratch operand']
  %s0 = inlined_call_operand.vmem [shape: f32[2,256,32], index: 0, kind: input, shape index: {}]
  %s1 = inlined_call_operand.vmem [shape: f32[1,32], index: 1, kind: input, shape index: {}]
  %s2 = inlined_call_operand.vmem [shape: f32[1,32], index: 2, kind: input, shape index: {}]
  %s3 = inlined_call_operand.vmem [shape: f32[9,32,32], index: 3, kind: input, shape index: {}]
  %s4 = inlined_call_operand.vmem [shape: f32[2,256,32], index: 4, kind: output, shape index: {}]
  %s5 = sld [smem:[#allocation0]]
  $region49: #{pappm_forward.4} parent=0
    _
  %s7 = ssub.s32 1, %s5
  %s8 = scalar_select 0, %s7, %s5
  loop: start=0, step=1, limit=4
  $region2: #{pappm_forward.4} parent=0 // loop_pre_header
    _
  $region3: #{pappm_forward.4} parent=0 // loop_header
    %s10 = sphi 0, %s14
    %p11 = scmp.ge.s32.totalorder %s10, 4
    %s20 = sphi 0, %s22
    %s23 = sphi 0, %s20
    %s24 = sphi 0, %s23
    %s40 = sphi 0, %s24
    %s44 = sphi 0, %s44
    %s46 = sphi 0, %s44
    %s47 = sphi 0, %s46
    %s61 = sphi 0, %s47
    %s65 = sphi 0, %s65
    %s67 = sphi 0, %s65
    %s68 = sphi 0, %s67
    %s82 = sphi 0, %s68
    %s86 = sphi 0, %s86
    %s88 = sphi 0, %s86
    %s89 = sphi 0, %s88
    %s103 = sphi 0, %s89
    %s109 = sphi 0, %s111
    %s112 = sphi 0, %s109
    %s113 = sphi 0, %s112
    %s129 = sphi 0, %s113
  $region4: #{pappm_forward.4} parent=0 // loop_header_branch
    %13 = sbr.rel (%p11) target = $region8
  $region5: #{pappm_forward.4} parent=0 // loop_body
    %s15 = ssub.s32 %s10, 1
    %s16 = ssub.s32 %s10, 2
    %s17 = sadd.s32 %s10, 1
    %s18 = ssub.s32 %s10, %s17
    %p19 = scmp.eq.s32.totalorder %s18, 0
    %s21 = sadd.s32 %s20, 1
    %s22 = scalar_select %p19, %s20, %s21
    %p25 = pneg %p19
    %p26 = scmp.eq.s32.totalorder %s10, 1
    %p27 = por %p25, %p26
    %p28 = scmp.ne.s32.totalorder %s20, %s23
    %p29 = scmp.eq.s32.totalorder %s10, 0
    %p30 = por %p28, %p29
    %p31 = scmp.ne.s32.totalorder %s20, %s23
    %p32 = scmp.eq.s32.totalorder %s15, 1
    %p33 = por %p31, %p32
    %p34 = scmp.ne.s32.totalorder %s23, %s24
    %p35 = scmp.eq.s32.totalorder %s15, 0
    %p36 = por %p34, %p35
    %p37 = scmp.ne.s32.totalorder %s23, %s24
    %p38 = scmp.eq.s32.totalorder %s16, 1
    %p39 = por %p37, %p38
    %p41 = scmp.ne.s32.totalorder %s24, %s40
    %p42 = scmp.eq.s32.totalorder %s16, 0
    %p43 = por %p41, %p42
    %s45 = sadd.s32 %s44, 1
    %p48 = scmp.eq.s32.totalorder %s10, 1
    %p49 = scmp.ne.s32.totalorder %s44, %s46
    %p50 = scmp.eq.s32.totalorder %s10, 0
    %p51 = por %p49, %p50
    %p52 = scmp.ne.s32.totalorder %s44, %s46
    %p53 = scmp.eq.s32.totalorder %s15, 1
    %p54 = por %p52, %p53
    %p55 = scmp.ne.s32.totalorder %s46, %s47
    %p56 = scmp.eq.s32.totalorder %s15, 0
    %p57 = por %p55, %p56
    %p58 = scmp.ne.s32.totalorder %s46, %s47
    %p59 = scmp.eq.s32.totalorder %s16, 1
    %p60 = por %p58, %p59
    %p62 = scmp.ne.s32.totalorder %s47, %s61
    %p63 = scmp.eq.s32.totalorder %s16, 0
    %p64 = por %p62, %p63
    %s66 = sadd.s32 %s65, 1
    %p69 = scmp.eq.s32.totalorder %s10, 1
    %p70 = scmp.ne.s32.totalorder %s65, %s67
    %p71 = scmp.eq.s32.totalorder %s10, 0
    %p72 = por %p70, %p71
    %p73 = scmp.ne.s32.totalorder %s65, %s67
    %p74 = scmp.eq.s32.totalorder %s15, 1
    %p75 = por %p73, %p74
    %p76 = scmp.ne.s32.totalorder %s67, %s68
    %p77 = scmp.eq.s32.totalorder %s15, 0
    %p78 = por %p76, %p77
    %p79 = scmp.ne.s32.totalorder %s67, %s68
    %p80 = scmp.eq.s32.totalorder %s16, 1
    %p81 = por %p79, %p80
    %p83 = scmp.ne.s32.totalorder %s68, %s82
    %p84 = scmp.eq.s32.totalorder %s16, 0
    %p85 = por %p83, %p84
    %s87 = sadd.s32 %s86, 1
    %p90 = scmp.eq.s32.totalorder %s10, 1
    %p91 = scmp.ne.s32.totalorder %s86, %s88
    %p92 = scmp.eq.s32.totalorder %s10, 0
    %p93 = por %p91, %p92
    %p94 = scmp.ne.s32.totalorder %s86, %s88
    %p95 = scmp.eq.s32.totalorder %s15, 1
    %p96 = por %p94, %p95
    %p97 = scmp.ne.s32.totalorder %s88, %s89
    %p98 = scmp.eq.s32.totalorder %s15, 0
    %p99 = por %p97, %p98
    %p100 = scmp.ne.s32.totalorder %s88, %s89
    %p101 = scmp.eq.s32.totalorder %s16, 1
    %p102 = por %p100, %p101
    %p104 = scmp.ne.s32.totalorder %s89, %s103
    %p105 = scmp.eq.s32.totalorder %s16, 0
    %p106 = por %p104, %p105
    %s107 = ssub.s32 %s10, %s17
    %p108 = scmp.eq.s32.totalorder %s107, 0
    %s110 = sadd.s32 %s109, 1
    %s111 = scalar_select %p108, %s109, %s110
    %p114 = pneg %p108
    %p115 = scmp.eq.s32.totalorder %s10, 1
    %p116 = por %p114, %p115
    %p117 = scmp.ne.s32.totalorder %s109, %s112
    %p118 = scmp.eq.s32.totalorder %s10, 0
    %p119 = por %p117, %p118
    %p120 = scmp.ne.s32.totalorder %s109, %s112
    %p121 = scmp.eq.s32.totalorder %s15, 1
    %p122 = por %p120, %p121
    %p123 = scmp.ne.s32.totalorder %s112, %s113
    %p124 = scmp.eq.s32.totalorder %s15, 0
    %p125 = por %p123, %p124
    %p126 = scmp.ne.s32.totalorder %s112, %s113
    %p127 = scmp.eq.s32.totalorder %s16, 1
    %p128 = por %p126, %p127
    %p130 = scmp.ne.s32.totalorder %s113, %s129
    %p131 = scmp.eq.s32.totalorder %s16, 0
    %p132 = por %p130, %p131
    %p133 = scmp.le.s32.totalorder 1, %s10
    %p134 = scmp.lt.s32.totalorder %s10, 3
    %p135 = pnand %p133, %p134
    %p136 = pneg %p135
    // Predicated region
    $region9: #{pappm_forward.4} parent=5 // pred_check
      _
    $region10: #{pappm_forward.4} parent=5 // pred_check_branch
      %138 = sbr.rel (%p135) target = $region12
    $region11: #{pappm_forward.4} parent=5 // pred_region
      %s139 = ssub.s32 %s10, 1
      // Predicated region
      $region13: #{pappm_forward.4} parent=11 // pred_check
        %p140 = pneg %p57
      $region14: #{pappm_forward.4} parent=11 // pred_check_branch
        %142 = sbr.rel (%p140) target = $region16
      $region15: #{pappm_forward.4} parent=11 // pred_region
        _
      $region16: #{pappm_forward.4} parent=11 // pred_fallthru
        _
      // Predicated region
      $region17: #{pappm_forward.4} parent=11 // pred_check
        %p143 = pneg %p78
      $region18: #{pappm_forward.4} parent=11 // pred_check_branch
        %145 = sbr.rel (%p143) target = $region20
      $region19: #{pappm_forward.4} parent=11 // pred_region
        _
      $region20: #{pappm_forward.4} parent=11 // pred_fallthru
        _
      // Predicated region
      $region21: #{pappm_forward.4} parent=11 // pred_check
        %p146 = pneg %p99
      $region22: #{pappm_forward.4} parent=11 // pred_check_branch
        %148 = sbr.rel (%p146) target = $region24
      $region23: #{pappm_forward.4} parent=11 // pred_region
        _
      $region24: #{pappm_forward.4} parent=11 // pred_fallthru
        _
    $region12: #{pappm_forward.4} parent=5 // pred_fallthru
      _
    %p149 = scmp.lt.s32.totalorder %s10, 2
    // Predicated region
    $region25: #{pappm_forward.4} parent=5 // pred_check
      %p150 = pneg %p149
    $region26: #{pappm_forward.4} parent=5 // pred_check_branch
      %152 = sbr.rel (%p150) target = $region28
    $region27: #{pappm_forward.4} parent=5 // pred_region
      // Predicated region
      $region29: #{pappm_forward.4} parent=27 // pred_check
        %p153 = pneg %p30
      $region30: #{pappm_forward.4} parent=27 // pred_check_branch
        %155 = sbr.rel (%p153) target = $region32
      $region31: #{pappm_forward.4} parent=27 // pred_region
        %p156 = scmp.lt.s32.totalorder %s10, 1
        %s157 = scalar_select %p156, %s10, 1
        %s158 = smul.addr %s157, 32
        %s159 = smul.addr %s158, 8
        %s160 = scalar_lea.vmem %s0, %s159
      $region32: #{pappm_forward.4} parent=27 // pred_fallthru
        _
    $region28: #{pappm_forward.4} parent=5 // pred_fallthru
      _
    %p161 = scmp.le.s32.totalorder 1, %s10
    %p162 = scmp.lt.s32.totalorder %s10, 3
    %p163 = pnand %p161, %p162
    %p164 = pneg %p163
    // Predicated region
    $region33: #{pappm_forward.4} parent=5 // pred_check
      _
    $region34: #{pappm_forward.4} parent=5 // pred_check_branch
      %166 = sbr.rel (%p163) target = $region36
    $region35: #{pappm_forward.4} parent=5 // pred_region
      %s167 = ssub.s32 %s10, 1
      %p168 = scmp.lt.s32.totalorder %s15, 1
      %s169 = scalar_select %p168, %s15, 1
      %s170 = smul.addr %s169, 32
      %s171 = smul.addr %s170, 8
      %s172 = scalar_lea.vmem %s0, %s171
      %p173 = pneg %p36
      %p174 = pneg %p33
      %p175 = pneg %p57
      %p176 = pneg %p54
      %p177 = pneg %p78
      %p178 = pneg %p75
      %p179 = pneg %p99
      %p180 = pneg %p96
      %p181 = pneg %p125
      %p182 = pneg %p122
      %p183 = scmp.lt.s32.totalorder %s15, 1
      %s184 = scalar_select %p183, %s15, 1
      %s185 = smul.addr %s184, 32
      %s186 = smul.addr %s185, 8
      %s187 = scalar_lea.vmem %s4, %s186
      %p188 = scmp.lt.s32.totalorder %s15, 1
      %s189 = scalar_select %p188, %s15, 1
      %s190 = smul.addr %s189, 32
      %s191 = smul.addr %s190, 8
      %s192 = scalar_lea.vmem %s0, %s191
      %p193 = scmp.lt.s32.totalorder %s15, 1
      %s194 = scalar_select %p193, %s15, 1
      %s195 = smul.addr %s194, 32
      %s196 = smul.addr %s195, 8
      %s197 = scalar_lea.vmem %s4, %s196
      %v198 = vld [vmem:[%s192] sm:$0xff]
      %v199 = vld [vmem:[%s192 + $0x8] sm:$0xff]
      %v200 = vld [vmem:[%s192 + $0x10] sm:$0xff]
      %v201 = vld [vmem:[%s192 + $0x18] sm:$0xff]
      %v202 = vld [vmem:[%s192 + $0x20] sm:$0xff]
      %v203 = vld [vmem:[%s192 + $0x28] sm:$0xff]
      %v204 = vld [vmem:[%s192 + $0x30] sm:$0xff]
      %v205 = vld [vmem:[%s192 + $0x38] sm:$0xff]
      %v206 = vld [vmem:[%s192 + $0x40] sm:$0xff]
      %v207 = vld [vmem:[%s192 + $0x48] sm:$0xff]
      %v208 = vld [vmem:[%s192 + $0x50] sm:$0xff]
      %v209 = vld [vmem:[%s192 + $0x58] sm:$0xff]
      %v210 = vld [vmem:[%s192 + $0x60] sm:$0xff]
      %v211 = vld [vmem:[%s192 + $0x68] sm:$0xff]
      %v212 = vld [vmem:[%s192 + $0x70] sm:$0xff]
      %v213 = vld [vmem:[%s192 + $0x78] sm:$0xff]
      %v214 = vld [vmem:[%s192 + $0x80] sm:$0xff]
      %v215 = vld [vmem:[%s192 + $0x88] sm:$0xff]
      %v216 = vld [vmem:[%s192 + $0x90] sm:$0xff]
      %v217 = vld [vmem:[%s192 + $0x98] sm:$0xff]
      %v218 = vld [vmem:[%s192 + $0xa0] sm:$0xff]
      %v219 = vld [vmem:[%s192 + $0xa8] sm:$0xff]
      %v220 = vld [vmem:[%s192 + $0xb0] sm:$0xff]
      %v221 = vld [vmem:[%s192 + $0xb8] sm:$0xff]
      %v222 = vld [vmem:[%s192 + $0xc0] sm:$0xff]
      %v223 = vld [vmem:[%s192 + $0xc8] sm:$0xff]
      %v224 = vld [vmem:[%s192 + $0xd0] sm:$0xff]
      %v225 = vld [vmem:[%s192 + $0xd8] sm:$0xff]
      %v226 = vld [vmem:[%s192 + $0xe0] sm:$0xff]
      %v227 = vld [vmem:[%s192 + $0xe8] sm:$0xff]
      %v228 = vld [vmem:[%s192 + $0xf0] sm:$0xff]
      %v229 = vld [vmem:[%s192 + $0xf8] sm:$0xff]
      %v230 = vld [vmem:[%s1] sm:$0x1]
      %v232 = vlaneseq
      %v233 = vshrl.u32 %v232, 7
      %v234 = vsub.s32 0, %v233
      %v235 = vrot.slane %v230, %v234
      %v237 = vmul.f32 %v198, %v235
      %v238 = vmul.f32 %v199, %v235
      %v239 = vmul.f32 %v200, %v235
      %v240 = vmul.f32 %v201, %v235
      %v241 = vmul.f32 %v202, %v235
      %v242 = vmul.f32 %v203, %v235
      %v243 = vmul.f32 %v204, %v235
      %v244 = vmul.f32 %v205, %v235
      %v245 = vmul.f32 %v206, %v235
      %v246 = vmul.f32 %v207, %v235
      %v247 = vmul.f32 %v208, %v235
      %v248 = vmul.f32 %v209, %v235
      %v249 = vmul.f32 %v210, %v235
      %v250 = vmul.f32 %v211, %v235
      %v251 = vmul.f32 %v212, %v235
      %v252 = vmul.f32 %v213, %v235
      %v253 = vmul.f32 %v214, %v235
      %v254 = vmul.f32 %v215, %v235
      %v255 = vmul.f32 %v216, %v235
      %v256 = vmul.f32 %v217, %v235
      %v257 = vmul.f32 %v218, %v235
      %v258 = vmul.f32 %v219, %v235
      %v259 = vmul.f32 %v220, %v235
      %v260 = vmul.f32 %v221, %v235
      %v261 = vmul.f32 %v222, %v235
      %v262 = vmul.f32 %v223, %v235
      %v263 = vmul.f32 %v224, %v235
      %v264 = vmul.f32 %v225, %v235
      %v265 = vmul.f32 %v226, %v235
      %v266 = vmul.f32 %v227, %v235
      %v267 = vmul.f32 %v228, %v235
      %v268 = vmul.f32 %v229, %v235
      %v269 = vld [vmem:[%s2] sm:$0x1]
      %v271 = vlaneseq
      %v272 = vshrl.u32 %v271, 7
      %v273 = vsub.s32 0, %v272
      %v274 = vrot.slane %v269, %v273
      %v276 = vadd.f32 %v237, %v274
      %v277 = vadd.f32 %v238, %v274
      %v278 = vadd.f32 %v239, %v274
      %v279 = vadd.f32 %v240, %v274
      %v280 = vadd.f32 %v241, %v274
      %v281 = vadd.f32 %v242, %v274
      %v282 = vadd.f32 %v243, %v274
      %v283 = vadd.f32 %v244, %v274
      %v284 = vadd.f32 %v245, %v274
      %v285 = vadd.f32 %v246, %v274
      %v286 = vadd.f32 %v247, %v274
      %v287 = vadd.f32 %v248, %v274
      %v288 = vadd.f32 %v249, %v274
      %v289 = vadd.f32 %v250, %v274
      %v290 = vadd.f32 %v251, %v274
      %v291 = vadd.f32 %v252, %v274
      %v292 = vadd.f32 %v253, %v274
      %v293 = vadd.f32 %v254, %v274
      %v294 = vadd.f32 %v255, %v274
      %v295 = vadd.f32 %v256, %v274
      %v296 = vadd.f32 %v257, %v274
      %v297 = vadd.f32 %v258, %v274
      %v298 = vadd.f32 %v259, %v274
      %v299 = vadd.f32 %v260, %v274
      %v300 = vadd.f32 %v261, %v274
      %v301 = vadd.f32 %v262, %v274
      %v302 = vadd.f32 %v263, %v274
      %v303 = vadd.f32 %v264, %v274
      %v304 = vadd.f32 %v265, %v274
      %v305 = vadd.f32 %v266, %v274
      %v306 = vadd.f32 %v267, %v274
      %v307 = vadd.f32 %v268, %v274
      %v308 = vmax.f32 %v276, 0.0
      %v309 = vmax.f32 %v277, 0.0
      %v310 = vmax.f32 %v278, 0.0
      %v311 = vmax.f32 %v279, 0.0
      %v312 = vmax.f32 %v280, 0.0
      %v313 = vmax.f32 %v281, 0.0
      %v314 = vmax.f32 %v282, 0.0
      %v315 = vmax.f32 %v283, 0.0
      %v316 = vmax.f32 %v284, 0.0
      %v317 = vmax.f32 %v285, 0.0
      %v318 = vmax.f32 %v286, 0.0
      %v319 = vmax.f32 %v287, 0.0
      %v320 = vmax.f32 %v288, 0.0
      %v321 = vmax.f32 %v289, 0.0
      %v322 = vmax.f32 %v290, 0.0
      %v323 = vmax.f32 %v291, 0.0
      %v324 = vmax.f32 %v292, 0.0
      %v325 = vmax.f32 %v293, 0.0
      %v326 = vmax.f32 %v294, 0.0
      %v327 = vmax.f32 %v295, 0.0
      %v328 = vmax.f32 %v296, 0.0
      %v329 = vmax.f32 %v297, 0.0
      %v330 = vmax.f32 %v298, 0.0
      %v331 = vmax.f32 %v299, 0.0
      %v332 = vmax.f32 %v300, 0.0
      %v333 = vmax.f32 %v301, 0.0
      %v334 = vmax.f32 %v302, 0.0
      %v335 = vmax.f32 %v303, 0.0
      %v336 = vmax.f32 %v304, 0.0
      %v337 = vmax.f32 %v305, 0.0
      %v338 = vmax.f32 %v306, 0.0
      %v339 = vmax.f32 %v307, 0.0
      %vm340 = vcmask 261120
      %341 = vst.msk [vmem:[#allocation2] sm:$0xff] %vm340, 0.0
      %342 = vst.msk [vmem:[#allocation2 + $0x8] sm:$0xff] %vm340, 0.0
      %vm343 = vcmask 254976
      %344 = vst.msk [vmem:[#allocation2 + $0x10] sm:$0x3] %vm343, 0.0
      %s345 = scalar_lea.vmem [#allocation2], 408
      %346 = vst.msk [vmem:[%s345] sm:$0xff] %vm340, 0.0
      %347 = vst.msk [vmem:[%s345 + $0x8] sm:$0xff] %vm340, 0.0
      %348 = vst.msk [vmem:[%s345 + $0x10] sm:$0x3] %vm343, 0.0
      %vm349 = vcmask 253952
      %350 = vst.msk [vmem:[#allocation2] sm:$0x1] %vm349, 0.0
      %351 = vst.msk [vmem:[#allocation2 + $0x18] sm:$0x1] %vm349, 0.0
      %352 = vst.msk [vmem:[#allocation2 + $0x30] sm:$0x1] %vm349, 0.0
      %353 = vst.msk [vmem:[#allocation2 + $0x48] sm:$0x1] %vm349, 0.0
      %354 = vst.msk [vmem:[#allocation2 + $0x60] sm:$0x1] %vm349, 0.0
      %355 = vst.msk [vmem:[#allocation2 + $0x78] sm:$0x1] %vm349, 0.0
      %356 = vst.msk [vmem:[#allocation2 + $0x90] sm:$0x1] %vm349, 0.0
      %357 = vst.msk [vmem:[#allocation2 + $0xa8] sm:$0x1] %vm349, 0.0
      %358 = vst.msk [vmem:[#allocation2 + $0xc0] sm:$0x1] %vm349, 0.0
      %359 = vst.msk [vmem:[#allocation2 + $0xd8] sm:$0x1] %vm349, 0.0
      %360 = vst.msk [vmem:[#allocation2 + $0xf0] sm:$0x1] %vm349, 0.0
      %361 = vst.msk [vmem:[#allocation2 + $0x108] sm:$0x1] %vm349, 0.0
      %362 = vst.msk [vmem:[#allocation2 + $0x120] sm:$0x1] %vm349, 0.0
      %363 = vst.msk [vmem:[#allocation2 + $0x138] sm:$0x1] %vm349, 0.0
      %364 = vst.msk [vmem:[#allocation2 + $0x150] sm:$0x1] %vm349, 0.0
      %365 = vst.msk [vmem:[#allocation2 + $0x168] sm:$0x1] %vm349, 0.0
      %366 = vst.msk [vmem:[#allocation2 + $0x180] sm:$0x1] %vm349, 0.0
      %367 = vst.msk [vmem:[#allocation2 + $0x198] sm:$0x1] %vm349, 0.0
      %368 = vst.msk [vmem:[#allocation2 + $0x11] sm:$0x1] %vm349, 0.0
      %369 = vst.msk [vmem:[#allocation2 + $0x29] sm:$0x1] %vm349, 0.0
      %370 = vst.msk [vmem:[#allocation2 + $0x41] sm:$0x1] %vm349, 0.0
      %371 = vst.msk [vmem:[#allocation2 + $0x59] sm:$0x1] %vm349, 0.0
      %372 = vst.msk [vmem:[#allocation2 + $0x71] sm:$0x1] %vm349, 0.0
      %373 = vst.msk [vmem:[#allocation2 + $0x89] sm:$0x1] %vm349, 0.0
      %374 = vst.msk [vmem:[#allocation2 + $0xa1] sm:$0x1] %vm349, 0.0
      %375 = vst.msk [vmem:[#allocation2 + $0xb9] sm:$0x1] %vm349, 0.0
      %376 = vst.msk [vmem:[#allocation2 + $0xd1] sm:$0x1] %vm349, 0.0
      %377 = vst.msk [vmem:[#allocation2 + $0xe9] sm:$0x1] %vm349, 0.0
      %378 = vst.msk [vmem:[#allocation2 + $0x101] sm:$0x1] %vm349, 0.0
      %379 = vst.msk [vmem:[#allocation2 + $0x119] sm:$0x1] %vm349, 0.0
      %380 = vst.msk [vmem:[#allocation2 + $0x131] sm:$0x1] %vm349, 0.0
      %381 = vst.msk [vmem:[#allocation2 + $0x149] sm:$0x1] %vm349, 0.0
      %382 = vst.msk [vmem:[#allocation2 + $0x161] sm:$0x1] %vm349, 0.0
      %383 = vst.msk [vmem:[#allocation2 + $0x179] sm:$0x1] %vm349, 0.0
      %384 = vst.msk [vmem:[#allocation2 + $0x191] sm:$0x1] %vm349, 0.0
      %385 = vst.msk [vmem:[#allocation2 + $0x1a9] sm:$0x1] %vm349, 0.0
      %s386 = scalar_lea.vmem [#allocation2], 24
      %387 = vst.msk [vmem:[%s386 + $0x1] sm:$0xff] %vm340, %v308
      %388 = vst.msk [vmem:[%s386 + $0x9] sm:$0xff] %vm340, %v309
      %389 = vst.msk [vmem:[%s386 + $0x19] sm:$0xff] %vm340, %v310
      %390 = vst.msk [vmem:[%s386 + $0x21] sm:$0xff] %vm340, %v311
      %391 = vst.msk [vmem:[%s386 + $0x31] sm:$0xff] %vm340, %v312
      %392 = vst.msk [vmem:[%s386 + $0x39] sm:$0xff] %vm340, %v313
      %393 = vst.msk [vmem:[%s386 + $0x49] sm:$0xff] %vm340, %v314
      %394 = vst.msk [vmem:[%s386 + $0x51] sm:$0xff] %vm340, %v315
      %395 = vst.msk [vmem:[%s386 + $0x61] sm:$0xff] %vm340, %v316
      %396 = vst.msk [vmem:[%s386 + $0x69] sm:$0xff] %vm340, %v317
      %397 = vst.msk [vmem:[%s386 + $0x79] sm:$0xff] %vm340, %v318
      %398 = vst.msk [vmem:[%s386 + $0x81] sm:$0xff] %vm340, %v319
      %399 = vst.msk [vmem:[%s386 + $0x91] sm:$0xff] %vm340, %v320
      %400 = vst.msk [vmem:[%s386 + $0x99] sm:$0xff] %vm340, %v321
      %401 = vst.msk [vmem:[%s386 + $0xa9] sm:$0xff] %vm340, %v322
      %402 = vst.msk [vmem:[%s386 + $0xb1] sm:$0xff] %vm340, %v323
      %403 = vst.msk [vmem:[%s386 + $0xc1] sm:$0xff] %vm340, %v324
      %404 = vst.msk [vmem:[%s386 + $0xc9] sm:$0xff] %vm340, %v325
      %405 = vst.msk [vmem:[%s386 + $0xd9] sm:$0xff] %vm340, %v326
      %406 = vst.msk [vmem:[%s386 + $0xe1] sm:$0xff] %vm340, %v327
      %407 = vst.msk [vmem:[%s386 + $0xf1] sm:$0xff] %vm340, %v328
      %408 = vst.msk [vmem:[%s386 + $0xf9] sm:$0xff] %vm340, %v329
      %409 = vst.msk [vmem:[%s386 + $0x109] sm:$0xff] %vm340, %v330
      %410 = vst.msk [vmem:[%s386 + $0x111] sm:$0xff] %vm340, %v331
      %411 = vst.msk [vmem:[%s386 + $0x121] sm:$0xff] %vm340, %v332
      %412 = vst.msk [vmem:[%s386 + $0x129] sm:$0xff] %vm340, %v333
      %413 = vst.msk [vmem:[%s386 + $0x139] sm:$0xff] %vm340, %v334
      %414 = vst.msk [vmem:[%s386 + $0x141] sm:$0xff] %vm340, %v335
      %415 = vst.msk [vmem:[%s386 + $0x151] sm:$0xff] %vm340, %v336
      %416 = vst.msk [vmem:[%s386 + $0x159] sm:$0xff] %vm340, %v337
      %417 = vst.msk [vmem:[%s386 + $0x169] sm:$0xff] %vm340, %v338
      %418 = vst.msk [vmem:[%s386 + $0x171] sm:$0xff] %vm340, %v339
      %v419 = vld [vmem:[#allocation2] sm:$0xff]
      %v420 = vld [vmem:[#allocation2 + $0x8] sm:$0xff]
      %v421 = vld [vmem:[#allocation2 + $0x18] sm:$0xff]
      %v422 = vld [vmem:[#allocation2 + $0x20] sm:$0xff]
      %v423 = vld [vmem:[#allocation2 + $0x30] sm:$0xff]
      %v424 = vld [vmem:[#allocation2 + $0x38] sm:$0xff]
      %v425 = vld [vmem:[#allocation2 + $0x48] sm:$0xff]
      %v426 = vld [vmem:[#allocation2 + $0x50] sm:$0xff]
      %v427 = vld [vmem:[#allocation2 + $0x60] sm:$0xff]
      %v428 = vld [vmem:[#allocation2 + $0x68] sm:$0xff]
      %v429 = vld [vmem:[#allocation2 + $0x78] sm:$0xff]
      %v430 = vld [vmem:[#allocation2 + $0x80] sm:$0xff]
      %v431 = vld [vmem:[#allocation2 + $0x90] sm:$0xff]
      %v432 = vld [vmem:[#allocation2 + $0x98] sm:$0xff]
      %v433 = vld [vmem:[#allocation2 + $0xa8] sm:$0xff]
      %v434 = vld [vmem:[#allocation2 + $0xb0] sm:$0xff]
      %v435 = vld [vmem:[#allocation2 + $0xc0] sm:$0xff]
      %v436 = vld [vmem:[#allocation2 + $0xc8] sm:$0xff]
      %v437 = vld [vmem:[#allocation2 + $0xd8] sm:$0xff]
      %v438 = vld [vmem:[#allocation2 + $0xe0] sm:$0xff]
      %v439 = vld [vmem:[#allocation2 + $0xf0] sm:$0xff]
      %v440 = vld [vmem:[#allocation2 + $0xf8] sm:$0xff]
      %v441 = vld [vmem:[#allocation2 + $0x108] sm:$0xff]
      %v442 = vld [vmem:[#allocation2 + $0x110] sm:$0xff]
      %v443 = vld [vmem:[#allocation2 + $0x120] sm:$0xff]
      %v444 = vld [vmem:[#allocation2 + $0x128] sm:$0xff]
      %v445 = vld [vmem:[#allocation2 + $0x138] sm:$0xff]
      %v446 = vld [vmem:[#allocation2 + $0x140] sm:$0xff]
      %v447 = vld [vmem:[#allocation2 + $0x150] sm:$0xff]
      %v448 = vld [vmem:[#allocation2 + $0x158] sm:$0xff]
      %v449 = vld [vmem:[#allocation2 + $0x168] sm:$0xff]
      %v450 = vld [vmem:[#allocation2 + $0x170] sm:$0xff]
      %v451 = vld [vmem:[%s3] sm:$0xff]
      %v452 = vld [vmem:[%s3 + $0x8] sm:$0xff]
      %v453 = vld [vmem:[%s3 + $0x10] sm:$0xff]
      %v454 = vld [vmem:[%s3 + $0x18] sm:$0xff]
      %v455 = vld [vmem:[#allocation2 + $0x1] sm:$0xff]
      %v456 = vld [vmem:[#allocation2 + $0x9] sm:$0xff]
      %v457 = vld [vmem:[#allocation2 + $0x19] sm:$0xff]
      %v458 = vld [vmem:[#allocation2 + $0x21] sm:$0xff]
      %v459 = vld [vmem:[#allocation2 + $0x31] sm:$0xff]
      %v460 = vld [vmem:[#allocation2 + $0x39] sm:$0xff]
      %v461 = vld [vmem:[#allocation2 + $0x49] sm:$0xff]
      %v462 = vld [vmem:[#allocation2 + $0x51] sm:$0xff]
      %v463 = vld [vmem:[#allocation2 + $0x61] sm:$0xff]
      %v464 = vld [vmem:[#allocation2 + $0x69] sm:$0xff]
      %v465 = vld [vmem:[#allocation2 + $0x79] sm:$0xff]
      %v466 = vld [vmem:[#allocation2 + $0x81] sm:$0xff]
      %v467 = vld [vmem:[#allocation2 + $0x91] sm:$0xff]
      %v468 = vld [vmem:[#allocation2 + $0x99] sm:$0xff]
      %v469 = vld [vmem:[#allocation2 + $0xa9] sm:$0xff]
      %v470 = vld [vmem:[#allocation2 + $0xb1] sm:$0xff]
      %v471 = vld [vmem:[#allocation2 + $0xc1] sm:$0xff]
      %v472 = vld [vmem:[#allocation2 + $0xc9] sm:$0xff]
      %v473 = vld [vmem:[#allocation2 + $0xd9] sm:$0xff]
      %v474 = vld [vmem:[#allocation2 + $0xe1] sm:$0xff]
      %v475 = vld [vmem:[#allocation2 + $0xf1] sm:$0xff]
      %v476 = vld [vmem:[#allocation2 + $0xf9] sm:$0xff]
      %v477 = vld [vmem:[#allocation2 + $0x109] sm:$0xff]
      %v478 = vld [vmem:[#allocation2 + $0x111] sm:$0xff]
      %v479 = vld [vmem:[#allocation2 + $0x121] sm:$0xff]
      %v480 = vld [vmem:[#allocation2 + $0x129] sm:$0xff]
      %v481 = vld [vmem:[#allocation2 + $0x139] sm:$0xff]
      %v482 = vld [vmem:[#allocation2 + $0x141] sm:$0xff]
      %v483 = vld [vmem:[#allocation2 + $0x151] sm:$0xff]
      %v484 = vld [vmem:[#allocation2 + $0x159] sm:$0xff]
      %v485 = vld [vmem:[#allocation2 + $0x169] sm:$0xff]
      %v486 = vld [vmem:[#allocation2 + $0x171] sm:$0xff]
      %s487 = scalar_lea.vmem %s3, 32
      %v488 = vld [vmem:[%s487] sm:$0xff]
      %v489 = vld [vmem:[%s487 + $0x8] sm:$0xff]
      %v490 = vld [vmem:[%s487 + $0x10] sm:$0xff]
      %v491 = vld [vmem:[%s487 + $0x18] sm:$0xff]
      %v493 = vsel %vm340, %v455, 0
      %v496 = vsel %vm340, %v456, 0
      %v499 = vsel %vm340, %v457, 0
      %v502 = vsel %vm340, %v458, 0
      %v505 = vsel %vm340, %v459, 0
      %v508 = vsel %vm340, %v460, 0
      %v511 = vsel %vm340, %v461, 0
      %v514 = vsel %vm340, %v462, 0
      %v517 = vsel %vm340, %v463, 0
      %v520 = vsel %vm340, %v464, 0
      %v523 = vsel %vm340, %v465, 0
      %v526 = vsel %vm340, %v466, 0
      %v529 = vsel %vm340, %v467, 0
      %v532 = vsel %vm340, %v468, 0
      %v535 = vsel %vm340, %v469, 0
      %v538 = vsel %vm340, %v470, 0
      %v541 = vsel %vm340, %v471, 0
      %v544 = vsel %vm340, %v472, 0
      %v547 = vsel %vm340, %v473, 0
      %v550 = vsel %vm340, %v474, 0
      %v553 = vsel %vm340, %v475, 0
      %v556 = vsel %vm340, %v476, 0
      %v559 = vsel %vm340, %v477, 0
      %v562 = vsel %vm340, %v478, 0
      %v565 = vsel %vm340, %v479, 0
      %v568 = vsel %vm340, %v480, 0
      %v571 = vsel %vm340, %v481, 0
      %v574 = vsel %vm340, %v482, 0
      %v577 = vsel %vm340, %v483, 0
      %v580 = vsel %vm340, %v484, 0
      %v583 = vsel %vm340, %v485, 0
      %v586 = vsel %vm340, %v486, 0
      %588 = vmatprep.subr.mxu0 0.0
      %589 = vmatpush1.msra.mxu0 %v488
      %590 = vmatprep.subr.mxu0 0.0
      %591 = vmatpush1.msra.mxu0 %v489
      %592 = vmatprep.subr.mxu0 0.0
      %593 = vmatpush1.msra.mxu0 %v490
      %594 = vmatprep.subr.mxu0 0.0
      %595 = vmatpush1.msra.mxu0 %v491
      %596 = vmatprep.subr.mxu0 0.0
      %597 = vmatpush1.msra.mxu0 0.0
      %598 = vmatprep.subr.mxu0 0.0
      %599 = vmatpush1.msra.mxu0 0.0
      %600 = vmatprep.subr.mxu0 0.0
      %601 = vmatpush1.msra.mxu0 0.0
      %602 = vmatprep.subr.mxu0 0.0
      %603 = vmatpush1.msra.mxu0 0.0
      %604 = vmatprep.subr.mxu0 0.0
      %605 = vmatpush1.msra.mxu0 0.0
      %606 = vmatprep.subr.mxu0 0.0
      %607 = vmatpush1.msra.mxu0 0.0
      %608 = vmatprep.subr.mxu0 0.0
      %609 = vmatpush1.msra.mxu0 0.0
      %610 = vmatprep.subr.mxu0 0.0
      %611 = vmatpush1.msra.mxu0 0.0
      %612 = vmatprep.subr.mxu0 0.0
      %613 = vmatpush1.msra.mxu0 0.0
      %614 = vmatprep.subr.mxu0 0.0
      %615 = vmatpush1.msra.mxu0 0.0
      %616 = vmatprep.subr.mxu0 0.0
      %617 = vmatpush1.msra.mxu0 0.0
      %618 = vmatprep.subr.mxu0 0.0
      %619 = vmatpush1.msra.mxu0 0.0
      %620 = vmatprep.subr.mxu0 0.0
      %621 = vmatpush1.msra.mxu0 0.0
      %622 = vmatprep.subr.mxu0 0.0
      %623 = vmatpush1.msra.mxu0 0.0
      %624 = vmatprep.subr.mxu0 0.0
      %625 = vmatpush1.msra.mxu0 0.0
      %626 = vmatprep.subr.mxu0 0.0
      %627 = vmatpush1.msra.mxu0 0.0
      %628 = vmatprep.subr.mxu0 0.0
      %629 = vmatpush1.msra.mxu0 0.0
      %630 = vmatprep.subr.mxu0 0.0
      %631 = vmatpush1.msra.mxu0 0.0
      %632 = vmatprep.subr.mxu0 0.0
      %633 = vmatpush1.msra.mxu0 0.0
      %634 = vmatprep.subr.mxu0 0.0
      %635 = vmatpush1.msra.mxu0 0.0
      %636 = vmatprep.subr.mxu0 0.0
      %637 = vmatpush1.msra.mxu0 0.0
      %638 = vmatprep.subr.mxu0 0.0
      %639 = vmatpush1.msra.mxu0 0.0
      %640 = vmatprep.subr.mxu0 0.0
      %641 = vmatpush1.msra.mxu0 0.0
      %642 = vmatprep.subr.mxu0 0.0
      %643 = vmatpush1.msra.mxu0 0.0
      %644 = vmatprep.subr.mxu0 0.0
      %645 = vmatpush1.msra.mxu0 0.0
      %646 = vmatprep.subr.mxu0 0.0
      %647 = vmatpush1.msra.mxu0 0.0
      %648 = vmatprep.subr.mxu0 0.0
      %649 = vmatpush1.msra.mxu0 0.0
      %650 = vmatprep.subr.mxu0 0.0
      %651 = vmatpush1.msra.mxu0 0.0
      %652 = vmatprep.mubr.f32.mxu0 0.0
      %653 = vmatmul.mubr.f32.gmra.mrb[0].mxu0 %v493
      %v654 = vpop.f32.mrb[0].mxu0
      %v655 = vadd.f32 0.0, %v654
      %v656 = vpop.f32.mrb[0].mxu0
      %657 = vmatprep.mubr.f32.mxu0 0.0
      %658 = vmatmul.mubr.f32.gmra.mrb[0].mxu0 %v496
      %v659 = vpop.f32.mrb[0].mxu0
      %v660 = vadd.f32 0.0, %v659
      %v661 = vpop.f32.mrb[0].mxu0
      %662 = vmatprep.mubr.f32.mxu0 0.0
      %663 = vmatmul.mubr.f32.gmra.mrb[0].mxu0 %v499
      %v664 = vpop.f32.mrb[0].mxu0
      %v665 = vadd.f32 0.0, %v664
      %v666 = vpop.f32.mrb[0].mxu0
      %667 = vmatprep.mubr.f32.mxu0 0.0
      %668 = vmatmul.mubr.f32.gmra.mrb[0].mxu0 %v502
      %v669 = vpop.f32.mrb[0].mxu0
      %v670 = vadd.f32 0.0, %v669
      %v671 = vpop.f32.mrb[0].mxu0
      %672 = vmatprep.mubr.f32.mxu0 0.0
      %673 = vmatmul.mubr.f32.gmra.mrb[0].mxu0 %v505
      %v674 = vpop.f32.mrb[0].mxu0
      %v675 = vadd.f32 0.0, %v674
      %v676 = vpop.f32.mrb[0].mxu0
      %677 = vmatprep.mubr.f32.mxu0 0.0
      %678 = vmatmul.mubr.f32.gmra.mrb[0].mxu0 %v508
      %v679 = vpop.f32.mrb[0].mxu0
      %v680 = vadd.f32 0.0, %v679
      %v681 = vpop.f32.mrb[0].mxu0
      %682 = vmatprep.mubr.f32.mxu0 0.0
      %683 = vmatmul.mubr.f32.gmra.mrb[0].mxu0 %v511
      %v684 = vpop.f32.mrb[0].mxu0
      %v685 = vadd.f32 0.0, %v684
      %v686 = vpop.f32.mrb[0].mxu0
      %687 = vmatprep.mubr.f32.mxu0 0.0
      %688 = vmatmul.mubr.f32.gmra.mrb[0].mxu0 %v514
      %v689 = vpop.f32.mrb[0].mxu0
      %v690 = vadd.f32 0.0, %v689
      %v691 = vpop.f32.mrb[0].mxu0
      %692 = vmatprep.mubr.f32.mxu0 0.0
      %693 = vmatmul.mubr.f32.gmra.mrb[0].mxu0 %v517
      %v694 = vpop.f32.mrb[0].mxu0
      %v695 = vadd.f32 0.0, %v694
      %v696 = vpop.f32.mrb[0].mxu0
      %697 = vmatprep.mubr.f32.mxu0 0.0
      %698 = vmatmul.mubr.f32.gmra.mrb[0].mxu0 %v520
      %v699 = vpop.f32.mrb[0].mxu0
      %v700 = vadd.f32 0.0, %v699
      %v701 = vpop.f32.mrb[0].mxu0
      %702 = vmatprep.mubr.f32.mxu0 0.0
      %703 = vmatmul.mubr.f32.gmra.mrb[0].mxu0 %v523
      %v704 = vpop.f32.mrb[0].mxu0
      %v705 = vadd.f32 0.0, %v704
      %v706 = vpop.f32.mrb[0].mxu0
      %707 = vmatprep.mubr.f32.mxu0 0.0
      %708 = vmatmul.mubr.f32.gmra.mrb[0].mxu0 %v526
      %v709 = vpop.f32.mrb[0].mxu0
      %v710 = vadd.f32 0.0, %v709
      %v711 = vpop.f32.mrb[0].mxu0
      %712 = vmatprep.mubr.f32.mxu0 0.0
      %713 = vmatmul.mubr.f32.gmra.mrb[0].mxu0 %v529
      %v714 = vpop.f32.mrb[0].mxu0
      %v715 = vadd.f32 0.0, %v714
      %v716 = vpop.f32.mrb[0].mxu0
      %717 = vmatprep.mubr.f32.mxu0 0.0
      %718 = vmatmul.mubr.f32.gmra.mrb[0].mxu0 %v532
      %v719 = vpop.f32.mrb[0].mxu0
      %v720 = vadd.f32 0.0, %v719
      %v721 = vpop.f32.mrb[0].mxu0
      %722 = vmatprep.mubr.f32.mxu0 0.0
      %723 = vmatmul.mubr.f32.gmra.mrb[0].mxu0 %v535
      %v724 = vpop.f32.mrb[0].mxu0
      %v725 = vadd.f32 0.0, %v724
      %v726 = vpop.f32.mrb[0].mxu0
      %727 = vmatprep.mubr.f32.mxu0 0.0
      %728 = vmatmul.mubr.f32.gmra.mrb[0].mxu0 %v538
      %v729 = vpop.f32.mrb[0].mxu0
      %v730 = vadd.f32 0.0, %v729
      %v731 = vpop.f32.mrb[0].mxu0
      %732 = vmatprep.mubr.f32.mxu0 0.0
      %733 = vmatmul.mubr.f32.gmra.mrb[0].mxu0 %v541
      %v734 = vpop.f32.mrb[0].mxu0
      %v735 = vadd.f32 0.0, %v734
      %v736 = vpop.f32.mrb[0].mxu0
      %737 = vmatprep.mubr.f32.mxu0 0.0
      %738 = vmatmul.mubr.f32.gmra.mrb[0].mxu0 %v544
      %v739 = vpop.f32.mrb[0].mxu0
      %v740 = vadd.f32 0.0, %v739
      %v741 = vpop.f32.mrb[0].mxu0
      %742 = vmatprep.mubr.f32.mxu0 0.0
      %743 = vmatmul.mubr.f32.gmra.mrb[0].mxu0 %v547
      %v744 = vpop.f32.mrb[0].mxu0
      %v745 = vadd.f32 0.0, %v744
      %v746 = vpop.f32.mrb[0].mxu0
      %747 = vmatprep.mubr.f32.mxu0 0.0
      %748 = vmatmul.mubr.f32.gmra.mrb[0].mxu0 %v550
      %v749 = vpop.f32.mrb[0].mxu0
      %v750 = vadd.f32 0.0, %v749
      %v751 = vpop.f32.mrb[0].mxu0
      %752 = vmatprep.mubr.f32.mxu0 0.0
      %753 = vmatmul.mubr.f32.gmra.mrb[0].mxu0 %v553
      %v754 = vpop.f32.mrb[0].mxu0
      %v755 = vadd.f32 0.0, %v754
      %v756 = vpop.f32.mrb[0].mxu0
      %757 = vmatprep.mubr.f32.mxu0 0.0
      %758 = vmatmul.mubr.f32.gmra.mrb[0].mxu0 %v556
      %v759 = vpop.f32.mrb[0].mxu0
      %v760 = vadd.f32 0.0, %v759
      %v761 = vpop.f32.mrb[0].mxu0
      %762 = vmatprep.mubr.f32.mxu0 0.0
      %763 = vmatmul.mubr.f32.gmra.mrb[0].mxu0 %v559
      %v764 = vpop.f32.mrb[0].mxu0
      %v765 = vadd.f32 0.0, %v764
      %v766 = vpop.f32.mrb[0].mxu0
      %767 = vmatprep.mubr.f32.mxu0 0.0
      %768 = vmatmul.mubr.f32.gmra.mrb[0].mxu0 %v562
      %v769 = vpop.f32.mrb[0].mxu0
      %v770 = vadd.f32 0.0, %v769
      %v771 = vpop.f32.mrb[0].mxu0
      %772 = vmatprep.mubr.f32.mxu0 0.0
      %773 = vmatmul.mubr.f32.gmra.mrb[0].mxu0 %v565
      %v774 = vpop.f32.mrb[0].mxu0
      %v775 = vadd.f32 0.0, %v774
      %v776 = vpop.f32.mrb[0].mxu0
      %777 = vmatprep.mubr.f32.mxu0 0.0
      %778 = vmatmul.mubr.f32.gmra.mrb[0].mxu0 %v568
      %v779 = vpop.f32.mrb[0].mxu0
      %v780 = vadd.f32 0.0, %v779
      %v781 = vpop.f32.mrb[0].mxu0
      %782 = vmatprep.mubr.f32.mxu0 0.0
      %783 = vmatmul.mubr.f32.gmra.mrb[0].mxu0 %v571
      %v784 = vpop.f32.mrb[0].mxu0
      %v785 = vadd.f32 0.0, %v784
      %v786 = vpop.f32.mrb[0].mxu0
      %787 = vmatprep.mubr.f32.mxu0 0.0
      %788 = vmatmul.mubr.f32.gmra.mrb[0].mxu0 %v574
      %v789 = vpop.f32.mrb[0].mxu0
      %v790 = vadd.f32 0.0, %v789
      %v791 = vpop.f32.mrb[0].mxu0
      %792 = vmatprep.mubr.f32.mxu0 0.0
      %793 = vmatmul.mubr.f32.gmra.mrb[0].mxu0 %v577
      %v794 = vpop.f32.mrb[0].mxu0
      %v795 = vadd.f32 0.0, %v794
      %v796 = vpop.f32.mrb[0].mxu0
      %797 = vmatprep.mubr.f32.mxu0 0.0
      %798 = vmatmul.mubr.f32.gmra.mrb[0].mxu0 %v580
      %v799 = vpop.f32.mrb[0].mxu0
      %v800 = vadd.f32 0.0, %v799
      %v801 = vpop.f32.mrb[0].mxu0
      %802 = vmatprep.mubr.f32.mxu0 0.0
      %803 = vmatmul.mubr.f32.gmra.mrb[0].mxu0 %v583
      %v804 = vpop.f32.mrb[0].mxu0
      %v805 = vadd.f32 0.0, %v804
      %v806 = vpop.f32.mrb[0].mxu0
      %807 = vmatprep.mubr.f32.mxu0 0.0
      %808 = vmatmul.mubr.f32.gmra.mrb[0].mxu0 %v586
      %v809 = vpop.f32.mrb[0].mxu0
      %v810 = vadd.f32 0.0, %v809
      %v811 = vpop.f32.mrb[0].mxu0
      %812 = vdwg.mxu0
      %v814 = vsel %vm340, %v419, 0
      %v817 = vsel %vm340, %v420, 0
      %v820 = vsel %vm340, %v421, 0
      %v823 = vsel %vm340, %v422, 0
      %v826 = vsel %vm340, %v423, 0
      %v829 = vsel %vm340, %v424, 0
      %v832 = vsel %vm340, %v425, 0
      %v835 = vsel %vm340, %v426, 0
      %v838 = vsel %vm340, %v427, 0
      %v841 = vsel %vm340, %v428, 0
      %v844 = vsel %vm340, %v429, 0
      %v847 = vsel %vm340, %v430, 0
      %v850 = vsel %vm340, %v431, 0
      %v853 = vsel %vm340, %v432, 0
      %v856 = vsel %vm340, %v433, 0
      %v859 = vsel %vm340, %v434, 0
      %v862 = vsel %vm340, %v435, 0
      %v865 = vsel %vm340, %v436, 0
      %v868 = vsel %vm340, %v437, 0
      %v871 = vsel %vm340, %v438, 0
      %v874 = vsel %vm340, %v439, 0
      %v877 = vsel %vm340, %v440, 0
      %v880 = vsel %vm340, %v441, 0
      %v883 = vsel %vm340, %v442, 0
      %v886 = vsel %vm340, %v443, 0
      %v889 = vsel %vm340, %v444, 0
      %v892 = vsel %vm340, %v445, 0
      %v895 = vsel %vm340, %v446, 0
      %v898 = vsel %vm340, %v447, 0
      %v901 = vsel %vm340, %v448, 0
      %v904 = vsel %vm340, %v449, 0
      %v907 = vsel %vm340, %v450, 0
      %909 = vmatprep.subr.mxu0 0.0
      %910 = vmatpush1.msra.mxu0 %v451
      %911 = vmatprep.subr.mxu0 0.0
      %912 = vmatpush1.msra.mxu0 %v452
      %913 = vmatprep.subr.mxu0 0.0
      %914 = vmatpush1.msra.mxu0 %v453
      %915 = vmatprep.subr.mxu0 0.0
      %916 = vmatpush1.msra.mxu0 %v454
      %917 = vmatprep.subr.mxu0 0.0
      %918 = vmatpush1.msra.mxu0 0.0
      %919 = vmatprep.subr.mxu0 0.0
      %920 = vmatpush1.msra.mxu0 0.0
      %921 = vmatprep.subr.mxu0 0.0
      %922 = vmatpush1.msra.mxu0 0.0
      %923 = vmatprep.subr.mxu0 0.0
      %924 = vmatpush1.msra.mxu0 0.0
      %925 = vmatprep.subr.mxu0 0.0
      %926 = vmatpush1.msra.mxu0 0.0
      %927 = vmatprep.subr.mxu0 0.0
      %928 = vmatpush1.msra.mxu0 0.0
      %929 = vmatprep.subr.mxu0 0.0
      %930 = vmatpush1.msra.mxu0 0.0
      %931 = vmatprep.subr.mxu0 0.0
      %932 = vmatpush1.msra.mxu0 0.0
      %933 = vmatprep.subr.mxu0 0.0
      %934 = vmatpush1.msra.mxu0 0.0
      %935 = vmatprep.subr.mxu0 0.0
      %936 = vmatpush1.msra.mxu0 0.0
      %937 = vmatprep.subr.mxu0 0.0
      %938 = vmatpush1.msra.mxu0 0.0
      %939 = vmatprep.subr.mxu0 0.0
      %940 = vmatpush1.msra.mxu0 0.0
      %941 = vmatprep.subr.mxu0 0.0
      %942 = vmatpush1.msra.mxu0 0.0
      %943 = vmatprep.subr.mxu0 0.0
      %944 = vmatpush1.msra.mxu0 0.0
      %945 = vmatprep.subr.mxu0 0.0
      %946 = vmatpush1.msra.mxu0 0.0
      %947 = vmatprep.subr.mxu0 0.0
      %948 = vmatpush1.msra.mxu0 0.0
      %949 = vmatprep.subr.mxu0 0.0
      %950 = vmatpush1.msra.mxu0 0.0
      %951 = vmatprep.subr.mxu0 0.0
      %952 = vmatpush1.msra.mxu0 0.0
      %953 = vmatprep.subr.mxu0 0.0
      %954 = vmatpush1.msra.mxu0 0.0
      %955 = vmatprep.subr.mxu0 0.0
      %956 = vmatpush1.msra.mxu0 0.0
      %957 = vmatprep.subr.mxu0 0.0
      %958 = vmatpush1.msra.mxu0 0.0
      %959 = vmatprep.subr.mxu0 0.0
      %960 = vmatpush1.msra.mxu0 0.0
      %961 = vmatprep.subr.mxu0 0.0
      %962 = vmatpush1.msra.mxu0 0.0
      %963 = vmatprep.subr.mxu0 0.0
      %964 = vmatpush1.msra.mxu0 0.0
      %965 = vmatprep.subr.mxu0 0.0
      %966 = vmatpush1.msra.mxu0 0.0
      %967 = vmatprep.subr.mxu0 0.0
      %968 = vmatpush1.msra.mxu0 0.0
      %969 = vmatprep.subr.mxu0 0.0
      %970 = vmatpush1.msra.mxu0 0.0
      %971 = vmatprep.subr.mxu0 0.0
      %972 = vmatpush1.msra.mxu0 0.0
      %973 = vmatprep.mubr.f32.mxu0 0.0
      %974 = vmatmul.mubr.f32.gmra.mrb[0].mxu0 %v814
      %v975 = vpop.f32.mrb[0].mxu0
      %v976 = vadd.f32 %v655, %v975
      %v977 = vpop.f32.mrb[0].mxu0
      %978 = vmatprep.mubr.f32.mxu0 0.0
      %979 = vmatmul.mubr.f32.gmra.mrb[0].mxu0 %v817
      %v980 = vpop.f32.mrb[0].mxu0
      %v981 = vadd.f32 %v660, %v980
      %v982 = vpop.f32.mrb[0].mxu0
      %983 = vmatprep.mubr.f32.mxu0 0.0
      %984 = vmatmul.mubr.f32.gmra.mrb[0].mxu0 %v820
      %v985 = vpop.f32.mrb[0].mxu0
      %v986 = vadd.f32 %v665, %v985
      %v987 = vpop.f32.mrb[0].mxu0
      %988 = vmatprep.mubr.f32.mxu0 0.0
      %989 = vmatmul.mubr.f32.gmra.mrb[0].mxu0 %v823
      %v990 = vpop.f32.mrb[0].mxu0
      %v991 = vadd.f32 %v670, %v990
      %v992 = vpop.f32.mrb[0].mxu0
      %993 = vmatprep.mubr.f32.mxu0 0.0
      %994 = vmatmul.mubr.f32.gmra.mrb[0].mxu0 %v826
      %v995 = vpop.f32.mrb[0].mxu0
      %v996 = vadd.f32 %v675, %v995
      %v997 = vpop.f32.mrb[0].mxu0
      %998 = vmatprep.mubr.f32.mxu0 0.0
      %999 = vmatmul.mubr.f32.gmra.mrb[0].mxu0 %v829
      %v1000 = vpop.f32.mrb[0].mxu0
      %v1001 = vadd.f32 %v680, %v1000
      %v1002 = vpop.f32.mrb[0].mxu0
      %1003 = vmatprep.mubr.f32.mxu0 0.0
      %1004 = vmatmul.mubr.f32.gmra.mrb[0].mxu0 %v832
      %v1005 = vpop.f32.mrb[0].mxu0
      %v1006 = vadd.f32 %v685, %v1005
      %v1007 = vpop.f32.mrb[0].mxu0
      %1008 = vmatprep.mubr.f32.mxu0 0.0
      %1009 = vmatmul.mubr.f32.gmra.mrb[0].mxu0 %v835
      %v1010 = vpop.f32.mrb[0].mxu0
      %v1011 = vadd.f32 %v690, %v1010
      %v1012 = vpop.f32.mrb[0].mxu0
      %1013 = vmatprep.mubr.f32.mxu0 0.0
      %1014 = vmatmul.mubr.f32.gmra.mrb[0].mxu0 %v838
      %v1015 = vpop.f32.mrb[0].mxu0
      %v1016 = vadd.f32 %v695, %v1015
      %v1017 = vpop.f32.mrb[0].mxu0
      %1018 = vmatprep.mubr.f32.mxu0 0.0
      %1019 = vmatmul.mubr.f32.gmra.mrb[0].mxu0 %v841
      %v1020 = vpop.f32.mrb[0].mxu0
      %v1021 = vadd.f32 %v700, %v1020
      %v1022 = vpop.f32.mrb[0].mxu0
      %1023 = vmatprep.mubr.f32.mxu0 0.0
      %1024 = vmatmul.mubr.f32.gmra.mrb[0].mxu0 %v844
      %v1025 = vpop.f32.mrb[0].mxu0
      %v1026 = vadd.f32 %v705, %v1025
      %v1027 = vpop.f32.mrb[0].mxu0
      %1028 = vmatprep.mubr.f32.mxu0 0.0
      %1029 = vmatmul.mubr.f32.gmra.mrb[0].mxu0 %v847
      %v1030 = vpop.f32.mrb[0].mxu0
      %v1031 = vadd.f32 %v710, %v1030
      %v1032 = vpop.f32.mrb[0].mxu0
      %1033 = vmatprep.mubr.f32.mxu0 0.0
      %1034 = vmatmul.mubr.f32.gmra.mrb[0].mxu0 %v850
      %v1035 = vpop.f32.mrb[0].mxu0
      %v1036 = vadd.f32 %v715, %v1035
      %v1037 = vpop.f32.mrb[0].mxu0
      %1038 = vmatprep.mubr.f32.mxu0 0.0
      %1039 = vmatmul.mubr.f32.gmra.mrb[0].mxu0 %v853
      %v1040 = vpop.f32.mrb[0].mxu0
      %v1041 = vadd.f32 %v720, %v1040
      %v1042 = vpop.f32.mrb[0].mxu0
      %1043 = vmatprep.mubr.f32.mxu0 0.0
      %1044 = vmatmul.mubr.f32.gmra.mrb[0].mxu0 %v856
      %v1045 = vpop.f32.mrb[0].mxu0
      %v1046 = vadd.f32 %v725, %v1045
      %v1047 = vpop.f32.mrb[0].mxu0
      %1048 = vmatprep.mubr.f32.mxu0 0.0
      %1049 = vmatmul.mubr.f32.gmra.mrb[0].mxu0 %v859
      %v1050 = vpop.f32.mrb[0].mxu0
      %v1051 = vadd.f32 %v730, %v1050
      %v1052 = vpop.f32.mrb[0].mxu0
      %1053 = vmatprep.mubr.f32.mxu0 0.0
      %1054 = vmatmul.mubr.f32.gmra.mrb[0].mxu0 %v862
      %v1055 = vpop.f32.mrb[0].mxu0
      %v1056 = vadd.f32 %v735, %v1055
      %v1057 = vpop.f32.mrb[0].mxu0
      %1058 = vmatprep.mubr.f32.mxu0 0.0
      %1059 = vmatmul.mubr.f32.gmra.mrb[0].mxu0 %v865
      %v1060 = vpop.f32.mrb[0].mxu0
      %v1061 = vadd.f32 %v740, %v1060
      %v1062 = vpop.f32.mrb[0].mxu0
      %1063 = vmatprep.mubr.f32.mxu0 0.0
      %1064 = vmatmul.mubr.f32.gmra.mrb[0].mxu0 %v868
      %v1065 = vpop.f32.mrb[0].mxu0
      %v1066 = vadd.f32 %v745, %v1065
      %v1067 = vpop.f32.mrb[0].mxu0
      %1068 = vmatprep.mubr.f32.mxu0 0.0
      %1069 = vmatmul.mubr.f32.gmra.mrb[0].mxu0 %v871
      %v1070 = vpop.f32.mrb[0].mxu0
      %v1071 = vadd.f32 %v750, %v1070
      %v1072 = vpop.f32.mrb[0].mxu0
      %1073 = vmatprep.mubr.f32.mxu0 0.0
      %1074 = vmatmul.mubr.f32.gmra.mrb[0].mxu0 %v874
      %v1075 = vpop.f32.mrb[0].mxu0
      %v1076 = vadd.f32 %v755, %v1075
      %v1077 = vpop.f32.mrb[0].mxu0
      %1078 = vmatprep.mubr.f32.mxu0 0.0
      %1079 = vmatmul.mubr.f32.gmra.mrb[0].mxu0 %v877
      %v1080 = vpop.f32.mrb[0].mxu0
      %v1081 = vadd.f32 %v760, %v1080
      %v1082 = vpop.f32.mrb[0].mxu0
      %1083 = vmatprep.mubr.f32.mxu0 0.0
      %1084 = vmatmul.mubr.f32.gmra.mrb[0].mxu0 %v880
      %v1085 = vpop.f32.mrb[0].mxu0
      %v1086 = vadd.f32 %v765, %v1085
      %v1087 = vpop.f32.mrb[0].mxu0
      %1088 = vmatprep.mubr.f32.mxu0 0.0
      %1089 = vmatmul.mubr.f32.gmra.mrb[0].mxu0 %v883
      %v1090 = vpop.f32.mrb[0].mxu0
      %v1091 = vadd.f32 %v770, %v1090
      %v1092 = vpop.f32.mrb[0].mxu0
      %1093 = vmatprep.mubr.f32.mxu0 0.0
      %1094 = vmatmul.mubr.f32.gmra.mrb[0].mxu0 %v886
      %v1095 = vpop.f32.mrb[0].mxu0
      %v1096 = vadd.f32 %v775, %v1095
      %v1097 = vpop.f32.mrb[0].mxu0
      %1098 = vmatprep.mubr.f32.mxu0 0.0
      %1099 = vmatmul.mubr.f32.gmra.mrb[0].mxu0 %v889
      %v1100 = vpop.f32.mrb[0].mxu0
      %v1101 = vadd.f32 %v780, %v1100
      %v1102 = vpop.f32.mrb[0].mxu0
      %1103 = vmatprep.mubr.f32.mxu0 0.0
      %1104 = vmatmul.mubr.f32.gmra.mrb[0].mxu0 %v892
      %v1105 = vpop.f32.mrb[0].mxu0
      %v1106 = vadd.f32 %v785, %v1105
      %v1107 = vpop.f32.mrb[0].mxu0
      %1108 = vmatprep.mubr.f32.mxu0 0.0
      %1109 = vmatmul.mubr.f32.gmra.mrb[0].mxu0 %v895
      %v1110 = vpop.f32.mrb[0].mxu0
      %v1111 = vadd.f32 %v790, %v1110
      %v1112 = vpop.f32.mrb[0].mxu0
      %1113 = vmatprep.mubr.f32.mxu0 0.0
      %1114 = vmatmul.mubr.f32.gmra.mrb[0].mxu0 %v898
      %v1115 = vpop.f32.mrb[0].mxu0
      %v1116 = vadd.f32 %v795, %v1115
      %v1117 = vpop.f32.mrb[0].mxu0
      %1118 = vmatprep.mubr.f32.mxu0 0.0
      %1119 = vmatmul.mubr.f32.gmra.mrb[0].mxu0 %v901
      %v1120 = vpop.f32.mrb[0].mxu0
      %v1121 = vadd.f32 %v800, %v1120
      %v1122 = vpop.f32.mrb[0].mxu0
      %1123 = vmatprep.mubr.f32.mxu0 0.0
      %1124 = vmatmul.mubr.f32.gmra.mrb[0].mxu0 %v904
      %v1125 = vpop.f32.mrb[0].mxu0
      %v1126 = vadd.f32 %v805, %v1125
      %v1127 = vpop.f32.mrb[0].mxu0
      %1128 = vmatprep.mubr.f32.mxu0 0.0
      %1129 = vmatmul.mubr.f32.gmra.mrb[0].mxu0 %v907
      %v1130 = vpop.f32.mrb[0].mxu0
      %v1131 = vadd.f32 %v810, %v1130
      %v1132 = vpop.f32.mrb[0].mxu0
      %1133 = vdwg.mxu0
      %v1134 = vld [vmem:[#allocation2 + $0x2] sm:$0xff]
      %v1135 = vld [vmem:[#allocation2 + $0xa] sm:$0xff]
      %v1136 = vld [vmem:[#allocation2 + $0x1a] sm:$0xff]
      %v1137 = vld [vmem:[#allocation2 + $0x22] sm:$0xff]
      %v1138 = vld [vmem:[#allocation2 + $0x32] sm:$0xff]
      %v1139 = vld [vmem:[#allocation2 + $0x3a] sm:$0xff]
      %v1140 = vld [vmem:[#allocation2 + $0x4a] sm:$0xff]
      %v1141 = vld [vmem:[#allocation2 + $0x52] sm:$0xff]
      %v1142 = vld [vmem:[#allocation2 + $0x62] sm:$0xff]
      %v1143 = vld [vmem:[#allocation2 + $0x6a] sm:$0xff]
      %v1144 = vld [vmem:[#allocation2 + $0x7a] sm:$0xff]
      %v1145 = vld [vmem:[#allocation2 + $0x82] sm:$0xff]
      %v1146 = vld [vmem:[#allocation2 + $0x92] sm:$0xff]
      %v1147 = vld [vmem:[#allocation2 + $0x9a] sm:$0xff]
      %v1148 = vld [vmem:[#allocation2 + $0xaa] sm:$0xff]
      %v1149 = vld [vmem:[#allocation2 + $0xb2] sm:$0xff]
      %v1150 = vld [vmem:[#allocation2 + $0xc2] sm:$0xff]
      %v1151 = vld [vmem:[#allocation2 + $0xca] sm:$0xff]
      %v1152 = vld [vmem:[#allocation2 + $0xda] sm:$0xff]
      %v1153 = vld [vmem:[#allocation2 + $0xe2] sm:$0xff]
      %v1154 = vld [vmem:[#allocation2 + $0xf2] sm:$0xff]
      %v1155 = vld [vmem:[#allocation2 + $0xfa] sm:$0xff]
      %v1156 = vld [vmem:[#allocation2 + $0x10a] sm:$0xff]
      %v1157 = vld [vmem:[#allocation2 + $0x112] sm:$0xff]
      %v1158 = vld [vmem:[#allocation2 + $0x122] sm:$0xff]
      %v1159 = vld [vmem:[#allocation2 + $0x12a] sm:$0xff]
      %v1160 = vld [vmem:[#allocation2 + $0x13a] sm:$0xff]
      %v1161 = vld [vmem:[#allocation2 + $0x142] sm:$0xff]
      %v1162 = vld [vmem:[#allocation2 + $0x152] sm:$0xff]
      %v1163 = vld [vmem:[#allocation2 + $0x15a] sm:$0xff]
      %v1164 = vld [vmem:[#allocation2 + $0x16a] sm:$0xff]
      %v1165 = vld [vmem:[#allocation2 + $0x172] sm:$0xff]
      %s1166 = scalar_lea.vmem %s3, 64
      %v1167 = vld [vmem:[%s1166] sm:$0xff]
      %v1168 = vld [vmem:[%s1166 + $0x8] sm:$0xff]
      %v1169 = vld [vmem:[%s1166 + $0x10] sm:$0xff]
      %v1170 = vld [vmem:[%s1166 + $0x18] sm:$0xff]
      %v1172 = vsel %vm340, %v1134, 0
      %v1175 = vsel %vm340, %v1135, 0
      %v1178 = vsel %vm340, %v1136, 0
      %v1181 = vsel %vm340, %v1137, 0
      %v1184 = vsel %vm340, %v1138, 0
      %v1187 = vsel %vm340, %v1139, 0
      %v1190 = vsel %vm340, %v1140, 0
      %v1193 = vsel %vm340, %v1141, 0
      %v1196 = vsel %vm340, %v1142, 0
      %v1199 = vsel %vm340, %v1143, 0
      %v1202 = vsel %vm340, %v1144, 0
      %v1205 = vsel %vm340, %v1145, 0
      %v1208 = vsel %vm340, %v1146, 0
      %v1211 = vsel %vm340, %v1147, 0
      %v1214 = vsel %vm340, %v1148, 0
      %v1217 = vsel %vm340, %v1149, 0
      %v1220 = vsel %vm340, %v1150, 0
      %v1223 = vsel %vm340, %v1151, 0
      %v1226 = vsel %vm340, %v1152, 0
      %v1229 = vsel %vm340, %v1153, 0
      %v1232 = vsel %vm340, %v1154, 0
      %v1235 = vsel %vm340, %v1155, 0
      %v1238 = vsel %vm340, %v1156, 0
      %v1241 = vsel %vm340, %v1157, 0
      %v1244 = vsel %vm340, %v1158, 0
      %v1247 = vsel %vm340, %v1159, 0
      %v1250 = vsel %vm340, %v1160, 0
      %v1253 = vsel %vm340, %v1161, 0
      %v1256 = vsel %vm340, %v1162, 0
      %v1259 = vsel %vm340, %v1163, 0
      %v1262 = vsel %vm340, %v1164, 0
      %v1265 = vsel %vm340, %v1165, 0
      %1267 = vmatprep.subr.mxu0 0.0
      %1268 = vmatpush1.msra.mxu0 %v1167
      %1269 = vmatprep.subr.mxu0 0.0
      %1270 = vmatpush1.msra.mxu0 %v1168
      %1271 = vmatprep.subr.mxu0 0.0
      %1272 = vmatpush1.msra.mxu0 %v1169
      %1273 = vmatprep.subr.mxu0 0.0
      %1274 = vmatpush1.msra.mxu0 %v1170
      %1275 = vmatprep.subr.mxu0 0.0
      %1276 = vmatpush1.msra.mxu0 0.0
      %1277 = vmatprep.subr.mxu0 0.0
      %1278 = vmatpush1.msra.mxu0 0.0
      %1279 = vmatprep.subr.mxu0 0.0
      %1280 = vmatpush1.msra.mxu0 0.0
      %1281 = vmatprep.subr.mxu0 0.0
      %1282 = vmatpush1.msra.mxu0 0.0
      %1283 = vmatprep.subr.mxu0 0.0
      %1284 = vmatpush1.msra.mxu0 0.0
      %1285 = vmatprep.subr.mxu0 0.0
      %1286 = vmatpush1.msra.mxu0 0.0
      %1287 = vmatprep.subr.mxu0 0.0
      %1288 = vmatpush1.msra.mxu0 0.0
      %1289 = vmatprep.subr.mxu0 0.0
      %1290 = vmatpush1.msra.mxu0 0.0
      %1291 = vmatprep.subr.mxu0 0.0
      %1292 = vmatpush1.msra.mxu0 0.0
      %1293 = vmatprep.subr.mxu0 0.0
      %1294 = vmatpush1.msra.mxu0 0.0
      %1295 = vmatprep.subr.mxu0 0.0
      %1296 = vmatpush1.msra.mxu0 0.0
      %1297 = vmatprep.subr.mxu0 0.0
      %1298 = vmatpush1.msra.mxu0 0.0
      %1299 = vmatprep.subr.mxu0 0.0
      %1300 = vmatpush1.msra.mxu0 0.0
      %1301 = vmatprep.subr.mxu0 0.0
      %1302 = vmatpush1.msra.mxu0 0.0
      %1303 = vmatprep.subr.mxu0 0.0
      %1304 = vmatpush1.msra.mxu0 0.0
      %1305 = vmatprep.subr.mxu0 0.0
      %1306 = vmatpush1.msra.mxu0 0.0
      %1307 = vmatprep.subr.mxu0 0.0
      %1308 = vmatpush1.msra.mxu0 0.0
      %1309 = vmatprep.subr.mxu0 0.0
      %1310 = vmatpush1.msra.mxu0 0.0
      %1311 = vmatprep.subr.mxu0 0.0
      %1312 = vmatpush1.msra.mxu0 0.0
      %1313 = vmatprep.subr.mxu0 0.0
      %1314 = vmatpush1.msra.mxu0 0.0
      %1315 = vmatprep.subr.mxu0 0.0
      %1316 = vmatpush1.msra.mxu0 0.0
      %1317 = vmatprep.subr.mxu0 0.0
      %1318 = vmatpush1.msra.mxu0 0.0
      %1319 = vmatprep.subr.mxu0 0.0
      %1320 = vmatpush1.msra.mxu0 0.0
      %1321 = vmatprep.subr.mxu0 0.0
      %1322 = vmatpush1.msra.mxu0 0.0
      %1323 = vmatprep.subr.mxu0 0.0
      %1324 = vmatpush1.msra.mxu0 0.0
      %1325 = vmatprep.subr.mxu0 0.0
      %1326 = vmatpush1.msra.mxu0 0.0
      %1327 = vmatprep.subr.mxu0 0.0
      %1328 = vmatpush1.msra.mxu0 0.0
      %1329 = vmatprep.subr.mxu0 0.0
      %1330 = vmatpush1.msra.mxu0 0.0
      %1331 = vmatprep.mubr.f32.mxu0 0.0
      %1332 = vmatmul.mubr.f32.gmra.mrb[0].mxu0 %v1172
      %v1333 = vpop.f32.mrb[0].mxu0
      %v1334 = vadd.f32 0.0, %v1333
      %v1335 = vpop.f32.mrb[0].mxu0
      %1336 = vmatprep.mubr.f32.mxu0 0.0
      %1337 = vmatmul.mubr.f32.gmra.mrb[0].mxu0 %v1175
      %v1338 = vpop.f32.mrb[0].mxu0
      %v1339 = vadd.f32 0.0, %v1338
      %v1340 = vpop.f32.mrb[0].mxu0
      %1341 = vmatprep.mubr.f32.mxu0 0.0
      %1342 = vmatmul.mubr.f32.gmra.mrb[0].mxu0 %v1178
      %v1343 = vpop.f32.mrb[0].mxu0
      %v1344 = vadd.f32 0.0, %v1343
      %v1345 = vpop.f32.mrb[0].mxu0
      %1346 = vmatprep.mubr.f32.mxu0 0.0
      %1347 = vmatmul.mubr.f32.gmra.mrb[0].mxu0 %v1181
      %v1348 = vpop.f32.mrb[0].mxu0
      %v1349 = vadd.f32 0.0, %v1348
      %v1350 = vpop.f32.mrb[0].mxu0
      %1351 = vmatprep.mubr.f32.mxu0 0.0
      %1352 = vmatmul.mubr.f32.gmra.mrb[0].mxu0 %v1184
      %v1353 = vpop.f32.mrb[0].mxu0
      %v1354 = vadd.f32 0.0, %v1353
      %v1355 = vpop.f32.mrb[0].mxu0
      %1356 = vmatprep.mubr.f32.mxu0 0.0
      %1357 = vmatmul.mubr.f32.gmra.mrb[0].mxu0 %v1187
      %v1358 = vpop.f32.mrb[0].mxu0
      %v1359 = vadd.f32 0.0, %v1358
      %v1360 = vpop.f32.mrb[0].mxu0
      %1361 = vmatprep.mubr.f32.mxu0 0.0
      %1362 = vmatmul.mubr.f32.gmra.mrb[0].mxu0 %v1190
      %v1363 = vpop.f32.mrb[0].mxu0
      %v1364 = vadd.f32 0.0, %v1363
      %v1365 = vpop.f32.mrb[0].mxu0
      %1366 = vmatprep.mubr.f32.mxu0 0.0
      %1367 = vmatmul.mubr.f32.gmra.mrb[0].mxu0 %v1193
      %v1368 = vpop.f32.mrb[0].mxu0
      %v1369 = vadd.f32 0.0, %v1368
      %v1370 = vpop.f32.mrb[0].mxu0
      %1371 = vmatprep.mubr.f32.mxu0 0.0
      %1372 = vmatmul.mubr.f32.gmra.mrb[0].mxu0 %v1196
      %v1373 = vpop.f32.mrb[0].mxu0
      %v1374 = vadd.f32 0.0, %v1373
      %v1375 = vpop.f32.mrb[0].mxu0
      %1376 = vmatprep.mubr.f32.mxu0 0.0
      %1377 = vmatmul.mubr.f32.gmra.mrb[0].mxu0 %v1199
      %v1378 = vpop.f32.mrb[0].mxu0
      %v1379 = vadd.f32 0.0, %v1378
      %v1380 = vpop.f32.mrb[0].mxu0
      %1381 = vmatprep.mubr.f32.mxu0 0.0
      %1382 = vmatmul.mubr.f32.gmra.mrb[0].mxu0 %v1202
      %v1383 = vpop.f32.mrb[0].mxu0
      %v1384 = vadd.f32 0.0, %v1383
      %v1385 = vpop.f32.mrb[0].mxu0
      %1386 = vmatprep.mubr.f32.mxu0 0.0
      %1387 = vmatmul.mubr.f32.gmra.mrb[0].mxu0 %v1205
      %v1388 = vpop.f32.mrb[0].mxu0
      %v1389 = vadd.f32 0.0, %v1388
      %v1390 = vpop.f32.mrb[0].mxu0
      %1391 = vmatprep.mubr.f32.mxu0 0.0
      %1392 = vmatmul.mubr.f32.gmra.mrb[0].mxu0 %v1208
      %v1393 = vpop.f32.mrb[0].mxu0
      %v1394 = vadd.f32 0.0, %v1393
      %v1395 = vpop.f32.mrb[0].mxu0
      %1396 = vmatprep.mubr.f32.mxu0 0.0
      %1397 = vmatmul.mubr.f32.gmra.mrb[0].mxu0 %v1211
      %v1398 = vpop.f32.mrb[0].mxu0
      %v1399 = vadd.f32 0.0, %v1398
      %v1400 = vpop.f32.mrb[0].mxu0
      %1401 = vmatprep.mubr.f32.mxu0 0.0
      %1402 = vmatmul.mubr.f32.gmra.mrb[0].mxu0 %v1214
      %v1403 = vpop.f32.mrb[0].mxu0
      %v1404 = vadd.f32 0.0, %v1403
      %v1405 = vpop.f32.mrb[0].mxu0
      %1406 = vmatprep.mubr.f32.mxu0 0.0
      %1407 = vmatmul.mubr.f32.gmra.mrb[0].mxu0 %v1217
      %v1408 = vpop.f32.mrb[0].mxu0
      %v1409 = vadd.f32 0.0, %v1408
      %v1410 = vpop.f32.mrb[0].mxu0
      %1411 = vmatprep.mubr.f32.mxu0 0.0
      %1412 = vmatmul.mubr.f32.gmra.mrb[0].mxu0 %v1220
      %v1413 = vpop.f32.mrb[0].mxu0
      %v1414 = vadd.f32 0.0, %v1413
      %v1415 = vpop.f32.mrb[0].mxu0
      %1416 = vmatprep.mubr.f32.mxu0 0.0
      %1417 = vmatmul.mubr.f32.gmra.mrb[0].mxu0 %v1223
      %v1418 = vpop.f32.mrb[0].mxu0
      %v1419 = vadd.f32 0.0, %v1418
      %v1420 = vpop.f32.mrb[0].mxu0
      %1421 = vmatprep.mubr.f32.mxu0 0.0
      %1422 = vmatmul.mubr.f32.gmra.mrb[0].mxu0 %v1226
      %v1423 = vpop.f32.mrb[0].mxu0
      %v1424 = vadd.f32 0.0, %v1423
      %v1425 = vpop.f32.mrb[0].mxu0
      %1426 = vmatprep.mubr.f32.mxu0 0.0
      %1427 = vmatmul.mubr.f32.gmra.mrb[0].mxu0 %v1229
      %v1428 = vpop.f32.mrb[0].mxu0
      %v1429 = vadd.f32 0.0, %v1428
      %v1430 = vpop.f32.mrb[0].mxu0
      %1431 = vmatprep.mubr.f32.mxu0 0.0
      %1432 = vmatmul.mubr.f32.gmra.mrb[0].mxu0 %v1232
      %v1433 = vpop.f32.mrb[0].mxu0
      %v1434 = vadd.f32 0.0, %v1433
      %v1435 = vpop.f32.mrb[0].mxu0
      %1436 = vmatprep.mubr.f32.mxu0 0.0
      %1437 = vmatmul.mubr.f32.gmra.mrb[0].mxu0 %v1235
      %v1438 = vpop.f32.mrb[0].mxu0
      %v1439 = vadd.f32 0.0, %v1438
      %v1440 = vpop.f32.mrb[0].mxu0
      %1441 = vmatprep.mubr.f32.mxu0 0.0
      %1442 = vmatmul.mubr.f32.gmra.mrb[0].mxu0 %v1238
      %v1443 = vpop.f32.mrb[0].mxu0
      %v1444 = vadd.f32 0.0, %v1443
      %v1445 = vpop.f32.mrb[0].mxu0
      %1446 = vmatprep.mubr.f32.mxu0 0.0
      %1447 = vmatmul.mubr.f32.gmra.mrb[0].mxu0 %v1241
      %v1448 = vpop.f32.mrb[0].mxu0
      %v1449 = vadd.f32 0.0, %v1448
      %v1450 = vpop.f32.mrb[0].mxu0
      %1451 = vmatprep.mubr.f32.mxu0 0.0
      %1452 = vmatmul.mubr.f32.gmra.mrb[0].mxu0 %v1244
      %v1453 = vpop.f32.mrb[0].mxu0
      %v1454 = vadd.f32 0.0, %v1453
      %v1455 = vpop.f32.mrb[0].mxu0
      %1456 = vmatprep.mubr.f32.mxu0 0.0
      %1457 = vmatmul.mubr.f32.gmra.mrb[0].mxu0 %v1247
      %v1458 = vpop.f32.mrb[0].mxu0
      %v1459 = vadd.f32 0.0, %v1458
      %v1460 = vpop.f32.mrb[0].mxu0
      %1461 = vmatprep.mubr.f32.mxu0 0.0
      %1462 = vmatmul.mubr.f32.gmra.mrb[0].mxu0 %v1250
      %v1463 = vpop.f32.mrb[0].mxu0
      %v1464 = vadd.f32 0.0, %v1463
      %v1465 = vpop.f32.mrb[0].mxu0
      %1466 = vmatprep.mubr.f32.mxu0 0.0
      %1467 = vmatmul.mubr.f32.gmra.mrb[0].mxu0 %v1253
      %v1468 = vpop.f32.mrb[0].mxu0
      %v1469 = vadd.f32 0.0, %v1468
      %v1470 = vpop.f32.mrb[0].mxu0
      %1471 = vmatprep.mubr.f32.mxu0 0.0
      %1472 = vmatmul.mubr.f32.gmra.mrb[0].mxu0 %v1256
      %v1473 = vpop.f32.mrb[0].mxu0
      %v1474 = vadd.f32 0.0, %v1473
      %v1475 = vpop.f32.mrb[0].mxu0
      %1476 = vmatprep.mubr.f32.mxu0 0.0
      %1477 = vmatmul.mubr.f32.gmra.mrb[0].mxu0 %v1259
      %v1478 = vpop.f32.mrb[0].mxu0
      %v1479 = vadd.f32 0.0, %v1478
      %v1480 = vpop.f32.mrb[0].mxu0
      %1481 = vmatprep.mubr.f32.mxu0 0.0
      %1482 = vmatmul.mubr.f32.gmra.mrb[0].mxu0 %v1262
      %v1483 = vpop.f32.mrb[0].mxu0
      %v1484 = vadd.f32 0.0, %v1483
      %v1485 = vpop.f32.mrb[0].mxu0
      %1486 = vmatprep.mubr.f32.mxu0 0.0
      %1487 = vmatmul.mubr.f32.gmra.mrb[0].mxu0 %v1265
      %v1488 = vpop.f32.mrb[0].mxu0
      %v1489 = vadd.f32 0.0, %v1488
      %v1490 = vpop.f32.mrb[0].mxu0
      %1491 = vdwg.mxu0
      %v1492 = vadd.f32 %v976, %v1334
      %v1493 = vadd.f32 %v981, %v1339
      %v1494 = vadd.f32 %v986, %v1344
      %v1495 = vadd.f32 %v991, %v1349
      %v1496 = vadd.f32 %v996, %v1354
      %v1497 = vadd.f32 %v1001, %v1359
      %v1498 = vadd.f32 %v1006, %v1364
      %v1499 = vadd.f32 %v1011, %v1369
      %v1500 = vadd.f32 %v1016, %v1374
      %v1501 = vadd.f32 %v1021, %v1379
      %v1502 = vadd.f32 %v1026, %v1384
      %v1503 = vadd.f32 %v1031, %v1389
      %v1504 = vadd.f32 %v1036, %v1394
      %v1505 = vadd.f32 %v1041, %v1399
      %v1506 = vadd.f32 %v1046, %v1404
      %v1507 = vadd.f32 %v1051, %v1409
      %v1508 = vadd.f32 %v1056, %v1414
      %v1509 = vadd.f32 %v1061, %v1419
      %v1510 = vadd.f32 %v1066, %v1424
      %v1511 = vadd.f32 %v1071, %v1429
      %v1512 = vadd.f32 %v1076, %v1434
      %v1513 = vadd.f32 %v1081, %v1439
      %v1514 = vadd.f32 %v1086, %v1444
      %v1515 = vadd.f32 %v1091, %v1449
      %v1516 = vadd.f32 %v1096, %v1454
      %v1517 = vadd.f32 %v1101, %v1459
      %v1518 = vadd.f32 %v1106, %v1464
      %v1519 = vadd.f32 %v1111, %v1469
      %v1520 = vadd.f32 %v1116, %v1474
      %v1521 = vadd.f32 %v1121, %v1479
      %v1522 = vadd.f32 %v1126, %v1484
      %v1523 = vadd.f32 %v1131, %v1489
      %v1524 = vld [vmem:[%s386] sm:$0xff]
      %v1525 = vld [vmem:[%s386 + $0x8] sm:$0xff]
      %v1526 = vld [vmem:[%s386 + $0x18] sm:$0xff]
      %v1527 = vld [vmem:[%s386 + $0x20] sm:$0xff]
      %v1528 = vld [vmem:[%s386 + $0x30] sm:$0xff]
      %v1529 = vld [vmem:[%s386 + $0x38] sm:$0xff]
      %v1530 = vld [vmem:[%s386 + $0x48] sm:$0xff]
      %v1531 = vld [vmem:[%s386 + $0x50] sm:$0xff]
      %v1532 = vld [vmem:[%s386 + $0x60] sm:$0xff]
      %v1533 = vld [vmem:[%s386 + $0x68] sm:$0xff]
      %v1534 = vld [vmem:[%s386 + $0x78] sm:$0xff]
      %v1535 = vld [vmem:[%s386 + $0x80] sm:$0xff]
      %v1536 = vld [vmem:[%s386 + $0x90] sm:$0xff]
      %v1537 = vld [vmem:[%s386 + $0x98] sm:$0xff]
      %v1538 = vld [vmem:[%s386 + $0xa8] sm:$0xff]
      %v1539 = vld [vmem:[%s386 + $0xb0] sm:$0xff]
      %v1540 = vld [vmem:[%s386 + $0xc0] sm:$0xff]
      %v1541 = vld [vmem:[%s386 + $0xc8] sm:$0xff]
      %v1542 = vld [vmem:[%s386 + $0xd8] sm:$0xff]
      %v1543 = vld [vmem:[%s386 + $0xe0] sm:$0xff]
      %v1544 = vld [vmem:[%s386 + $0xf0] sm:$0xff]
      %v1545 = vld [vmem:[%s386 + $0xf8] sm:$0xff]
      %v1546 = vld [vmem:[%s386 + $0x108] sm:$0xff]
      %v1547 = vld [vmem:[%s386 + $0x110] sm:$0xff]
      %v1548 = vld [vmem:[%s386 + $0x120] sm:$0xff]
      %v1549 = vld [vmem:[%s386 + $0x128] sm:$0xff]
      %v1550 = vld [vmem:[%s386 + $0x138] sm:$0xff]
      %v1551 = vld [vmem:[%s386 + $0x140] sm:$0xff]
      %v1552 = vld [vmem:[%s386 + $0x150] sm:$0xff]
      %v1553 = vld [vmem:[%s386 + $0x158] sm:$0xff]
      %v1554 = vld [vmem:[%s386 + $0x168] sm:$0xff]
      %v1555 = vld [vmem:[%s386 + $0x170] sm:$0xff]
      %s1556 = scalar_lea.vmem %s3, 96
      %v1557 = vld [vmem:[%s1556] sm:$0xff]
      %v1558 = vld [vmem:[%s1556 + $0x8] sm:$0xff]
      %v1559 = vld [vmem:[%s1556 + $0x10] sm:$0xff]
      %v1560 = vld [vmem:[%s1556 + $0x18] sm:$0xff]
      %v1562 = vsel %vm340, %v1524, 0
      %v1565 = vsel %vm340, %v1525, 0
      %v1568 = vsel %vm340, %v1526, 0
      %v1571 = vsel %vm340, %v1527, 0
      %v1574 = vsel %vm340, %v1528, 0
      %v1577 = vsel %vm340, %v1529, 0
      %v1580 = vsel %vm340, %v1530, 0
      %v1583 = vsel %vm340, %v1531, 0
      %v1586 = vsel %vm340, %v1532, 0
      %v1589 = vsel %vm340, %v1533, 0
      %v1592 = vsel %vm340, %v1534, 0
      %v1595 = vsel %vm340, %v1535, 0
      %v1598 = vsel %vm340, %v1536, 0
      %v1601 = vsel %vm340, %v1537, 0
      %v1604 = vsel %vm340, %v1538, 0
      %v1607 = vsel %vm340, %v1539, 0
      %v1610 = vsel %vm340, %v1540, 0
      %v1613 = vsel %vm340, %v1541, 0
      %v1616 = vsel %vm340, %v1542, 0
      %v1619 = vsel %vm340, %v1543, 0
      %v1622 = vsel %vm340, %v1544, 0
      %v1625 = vsel %vm340, %v1545, 0
      %v1628 = vsel %vm340, %v1546, 0
      %v1631 = vsel %vm340, %v1547, 0
      %v1634 = vsel %vm340, %v1548, 0
      %v1637 = vsel %vm340, %v1549, 0
      %v1640 = vsel %vm340, %v1550, 0
      %v1643 = vsel %vm340, %v1551, 0
      %v1646 = vsel %vm340, %v1552, 0
      %v1649 = vsel %vm340, %v1553, 0
      %v1652 = vsel %vm340, %v1554, 0
      %v1655 = vsel %vm340, %v1555, 0
      %1657 = vmatprep.subr.mxu0 0.0
      %1658 = vmatpush1.msra.mxu0 %v1557
      %1659 = vmatprep.subr.mxu0 0.0
      %1660 = vmatpush1.msra.mxu0 %v1558
      %1661 = vmatprep.subr.mxu0 0.0
      %1662 = vmatpush1.msra.mxu0 %v1559
      %1663 = vmatprep.subr.mxu0 0.0
      %1664 = vmatpush1.msra.mxu0 %v1560
      %1665 = vmatprep.subr.mxu0 0.0
      %1666 = vmatpush1.msra.mxu0 0.0
      %1667 = vmatprep.subr.mxu0 0.0
      %1668 = vmatpush1.msra.mxu0 0.0
      %1669 = vmatprep.subr.mxu0 0.0
      %1670 = vmatpush1.msra.mxu0 0.0
      %1671 = vmatprep.subr.mxu0 0.0
      %1672 = vmatpush1.msra.mxu0 0.0
      %1673 = vmatprep.subr.mxu0 0.0
      %1674 = vmatpush1.msra.mxu0 0.0
      %1675 = vmatprep.subr.mxu0 0.0
      %1676 = vmatpush1.msra.mxu0 0.0
      %1677 = vmatprep.subr.mxu0 0.0
      %1678 = vmatpush1.msra.mxu0 0.0
      %1679 = vmatprep.subr.mxu0 0.0
      %1680 = vmatpush1.msra.mxu0 0.0
      %1681 = vmatprep.subr.mxu0 0.0
      %1682 = vmatpush1.msra.mxu0 0.0
      %1683 = vmatprep.subr.mxu0 0.0
      %1684 = vmatpush1.msra.mxu0 0.0
      %1685 = vmatprep.subr.mxu0 0.0
      %1686 = vmatpush1.msra.mxu0 0.0
      %1687 = vmatprep.subr.mxu0 0.0
      %1688 = vmatpush1.msra.mxu0 0.0
      %1689 = vmatprep.subr.mxu0 0.0
      %1690 = vmatpush1.msra.mxu0 0.0
      %1691 = vmatprep.subr.mxu0 0.0
      %1692 = vmatpush1.msra.mxu0 0.0
      %1693 = vmatprep.subr.mxu0 0.0
      %1694 = vmatpush1.msra.mxu0 0.0
      %1695 = vmatprep.subr.mxu0 0.0
      %1696 = vmatpush1.msra.mxu0 0.0
      %1697 = vmatprep.subr.mxu0 0.0
      %1698 = vmatpush1.msra.mxu0 0.0
      %1699 = vmatprep.subr.mxu0 0.0
      %1700 = vmatpush1.msra.mxu0 0.0
      %1701 = vmatprep.subr.mxu0 0.0
      %1702 = vmatpush1.msra.mxu0 0.0
      %1703 = vmatprep.subr.mxu0 0.0
      %1704 = vmatpush1.msra.mxu0 0.0
      %1705 = vmatprep.subr.mxu0 0.0
      %1706 = vmatpush1.msra.mxu0 0.0
      %1707 = vmatprep.subr.mxu0 0.0
      %1708 = vmatpush1.msra.mxu0 0.0
      %1709 = vmatprep.subr.mxu0 0.0
      %1710 = vmatpush1.msra.mxu0 0.0
      %1711 = vmatprep.subr.mxu0 0.0
      %1712 = vmatpush1.msra.mxu0 0.0
      %1713 = vmatprep.subr.mxu0 0.0
      %1714 = vmatpush1.msra.mxu0 0.0
      %1715 = vmatprep.subr.mxu0 0.0
      %1716 = vmatpush1.msra.mxu0 0.0
      %1717 = vmatprep.subr.mxu0 0.0
      %1718 = vmatpush1.msra.mxu0 0.0
      %1719 = vmatprep.subr.mxu0 0.0
      %1720 = vmatpush1.msra.mxu0 0.0
      %1721 = vmatprep.mubr.f32.mxu0 0.0
      %1722 = vmatmul.mubr.f32.gmra.mrb[0].mxu0 %v1562
      %v1723 = vpop.f32.mrb[0].mxu0
      %v1724 = vadd.f32 0.0, %v1723
      %v1725 = vpop.f32.mrb[0].mxu0
      %1726 = vmatprep.mubr.f32.mxu0 0.0
      %1727 = vmatmul.mubr.f32.gmra.mrb[0].mxu0 %v1565
      %v1728 = vpop.f32.mrb[0].mxu0
      %v1729 = vadd.f32 0.0, %v1728
      %v1730 = vpop.f32.mrb[0].mxu0
      %1731 = vmatprep.mubr.f32.mxu0 0.0
      %1732 = vmatmul.mubr.f32.gmra.mrb[0].mxu0 %v1568
      %v1733 = vpop.f32.mrb[0].mxu0
      %v1734 = vadd.f32 0.0, %v1733
      %v1735 = vpop.f32.mrb[0].mxu0
      %1736 = vmatprep.mubr.f32.mxu0 0.0
      %1737 = vmatmul.mubr.f32.gmra.mrb[0].mxu0 %v1571
      %v1738 = vpop.f32.mrb[0].mxu0
      %v1739 = vadd.f32 0.0, %v1738
      %v1740 = vpop.f32.mrb[0].mxu0
      %1741 = vmatprep.mubr.f32.mxu0 0.0
      %1742 = vmatmul.mubr.f32.gmra.mrb[0].mxu0 %v1574
      %v1743 = vpop.f32.mrb[0].mxu0
      %v1744 = vadd.f32 0.0, %v1743
      %v1745 = vpop.f32.mrb[0].mxu0
      %1746 = vmatprep.mubr.f32.mxu0 0.0
      %1747 = vmatmul.mubr.f32.gmra.mrb[0].mxu0 %v1577
      %v1748 = vpop.f32.mrb[0].mxu0
      %v1749 = vadd.f32 0.0, %v1748
      %v1750 = vpop.f32.mrb[0].mxu0
      %1751 = vmatprep.mubr.f32.mxu0 0.0
      %1752 = vmatmul.mubr.f32.gmra.mrb[0].mxu0 %v1580
      %v1753 = vpop.f32.mrb[0].mxu0
      %v1754 = vadd.f32 0.0, %v1753
      %v1755 = vpop.f32.mrb[0].mxu0
      %1756 = vmatprep.mubr.f32.mxu0 0.0
      %1757 = vmatmul.mubr.f32.gmra.mrb[0].mxu0 %v1583
      %v1758 = vpop.f32.mrb[0].mxu0
      %v1759 = vadd.f32 0.0, %v1758
      %v1760 = vpop.f32.mrb[0].mxu0
      %1761 = vmatprep.mubr.f32.mxu0 0.0
      %1762 = vmatmul.mubr.f32.gmra.mrb[0].mxu0 %v1586
      %v1763 = vpop.f32.mrb[0].mxu0
      %v1764 = vadd.f32 0.0, %v1763
      %v1765 = vpop.f32.mrb[0].mxu0
      %1766 = vmatprep.mubr.f32.mxu0 0.0
      %1767 = vmatmul.mubr.f32.gmra.mrb[0].mxu0 %v1589
      %v1768 = vpop.f32.mrb[0].mxu0
      %v1769 = vadd.f32 0.0, %v1768
      %v1770 = vpop.f32.mrb[0].mxu0
      %1771 = vmatprep.mubr.f32.mxu0 0.0
      %1772 = vmatmul.mubr.f32.gmra.mrb[0].mxu0 %v1592
      %v1773 = vpop.f32.mrb[0].mxu0
      %v1774 = vadd.f32 0.0, %v1773
      %v1775 = vpop.f32.mrb[0].mxu0
      %1776 = vmatprep.mubr.f32.mxu0 0.0
      %1777 = vmatmul.mubr.f32.gmra.mrb[0].mxu0 %v1595
      %v1778 = vpop.f32.mrb[0].mxu0
      %v1779 = vadd.f32 0.0, %v1778
      %v1780 = vpop.f32.mrb[0].mxu0
      %1781 = vmatprep.mubr.f32.mxu0 0.0
      %1782 = vmatmul.mubr.f32.gmra.mrb[0].mxu0 %v1598
      %v1783 = vpop.f32.mrb[0].mxu0
      %v1784 = vadd.f32 0.0, %v1783
      %v1785 = vpop.f32.mrb[0].mxu0
      %1786 = vmatprep.mubr.f32.mxu0 0.0
      %1787 = vmatmul.mubr.f32.gmra.mrb[0].mxu0 %v1601
      %v1788 = vpop.f32.mrb[0].mxu0
      %v1789 = vadd.f32 0.0, %v1788
      %v1790 = vpop.f32.mrb[0].mxu0
      %1791 = vmatprep.mubr.f32.mxu0 0.0
      %1792 = vmatmul.mubr.f32.gmra.mrb[0].mxu0 %v1604
      %v1793 = vpop.f32.mrb[0].mxu0
      %v1794 = vadd.f32 0.0, %v1793
      %v1795 = vpop.f32.mrb[0].mxu0
      %1796 = vmatprep.mubr.f32.mxu0 0.0
      %1797 = vmatmul.mubr.f32.gmra.mrb[0].mxu0 %v1607
      %v1798 = vpop.f32.mrb[0].mxu0
      %v1799 = vadd.f32 0.0, %v1798
      %v1800 = vpop.f32.mrb[0].mxu0
      %1801 = vmatprep.mubr.f32.mxu0 0.0
      %1802 = vmatmul.mubr.f32.gmra.mrb[0].mxu0 %v1610
      %v1803 = vpop.f32.mrb[0].mxu0
      %v1804 = vadd.f32 0.0, %v1803
      %v1805 = vpop.f32.mrb[0].mxu0
      %1806 = vmatprep.mubr.f32.mxu0 0.0
      %1807 = vmatmul.mubr.f32.gmra.mrb[0].mxu0 %v1613
      %v1808 = vpop.f32.mrb[0].mxu0
      %v1809 = vadd.f32 0.0, %v1808
      %v1810 = vpop.f32.mrb[0].mxu0
      %1811 = vmatprep.mubr.f32.mxu0 0.0
      %1812 = vmatmul.mubr.f32.gmra.mrb[0].mxu0 %v1616
      %v1813 = vpop.f32.mrb[0].mxu0
      %v1814 = vadd.f32 0.0, %v1813
      %v1815 = vpop.f32.mrb[0].mxu0
      %1816 = vmatprep.mubr.f32.mxu0 0.0
      %1817 = vmatmul.mubr.f32.gmra.mrb[0].mxu0 %v1619
      %v1818 = vpop.f32.mrb[0].mxu0
      %v1819 = vadd.f32 0.0, %v1818
      %v1820 = vpop.f32.mrb[0].mxu0
      %1821 = vmatprep.mubr.f32.mxu0 0.0
      %1822 = vmatmul.mubr.f32.gmra.mrb[0].mxu0 %v1622
      %v1823 = vpop.f32.mrb[0].mxu0
      %v1824 = vadd.f32 0.0, %v1823
      %v1825 = vpop.f32.mrb[0].mxu0
      %1826 = vmatprep.mubr.f32.mxu0 0.0
      %1827 = vmatmul.mubr.f32.gmra.mrb[0].mxu0 %v1625
      %v1828 = vpop.f32.mrb[0].mxu0
      %v1829 = vadd.f32 0.0, %v1828
      %v1830 = vpop.f32.mrb[0].mxu0
      %1831 = vmatprep.mubr.f32.mxu0 0.0
      %1832 = vmatmul.mubr.f32.gmra.mrb[0].mxu0 %v1628
      %v1833 = vpop.f32.mrb[0].mxu0
      %v1834 = vadd.f32 0.0, %v1833
      %v1835 = vpop.f32.mrb[0].mxu0
      %1836 = vmatprep.mubr.f32.mxu0 0.0
      %1837 = vmatmul.mubr.f32.gmra.mrb[0].mxu0 %v1631
      %v1838 = vpop.f32.mrb[0].mxu0
      %v1839 = vadd.f32 0.0, %v1838
      %v1840 = vpop.f32.mrb[0].mxu0
      %1841 = vmatprep.mubr.f32.mxu0 0.0
      %1842 = vmatmul.mubr.f32.gmra.mrb[0].mxu0 %v1634
      %v1843 = vpop.f32.mrb[0].mxu0
      %v1844 = vadd.f32 0.0, %v1843
      %v1845 = vpop.f32.mrb[0].mxu0
      %1846 = vmatprep.mubr.f32.mxu0 0.0
      %1847 = vmatmul.mubr.f32.gmra.mrb[0].mxu0 %v1637
      %v1848 = vpop.f32.mrb[0].mxu0
      %v1849 = vadd.f32 0.0, %v1848
      %v1850 = vpop.f32.mrb[0].mxu0
      %1851 = vmatprep.mubr.f32.mxu0 0.0
      %1852 = vmatmul.mubr.f32.gmra.mrb[0].mxu0 %v1640
      %v1853 = vpop.f32.mrb[0].mxu0
      %v1854 = vadd.f32 0.0, %v1853
      %v1855 = vpop.f32.mrb[0].mxu0
      %1856 = vmatprep.mubr.f32.mxu0 0.0
      %1857 = vmatmul.mubr.f32.gmra.mrb[0].mxu0 %v1643
      %v1858 = vpop.f32.mrb[0].mxu0
      %v1859 = vadd.f32 0.0, %v1858
      %v1860 = vpop.f32.mrb[0].mxu0
      %1861 = vmatprep.mubr.f32.mxu0 0.0
      %1862 = vmatmul.mubr.f32.gmra.mrb[0].mxu0 %v1646
      %v1863 = vpop.f32.mrb[0].mxu0
      %v1864 = vadd.f32 0.0, %v1863
      %v1865 = vpop.f32.mrb[0].mxu0
      %1866 = vmatprep.mubr.f32.mxu0 0.0
      %1867 = vmatmul.mubr.f32.gmra.mrb[0].mxu0 %v1649
      %v1868 = vpop.f32.mrb[0].mxu0
      %v1869 = vadd.f32 0.0, %v1868
      %v1870 = vpop.f32.mrb[0].mxu0
      %1871 = vmatprep.mubr.f32.mxu0 0.0
      %1872 = vmatmul.mubr.f32.gmra.mrb[0].mxu0 %v1652
      %v1873 = vpop.f32.mrb[0].mxu0
      %v1874 = vadd.f32 0.0, %v1873
      %v1875 = vpop.f32.mrb[0].mxu0
      %1876 = vmatprep.mubr.f32.mxu0 0.0
      %1877 = vmatmul.mubr.f32.gmra.mrb[0].mxu0 %v1655
      %v1878 = vpop.f32.mrb[0].mxu0
      %v1879 = vadd.f32 0.0, %v1878
      %v1880 = vpop.f32.mrb[0].mxu0
      %1881 = vdwg.mxu0
      %v1882 = vadd.f32 %v1492, %v1724
      %v1883 = vadd.f32 %v1493, %v1729
      %v1884 = vadd.f32 %v1494, %v1734
      %v1885 = vadd.f32 %v1495, %v1739
      %v1886 = vadd.f32 %v1496, %v1744
      %v1887 = vadd.f32 %v1497, %v1749
      %v1888 = vadd.f32 %v1498, %v1754
      %v1889 = vadd.f32 %v1499, %v1759
      %v1890 = vadd.f32 %v1500, %v1764
      %v1891 = vadd.f32 %v1501, %v1769
      %v1892 = vadd.f32 %v1502, %v1774
      %v1893 = vadd.f32 %v1503, %v1779
      %v1894 = vadd.f32 %v1504, %v1784
      %v1895 = vadd.f32 %v1505, %v1789
      %v1896 = vadd.f32 %v1506, %v1794
      %v1897 = vadd.f32 %v1507, %v1799
      %v1898 = vadd.f32 %v1508, %v1804
      %v1899 = vadd.f32 %v1509, %v1809
      %v1900 = vadd.f32 %v1510, %v1814
      %v1901 = vadd.f32 %v1511, %v1819
      %v1902 = vadd.f32 %v1512, %v1824
      %v1903 = vadd.f32 %v1513, %v1829
      %v1904 = vadd.f32 %v1514, %v1834
      %v1905 = vadd.f32 %v1515, %v1839
      %v1906 = vadd.f32 %v1516, %v1844
      %v1907 = vadd.f32 %v1517, %v1849
      %v1908 = vadd.f32 %v1518, %v1854
      %v1909 = vadd.f32 %v1519, %v1859
      %v1910 = vadd.f32 %v1520, %v1864
      %v1911 = vadd.f32 %v1521, %v1869
      %v1912 = vadd.f32 %v1522, %v1874
      %v1913 = vadd.f32 %v1523, %v1879
      %v1914 = vld [vmem:[%s386 + $0x1] sm:$0xff]
      %v1915 = vld [vmem:[%s386 + $0x9] sm:$0xff]
      %v1916 = vld [vmem:[%s386 + $0x19] sm:$0xff]
      %v1917 = vld [vmem:[%s386 + $0x21] sm:$0xff]
      %v1918 = vld [vmem:[%s386 + $0x31] sm:$0xff]
      %v1919 = vld [vmem:[%s386 + $0x39] sm:$0xff]
      %v1920 = vld [vmem:[%s386 + $0x49] sm:$0xff]
      %v1921 = vld [vmem:[%s386 + $0x51] sm:$0xff]
      %v1922 = vld [vmem:[%s386 + $0x61] sm:$0xff]
      %v1923 = vld [vmem:[%s386 + $0x69] sm:$0xff]
      %v1924 = vld [vmem:[%s386 + $0x79] sm:$0xff]
      %v1925 = vld [vmem:[%s386 + $0x81] sm:$0xff]
      %v1926 = vld [vmem:[%s386 + $0x91] sm:$0xff]
      %v1927 = vld [vmem:[%s386 + $0x99] sm:$0xff]
      %v1928 = vld [vmem:[%s386 + $0xa9] sm:$0xff]
      %v1929 = vld [vmem:[%s386 + $0xb1] sm:$0xff]
      %v1930 = vld [vmem:[%s386 + $0xc1] sm:$0xff]
      %v1931 = vld [vmem:[%s386 + $0xc9] sm:$0xff]
      %v1932 = vld [vmem:[%s386 + $0xd9] sm:$0xff]
      %v1933 = vld [vmem:[%s386 + $0xe1] sm:$0xff]
      %v1934 = vld [vmem:[%s386 + $0xf1] sm:$0xff]
      %v1935 = vld [vmem:[%s386 + $0xf9] sm:$0xff]
      %v1936 = vld [vmem:[%s386 + $0x109] sm:$0xff]
      %v1937 = vld [vmem:[%s386 + $0x111] sm:$0xff]
      %v1938 = vld [vmem:[%s386 + $0x121] sm:$0xff]
      %v1939 = vld [vmem:[%s386 + $0x129] sm:$0xff]
      %v1940 = vld [vmem:[%s386 + $0x139] sm:$0xff]
      %v1941 = vld [vmem:[%s386 + $0x141] sm:$0xff]
      %v1942 = vld [vmem:[%s386 + $0x151] sm:$0xff]
      %v1943 = vld [vmem:[%s386 + $0x159] sm:$0xff]
      %v1944 = vld [vmem:[%s386 + $0x169] sm:$0xff]
      %v1945 = vld [vmem:[%s386 + $0x171] sm:$0xff]
      %s1946 = scalar_lea.vmem %s3, 128
      %v1947 = vld [vmem:[%s1946] sm:$0xff]
      %v1948 = vld [vmem:[%s1946 + $0x8] sm:$0xff]
      %v1949 = vld [vmem:[%s1946 + $0x10] sm:$0xff]
      %v1950 = vld [vmem:[%s1946 + $0x18] sm:$0xff]
      %v1952 = vsel %vm340, %v1914, 0
      %v1955 = vsel %vm340, %v1915, 0
      %v1958 = vsel %vm340, %v1916, 0
      %v1961 = vsel %vm340, %v1917, 0
      %v1964 = vsel %vm340, %v1918, 0
      %v1967 = vsel %vm340, %v1919, 0
      %v1970 = vsel %vm340, %v1920, 0
      %v1973 = vsel %vm340, %v1921, 0
      %v1976 = vsel %vm340, %v1922, 0
      %v1979 = vsel %vm340, %v1923, 0
      %v1982 = vsel %vm340, %v1924, 0
      %v1985 = vsel %vm340, %v1925, 0
      %v1988 = vsel %vm340, %v1926, 0
      %v1991 = vsel %vm340, %v1927, 0
      %v1994 = vsel %vm340, %v1928, 0
      %v1997 = vsel %vm340, %v1929, 0
      %v2000 = vsel %vm340, %v1930, 0
      %v2003 = vsel %vm340, %v1931, 0
      %v2006 = vsel %vm340, %v1932, 0
      %v2009 = vsel %vm340, %v1933, 0
      %v2012 = vsel %vm340, %v1934, 0
      %v2015 = vsel %vm340, %v1935, 0
      %v2018 = vsel %vm340, %v1936, 0
      %v2021 = vsel %vm340, %v1937, 0
      %v2024 = vsel %vm340, %v1938, 0
      %v2027 = vsel %vm340, %v1939, 0
      %v2030 = vsel %vm340, %v1940, 0
      %v2033 = vsel %vm340, %v1941, 0
      %v2036 = vsel %vm340, %v1942, 0
      %v2039 = vsel %vm340, %v1943, 0
      %v2042 = vsel %vm340, %v1944, 0
      %v2045 = vsel %vm340, %v1945, 0
      %2047 = vmatprep.subr.mxu0 0.0
      %2048 = vmatpush1.msra.mxu0 %v1947
      %2049 = vmatprep.subr.mxu0 0.0
      %2050 = vmatpush1.msra.mxu0 %v1948
      %2051 = vmatprep.subr.mxu0 0.0
      %2052 = vmatpush1.msra.mxu0 %v1949
      %2053 = vmatprep.subr.mxu0 0.0
      %2054 = vmatpush1.msra.mxu0 %v1950
      %2055 = vmatprep.subr.mxu0 0.0
      %2056 = vmatpush1.msra.mxu0 0.0
      %2057 = vmatprep.subr.mxu0 0.0
      %2058 = vmatpush1.msra.mxu0 0.0
      %2059 = vmatprep.subr.mxu0 0.0
      %2060 = vmatpush1.msra.mxu0 0.0
      %2061 = vmatprep.subr.mxu0 0.0
      %2062 = vmatpush1.msra.mxu0 0.0
      %2063 = vmatprep.subr.mxu0 0.0
      %2064 = vmatpush1.msra.mxu0 0.0
      %2065 = vmatprep.subr.mxu0 0.0
      %2066 = vmatpush1.msra.mxu0 0.0
      %2067 = vmatprep.subr.mxu0 0.0
      %2068 = vmatpush1.msra.mxu0 0.0
      %2069 = vmatprep.subr.mxu0 0.0
      %2070 = vmatpush1.msra.mxu0 0.0
      %2071 = vmatprep.subr.mxu0 0.0
      %2072 = vmatpush1.msra.mxu0 0.0
      %2073 = vmatprep.subr.mxu0 0.0
      %2074 = vmatpush1.msra.mxu0 0.0
      %2075 = vmatprep.subr.mxu0 0.0
      %2076 = vmatpush1.msra.mxu0 0.0
      %2077 = vmatprep.subr.mxu0 0.0
      %2078 = vmatpush1.msra.mxu0 0.0
      %2079 = vmatprep.subr.mxu0 0.0
      %2080 = vmatpush1.msra.mxu0 0.0
      %2081 = vmatprep.subr.mxu0 0.0
      %2082 = vmatpush1.msra.mxu0 0.0
      %2083 = vmatprep.subr.mxu0 0.0
      %2084 = vmatpush1.msra.mxu0 0.0
      %2085 = vmatprep.subr.mxu0 0.0
      %2086 = vmatpush1.msra.mxu0 0.0
      %2087 = vmatprep.subr.mxu0 0.0
      %2088 = vmatpush1.msra.mxu0 0.0
      %2089 = vmatprep.subr.mxu0 0.0
      %2090 = vmatpush1.msra.mxu0 0.0
      %2091 = vmatprep.subr.mxu0 0.0
      %2092 = vmatpush1.msra.mxu0 0.0
      %2093 = vmatprep.subr.mxu0 0.0
      %2094 = vmatpush1.msra.mxu0 0.0
      %2095 = vmatprep.subr.mxu0 0.0
      %2096 = vmatpush1.msra.mxu0 0.0
      %2097 = vmatprep.subr.mxu0 0.0
      %2098 = vmatpush1.msra.mxu0 0.0
      %2099 = vmatprep.subr.mxu0 0.0
      %2100 = vmatpush1.msra.mxu0 0.0
      %2101 = vmatprep.subr.mxu0 0.0
      %2102 = vmatpush1.msra.mxu0 0.0
      %2103 = vmatprep.subr.mxu0 0.0
      %2104 = vmatpush1.msra.mxu0 0.0
      %2105 = vmatprep.subr.mxu0 0.0
      %2106 = vmatpush1.msra.mxu0 0.0
      %2107 = vmatprep.subr.mxu0 0.0
      %2108 = vmatpush1.msra.mxu0 0.0
      %2109 = vmatprep.subr.mxu0 0.0
      %2110 = vmatpush1.msra.mxu0 0.0
      %2111 = vmatprep.mubr.f32.mxu0 0.0
      %2112 = vmatmul.mubr.f32.gmra.mrb[0].mxu0 %v1952
      %v2113 = vpop.f32.mrb[0].mxu0
      %v2114 = vadd.f32 0.0, %v2113
      %v2115 = vpop.f32.mrb[0].mxu0
      %2116 = vmatprep.mubr.f32.mxu0 0.0
      %2117 = vmatmul.mubr.f32.gmra.mrb[0].mxu0 %v1955
      %v2118 = vpop.f32.mrb[0].mxu0
      %v2119 = vadd.f32 0.0, %v2118
      %v2120 = vpop.f32.mrb[0].mxu0
      %2121 = vmatprep.mubr.f32.mxu0 0.0
      %2122 = vmatmul.mubr.f32.gmra.mrb[0].mxu0 %v1958
      %v2123 = vpop.f32.mrb[0].mxu0
      %v2124 = vadd.f32 0.0, %v2123
      %v2125 = vpop.f32.mrb[0].mxu0
      %2126 = vmatprep.mubr.f32.mxu0 0.0
      %2127 = vmatmul.mubr.f32.gmra.mrb[0].mxu0 %v1961
      %v2128 = vpop.f32.mrb[0].mxu0
      %v2129 = vadd.f32 0.0, %v2128
      %v2130 = vpop.f32.mrb[0].mxu0
      %2131 = vmatprep.mubr.f32.mxu0 0.0
      %2132 = vmatmul.mubr.f32.gmra.mrb[0].mxu0 %v1964
      %v2133 = vpop.f32.mrb[0].mxu0
      %v2134 = vadd.f32 0.0, %v2133
      %v2135 = vpop.f32.mrb[0].mxu0
      %2136 = vmatprep.mubr.f32.mxu0 0.0
      %2137 = vmatmul.mubr.f32.gmra.mrb[0].mxu0 %v1967
      %v2138 = vpop.f32.mrb[0].mxu0
      %v2139 = vadd.f32 0.0, %v2138
      %v2140 = vpop.f32.mrb[0].mxu0
      %2141 = vmatprep.mubr.f32.mxu0 0.0
      %2142 = vmatmul.mubr.f32.gmra.mrb[0].mxu0 %v1970
      %v2143 = vpop.f32.mrb[0].mxu0
      %v2144 = vadd.f32 0.0, %v2143
      %v2145 = vpop.f32.mrb[0].mxu0
      %2146 = vmatprep.mubr.f32.mxu0 0.0
      %2147 = vmatmul.mubr.f32.gmra.mrb[0].mxu0 %v1973
      %v2148 = vpop.f32.mrb[0].mxu0
      %v2149 = vadd.f32 0.0, %v2148
      %v2150 = vpop.f32.mrb[0].mxu0
      %2151 = vmatprep.mubr.f32.mxu0 0.0
      %2152 = vmatmul.mubr.f32.gmra.mrb[0].mxu0 %v1976
      %v2153 = vpop.f32.mrb[0].mxu0
      %v2154 = vadd.f32 0.0, %v2153
      %v2155 = vpop.f32.mrb[0].mxu0
      %2156 = vmatprep.mubr.f32.mxu0 0.0
      %2157 = vmatmul.mubr.f32.gmra.mrb[0].mxu0 %v1979
      %v2158 = vpop.f32.mrb[0].mxu0
      %v2159 = vadd.f32 0.0, %v2158
      %v2160 = vpop.f32.mrb[0].mxu0
      %2161 = vmatprep.mubr.f32.mxu0 0.0
      %2162 = vmatmul.mubr.f32.gmra.mrb[0].mxu0 %v1982
      %v2163 = vpop.f32.mrb[0].mxu0
      %v2164 = vadd.f32 0.0, %v2163
      %v2165 = vpop.f32.mrb[0].mxu0
      %2166 = vmatprep.mubr.f32.mxu0 0.0
      %2167 = vmatmul.mubr.f32.gmra.mrb[0].mxu0 %v1985
      %v2168 = vpop.f32.mrb[0].mxu0
      %v2169 = vadd.f32 0.0, %v2168
      %v2170 = vpop.f32.mrb[0].mxu0
      %2171 = vmatprep.mubr.f32.mxu0 0.0
      %2172 = vmatmul.mubr.f32.gmra.mrb[0].mxu0 %v1988
      %v2173 = vpop.f32.mrb[0].mxu0
      %v2174 = vadd.f32 0.0, %v2173
      %v2175 = vpop.f32.mrb[0].mxu0
      %2176 = vmatprep.mubr.f32.mxu0 0.0
      %2177 = vmatmul.mubr.f32.gmra.mrb[0].mxu0 %v1991
      %v2178 = vpop.f32.mrb[0].mxu0
      %v2179 = vadd.f32 0.0, %v2178
      %v2180 = vpop.f32.mrb[0].mxu0
      %2181 = vmatprep.mubr.f32.mxu0 0.0
      %2182 = vmatmul.mubr.f32.gmra.mrb[0].mxu0 %v1994
      %v2183 = vpop.f32.mrb[0].mxu0
      %v2184 = vadd.f32 0.0, %v2183
      %v2185 = vpop.f32.mrb[0].mxu0
      %2186 = vmatprep.mubr.f32.mxu0 0.0
      %2187 = vmatmul.mubr.f32.gmra.mrb[0].mxu0 %v1997
      %v2188 = vpop.f32.mrb[0].mxu0
      %v2189 = vadd.f32 0.0, %v2188
      %v2190 = vpop.f32.mrb[0].mxu0
      %2191 = vmatprep.mubr.f32.mxu0 0.0
      %2192 = vmatmul.mubr.f32.gmra.mrb[0].mxu0 %v2000
      %v2193 = vpop.f32.mrb[0].mxu0
      %v2194 = vadd.f32 0.0, %v2193
      %v2195 = vpop.f32.mrb[0].mxu0
      %2196 = vmatprep.mubr.f32.mxu0 0.0
      %2197 = vmatmul.mubr.f32.gmra.mrb[0].mxu0 %v2003
      %v2198 = vpop.f32.mrb[0].mxu0
      %v2199 = vadd.f32 0.0, %v2198
      %v2200 = vpop.f32.mrb[0].mxu0
      %2201 = vmatprep.mubr.f32.mxu0 0.0
      %2202 = vmatmul.mubr.f32.gmra.mrb[0].mxu0 %v2006
      %v2203 = vpop.f32.mrb[0].mxu0
      %v2204 = vadd.f32 0.0, %v2203
      %v2205 = vpop.f32.mrb[0].mxu0
      %2206 = vmatprep.mubr.f32.mxu0 0.0
      %2207 = vmatmul.mubr.f32.gmra.mrb[0].mxu0 %v2009
      %v2208 = vpop.f32.mrb[0].mxu0
      %v2209 = vadd.f32 0.0, %v2208
      %v2210 = vpop.f32.mrb[0].mxu0
      %2211 = vmatprep.mubr.f32.mxu0 0.0
      %2212 = vmatmul.mubr.f32.gmra.mrb[0].mxu0 %v2012
      %v2213 = vpop.f32.mrb[0].mxu0
      %v2214 = vadd.f32 0.0, %v2213
      %v2215 = vpop.f32.mrb[0].mxu0
      %2216 = vmatprep.mubr.f32.mxu0 0.0
      %2217 = vmatmul.mubr.f32.gmra.mrb[0].mxu0 %v2015
      %v2218 = vpop.f32.mrb[0].mxu0
      %v2219 = vadd.f32 0.0, %v2218
      %v2220 = vpop.f32.mrb[0].mxu0
      %2221 = vmatprep.mubr.f32.mxu0 0.0
      %2222 = vmatmul.mubr.f32.gmra.mrb[0].mxu0 %v2018
      %v2223 = vpop.f32.mrb[0].mxu0
      %v2224 = vadd.f32 0.0, %v2223
      %v2225 = vpop.f32.mrb[0].mxu0
      %2226 = vmatprep.mubr.f32.mxu0 0.0
      %2227 = vmatmul.mubr.f32.gmra.mrb[0].mxu0 %v2021
      %v2228 = vpop.f32.mrb[0].mxu0
      %v2229 = vadd.f32 0.0, %v2228
      %v2230 = vpop.f32.mrb[0].mxu0
      %2231 = vmatprep.mubr.f32.mxu0 0.0
      %2232 = vmatmul.mubr.f32.gmra.mrb[0].mxu0 %v2024
      %v2233 = vpop.f32.mrb[0].mxu0
      %v2234 = vadd.f32 0.0, %v2233
      %v2235 = vpop.f32.mrb[0].mxu0
      %2236 = vmatprep.mubr.f32.mxu0 0.0
      %2237 = vmatmul.mubr.f32.gmra.mrb[0].mxu0 %v2027
      %v2238 = vpop.f32.mrb[0].mxu0
      %v2239 = vadd.f32 0.0, %v2238
      %v2240 = vpop.f32.mrb[0].mxu0
      %2241 = vmatprep.mubr.f32.mxu0 0.0
      %2242 = vmatmul.mubr.f32.gmra.mrb[0].mxu0 %v2030
      %v2243 = vpop.f32.mrb[0].mxu0
      %v2244 = vadd.f32 0.0, %v2243
      %v2245 = vpop.f32.mrb[0].mxu0
      %2246 = vmatprep.mubr.f32.mxu0 0.0
      %2247 = vmatmul.mubr.f32.gmra.mrb[0].mxu0 %v2033
      %v2248 = vpop.f32.mrb[0].mxu0
      %v2249 = vadd.f32 0.0, %v2248
      %v2250 = vpop.f32.mrb[0].mxu0
      %2251 = vmatprep.mubr.f32.mxu0 0.0
      %2252 = vmatmul.mubr.f32.gmra.mrb[0].mxu0 %v2036
      %v2253 = vpop.f32.mrb[0].mxu0
      %v2254 = vadd.f32 0.0, %v2253
      %v2255 = vpop.f32.mrb[0].mxu0
      %2256 = vmatprep.mubr.f32.mxu0 0.0
      %2257 = vmatmul.mubr.f32.gmra.mrb[0].mxu0 %v2039
      %v2258 = vpop.f32.mrb[0].mxu0
      %v2259 = vadd.f32 0.0, %v2258
      %v2260 = vpop.f32.mrb[0].mxu0
      %2261 = vmatprep.mubr.f32.mxu0 0.0
      %2262 = vmatmul.mubr.f32.gmra.mrb[0].mxu0 %v2042
      %v2263 = vpop.f32.mrb[0].mxu0
      %v2264 = vadd.f32 0.0, %v2263
      %v2265 = vpop.f32.mrb[0].mxu0
      %2266 = vmatprep.mubr.f32.mxu0 0.0
      %2267 = vmatmul.mubr.f32.gmra.mrb[0].mxu0 %v2045
      %v2268 = vpop.f32.mrb[0].mxu0
      %v2269 = vadd.f32 0.0, %v2268
      %v2270 = vpop.f32.mrb[0].mxu0
      %2271 = vdwg.mxu0
      %v2272 = vadd.f32 %v1882, %v2114
      %v2273 = vadd.f32 %v1883, %v2119
      %v2274 = vadd.f32 %v1884, %v2124
      %v2275 = vadd.f32 %v1885, %v2129
      %v2276 = vadd.f32 %v1886, %v2134
      %v2277 = vadd.f32 %v1887, %v2139
      %v2278 = vadd.f32 %v1888, %v2144
      %v2279 = vadd.f32 %v1889, %v2149
      %v2280 = vadd.f32 %v1890, %v2154
      %v2281 = vadd.f32 %v1891, %v2159
      %v2282 = vadd.f32 %v1892, %v2164
      %v2283 = vadd.f32 %v1893, %v2169
      %v2284 = vadd.f32 %v1894, %v2174
      %v2285 = vadd.f32 %v1895, %v2179
      %v2286 = vadd.f32 %v1896, %v2184
      %v2287 = vadd.f32 %v1897, %v2189
      %v2288 = vadd.f32 %v1898, %v2194
      %v2289 = vadd.f32 %v1899, %v2199
      %v2290 = vadd.f32 %v1900, %v2204
      %v2291 = vadd.f32 %v1901, %v2209
      %v2292 = vadd.f32 %v1902, %v2214
      %v2293 = vadd.f32 %v1903, %v2219
      %v2294 = vadd.f32 %v1904, %v2224
      %v2295 = vadd.f32 %v1905, %v2229
      %v2296 = vadd.f32 %v1906, %v2234
      %v2297 = vadd.f32 %v1907, %v2239
      %v2298 = vadd.f32 %v1908, %v2244
      %v2299 = vadd.f32 %v1909, %v2249
      %v2300 = vadd.f32 %v1910, %v2254
      %v2301 = vadd.f32 %v1911, %v2259
      %v2302 = vadd.f32 %v1912, %v2264
      %v2303 = vadd.f32 %v1913, %v2269
      %v2304 = vld [vmem:[%s386 + $0x2] sm:$0xff]
      %v2305 = vld [vmem:[%s386 + $0xa] sm:$0xff]
      %v2306 = vld [vmem:[%s386 + $0x1a] sm:$0xff]
      %v2307 = vld [vmem:[%s386 + $0x22] sm:$0xff]
      %v2308 = vld [vmem:[%s386 + $0x32] sm:$0xff]
      %v2309 = vld [vmem:[%s386 + $0x3a] sm:$0xff]
      %v2310 = vld [vmem:[%s386 + $0x4a] sm:$0xff]
      %v2311 = vld [vmem:[%s386 + $0x52] sm:$0xff]
      %v2312 = vld [vmem:[%s386 + $0x62] sm:$0xff]
      %v2313 = vld [vmem:[%s386 + $0x6a] sm:$0xff]
      %v2314 = vld [vmem:[%s386 + $0x7a] sm:$0xff]
      %v2315 = vld [vmem:[%s386 + $0x82] sm:$0xff]
      %v2316 = vld [vmem:[%s386 + $0x92] sm:$0xff]
      %v2317 = vld [vmem:[%s386 + $0x9a] sm:$0xff]
      %v2318 = vld [vmem:[%s386 + $0xaa] sm:$0xff]
      %v2319 = vld [vmem:[%s386 + $0xb2] sm:$0xff]
      %v2320 = vld [vmem:[%s386 + $0xc2] sm:$0xff]
      %v2321 = vld [vmem:[%s386 + $0xca] sm:$0xff]
      %v2322 = vld [vmem:[%s386 + $0xda] sm:$0xff]
      %v2323 = vld [vmem:[%s386 + $0xe2] sm:$0xff]
      %v2324 = vld [vmem:[%s386 + $0xf2] sm:$0xff]
      %v2325 = vld [vmem:[%s386 + $0xfa] sm:$0xff]
      %v2326 = vld [vmem:[%s386 + $0x10a] sm:$0xff]
      %v2327 = vld [vmem:[%s386 + $0x112] sm:$0xff]
      %v2328 = vld [vmem:[%s386 + $0x122] sm:$0xff]
      %v2329 = vld [vmem:[%s386 + $0x12a] sm:$0xff]
      %v2330 = vld [vmem:[%s386 + $0x13a] sm:$0xff]
      %v2331 = vld [vmem:[%s386 + $0x142] sm:$0xff]
      %v2332 = vld [vmem:[%s386 + $0x152] sm:$0xff]
      %v2333 = vld [vmem:[%s386 + $0x15a] sm:$0xff]
      %v2334 = vld [vmem:[%s386 + $0x16a] sm:$0xff]
      %v2335 = vld [vmem:[%s386 + $0x172] sm:$0xff]
      %s2336 = scalar_lea.vmem %s3, 160
      %v2337 = vld [vmem:[%s2336] sm:$0xff]
      %v2338 = vld [vmem:[%s2336 + $0x8] sm:$0xff]
      %v2339 = vld [vmem:[%s2336 + $0x10] sm:$0xff]
      %v2340 = vld [vmem:[%s2336 + $0x18] sm:$0xff]
      %v2342 = vsel %vm340, %v2304, 0
      %v2345 = vsel %vm340, %v2305, 0
      %v2348 = vsel %vm340, %v2306, 0
      %v2351 = vsel %vm340, %v2307, 0
      %v2354 = vsel %vm340, %v2308, 0
      %v2357 = vsel %vm340, %v2309, 0
      %v2360 = vsel %vm340, %v2310, 0
      %v2363 = vsel %vm340, %v2311, 0
      %v2366 = vsel %vm340, %v2312, 0
      %v2369 = vsel %vm340, %v2313, 0
      %v2372 = vsel %vm340, %v2314, 0
      %v2375 = vsel %vm340, %v2315, 0
      %v2378 = vsel %vm340, %v2316, 0
      %v2381 = vsel %vm340, %v2317, 0
      %v2384 = vsel %vm340, %v2318, 0
      %v2387 = vsel %vm340, %v2319, 0
      %v2390 = vsel %vm340, %v2320, 0
      %v2393 = vsel %vm340, %v2321, 0
      %v2396 = vsel %vm340, %v2322, 0
      %v2399 = vsel %vm340, %v2323, 0
      %v2402 = vsel %vm340, %v2324, 0
      %v2405 = vsel %vm340, %v2325, 0
      %v2408 = vsel %vm340, %v2326, 0
      %v2411 = vsel %vm340, %v2327, 0
      %v2414 = vsel %vm340, %v2328, 0
      %v2417 = vsel %vm340, %v2329, 0
      %v2420 = vsel %vm340, %v2330, 0
      %v2423 = vsel %vm340, %v2331, 0
      %v2426 = vsel %vm340, %v2332, 0
      %v2429 = vsel %vm340, %v2333, 0
      %v2432 = vsel %vm340, %v2334, 0
      %v2435 = vsel %vm340, %v2335, 0
      %2437 = vmatprep.subr.mxu0 0.0
      %2438 = vmatpush1.msra.mxu0 %v2337
      %2439 = vmatprep.subr.mxu0 0.0
      %2440 = vmatpush1.msra.mxu0 %v2338
      %2441 = vmatprep.subr.mxu0 0.0
      %2442 = vmatpush1.msra.mxu0 %v2339
      %2443 = vmatprep.subr.mxu0 0.0
      %2444 = vmatpush1.msra.mxu0 %v2340
      %2445 = vmatprep.subr.mxu0 0.0
      %2446 = vmatpush1.msra.mxu0 0.0
      %2447 = vmatprep.subr.mxu0 0.0
      %2448 = vmatpush1.msra.mxu0 0.0
      %2449 = vmatprep.subr.mxu0 0.0
      %2450 = vmatpush1.msra.mxu0 0.0
      %2451 = vmatprep.subr.mxu0 0.0
      %2452 = vmatpush1.msra.mxu0 0.0
      %2453 = vmatprep.subr.mxu0 0.0
      %2454 = vmatpush1.msra.mxu0 0.0
      %2455 = vmatprep.subr.mxu0 0.0
      %2456 = vmatpush1.msra.mxu0 0.0
      %2457 = vmatprep.subr.mxu0 0.0
      %2458 = vmatpush1.msra.mxu0 0.0
      %2459 = vmatprep.subr.mxu0 0.0
      %2460 = vmatpush1.msra.mxu0 0.0
      %2461 = vmatprep.subr.mxu0 0.0
      %2462 = vmatpush1.msra.mxu0 0.0
      %2463 = vmatprep.subr.mxu0 0.0
      %2464 = vmatpush1.msra.mxu0 0.0
      %2465 = vmatprep.subr.mxu0 0.0
      %2466 = vmatpush1.msra.mxu0 0.0
      %2467 = vmatprep.subr.mxu0 0.0
      %2468 = vmatpush1.msra.mxu0 0.0
      %2469 = vmatprep.subr.mxu0 0.0
      %2470 = vmatpush1.msra.mxu0 0.0
      %2471 = vmatprep.subr.mxu0 0.0
      %2472 = vmatpush1.msra.mxu0 0.0
      %2473 = vmatprep.subr.mxu0 0.0
      %2474 = vmatpush1.msra.mxu0 0.0
      %2475 = vmatprep.subr.mxu0 0.0
      %2476 = vmatpush1.msra.mxu0 0.0
      %2477 = vmatprep.subr.mxu0 0.0
      %2478 = vmatpush1.msra.mxu0 0.0
      %2479 = vmatprep.subr.mxu0 0.0
      %2480 = vmatpush1.msra.mxu0 0.0
      %2481 = vmatprep.subr.mxu0 0.0
      %2482 = vmatpush1.msra.mxu0 0.0
      %2483 = vmatprep.subr.mxu0 0.0
      %2484 = vmatpush1.msra.mxu0 0.0
      %2485 = vmatprep.subr.mxu0 0.0
      %2486 = vmatpush1.msra.mxu0 0.0
      %2487 = vmatprep.subr.mxu0 0.0
      %2488 = vmatpush1.msra.mxu0 0.0
      %2489 = vmatprep.subr.mxu0 0.0
      %2490 = vmatpush1.msra.mxu0 0.0
      %2491 = vmatprep.subr.mxu0 0.0
      %2492 = vmatpush1.msra.mxu0 0.0
      %2493 = vmatprep.subr.mxu0 0.0
      %2494 = vmatpush1.msra.mxu0 0.0
      %2495 = vmatprep.subr.mxu0 0.0
      %2496 = vmatpush1.msra.mxu0 0.0
      %2497 = vmatprep.subr.mxu0 0.0
      %2498 = vmatpush1.msra.mxu0 0.0
      %2499 = vmatprep.subr.mxu0 0.0
      %2500 = vmatpush1.msra.mxu0 0.0
      %2501 = vmatprep.mubr.f32.mxu0 0.0
      %2502 = vmatmul.mubr.f32.gmra.mrb[0].mxu0 %v2342
      %v2503 = vpop.f32.mrb[0].mxu0
      %v2504 = vadd.f32 0.0, %v2503
      %v2505 = vpop.f32.mrb[0].mxu0
      %2506 = vmatprep.mubr.f32.mxu0 0.0
      %2507 = vmatmul.mubr.f32.gmra.mrb[0].mxu0 %v2345
      %v2508 = vpop.f32.mrb[0].mxu0
      %v2509 = vadd.f32 0.0, %v2508
      %v2510 = vpop.f32.mrb[0].mxu0
      %2511 = vmatprep.mubr.f32.mxu0 0.0
      %2512 = vmatmul.mubr.f32.gmra.mrb[0].mxu0 %v2348
      %v2513 = vpop.f32.mrb[0].mxu0
      %v2514 = vadd.f32 0.0, %v2513
      %v2515 = vpop.f32.mrb[0].mxu0
      %2516 = vmatprep.mubr.f32.mxu0 0.0
      %2517 = vmatmul.mubr.f32.gmra.mrb[0].mxu0 %v2351
      %v2518 = vpop.f32.mrb[0].mxu0
      %v2519 = vadd.f32 0.0, %v2518
      %v2520 = vpop.f32.mrb[0].mxu0
      %2521 = vmatprep.mubr.f32.mxu0 0.0
      %2522 = vmatmul.mubr.f32.gmra.mrb[0].mxu0 %v2354
      %v2523 = vpop.f32.mrb[0].mxu0
      %v2524 = vadd.f32 0.0, %v2523
      %v2525 = vpop.f32.mrb[0].mxu0
      %2526 = vmatprep.mubr.f32.mxu0 0.0
      %2527 = vmatmul.mubr.f32.gmra.mrb[0].mxu0 %v2357
      %v2528 = vpop.f32.mrb[0].mxu0
      %v2529 = vadd.f32 0.0, %v2528
      %v2530 = vpop.f32.mrb[0].mxu0
      %2531 = vmatprep.mubr.f32.mxu0 0.0
      %2532 = vmatmul.mubr.f32.gmra.mrb[0].mxu0 %v2360
      %v2533 = vpop.f32.mrb[0].mxu0
      %v2534 = vadd.f32 0.0, %v2533
      %v2535 = vpop.f32.mrb[0].mxu0
      %2536 = vmatprep.mubr.f32.mxu0 0.0
      %2537 = vmatmul.mubr.f32.gmra.mrb[0].mxu0 %v2363
      %v2538 = vpop.f32.mrb[0].mxu0
      %v2539 = vadd.f32 0.0, %v2538
      %v2540 = vpop.f32.mrb[0].mxu0
      %2541 = vmatprep.mubr.f32.mxu0 0.0
      %2542 = vmatmul.mubr.f32.gmra.mrb[0].mxu0 %v2366
      %v2543 = vpop.f32.mrb[0].mxu0
      %v2544 = vadd.f32 0.0, %v2543
      %v2545 = vpop.f32.mrb[0].mxu0
      %2546 = vmatprep.mubr.f32.mxu0 0.0
      %2547 = vmatmul.mubr.f32.gmra.mrb[0].mxu0 %v2369
      %v2548 = vpop.f32.mrb[0].mxu0
      %v2549 = vadd.f32 0.0, %v2548
      %v2550 = vpop.f32.mrb[0].mxu0
      %2551 = vmatprep.mubr.f32.mxu0 0.0
      %2552 = vmatmul.mubr.f32.gmra.mrb[0].mxu0 %v2372
      %v2553 = vpop.f32.mrb[0].mxu0
      %v2554 = vadd.f32 0.0, %v2553
      %v2555 = vpop.f32.mrb[0].mxu0
      %2556 = vmatprep.mubr.f32.mxu0 0.0
      %2557 = vmatmul.mubr.f32.gmra.mrb[0].mxu0 %v2375
      %v2558 = vpop.f32.mrb[0].mxu0
      %v2559 = vadd.f32 0.0, %v2558
      %v2560 = vpop.f32.mrb[0].mxu0
      %2561 = vmatprep.mubr.f32.mxu0 0.0
      %2562 = vmatmul.mubr.f32.gmra.mrb[0].mxu0 %v2378
      %v2563 = vpop.f32.mrb[0].mxu0
      %v2564 = vadd.f32 0.0, %v2563
      %v2565 = vpop.f32.mrb[0].mxu0
      %2566 = vmatprep.mubr.f32.mxu0 0.0
      %2567 = vmatmul.mubr.f32.gmra.mrb[0].mxu0 %v2381
      %v2568 = vpop.f32.mrb[0].mxu0
      %v2569 = vadd.f32 0.0, %v2568
      %v2570 = vpop.f32.mrb[0].mxu0
      %2571 = vmatprep.mubr.f32.mxu0 0.0
      %2572 = vmatmul.mubr.f32.gmra.mrb[0].mxu0 %v2384
      %v2573 = vpop.f32.mrb[0].mxu0
      %v2574 = vadd.f32 0.0, %v2573
      %v2575 = vpop.f32.mrb[0].mxu0
      %2576 = vmatprep.mubr.f32.mxu0 0.0
      %2577 = vmatmul.mubr.f32.gmra.mrb[0].mxu0 %v2387
      %v2578 = vpop.f32.mrb[0].mxu0
      %v2579 = vadd.f32 0.0, %v2578
      %v2580 = vpop.f32.mrb[0].mxu0
      %2581 = vmatprep.mubr.f32.mxu0 0.0
      %2582 = vmatmul.mubr.f32.gmra.mrb[0].mxu0 %v2390
      %v2583 = vpop.f32.mrb[0].mxu0
      %v2584 = vadd.f32 0.0, %v2583
      %v2585 = vpop.f32.mrb[0].mxu0
      %2586 = vmatprep.mubr.f32.mxu0 0.0
      %2587 = vmatmul.mubr.f32.gmra.mrb[0].mxu0 %v2393
      %v2588 = vpop.f32.mrb[0].mxu0
      %v2589 = vadd.f32 0.0, %v2588
      %v2590 = vpop.f32.mrb[0].mxu0
      %2591 = vmatprep.mubr.f32.mxu0 0.0
      %2592 = vmatmul.mubr.f32.gmra.mrb[0].mxu0 %v2396
      %v2593 = vpop.f32.mrb[0].mxu0
      %v2594 = vadd.f32 0.0, %v2593
      %v2595 = vpop.f32.mrb[0].mxu0
      %2596 = vmatprep.mubr.f32.mxu0 0.0
      %2597 = vmatmul.mubr.f32.gmra.mrb[0].mxu0 %v2399
      %v2598 = vpop.f32.mrb[0].mxu0
      %v2599 = vadd.f32 0.0, %v2598
      %v2600 = vpop.f32.mrb[0].mxu0
      %2601 = vmatprep.mubr.f32.mxu0 0.0
      %2602 = vmatmul.mubr.f32.gmra.mrb[0].mxu0 %v2402
      %v2603 = vpop.f32.mrb[0].mxu0
      %v2604 = vadd.f32 0.0, %v2603
      %v2605 = vpop.f32.mrb[0].mxu0
      %2606 = vmatprep.mubr.f32.mxu0 0.0
      %2607 = vmatmul.mubr.f32.gmra.mrb[0].mxu0 %v2405
      %v2608 = vpop.f32.mrb[0].mxu0
      %v2609 = vadd.f32 0.0, %v2608
      %v2610 = vpop.f32.mrb[0].mxu0
      %2611 = vmatprep.mubr.f32.mxu0 0.0
      %2612 = vmatmul.mubr.f32.gmra.mrb[0].mxu0 %v2408
      %v2613 = vpop.f32.mrb[0].mxu0
      %v2614 = vadd.f32 0.0, %v2613
      %v2615 = vpop.f32.mrb[0].mxu0
      %2616 = vmatprep.mubr.f32.mxu0 0.0
      %2617 = vmatmul.mubr.f32.gmra.mrb[0].mxu0 %v2411
      %v2618 = vpop.f32.mrb[0].mxu0
      %v2619 = vadd.f32 0.0, %v2618
      %v2620 = vpop.f32.mrb[0].mxu0
      %2621 = vmatprep.mubr.f32.mxu0 0.0
      %2622 = vmatmul.mubr.f32.gmra.mrb[0].mxu0 %v2414
      %v2623 = vpop.f32.mrb[0].mxu0
      %v2624 = vadd.f32 0.0, %v2623
      %v2625 = vpop.f32.mrb[0].mxu0
      %2626 = vmatprep.mubr.f32.mxu0 0.0
      %2627 = vmatmul.mubr.f32.gmra.mrb[0].mxu0 %v2417
      %v2628 = vpop.f32.mrb[0].mxu0
      %v2629 = vadd.f32 0.0, %v2628
      %v2630 = vpop.f32.mrb[0].mxu0
      %2631 = vmatprep.mubr.f32.mxu0 0.0
      %2632 = vmatmul.mubr.f32.gmra.mrb[0].mxu0 %v2420
      %v2633 = vpop.f32.mrb[0].mxu0
      %v2634 = vadd.f32 0.0, %v2633
      %v2635 = vpop.f32.mrb[0].mxu0
      %2636 = vmatprep.mubr.f32.mxu0 0.0
      %2637 = vmatmul.mubr.f32.gmra.mrb[0].mxu0 %v2423
      %v2638 = vpop.f32.mrb[0].mxu0
      %v2639 = vadd.f32 0.0, %v2638
      %v2640 = vpop.f32.mrb[0].mxu0
      %2641 = vmatprep.mubr.f32.mxu0 0.0
      %2642 = vmatmul.mubr.f32.gmra.mrb[0].mxu0 %v2426
      %v2643 = vpop.f32.mrb[0].mxu0
      %v2644 = vadd.f32 0.0, %v2643
      %v2645 = vpop.f32.mrb[0].mxu0
      %2646 = vmatprep.mubr.f32.mxu0 0.0
      %2647 = vmatmul.mubr.f32.gmra.mrb[0].mxu0 %v2429
      %v2648 = vpop.f32.mrb[0].mxu0
      %v2649 = vadd.f32 0.0, %v2648
      %v2650 = vpop.f32.mrb[0].mxu0
      %2651 = vmatprep.mubr.f32.mxu0 0.0
      %2652 = vmatmul.mubr.f32.gmra.mrb[0].mxu0 %v2432
      %v2653 = vpop.f32.mrb[0].mxu0
      %v2654 = vadd.f32 0.0, %v2653
      %v2655 = vpop.f32.mrb[0].mxu0
      %2656 = vmatprep.mubr.f32.mxu0 0.0
      %2657 = vmatmul.mubr.f32.gmra.mrb[0].mxu0 %v2435
      %v2658 = vpop.f32.mrb[0].mxu0
      %v2659 = vadd.f32 0.0, %v2658
      %v2660 = vpop.f32.mrb[0].mxu0
      %2661 = vdwg.mxu0
      %v2662 = vadd.f32 %v2272, %v2504
      %v2663 = vadd.f32 %v2273, %v2509
      %v2664 = vadd.f32 %v2274, %v2514
      %v2665 = vadd.f32 %v2275, %v2519
      %v2666 = vadd.f32 %v2276, %v2524
      %v2667 = vadd.f32 %v2277, %v2529
      %v2668 = vadd.f32 %v2278, %v2534
      %v2669 = vadd.f32 %v2279, %v2539
      %v2670 = vadd.f32 %v2280, %v2544
      %v2671 = vadd.f32 %v2281, %v2549
      %v2672 = vadd.f32 %v2282, %v2554
      %v2673 = vadd.f32 %v2283, %v2559
      %v2674 = vadd.f32 %v2284, %v2564
      %v2675 = vadd.f32 %v2285, %v2569
      %v2676 = vadd.f32 %v2286, %v2574
      %v2677 = vadd.f32 %v2287, %v2579
      %v2678 = vadd.f32 %v2288, %v2584
      %v2679 = vadd.f32 %v2289, %v2589
      %v2680 = vadd.f32 %v2290, %v2594
      %v2681 = vadd.f32 %v2291, %v2599
      %v2682 = vadd.f32 %v2292, %v2604
      %v2683 = vadd.f32 %v2293, %v2609
      %v2684 = vadd.f32 %v2294, %v2614
      %v2685 = vadd.f32 %v2295, %v2619
      %v2686 = vadd.f32 %v2296, %v2624
      %v2687 = vadd.f32 %v2297, %v2629
      %v2688 = vadd.f32 %v2298, %v2634
      %v2689 = vadd.f32 %v2299, %v2639
      %v2690 = vadd.f32 %v2300, %v2644
      %v2691 = vadd.f32 %v2301, %v2649
      %v2692 = vadd.f32 %v2302, %v2654
      %v2693 = vadd.f32 %v2303, %v2659
      %s2694 = scalar_lea.vmem [#allocation2], 48
      %v2695 = vld [vmem:[%s2694] sm:$0xff]
      %v2696 = vld [vmem:[%s2694 + $0x8] sm:$0xff]
      %v2697 = vld [vmem:[%s2694 + $0x18] sm:$0xff]
      %v2698 = vld [vmem:[%s2694 + $0x20] sm:$0xff]
      %v2699 = vld [vmem:[%s2694 + $0x30] sm:$0xff]
      %v2700 = vld [vmem:[%s2694 + $0x38] sm:$0xff]
      %v2701 = vld [vmem:[%s2694 + $0x48] sm:$0xff]
      %v2702 = vld [vmem:[%s2694 + $0x50] sm:$0xff]
      %v2703 = vld [vmem:[%s2694 + $0x60] sm:$0xff]
      %v2704 = vld [vmem:[%s2694 + $0x68] sm:$0xff]
      %v2705 = vld [vmem:[%s2694 + $0x78] sm:$0xff]
      %v2706 = vld [vmem:[%s2694 + $0x80] sm:$0xff]
      %v2707 = vld [vmem:[%s2694 + $0x90] sm:$0xff]
      %v2708 = vld [vmem:[%s2694 + $0x98] sm:$0xff]
      %v2709 = vld [vmem:[%s2694 + $0xa8] sm:$0xff]
      %v2710 = vld [vmem:[%s2694 + $0xb0] sm:$0xff]
      %v2711 = vld [vmem:[%s2694 + $0xc0] sm:$0xff]
      %v2712 = vld [vmem:[%s2694 + $0xc8] sm:$0xff]
      %v2713 = vld [vmem:[%s2694 + $0xd8] sm:$0xff]
      %v2714 = vld [vmem:[%s2694 + $0xe0] sm:$0xff]
      %v2715 = vld [vmem:[%s2694 + $0xf0] sm:$0xff]
      %v2716 = vld [vmem:[%s2694 + $0xf8] sm:$0xff]
      %v2717 = vld [vmem:[%s2694 + $0x108] sm:$0xff]
      %v2718 = vld [vmem:[%s2694 + $0x110] sm:$0xff]
      %v2719 = vld [vmem:[%s2694 + $0x120] sm:$0xff]
      %v2720 = vld [vmem:[%s2694 + $0x128] sm:$0xff]
      %v2721 = vld [vmem:[%s2694 + $0x138] sm:$0xff]
      %v2722 = vld [vmem:[%s2694 + $0x140] sm:$0xff]
      %v2723 = vld [vmem:[%s2694 + $0x150] sm:$0xff]
      %v2724 = vld [vmem:[%s2694 + $0x158] sm:$0xff]
      %v2725 = vld [vmem:[%s2694 + $0x168] sm:$0xff]
      %v2726 = vld [vmem:[%s2694 + $0x170] sm:$0xff]
      %s2727 = scalar_lea.vmem %s3, 192
      %v2728 = vld [vmem:[%s2727] sm:$0xff]
      %v2729 = vld [vmem:[%s2727 + $0x8] sm:$0xff]
      %v2730 = vld [vmem:[%s2727 + $0x10] sm:$0xff]
      %v2731 = vld [vmem:[%s2727 + $0x18] sm:$0xff]
      %v2733 = vsel %vm340, %v2695, 0
      %v2736 = vsel %vm340, %v2696, 0
      %v2739 = vsel %vm340, %v2697, 0
      %v2742 = vsel %vm340, %v2698, 0
      %v2745 = vsel %vm340, %v2699, 0
      %v2748 = vsel %vm340, %v2700, 0
      %v2751 = vsel %vm340, %v2701, 0
      %v2754 = vsel %vm340, %v2702, 0
      %v2757 = vsel %vm340, %v2703, 0
      %v2760 = vsel %vm340, %v2704, 0
      %v2763 = vsel %vm340, %v2705, 0
      %v2766 = vsel %vm340, %v2706, 0
      %v2769 = vsel %vm340, %v2707, 0
      %v2772 = vsel %vm340, %v2708, 0
      %v2775 = vsel %vm340, %v2709, 0
      %v2778 = vsel %vm340, %v2710, 0
      %v2781 = vsel %vm340, %v2711, 0
      %v2784 = vsel %vm340, %v2712, 0
      %v2787 = vsel %vm340, %v2713, 0
      %v2790 = vsel %vm340, %v2714, 0
      %v2793 = vsel %vm340, %v2715, 0
      %v2796 = vsel %vm340, %v2716, 0
      %v2799 = vsel %vm340, %v2717, 0
      %v2802 = vsel %vm340, %v2718, 0
      %v2805 = vsel %vm340, %v2719, 0
      %v2808 = vsel %vm340, %v2720, 0
      %v2811 = vsel %vm340, %v2721, 0
      %v2814 = vsel %vm340, %v2722, 0
      %v2817 = vsel %vm340, %v2723, 0
      %v2820 = vsel %vm340, %v2724, 0
      %v2823 = vsel %vm340, %v2725, 0
      %v2826 = vsel %vm340, %v2726, 0
      %2828 = vmatprep.subr.mxu0 0.0
      %2829 = vmatpush1.msra.mxu0 %v2728
      %2830 = vmatprep.subr.mxu0 0.0
      %2831 = vmatpush1.msra.mxu0 %v2729
      %2832 = vmatprep.subr.mxu0 0.0
      %2833 = vmatpush1.msra.mxu0 %v2730
      %2834 = vmatprep.subr.mxu0 0.0
      %2835 = vmatpush1.msra.mxu0 %v2731
      %2836 = vmatprep.subr.mxu0 0.0
      %2837 = vmatpush1.msra.mxu0 0.0
      %2838 = vmatprep.subr.mxu0 0.0
      %2839 = vmatpush1.msra.mxu0 0.0
      %2840 = vmatprep.subr.mxu0 0.0
      %2841 = vmatpush1.msra.mxu0 0.0
      %2842 = vmatprep.subr.mxu0 0.0
      %2843 = vmatpush1.msra.mxu0 0.0
      %2844 = vmatprep.subr.mxu0 0.0
      %2845 = vmatpush1.msra.mxu0 0.0
      %2846 = vmatprep.subr.mxu0 0.0
      %2847 = vmatpush1.msra.mxu0 0.0
      %2848 = vmatprep.subr.mxu0 0.0
      %2849 = vmatpush1.msra.mxu0 0.0
      %2850 = vmatprep.subr.mxu0 0.0
      %2851 = vmatpush1.msra.mxu0 0.0
      %2852 = vmatprep.subr.mxu0 0.0
      %2853 = vmatpush1.msra.mxu0 0.0
      %2854 = vmatprep.subr.mxu0 0.0
      %2855 = vmatpush1.msra.mxu0 0.0
      %2856 = vmatprep.subr.mxu0 0.0
      %2857 = vmatpush1.msra.mxu0 0.0
      %2858 = vmatprep.subr.mxu0 0.0
      %2859 = vmatpush1.msra.mxu0 0.0
      %2860 = vmatprep.subr.mxu0 0.0
      %2861 = vmatpush1.msra.mxu0 0.0
      %2862 = vmatprep.subr.mxu0 0.0
      %2863 = vmatpush1.msra.mxu0 0.0
      %2864 = vmatprep.subr.mxu0 0.0
      %2865 = vmatpush1.msra.mxu0 0.0
      %2866 = vmatprep.subr.mxu0 0.0
      %2867 = vmatpush1.msra.mxu0 0.0
      %2868 = vmatprep.subr.mxu0 0.0
      %2869 = vmatpush1.msra.mxu0 0.0
      %2870 = vmatprep.subr.mxu0 0.0
      %2871 = vmatpush1.msra.mxu0 0.0
      %2872 = vmatprep.subr.mxu0 0.0
      %2873 = vmatpush1.msra.mxu0 0.0
      %2874 = vmatprep.subr.mxu0 0.0
      %2875 = vmatpush1.msra.mxu0 0.0
      %2876 = vmatprep.subr.mxu0 0.0
      %2877 = vmatpush1.msra.mxu0 0.0
      %2878 = vmatprep.subr.mxu0 0.0
      %2879 = vmatpush1.msra.mxu0 0.0
      %2880 = vmatprep.subr.mxu0 0.0
      %2881 = vmatpush1.msra.mxu0 0.0
      %2882 = vmatprep.subr.mxu0 0.0
      %2883 = vmatpush1.msra.mxu0 0.0
      %2884 = vmatprep.subr.mxu0 0.0
      %2885 = vmatpush1.msra.mxu0 0.0
      %2886 = vmatprep.subr.mxu0 0.0
      %2887 = vmatpush1.msra.mxu0 0.0
      %2888 = vmatprep.subr.mxu0 0.0
      %2889 = vmatpush1.msra.mxu0 0.0
      %2890 = vmatprep.subr.mxu0 0.0
      %2891 = vmatpush1.msra.mxu0 0.0
      %2892 = vmatprep.mubr.f32.mxu0 0.0
      %2893 = vmatmul.mubr.f32.gmra.mrb[0].mxu0 %v2733
      %v2894 = vpop.f32.mrb[0].mxu0
      %v2895 = vadd.f32 0.0, %v2894
      %v2896 = vpop.f32.mrb[0].mxu0
      %2897 = vmatprep.mubr.f32.mxu0 0.0
      %2898 = vmatmul.mubr.f32.gmra.mrb[0].mxu0 %v2736
      %v2899 = vpop.f32.mrb[0].mxu0
      %v2900 = vadd.f32 0.0, %v2899
      %v2901 = vpop.f32.mrb[0].mxu0
      %2902 = vmatprep.mubr.f32.mxu0 0.0
      %2903 = vmatmul.mubr.f32.gmra.mrb[0].mxu0 %v2739
      %v2904 = vpop.f32.mrb[0].mxu0
      %v2905 = vadd.f32 0.0, %v2904
      %v2906 = vpop.f32.mrb[0].mxu0
      %2907 = vmatprep.mubr.f32.mxu0 0.0
      %2908 = vmatmul.mubr.f32.gmra.mrb[0].mxu0 %v2742
      %v2909 = vpop.f32.mrb[0].mxu0
      %v2910 = vadd.f32 0.0, %v2909
      %v2911 = vpop.f32.mrb[0].mxu0
      %2912 = vmatprep.mubr.f32.mxu0 0.0
      %2913 = vmatmul.mubr.f32.gmra.mrb[0].mxu0 %v2745
      %v2914 = vpop.f32.mrb[0].mxu0
      %v2915 = vadd.f32 0.0, %v2914
      %v2916 = vpop.f32.mrb[0].mxu0
      %2917 = vmatprep.mubr.f32.mxu0 0.0
      %2918 = vmatmul.mubr.f32.gmra.mrb[0].mxu0 %v2748
      %v2919 = vpop.f32.mrb[0].mxu0
      %v2920 = vadd.f32 0.0, %v2919
      %v2921 = vpop.f32.mrb[0].mxu0
      %2922 = vmatprep.mubr.f32.mxu0 0.0
      %2923 = vmatmul.mubr.f32.gmra.mrb[0].mxu0 %v2751
      %v2924 = vpop.f32.mrb[0].mxu0
      %v2925 = vadd.f32 0.0, %v2924
      %v2926 = vpop.f32.mrb[0].mxu0
      %2927 = vmatprep.mubr.f32.mxu0 0.0
      %2928 = vmatmul.mubr.f32.gmra.mrb[0].mxu0 %v2754
      %v2929 = vpop.f32.mrb[0].mxu0
      %v2930 = vadd.f32 0.0, %v2929
      %v2931 = vpop.f32.mrb[0].mxu0
      %2932 = vmatprep.mubr.f32.mxu0 0.0
      %2933 = vmatmul.mubr.f32.gmra.mrb[0].mxu0 %v2757
      %v2934 = vpop.f32.mrb[0].mxu0
      %v2935 = vadd.f32 0.0, %v2934
      %v2936 = vpop.f32.mrb[0].mxu0
      %2937 = vmatprep.mubr.f32.mxu0 0.0
      %2938 = vmatmul.mubr.f32.gmra.mrb[0].mxu0 %v2760
      %v2939 = vpop.f32.mrb[0].mxu0
      %v2940 = vadd.f32 0.0, %v2939
      %v2941 = vpop.f32.mrb[0].mxu0
      %2942 = vmatprep.mubr.f32.mxu0 0.0
      %2943 = vmatmul.mubr.f32.gmra.mrb[0].mxu0 %v2763
      %v2944 = vpop.f32.mrb[0].mxu0
      %v2945 = vadd.f32 0.0, %v2944
      %v2946 = vpop.f32.mrb[0].mxu0
      %2947 = vmatprep.mubr.f32.mxu0 0.0
      %2948 = vmatmul.mubr.f32.gmra.mrb[0].mxu0 %v2766
      %v2949 = vpop.f32.mrb[0].mxu0
      %v2950 = vadd.f32 0.0, %v2949
      %v2951 = vpop.f32.mrb[0].mxu0
      %2952 = vmatprep.mubr.f32.mxu0 0.0
      %2953 = vmatmul.mubr.f32.gmra.mrb[0].mxu0 %v2769
      %v2954 = vpop.f32.mrb[0].mxu0
      %v2955 = vadd.f32 0.0, %v2954
      %v2956 = vpop.f32.mrb[0].mxu0
      %2957 = vmatprep.mubr.f32.mxu0 0.0
      %2958 = vmatmul.mubr.f32.gmra.mrb[0].mxu0 %v2772
      %v2959 = vpop.f32.mrb[0].mxu0
      %v2960 = vadd.f32 0.0, %v2959
      %v2961 = vpop.f32.mrb[0].mxu0
      %2962 = vmatprep.mubr.f32.mxu0 0.0
      %2963 = vmatmul.mubr.f32.gmra.mrb[0].mxu0 %v2775
      %v2964 = vpop.f32.mrb[0].mxu0
      %v2965 = vadd.f32 0.0, %v2964
      %v2966 = vpop.f32.mrb[0].mxu0
      %2967 = vmatprep.mubr.f32.mxu0 0.0
      %2968 = vmatmul.mubr.f32.gmra.mrb[0].mxu0 %v2778
      %v2969 = vpop.f32.mrb[0].mxu0
      %v2970 = vadd.f32 0.0, %v2969
      %v2971 = vpop.f32.mrb[0].mxu0
      %2972 = vmatprep.mubr.f32.mxu0 0.0
      %2973 = vmatmul.mubr.f32.gmra.mrb[0].mxu0 %v2781
      %v2974 = vpop.f32.mrb[0].mxu0
      %v2975 = vadd.f32 0.0, %v2974
      %v2976 = vpop.f32.mrb[0].mxu0
      %2977 = vmatprep.mubr.f32.mxu0 0.0
      %2978 = vmatmul.mubr.f32.gmra.mrb[0].mxu0 %v2784
      %v2979 = vpop.f32.mrb[0].mxu0
      %v2980 = vadd.f32 0.0, %v2979
      %v2981 = vpop.f32.mrb[0].mxu0
      %2982 = vmatprep.mubr.f32.mxu0 0.0
      %2983 = vmatmul.mubr.f32.gmra.mrb[0].mxu0 %v2787
      %v2984 = vpop.f32.mrb[0].mxu0
      %v2985 = vadd.f32 0.0, %v2984
      %v2986 = vpop.f32.mrb[0].mxu0
      %2987 = vmatprep.mubr.f32.mxu0 0.0
      %2988 = vmatmul.mubr.f32.gmra.mrb[0].mxu0 %v2790
      %v2989 = vpop.f32.mrb[0].mxu0
      %v2990 = vadd.f32 0.0, %v2989
      %v2991 = vpop.f32.mrb[0].mxu0
      %2992 = vmatprep.mubr.f32.mxu0 0.0
      %2993 = vmatmul.mubr.f32.gmra.mrb[0].mxu0 %v2793
      %v2994 = vpop.f32.mrb[0].mxu0
      %v2995 = vadd.f32 0.0, %v2994
      %v2996 = vpop.f32.mrb[0].mxu0
      %2997 = vmatprep.mubr.f32.mxu0 0.0
      %2998 = vmatmul.mubr.f32.gmra.mrb[0].mxu0 %v2796
      %v2999 = vpop.f32.mrb[0].mxu0
      %v3000 = vadd.f32 0.0, %v2999
      %v3001 = vpop.f32.mrb[0].mxu0
      %3002 = vmatprep.mubr.f32.mxu0 0.0
      %3003 = vmatmul.mubr.f32.gmra.mrb[0].mxu0 %v2799
      %v3004 = vpop.f32.mrb[0].mxu0
      %v3005 = vadd.f32 0.0, %v3004
      %v3006 = vpop.f32.mrb[0].mxu0
      %3007 = vmatprep.mubr.f32.mxu0 0.0
      %3008 = vmatmul.mubr.f32.gmra.mrb[0].mxu0 %v2802
      %v3009 = vpop.f32.mrb[0].mxu0
      %v3010 = vadd.f32 0.0, %v3009
      %v3011 = vpop.f32.mrb[0].mxu0
      %3012 = vmatprep.mubr.f32.mxu0 0.0
      %3013 = vmatmul.mubr.f32.gmra.mrb[0].mxu0 %v2805
      %v3014 = vpop.f32.mrb[0].mxu0
      %v3015 = vadd.f32 0.0, %v3014
      %v3016 = vpop.f32.mrb[0].mxu0
      %3017 = vmatprep.mubr.f32.mxu0 0.0
      %3018 = vmatmul.mubr.f32.gmra.mrb[0].mxu0 %v2808
      %v3019 = vpop.f32.mrb[0].mxu0
      %v3020 = vadd.f32 0.0, %v3019
      %v3021 = vpop.f32.mrb[0].mxu0
      %3022 = vmatprep.mubr.f32.mxu0 0.0
      %3023 = vmatmul.mubr.f32.gmra.mrb[0].mxu0 %v2811
      %v3024 = vpop.f32.mrb[0].mxu0
      %v3025 = vadd.f32 0.0, %v3024
      %v3026 = vpop.f32.mrb[0].mxu0
      %3027 = vmatprep.mubr.f32.mxu0 0.0
      %3028 = vmatmul.mubr.f32.gmra.mrb[0].mxu0 %v2814
      %v3029 = vpop.f32.mrb[0].mxu0
      %v3030 = vadd.f32 0.0, %v3029
      %v3031 = vpop.f32.mrb[0].mxu0
      %3032 = vmatprep.mubr.f32.mxu0 0.0
      %3033 = vmatmul.mubr.f32.gmra.mrb[0].mxu0 %v2817
      %v3034 = vpop.f32.mrb[0].mxu0
      %v3035 = vadd.f32 0.0, %v3034
      %v3036 = vpop.f32.mrb[0].mxu0
      %3037 = vmatprep.mubr.f32.mxu0 0.0
      %3038 = vmatmul.mubr.f32.gmra.mrb[0].mxu0 %v2820
      %v3039 = vpop.f32.mrb[0].mxu0
      %v3040 = vadd.f32 0.0, %v3039
      %v3041 = vpop.f32.mrb[0].mxu0
      %3042 = vmatprep.mubr.f32.mxu0 0.0
      %3043 = vmatmul.mubr.f32.gmra.mrb[0].mxu0 %v2823
      %v3044 = vpop.f32.mrb[0].mxu0
      %v3045 = vadd.f32 0.0, %v3044
      %v3046 = vpop.f32.mrb[0].mxu0
      %3047 = vmatprep.mubr.f32.mxu0 0.0
      %3048 = vmatmul.mubr.f32.gmra.mrb[0].mxu0 %v2826
      %v3049 = vpop.f32.mrb[0].mxu0
      %v3050 = vadd.f32 0.0, %v3049
      %v3051 = vpop.f32.mrb[0].mxu0
      %3052 = vdwg.mxu0
      %v3053 = vadd.f32 %v2662, %v2895
      %v3054 = vadd.f32 %v2663, %v2900
      %v3055 = vadd.f32 %v2664, %v2905
      %v3056 = vadd.f32 %v2665, %v2910
      %v3057 = vadd.f32 %v2666, %v2915
      %v3058 = vadd.f32 %v2667, %v2920
      %v3059 = vadd.f32 %v2668, %v2925
      %v3060 = vadd.f32 %v2669, %v2930
      %v3061 = vadd.f32 %v2670, %v2935
      %v3062 = vadd.f32 %v2671, %v2940
      %v3063 = vadd.f32 %v2672, %v2945
      %v3064 = vadd.f32 %v2673, %v2950
      %v3065 = vadd.f32 %v2674, %v2955
      %v3066 = vadd.f32 %v2675, %v2960
      %v3067 = vadd.f32 %v2676, %v2965
      %v3068 = vadd.f32 %v2677, %v2970
      %v3069 = vadd.f32 %v2678, %v2975
      %v3070 = vadd.f32 %v2679, %v2980
      %v3071 = vadd.f32 %v2680, %v2985
      %v3072 = vadd.f32 %v2681, %v2990
      %v3073 = vadd.f32 %v2682, %v2995
      %v3074 = vadd.f32 %v2683, %v3000
      %v3075 = vadd.f32 %v2684, %v3005
      %v3076 = vadd.f32 %v2685, %v3010
      %v3077 = vadd.f32 %v2686, %v3015
      %v3078 = vadd.f32 %v2687, %v3020
      %v3079 = vadd.f32 %v2688, %v3025
      %v3080 = vadd.f32 %v2689, %v3030
      %v3081 = vadd.f32 %v2690, %v3035
      %v3082 = vadd.f32 %v2691, %v3040
      %v3083 = vadd.f32 %v2692, %v3045
      %v3084 = vadd.f32 %v2693, %v3050
      %v3085 = vld [vmem:[%s2694 + $0x1] sm:$0xff]
      %v3086 = vld [vmem:[%s2694 + $0x9] sm:$0xff]
      %v3087 = vld [vmem:[%s2694 + $0x19] sm:$0xff]
      %v3088 = vld [vmem:[%s2694 + $0x21] sm:$0xff]
      %v3089 = vld [vmem:[%s2694 + $0x31] sm:$0xff]
      %v3090 = vld [vmem:[%s2694 + $0x39] sm:$0xff]
      %v3091 = vld [vmem:[%s2694 + $0x49] sm:$0xff]
      %v3092 = vld [vmem:[%s2694 + $0x51] sm:$0xff]
      %v3093 = vld [vmem:[%s2694 + $0x61] sm:$0xff]
      %v3094 = vld [vmem:[%s2694 + $0x69] sm:$0xff]
      %v3095 = vld [vmem:[%s2694 + $0x79] sm:$0xff]
      %v3096 = vld [vmem:[%s2694 + $0x81] sm:$0xff]
      %v3097 = vld [vmem:[%s2694 + $0x91] sm:$0xff]
      %v3098 = vld [vmem:[%s2694 + $0x99] sm:$0xff]
      %v3099 = vld [vmem:[%s2694 + $0xa9] sm:$0xff]
      %v3100 = vld [vmem:[%s2694 + $0xb1] sm:$0xff]
      %v3101 = vld [vmem:[%s2694 + $0xc1] sm:$0xff]
      %v3102 = vld [vmem:[%s2694 + $0xc9] sm:$0xff]
      %v3103 = vld [vmem:[%s2694 + $0xd9] sm:$0xff]
      %v3104 = vld [vmem:[%s2694 + $0xe1] sm:$0xff]
      %v3105 = vld [vmem:[%s2694 + $0xf1] sm:$0xff]
      %v3106 = vld [vmem:[%s2694 + $0xf9] sm:$0xff]
      %v3107 = vld [vmem:[%s2694 + $0x109] sm:$0xff]
      %v3108 = vld [vmem:[%s2694 + $0x111] sm:$0xff]
      %v3109 = vld [vmem:[%s2694 + $0x121] sm:$0xff]
      %v3110 = vld [vmem:[%s2694 + $0x129] sm:$0xff]
      %v3111 = vld [vmem:[%s2694 + $0x139] sm:$0xff]
      %v3112 = vld [vmem:[%s2694 + $0x141] sm:$0xff]
      %v3113 = vld [vmem:[%s2694 + $0x151] sm:$0xff]
      %v3114 = vld [vmem:[%s2694 + $0x159] sm:$0xff]
      %v3115 = vld [vmem:[%s2694 + $0x169] sm:$0xff]
      %v3116 = vld [vmem:[%s2694 + $0x171] sm:$0xff]
      %s3117 = scalar_lea.vmem %s3, 224
      %v3118 = vld [vmem:[%s3117] sm:$0xff]
      %v3119 = vld [vmem:[%s3117 + $0x8] sm:$0xff]
      %v3120 = vld [vmem:[%s3117 + $0x10] sm:$0xff]
      %v3121 = vld [vmem:[%s3117 + $0x18] sm:$0xff]
      %v3123 = vsel %vm340, %v3085, 0
      %v3126 = vsel %vm340, %v3086, 0
      %v3129 = vsel %vm340, %v3087, 0
      %v3132 = vsel %vm340, %v3088, 0
      %v3135 = vsel %vm340, %v3089, 0
      %v3138 = vsel %vm340, %v3090, 0
      %v3141 = vsel %vm340, %v3091, 0
      %v3144 = vsel %vm340, %v3092, 0
      %v3147 = vsel %vm340, %v3093, 0
      %v3150 = vsel %vm340, %v3094, 0
      %v3153 = vsel %vm340, %v3095, 0
      %v3156 = vsel %vm340, %v3096, 0
      %v3159 = vsel %vm340, %v3097, 0
      %v3162 = vsel %vm340, %v3098, 0
      %v3165 = vsel %vm340, %v3099, 0
      %v3168 = vsel %vm340, %v3100, 0
      %v3171 = vsel %vm340, %v3101, 0
      %v3174 = vsel %vm340, %v3102, 0
      %v3177 = vsel %vm340, %v3103, 0
      %v3180 = vsel %vm340, %v3104, 0
      %v3183 = vsel %vm340, %v3105, 0
      %v3186 = vsel %vm340, %v3106, 0
      %v3189 = vsel %vm340, %v3107, 0
      %v3192 = vsel %vm340, %v3108, 0
      %v3195 = vsel %vm340, %v3109, 0
      %v3198 = vsel %vm340, %v3110, 0
      %v3201 = vsel %vm340, %v3111, 0
      %v3204 = vsel %vm340, %v3112, 0
      %v3207 = vsel %vm340, %v3113, 0
      %v3210 = vsel %vm340, %v3114, 0
      %v3213 = vsel %vm340, %v3115, 0
      %v3216 = vsel %vm340, %v3116, 0
      %3218 = vmatprep.subr.mxu0 0.0
      %3219 = vmatpush1.msra.mxu0 %v3118
      %3220 = vmatprep.subr.mxu0 0.0
      %3221 = vmatpush1.msra.mxu0 %v3119
      %3222 = vmatprep.subr.mxu0 0.0
      %3223 = vmatpush1.msra.mxu0 %v3120
      %3224 = vmatprep.subr.mxu0 0.0
      %3225 = vmatpush1.msra.mxu0 %v3121
      %3226 = vmatprep.subr.mxu0 0.0
      %3227 = vmatpush1.msra.mxu0 0.0
      %3228 = vmatprep.subr.mxu0 0.0
      %3229 = vmatpush1.msra.mxu0 0.0
      %3230 = vmatprep.subr.mxu0 0.0
      %3231 = vmatpush1.msra.mxu0 0.0
      %3232 = vmatprep.subr.mxu0 0.0
      %3233 = vmatpush1.msra.mxu0 0.0
      %3234 = vmatprep.subr.mxu0 0.0
      %3235 = vmatpush1.msra.mxu0 0.0
      %3236 = vmatprep.subr.mxu0 0.0
      %3237 = vmatpush1.msra.mxu0 0.0
      %3238 = vmatprep.subr.mxu0 0.0
      %3239 = vmatpush1.msra.mxu0 0.0
      %3240 = vmatprep.subr.mxu0 0.0
      %3241 = vmatpush1.msra.mxu0 0.0
      %3242 = vmatprep.subr.mxu0 0.0
      %3243 = vmatpush1.msra.mxu0 0.0
      %3244 = vmatprep.subr.mxu0 0.0
      %3245 = vmatpush1.msra.mxu0 0.0
      %3246 = vmatprep.subr.mxu0 0.0
      %3247 = vmatpush1.msra.mxu0 0.0
      %3248 = vmatprep.subr.mxu0 0.0
      %3249 = vmatpush1.msra.mxu0 0.0
      %3250 = vmatprep.subr.mxu0 0.0
      %3251 = vmatpush1.msra.mxu0 0.0
      %3252 = vmatprep.subr.mxu0 0.0
      %3253 = vmatpush1.msra.mxu0 0.0
      %3254 = vmatprep.subr.mxu0 0.0
      %3255 = vmatpush1.msra.mxu0 0.0
      %3256 = vmatprep.subr.mxu0 0.0
      %3257 = vmatpush1.msra.mxu0 0.0
      %3258 = vmatprep.subr.mxu0 0.0
      %3259 = vmatpush1.msra.mxu0 0.0
      %3260 = vmatprep.subr.mxu0 0.0
      %3261 = vmatpush1.msra.mxu0 0.0
      %3262 = vmatprep.subr.mxu0 0.0
      %3263 = vmatpush1.msra.mxu0 0.0
      %3264 = vmatprep.subr.mxu0 0.0
      %3265 = vmatpush1.msra.mxu0 0.0
      %3266 = vmatprep.subr.mxu0 0.0
      %3267 = vmatpush1.msra.mxu0 0.0
      %3268 = vmatprep.subr.mxu0 0.0
      %3269 = vmatpush1.msra.mxu0 0.0
      %3270 = vmatprep.subr.mxu0 0.0
      %3271 = vmatpush1.msra.mxu0 0.0
      %3272 = vmatprep.subr.mxu0 0.0
      %3273 = vmatpush1.msra.mxu0 0.0
      %3274 = vmatprep.subr.mxu0 0.0
      %3275 = vmatpush1.msra.mxu0 0.0
      %3276 = vmatprep.subr.mxu0 0.0
      %3277 = vmatpush1.msra.mxu0 0.0
      %3278 = vmatprep.subr.mxu0 0.0
      %3279 = vmatpush1.msra.mxu0 0.0
      %3280 = vmatprep.subr.mxu0 0.0
      %3281 = vmatpush1.msra.mxu0 0.0
      %3282 = vmatprep.mubr.f32.mxu0 0.0
      %3283 = vmatmul.mubr.f32.gmra.mrb[0].mxu0 %v3123
      %v3284 = vpop.f32.mrb[0].mxu0
      %v3285 = vadd.f32 0.0, %v3284
      %v3286 = vpop.f32.mrb[0].mxu0
      %3287 = vmatprep.mubr.f32.mxu0 0.0
      %3288 = vmatmul.mubr.f32.gmra.mrb[0].mxu0 %v3126
      %v3289 = vpop.f32.mrb[0].mxu0
      %v3290 = vadd.f32 0.0, %v3289
      %v3291 = vpop.f32.mrb[0].mxu0
      %3292 = vmatprep.mubr.f32.mxu0 0.0
      %3293 = vmatmul.mubr.f32.gmra.mrb[0].mxu0 %v3129
      %v3294 = vpop.f32.mrb[0].mxu0
      %v3295 = vadd.f32 0.0, %v3294
      %v3296 = vpop.f32.mrb[0].mxu0
      %3297 = vmatprep.mubr.f32.mxu0 0.0
      %3298 = vmatmul.mubr.f32.gmra.mrb[0].mxu0 %v3132
      %v3299 = vpop.f32.mrb[0].mxu0
      %v3300 = vadd.f32 0.0, %v3299
      %v3301 = vpop.f32.mrb[0].mxu0
      %3302 = vmatprep.mubr.f32.mxu0 0.0
      %3303 = vmatmul.mubr.f32.gmra.mrb[0].mxu0 %v3135
      %v3304 = vpop.f32.mrb[0].mxu0
      %v3305 = vadd.f32 0.0, %v3304
      %v3306 = vpop.f32.mrb[0].mxu0
      %3307 = vmatprep.mubr.f32.mxu0 0.0
      %3308 = vmatmul.mubr.f32.gmra.mrb[0].mxu0 %v3138
      %v3309 = vpop.f32.mrb[0].mxu0
      %v3310 = vadd.f32 0.0, %v3309
      %v3311 = vpop.f32.mrb[0].mxu0
      %3312 = vmatprep.mubr.f32.mxu0 0.0
      %3313 = vmatmul.mubr.f32.gmra.mrb[0].mxu0 %v3141
      %v3314 = vpop.f32.mrb[0].mxu0
      %v3315 = vadd.f32 0.0, %v3314
      %v3316 = vpop.f32.mrb[0].mxu0
      %3317 = vmatprep.mubr.f32.mxu0 0.0
      %3318 = vmatmul.mubr.f32.gmra.mrb[0].mxu0 %v3144
      %v3319 = vpop.f32.mrb[0].mxu0
      %v3320 = vadd.f32 0.0, %v3319
      %v3321 = vpop.f32.mrb[0].mxu0
      %3322 = vmatprep.mubr.f32.mxu0 0.0
      %3323 = vmatmul.mubr.f32.gmra.mrb[0].mxu0 %v3147
      %v3324 = vpop.f32.mrb[0].mxu0
      %v3325 = vadd.f32 0.0, %v3324
      %v3326 = vpop.f32.mrb[0].mxu0
      %3327 = vmatprep.mubr.f32.mxu0 0.0
      %3328 = vmatmul.mubr.f32.gmra.mrb[0].mxu0 %v3150
      %v3329 = vpop.f32.mrb[0].mxu0
      %v3330 = vadd.f32 0.0, %v3329
      %v3331 = vpop.f32.mrb[0].mxu0
      %3332 = vmatprep.mubr.f32.mxu0 0.0
      %3333 = vmatmul.mubr.f32.gmra.mrb[0].mxu0 %v3153
      %v3334 = vpop.f32.mrb[0].mxu0
      %v3335 = vadd.f32 0.0, %v3334
      %v3336 = vpop.f32.mrb[0].mxu0
      %3337 = vmatprep.mubr.f32.mxu0 0.0
      %3338 = vmatmul.mubr.f32.gmra.mrb[0].mxu0 %v3156
      %v3339 = vpop.f32.mrb[0].mxu0
      %v3340 = vadd.f32 0.0, %v3339
      %v3341 = vpop.f32.mrb[0].mxu0
      %3342 = vmatprep.mubr.f32.mxu0 0.0
      %3343 = vmatmul.mubr.f32.gmra.mrb[0].mxu0 %v3159
      %v3344 = vpop.f32.mrb[0].mxu0
      %v3345 = vadd.f32 0.0, %v3344
      %v3346 = vpop.f32.mrb[0].mxu0
      %3347 = vmatprep.mubr.f32.mxu0 0.0
      %3348 = vmatmul.mubr.f32.gmra.mrb[0].mxu0 %v3162
      %v3349 = vpop.f32.mrb[0].mxu0
      %v3350 = vadd.f32 0.0, %v3349
      %v3351 = vpop.f32.mrb[0].mxu0
      %3352 = vmatprep.mubr.f32.mxu0 0.0
      %3353 = vmatmul.mubr.f32.gmra.mrb[0].mxu0 %v3165
      %v3354 = vpop.f32.mrb[0].mxu0
      %v3355 = vadd.f32 0.0, %v3354
      %v3356 = vpop.f32.mrb[0].mxu0
      %3357 = vmatprep.mubr.f32.mxu0 0.0
      %3358 = vmatmul.mubr.f32.gmra.mrb[0].mxu0 %v3168
      %v3359 = vpop.f32.mrb[0].mxu0
      %v3360 = vadd.f32 0.0, %v3359
      %v3361 = vpop.f32.mrb[0].mxu0
      %3362 = vmatprep.mubr.f32.mxu0 0.0
      %3363 = vmatmul.mubr.f32.gmra.mrb[0].mxu0 %v3171
      %v3364 = vpop.f32.mrb[0].mxu0
      %v3365 = vadd.f32 0.0, %v3364
      %v3366 = vpop.f32.mrb[0].mxu0
      %3367 = vmatprep.mubr.f32.mxu0 0.0
      %3368 = vmatmul.mubr.f32.gmra.mrb[0].mxu0 %v3174
      %v3369 = vpop.f32.mrb[0].mxu0
      %v3370 = vadd.f32 0.0, %v3369
      %v3371 = vpop.f32.mrb[0].mxu0
      %3372 = vmatprep.mubr.f32.mxu0 0.0
      %3373 = vmatmul.mubr.f32.gmra.mrb[0].mxu0 %v3177
      %v3374 = vpop.f32.mrb[0].mxu0
      %v3375 = vadd.f32 0.0, %v3374
      %v3376 = vpop.f32.mrb[0].mxu0
      %3377 = vmatprep.mubr.f32.mxu0 0.0
      %3378 = vmatmul.mubr.f32.gmra.mrb[0].mxu0 %v3180
      %v3379 = vpop.f32.mrb[0].mxu0
      %v3380 = vadd.f32 0.0, %v3379
      %v3381 = vpop.f32.mrb[0].mxu0
      %3382 = vmatprep.mubr.f32.mxu0 0.0
      %3383 = vmatmul.mubr.f32.gmra.mrb[0].mxu0 %v3183
      %v3384 = vpop.f32.mrb[0].mxu0
      %v3385 = vadd.f32 0.0, %v3384
      %v3386 = vpop.f32.mrb[0].mxu0
      %3387 = vmatprep.mubr.f32.mxu0 0.0
      %3388 = vmatmul.mubr.f32.gmra.mrb[0].mxu0 %v3186
      %v3389 = vpop.f32.mrb[0].mxu0
      %v3390 = vadd.f32 0.0, %v3389
      %v3391 = vpop.f32.mrb[0].mxu0
      %3392 = vmatprep.mubr.f32.mxu0 0.0
      %3393 = vmatmul.mubr.f32.gmra.mrb[0].mxu0 %v3189
      %v3394 = vpop.f32.mrb[0].mxu0
      %v3395 = vadd.f32 0.0, %v3394
      %v3396 = vpop.f32.mrb[0].mxu0
      %3397 = vmatprep.mubr.f32.mxu0 0.0
      %3398 = vmatmul.mubr.f32.gmra.mrb[0].mxu0 %v3192
      %v3399 = vpop.f32.mrb[0].mxu0
      %v3400 = vadd.f32 0.0, %v3399
      %v3401 = vpop.f32.mrb[0].mxu0
      %3402 = vmatprep.mubr.f32.mxu0 0.0
      %3403 = vmatmul.mubr.f32.gmra.mrb[0].mxu0 %v3195
      %v3404 = vpop.f32.mrb[0].mxu0
      %v3405 = vadd.f32 0.0, %v3404
      %v3406 = vpop.f32.mrb[0].mxu0
      %3407 = vmatprep.mubr.f32.mxu0 0.0
      %3408 = vmatmul.mubr.f32.gmra.mrb[0].mxu0 %v3198
      %v3409 = vpop.f32.mrb[0].mxu0
      %v3410 = vadd.f32 0.0, %v3409
      %v3411 = vpop.f32.mrb[0].mxu0
      %3412 = vmatprep.mubr.f32.mxu0 0.0
      %3413 = vmatmul.mubr.f32.gmra.mrb[0].mxu0 %v3201
      %v3414 = vpop.f32.mrb[0].mxu0
      %v3415 = vadd.f32 0.0, %v3414
      %v3416 = vpop.f32.mrb[0].mxu0
      %3417 = vmatprep.mubr.f32.mxu0 0.0
      %3418 = vmatmul.mubr.f32.gmra.mrb[0].mxu0 %v3204
      %v3419 = vpop.f32.mrb[0].mxu0
      %v3420 = vadd.f32 0.0, %v3419
      %v3421 = vpop.f32.mrb[0].mxu0
      %3422 = vmatprep.mubr.f32.mxu0 0.0
      %3423 = vmatmul.mubr.f32.gmra.mrb[0].mxu0 %v3207
      %v3424 = vpop.f32.mrb[0].mxu0
      %v3425 = vadd.f32 0.0, %v3424
      %v3426 = vpop.f32.mrb[0].mxu0
      %3427 = vmatprep.mubr.f32.mxu0 0.0
      %3428 = vmatmul.mubr.f32.gmra.mrb[0].mxu0 %v3210
      %v3429 = vpop.f32.mrb[0].mxu0
      %v3430 = vadd.f32 0.0, %v3429
      %v3431 = vpop.f32.mrb[0].mxu0
      %3432 = vmatprep.mubr.f32.mxu0 0.0
      %3433 = vmatmul.mubr.f32.gmra.mrb[0].mxu0 %v3213
      %v3434 = vpop.f32.mrb[0].mxu0
      %v3435 = vadd.f32 0.0, %v3434
      %v3436 = vpop.f32.mrb[0].mxu0
      %3437 = vmatprep.mubr.f32.mxu0 0.0
      %3438 = vmatmul.mubr.f32.gmra.mrb[0].mxu0 %v3216
      %v3439 = vpop.f32.mrb[0].mxu0
      %v3440 = vadd.f32 0.0, %v3439
      %v3441 = vpop.f32.mrb[0].mxu0
      %3442 = vdwg.mxu0
      %v3443 = vadd.f32 %v3053, %v3285
      %v3444 = vadd.f32 %v3054, %v3290
      %v3445 = vadd.f32 %v3055, %v3295
      %v3446 = vadd.f32 %v3056, %v3300
      %v3447 = vadd.f32 %v3057, %v3305
      %v3448 = vadd.f32 %v3058, %v3310
      %v3449 = vadd.f32 %v3059, %v3315
      %v3450 = vadd.f32 %v3060, %v3320
      %v3451 = vadd.f32 %v3061, %v3325
      %v3452 = vadd.f32 %v3062, %v3330
      %v3453 = vadd.f32 %v3063, %v3335
      %v3454 = vadd.f32 %v3064, %v3340
      %v3455 = vadd.f32 %v3065, %v3345
      %v3456 = vadd.f32 %v3066, %v3350
      %v3457 = vadd.f32 %v3067, %v3355
      %v3458 = vadd.f32 %v3068, %v3360
      %v3459 = vadd.f32 %v3069, %v3365
      %v3460 = vadd.f32 %v3070, %v3370
      %v3461 = vadd.f32 %v3071, %v3375
      %v3462 = vadd.f32 %v3072, %v3380
      %v3463 = vadd.f32 %v3073, %v3385
      %v3464 = vadd.f32 %v3074, %v3390
      %v3465 = vadd.f32 %v3075, %v3395
      %v3466 = vadd.f32 %v3076, %v3400
      %v3467 = vadd.f32 %v3077, %v3405
      %v3468 = vadd.f32 %v3078, %v3410
      %v3469 = vadd.f32 %v3079, %v3415
      %v3470 = vadd.f32 %v3080, %v3420
      %v3471 = vadd.f32 %v3081, %v3425
      %v3472 = vadd.f32 %v3082, %v3430
      %v3473 = vadd.f32 %v3083, %v3435
      %v3474 = vadd.f32 %v3084, %v3440
      %v3475 = vld [vmem:[%s2694 + $0x2] sm:$0xff]
      %v3476 = vld [vmem:[%s2694 + $0xa] sm:$0xff]
      %v3477 = vld [vmem:[%s2694 + $0x1a] sm:$0xff]
      %v3478 = vld [vmem:[%s2694 + $0x22] sm:$0xff]
      %v3479 = vld [vmem:[%s2694 + $0x32] sm:$0xff]
      %v3480 = vld [vmem:[%s2694 + $0x3a] sm:$0xff]
      %v3481 = vld [vmem:[%s2694 + $0x4a] sm:$0xff]
      %v3482 = vld [vmem:[%s2694 + $0x52] sm:$0xff]
      %v3483 = vld [vmem:[%s2694 + $0x62] sm:$0xff]
      %v3484 = vld [vmem:[%s2694 + $0x6a] sm:$0xff]
      %v3485 = vld [vmem:[%s2694 + $0x7a] sm:$0xff]
      %v3486 = vld [vmem:[%s2694 + $0x82] sm:$0xff]
      %v3487 = vld [vmem:[%s2694 + $0x92] sm:$0xff]
      %v3488 = vld [vmem:[%s2694 + $0x9a] sm:$0xff]
      %v3489 = vld [vmem:[%s2694 + $0xaa] sm:$0xff]
      %v3490 = vld [vmem:[%s2694 + $0xb2] sm:$0xff]
      %v3491 = vld [vmem:[%s2694 + $0xc2] sm:$0xff]
      %v3492 = vld [vmem:[%s2694 + $0xca] sm:$0xff]
      %v3493 = vld [vmem:[%s2694 + $0xda] sm:$0xff]
      %v3494 = vld [vmem:[%s2694 + $0xe2] sm:$0xff]
      %v3495 = vld [vmem:[%s2694 + $0xf2] sm:$0xff]
      %v3496 = vld [vmem:[%s2694 + $0xfa] sm:$0xff]
      %v3497 = vld [vmem:[%s2694 + $0x10a] sm:$0xff]
      %v3498 = vld [vmem:[%s2694 + $0x112] sm:$0xff]
      %v3499 = vld [vmem:[%s2694 + $0x122] sm:$0xff]
      %v3500 = vld [vmem:[%s2694 + $0x12a] sm:$0xff]
      %v3501 = vld [vmem:[%s2694 + $0x13a] sm:$0xff]
      %v3502 = vld [vmem:[%s2694 + $0x142] sm:$0xff]
      %v3503 = vld [vmem:[%s2694 + $0x152] sm:$0xff]
      %v3504 = vld [vmem:[%s2694 + $0x15a] sm:$0xff]
      %v3505 = vld [vmem:[%s2694 + $0x16a] sm:$0xff]
      %v3506 = vld [vmem:[%s2694 + $0x172] sm:$0xff]
      %s3507 = scalar_lea.vmem %s3, 256
      %v3508 = vld [vmem:[%s3507] sm:$0xff]
      %v3509 = vld [vmem:[%s3507 + $0x8] sm:$0xff]
      %v3510 = vld [vmem:[%s3507 + $0x10] sm:$0xff]
      %v3511 = vld [vmem:[%s3507 + $0x18] sm:$0xff]
      %v3513 = vsel %vm340, %v3475, 0
      %v3516 = vsel %vm340, %v3476, 0
      %v3519 = vsel %vm340, %v3477, 0
      %v3522 = vsel %vm340, %v3478, 0
      %v3525 = vsel %vm340, %v3479, 0
      %v3528 = vsel %vm340, %v3480, 0
      %v3531 = vsel %vm340, %v3481, 0
      %v3534 = vsel %vm340, %v3482, 0
      %v3537 = vsel %vm340, %v3483, 0
      %v3540 = vsel %vm340, %v3484, 0
      %v3543 = vsel %vm340, %v3485, 0
      %v3546 = vsel %vm340, %v3486, 0
      %v3549 = vsel %vm340, %v3487, 0
      %v3552 = vsel %vm340, %v3488, 0
      %v3555 = vsel %vm340, %v3489, 0
      %v3558 = vsel %vm340, %v3490, 0
      %v3561 = vsel %vm340, %v3491, 0
      %v3564 = vsel %vm340, %v3492, 0
      %v3567 = vsel %vm340, %v3493, 0
      %v3570 = vsel %vm340, %v3494, 0
      %v3573 = vsel %vm340, %v3495, 0
      %v3576 = vsel %vm340, %v3496, 0
      %v3579 = vsel %vm340, %v3497, 0
      %v3582 = vsel %vm340, %v3498, 0
      %v3585 = vsel %vm340, %v3499, 0
      %v3588 = vsel %vm340, %v3500, 0
      %v3591 = vsel %vm340, %v3501, 0
      %v3594 = vsel %vm340, %v3502, 0
      %v3597 = vsel %vm340, %v3503, 0
      %v3600 = vsel %vm340, %v3504, 0
      %v3603 = vsel %vm340, %v3505, 0
      %v3606 = vsel %vm340, %v3506, 0
      %3608 = vmatprep.subr.mxu0 0.0
      %3609 = vmatpush1.msra.mxu0 %v3508
      %3610 = vmatprep.subr.mxu0 0.0
      %3611 = vmatpush1.msra.mxu0 %v3509
      %3612 = vmatprep.subr.mxu0 0.0
      %3613 = vmatpush1.msra.mxu0 %v3510
      %3614 = vmatprep.subr.mxu0 0.0
      %3615 = vmatpush1.msra.mxu0 %v3511
      %3616 = vmatprep.subr.mxu0 0.0
      %3617 = vmatpush1.msra.mxu0 0.0
      %3618 = vmatprep.subr.mxu0 0.0
      %3619 = vmatpush1.msra.mxu0 0.0
      %3620 = vmatprep.subr.mxu0 0.0
      %3621 = vmatpush1.msra.mxu0 0.0
      %3622 = vmatprep.subr.mxu0 0.0
      %3623 = vmatpush1.msra.mxu0 0.0
      %3624 = vmatprep.subr.mxu0 0.0
      %3625 = vmatpush1.msra.mxu0 0.0
      %3626 = vmatprep.subr.mxu0 0.0
      %3627 = vmatpush1.msra.mxu0 0.0
      %3628 = vmatprep.subr.mxu0 0.0
      %3629 = vmatpush1.msra.mxu0 0.0
      %3630 = vmatprep.subr.mxu0 0.0
      %3631 = vmatpush1.msra.mxu0 0.0
      %3632 = vmatprep.subr.mxu0 0.0
      %3633 = vmatpush1.msra.mxu0 0.0
      %3634 = vmatprep.subr.mxu0 0.0
      %3635 = vmatpush1.msra.mxu0 0.0
      %3636 = vmatprep.subr.mxu0 0.0
      %3637 = vmatpush1.msra.mxu0 0.0
      %3638 = vmatprep.subr.mxu0 0.0
      %3639 = vmatpush1.msra.mxu0 0.0
      %3640 = vmatprep.subr.mxu0 0.0
      %3641 = vmatpush1.msra.mxu0 0.0
      %3642 = vmatprep.subr.mxu0 0.0
      %3643 = vmatpush1.msra.mxu0 0.0
      %3644 = vmatprep.subr.mxu0 0.0
      %3645 = vmatpush1.msra.mxu0 0.0
      %3646 = vmatprep.subr.mxu0 0.0
      %3647 = vmatpush1.msra.mxu0 0.0
      %3648 = vmatprep.subr.mxu0 0.0
      %3649 = vmatpush1.msra.mxu0 0.0
      %3650 = vmatprep.subr.mxu0 0.0
      %3651 = vmatpush1.msra.mxu0 0.0
      %3652 = vmatprep.subr.mxu0 0.0
      %3653 = vmatpush1.msra.mxu0 0.0
      %3654 = vmatprep.subr.mxu0 0.0
      %3655 = vmatpush1.msra.mxu0 0.0
      %3656 = vmatprep.subr.mxu0 0.0
      %3657 = vmatpush1.msra.mxu0 0.0
      %3658 = vmatprep.subr.mxu0 0.0
      %3659 = vmatpush1.msra.mxu0 0.0
      %3660 = vmatprep.subr.mxu0 0.0
      %3661 = vmatpush1.msra.mxu0 0.0
      %3662 = vmatprep.subr.mxu0 0.0
      %3663 = vmatpush1.msra.mxu0 0.0
      %3664 = vmatprep.subr.mxu0 0.0
      %3665 = vmatpush1.msra.mxu0 0.0
      %3666 = vmatprep.subr.mxu0 0.0
      %3667 = vmatpush1.msra.mxu0 0.0
      %3668 = vmatprep.subr.mxu0 0.0
      %3669 = vmatpush1.msra.mxu0 0.0
      %3670 = vmatprep.subr.mxu0 0.0
      %3671 = vmatpush1.msra.mxu0 0.0
      %3672 = vmatprep.mubr.f32.mxu0 0.0
      %3673 = vmatmul.mubr.f32.gmra.mrb[0].mxu0 %v3513
      %v3674 = vpop.f32.mrb[0].mxu0
      %v3675 = vadd.f32 0.0, %v3674
      %v3676 = vpop.f32.mrb[0].mxu0
      %3677 = vmatprep.mubr.f32.mxu0 0.0
      %3678 = vmatmul.mubr.f32.gmra.mrb[0].mxu0 %v3516
      %v3679 = vpop.f32.mrb[0].mxu0
      %v3680 = vadd.f32 0.0, %v3679
      %v3681 = vpop.f32.mrb[0].mxu0
      %3682 = vmatprep.mubr.f32.mxu0 0.0
      %3683 = vmatmul.mubr.f32.gmra.mrb[0].mxu0 %v3519
      %v3684 = vpop.f32.mrb[0].mxu0
      %v3685 = vadd.f32 0.0, %v3684
      %v3686 = vpop.f32.mrb[0].mxu0
      %3687 = vmatprep.mubr.f32.mxu0 0.0
      %3688 = vmatmul.mubr.f32.gmra.mrb[0].mxu0 %v3522
      %v3689 = vpop.f32.mrb[0].mxu0
      %v3690 = vadd.f32 0.0, %v3689
      %v3691 = vpop.f32.mrb[0].mxu0
      %3692 = vmatprep.mubr.f32.mxu0 0.0
      %3693 = vmatmul.mubr.f32.gmra.mrb[0].mxu0 %v3525
      %v3694 = vpop.f32.mrb[0].mxu0
      %v3695 = vadd.f32 0.0, %v3694
      %v3696 = vpop.f32.mrb[0].mxu0
      %3697 = vmatprep.mubr.f32.mxu0 0.0
      %3698 = vmatmul.mubr.f32.gmra.mrb[0].mxu0 %v3528
      %v3699 = vpop.f32.mrb[0].mxu0
      %v3700 = vadd.f32 0.0, %v3699
      %v3701 = vpop.f32.mrb[0].mxu0
      %3702 = vmatprep.mubr.f32.mxu0 0.0
      %3703 = vmatmul.mubr.f32.gmra.mrb[0].mxu0 %v3531
      %v3704 = vpop.f32.mrb[0].mxu0
      %v3705 = vadd.f32 0.0, %v3704
      %v3706 = vpop.f32.mrb[0].mxu0
      %3707 = vmatprep.mubr.f32.mxu0 0.0
      %3708 = vmatmul.mubr.f32.gmra.mrb[0].mxu0 %v3534
      %v3709 = vpop.f32.mrb[0].mxu0
      %v3710 = vadd.f32 0.0, %v3709
      %v3711 = vpop.f32.mrb[0].mxu0
      %3712 = vmatprep.mubr.f32.mxu0 0.0
      %3713 = vmatmul.mubr.f32.gmra.mrb[0].mxu0 %v3537
      %v3714 = vpop.f32.mrb[0].mxu0
      %v3715 = vadd.f32 0.0, %v3714
      %v3716 = vpop.f32.mrb[0].mxu0
      %3717 = vmatprep.mubr.f32.mxu0 0.0
      %3718 = vmatmul.mubr.f32.gmra.mrb[0].mxu0 %v3540
      %v3719 = vpop.f32.mrb[0].mxu0
      %v3720 = vadd.f32 0.0, %v3719
      %v3721 = vpop.f32.mrb[0].mxu0
      %3722 = vmatprep.mubr.f32.mxu0 0.0
      %3723 = vmatmul.mubr.f32.gmra.mrb[0].mxu0 %v3543
      %v3724 = vpop.f32.mrb[0].mxu0
      %v3725 = vadd.f32 0.0, %v3724
      %v3726 = vpop.f32.mrb[0].mxu0
      %3727 = vmatprep.mubr.f32.mxu0 0.0
      %3728 = vmatmul.mubr.f32.gmra.mrb[0].mxu0 %v3546
      %v3729 = vpop.f32.mrb[0].mxu0
      %v3730 = vadd.f32 0.0, %v3729
      %v3731 = vpop.f32.mrb[0].mxu0
      %3732 = vmatprep.mubr.f32.mxu0 0.0
      %3733 = vmatmul.mubr.f32.gmra.mrb[0].mxu0 %v3549
      %v3734 = vpop.f32.mrb[0].mxu0
      %v3735 = vadd.f32 0.0, %v3734
      %v3736 = vpop.f32.mrb[0].mxu0
      %3737 = vmatprep.mubr.f32.mxu0 0.0
      %3738 = vmatmul.mubr.f32.gmra.mrb[0].mxu0 %v3552
      %v3739 = vpop.f32.mrb[0].mxu0
      %v3740 = vadd.f32 0.0, %v3739
      %v3741 = vpop.f32.mrb[0].mxu0
      %3742 = vmatprep.mubr.f32.mxu0 0.0
      %3743 = vmatmul.mubr.f32.gmra.mrb[0].mxu0 %v3555
      %v3744 = vpop.f32.mrb[0].mxu0
      %v3745 = vadd.f32 0.0, %v3744
      %v3746 = vpop.f32.mrb[0].mxu0
      %3747 = vmatprep.mubr.f32.mxu0 0.0
      %3748 = vmatmul.mubr.f32.gmra.mrb[0].mxu0 %v3558
      %v3749 = vpop.f32.mrb[0].mxu0
      %v3750 = vadd.f32 0.0, %v3749
      %v3751 = vpop.f32.mrb[0].mxu0
      %3752 = vmatprep.mubr.f32.mxu0 0.0
      %3753 = vmatmul.mubr.f32.gmra.mrb[0].mxu0 %v3561
      %v3754 = vpop.f32.mrb[0].mxu0
      %v3755 = vadd.f32 0.0, %v3754
      %v3756 = vpop.f32.mrb[0].mxu0
      %3757 = vmatprep.mubr.f32.mxu0 0.0
      %3758 = vmatmul.mubr.f32.gmra.mrb[0].mxu0 %v3564
      %v3759 = vpop.f32.mrb[0].mxu0
      %v3760 = vadd.f32 0.0, %v3759
      %v3761 = vpop.f32.mrb[0].mxu0
      %3762 = vmatprep.mubr.f32.mxu0 0.0
      %3763 = vmatmul.mubr.f32.gmra.mrb[0].mxu0 %v3567
      %v3764 = vpop.f32.mrb[0].mxu0
      %v3765 = vadd.f32 0.0, %v3764
      %v3766 = vpop.f32.mrb[0].mxu0
      %3767 = vmatprep.mubr.f32.mxu0 0.0
      %3768 = vmatmul.mubr.f32.gmra.mrb[0].mxu0 %v3570
      %v3769 = vpop.f32.mrb[0].mxu0
      %v3770 = vadd.f32 0.0, %v3769
      %v3771 = vpop.f32.mrb[0].mxu0
      %3772 = vmatprep.mubr.f32.mxu0 0.0
      %3773 = vmatmul.mubr.f32.gmra.mrb[0].mxu0 %v3573
      %v3774 = vpop.f32.mrb[0].mxu0
      %v3775 = vadd.f32 0.0, %v3774
      %v3776 = vpop.f32.mrb[0].mxu0
      %3777 = vmatprep.mubr.f32.mxu0 0.0
      %3778 = vmatmul.mubr.f32.gmra.mrb[0].mxu0 %v3576
      %v3779 = vpop.f32.mrb[0].mxu0
      %v3780 = vadd.f32 0.0, %v3779
      %v3781 = vpop.f32.mrb[0].mxu0
      %3782 = vmatprep.mubr.f32.mxu0 0.0
      %3783 = vmatmul.mubr.f32.gmra.mrb[0].mxu0 %v3579
      %v3784 = vpop.f32.mrb[0].mxu0
      %v3785 = vadd.f32 0.0, %v3784
      %v3786 = vpop.f32.mrb[0].mxu0
      %3787 = vmatprep.mubr.f32.mxu0 0.0
      %3788 = vmatmul.mubr.f32.gmra.mrb[0].mxu0 %v3582
      %v3789 = vpop.f32.mrb[0].mxu0
      %v3790 = vadd.f32 0.0, %v3789
      %v3791 = vpop.f32.mrb[0].mxu0
      %3792 = vmatprep.mubr.f32.mxu0 0.0
      %3793 = vmatmul.mubr.f32.gmra.mrb[0].mxu0 %v3585
      %v3794 = vpop.f32.mrb[0].mxu0
      %v3795 = vadd.f32 0.0, %v3794
      %v3796 = vpop.f32.mrb[0].mxu0
      %3797 = vmatprep.mubr.f32.mxu0 0.0
      %3798 = vmatmul.mubr.f32.gmra.mrb[0].mxu0 %v3588
      %v3799 = vpop.f32.mrb[0].mxu0
      %v3800 = vadd.f32 0.0, %v3799
      %v3801 = vpop.f32.mrb[0].mxu0
      %3802 = vmatprep.mubr.f32.mxu0 0.0
      %3803 = vmatmul.mubr.f32.gmra.mrb[0].mxu0 %v3591
      %v3804 = vpop.f32.mrb[0].mxu0
      %v3805 = vadd.f32 0.0, %v3804
      %v3806 = vpop.f32.mrb[0].mxu0
      %3807 = vmatprep.mubr.f32.mxu0 0.0
      %3808 = vmatmul.mubr.f32.gmra.mrb[0].mxu0 %v3594
      %v3809 = vpop.f32.mrb[0].mxu0
      %v3810 = vadd.f32 0.0, %v3809
      %v3811 = vpop.f32.mrb[0].mxu0
      %3812 = vmatprep.mubr.f32.mxu0 0.0
      %3813 = vmatmul.mubr.f32.gmra.mrb[0].mxu0 %v3597
      %v3814 = vpop.f32.mrb[0].mxu0
      %v3815 = vadd.f32 0.0, %v3814
      %v3816 = vpop.f32.mrb[0].mxu0
      %3817 = vmatprep.mubr.f32.mxu0 0.0
      %3818 = vmatmul.mubr.f32.gmra.mrb[0].mxu0 %v3600
      %v3819 = vpop.f32.mrb[0].mxu0
      %v3820 = vadd.f32 0.0, %v3819
      %v3821 = vpop.f32.mrb[0].mxu0
      %3822 = vmatprep.mubr.f32.mxu0 0.0
      %3823 = vmatmul.mubr.f32.gmra.mrb[0].mxu0 %v3603
      %v3824 = vpop.f32.mrb[0].mxu0
      %v3825 = vadd.f32 0.0, %v3824
      %v3826 = vpop.f32.mrb[0].mxu0
      %3827 = vmatprep.mubr.f32.mxu0 0.0
      %3828 = vmatmul.mubr.f32.gmra.mrb[0].mxu0 %v3606
      %v3829 = vpop.f32.mrb[0].mxu0
      %v3830 = vadd.f32 0.0, %v3829
      %v3831 = vpop.f32.mrb[0].mxu0
      %3832 = vdwg.mxu0
      %v3833 = vadd.f32 %v3443, %v3675
      %v3834 = vadd.f32 %v3444, %v3680
      %v3835 = vadd.f32 %v3445, %v3685
      %v3836 = vadd.f32 %v3446, %v3690
      %v3837 = vadd.f32 %v3447, %v3695
      %v3838 = vadd.f32 %v3448, %v3700
      %v3839 = vadd.f32 %v3449, %v3705
      %v3840 = vadd.f32 %v3450, %v3710
      %v3841 = vadd.f32 %v3451, %v3715
      %v3842 = vadd.f32 %v3452, %v3720
      %v3843 = vadd.f32 %v3453, %v3725
      %v3844 = vadd.f32 %v3454, %v3730
      %v3845 = vadd.f32 %v3455, %v3735
      %v3846 = vadd.f32 %v3456, %v3740
      %v3847 = vadd.f32 %v3457, %v3745
      %v3848 = vadd.f32 %v3458, %v3750
      %v3849 = vadd.f32 %v3459, %v3755
      %v3850 = vadd.f32 %v3460, %v3760
      %v3851 = vadd.f32 %v3461, %v3765
      %v3852 = vadd.f32 %v3462, %v3770
      %v3853 = vadd.f32 %v3463, %v3775
      %v3854 = vadd.f32 %v3464, %v3780
      %v3855 = vadd.f32 %v3465, %v3785
      %v3856 = vadd.f32 %v3466, %v3790
      %v3857 = vadd.f32 %v3467, %v3795
      %v3858 = vadd.f32 %v3468, %v3800
      %v3859 = vadd.f32 %v3469, %v3805
      %v3860 = vadd.f32 %v3470, %v3810
      %v3861 = vadd.f32 %v3471, %v3815
      %v3862 = vadd.f32 %v3472, %v3820
      %v3863 = vadd.f32 %v3473, %v3825
      %v3864 = vadd.f32 %v3474, %v3830
      %3865 = vst.msk [vmem:[%s197] sm:$0xff] %vm340, %v3833
      %3866 = vst.msk [vmem:[%s197 + $0x8] sm:$0xff] %vm340, %v3834
      %3867 = vst.msk [vmem:[%s197 + $0x10] sm:$0xff] %vm340, %v3835
      %3868 = vst.msk [vmem:[%s197 + $0x18] sm:$0xff] %vm340, %v3836
      %3869 = vst.msk [vmem:[%s197 + $0x20] sm:$0xff] %vm340, %v3837
      %3870 = vst.msk [vmem:[%s197 + $0x28] sm:$0xff] %vm340, %v3838
      %3871 = vst.msk [vmem:[%s197 + $0x30] sm:$0xff] %vm340, %v3839
      %3872 = vst.msk [vmem:[%s197 + $0x38] sm:$0xff] %vm340, %v3840
      %3873 = vst.msk [vmem:[%s197 + $0x40] sm:$0xff] %vm340, %v3841
      %3874 = vst.msk [vmem:[%s197 + $0x48] sm:$0xff] %vm340, %v3842
      %3875 = vst.msk [vmem:[%s197 + $0x50] sm:$0xff] %vm340, %v3843
      %3876 = vst.msk [vmem:[%s197 + $0x58] sm:$0xff] %vm340, %v3844
      %3877 = vst.msk [vmem:[%s197 + $0x60] sm:$0xff] %vm340, %v3845
      %3878 = vst.msk [vmem:[%s197 + $0x68] sm:$0xff] %vm340, %v3846
      %3879 = vst.msk [vmem:[%s197 + $0x70] sm:$0xff] %vm340, %v3847
      %3880 = vst.msk [vmem:[%s197 + $0x78] sm:$0xff] %vm340, %v3848
      %3881 = vst.msk [vmem:[%s197 + $0x80] sm:$0xff] %vm340, %v3849
      %3882 = vst.msk [vmem:[%s197 + $0x88] sm:$0xff] %vm340, %v3850
      %3883 = vst.msk [vmem:[%s197 + $0x90] sm:$0xff] %vm340, %v3851
      %3884 = vst.msk [vmem:[%s197 + $0x98] sm:$0xff] %vm340, %v3852
      %3885 = vst.msk [vmem:[%s197 + $0xa0] sm:$0xff] %vm340, %v3853
      %3886 = vst.msk [vmem:[%s197 + $0xa8] sm:$0xff] %vm340, %v3854
      %3887 = vst.msk [vmem:[%s197 + $0xb0] sm:$0xff] %vm340, %v3855
      %3888 = vst.msk [vmem:[%s197 + $0xb8] sm:$0xff] %vm340, %v3856
      %3889 = vst.msk [vmem:[%s197 + $0xc0] sm:$0xff] %vm340, %v3857
      %3890 = vst.msk [vmem:[%s197 + $0xc8] sm:$0xff] %vm340, %v3858
      %3891 = vst.msk [vmem:[%s197 + $0xd0] sm:$0xff] %vm340, %v3859
      %3892 = vst.msk [vmem:[%s197 + $0xd8] sm:$0xff] %vm340, %v3860
      %3893 = vst.msk [vmem:[%s197 + $0xe0] sm:$0xff] %vm340, %v3861
      %3894 = vst.msk [vmem:[%s197 + $0xe8] sm:$0xff] %vm340, %v3862
      %3895 = vst.msk [vmem:[%s197 + $0xf0] sm:$0xff] %vm340, %v3863
      %3896 = vst.msk [vmem:[%s197 + $0xf8] sm:$0xff] %vm340, %v3864
      %p3897 = scmp.lt.s32.totalorder %s15, 1
      %s3898 = scalar_select %p3897, %s15, 1
      %s3899 = smul.addr %s3898, 32
      %s3900 = smul.addr %s3899, 8
      %s3901 = scalar_lea.vmem %s4, %s3900
      // Predicated region
      $region37: #{pappm_forward.4} parent=35 // pred_check
        %p3902 = pneg %p122
      $region38: #{pappm_forward.4} parent=35 // pred_check_branch
        %3904 = sbr.rel (%p3902) target = $region40
      $region39: #{pappm_forward.4} parent=35 // pred_region
        _
      $region40: #{pappm_forward.4} parent=35 // pred_fallthru
        _
    $region36: #{pappm_forward.4} parent=5 // pred_fallthru
      _
    %p3905 = scmp.le.s32.totalorder 2, %s10
    // Predicated region
    $region41: #{pappm_forward.4} parent=5 // pred_check
      %p3906 = pneg %p3905
    $region42: #{pappm_forward.4} parent=5 // pred_check_branch
      %3908 = sbr.rel (%p3906) target = $region44
    $region43: #{pappm_forward.4} parent=5 // pred_region
      %s3909 = ssub.s32 %s10, 2
      // Predicated region
      $region45: #{pappm_forward.4} parent=43 // pred_check
        %p3910 = pneg %p128
      $region46: #{pappm_forward.4} parent=43 // pred_check_branch
        %3912 = sbr.rel (%p3910) target = $region48
      $region47: #{pappm_forward.4} parent=43 // pred_region
        %p3913 = scmp.lt.s32.totalorder %s16, 1
        %s3914 = scalar_select %p3913, %s16, 1
        %s3915 = smul.addr %s3914, 32
        %s3916 = smul.addr %s3915, 8
        %s3917 = scalar_lea.vmem %s4, %s3916
      $region48: #{pappm_forward.4} parent=43 // pred_fallthru
        _
    $region44: #{pappm_forward.4} parent=5 // pred_fallthru
      _
  $region6: #{pappm_forward.4} parent=0 // loop_footer
    %s14 = sadd.s32 1, %s10
  $region7: #{pappm_forward.4} parent=0 // loop_footer_branch
    %9 = sbr.rel target = $region3
  $region8: #{pappm_forward.4} parent=0 // loop_exit
    _

</llo_original>
